<compile_context>
chip_gen: v6e
topology: v6e:2x2x1
jax: 0.10.0
libtpu: 0.0.40
codegen_flags: <defaults>
</compile_context>

<pallas_src>
import functools

import jax
import jax.numpy as jnp
from jax.experimental import pallas as pl
from jax.experimental.pallas import tpu as pltpu


STATE_SIZE = 3 * 84 * 84      # PyTorch code hard-codes view(-1, 3, 84, 84)
ACTION_SIZE = 4


def _round_up(x, m):
    return (x + m - 1) // m * m


def _tile_m(M, tile_m_max):
    """Pick an M tile (multiple of 16) and padded M.

    If M >= tile: no padding (ragged last block handled by Pallas masking).
    If M <  tile: pad M up to a single (small) tile.
    """
    tm = min(tile_m_max, _round_up(M, 16))
    Mp = M if M >= tm else tm
    return tm, Mp


def _pad_rows(x, m_to):
    M = x.shape[0]
    if M == m_to:
        return x
    return jnp.pad(x, ((0, m_to - M),) + ((0, 0),) * (x.ndim - 1))


# ----------------------------- Pallas kernels ------------------------------ #
def _mm_bias_kernel(x_ref, w_ref, b_ref, o_ref, *, apply_relu):
    # y = x @ w + b (f32 accumulate on MXU), optional ReLU.
    y = jnp.dot(x_ref[...], w_ref[...], preferred_element_type=jnp.float32)
    y = y + b_ref[...]
    if apply_relu:
        y = jnp.maximum(y, 0.0)
    o_ref[...] = y.astype(o_ref.dtype)


def _head_kernel(x_ref, a_ref, w4_ref, b4_ref, w1s_ref, w1a_ref, b1_ref,
                 w2_ref, b2_ref, o_ref):
    # conv4 (as matmul) + ReLU
    h4 = jnp.dot(x_ref[...], w4_ref[...], preferred_element_type=jnp.float32)
    h4 = jnp.maximum(h4 + b4_ref[...], 0.0).astype(jnp.bfloat16)
    # fc1 over [conv_feat, action] done as two matmuls (avoids in-kernel concat)
    h1 = (jnp.dot(h4, w1s_ref[...], preferred_element_type=jnp.float32)
          + jnp.dot(a_ref[...], w1a_ref[...], preferred_element_type=jnp.float32)
          + b1_ref[...])
    h1 = jnp.maximum(h1, 0.0).astype(jnp.bfloat16)
    # fc2 (N padded to 128 at prep time; only column 0 is real)
    r = jnp.dot(h1, w2_ref[...], preferred_element_type=jnp.float32) + b2_ref[...]
    o_ref[...] = r.astype(o_ref.dtype)


# ------------------------------ Matmul wrapper ----------------------------- #
def pallas_matmul_bias(x, w, b2d, *, relu, out_dtype, tile_m=512):
    """(relu)(x @ w + b): x (M,K) bf16, w (K,N) bf16, b2d (1,N) f32 -> (M,N)."""
    M, K = x.shape
    K2, N = w.shape
    assert K == K2 and b2d.shape == (1, N)
    tm, Mp = _tile_m(M, tile_m)
    xp = _pad_rows(x, Mp)
    grid = (pl.cdiv(Mp, tm),)

    out_isz = jnp.dtype(out_dtype).itemsize
    cost = pl.CostEstimate(
        flops=2 * Mp * K * N,
        transcendentals=0,
        bytes_accessed=(xp.size * xp.dtype.itemsize + w.size * 2
                        + b2d.size * 4 + Mp * N * out_isz))

    out = pl.pallas_call(
        functools.partial(_mm_bias_kernel, apply_relu=relu),
        out_shape=jax.ShapeDtypeStruct((Mp, N), out_dtype),
        grid=grid,
        in_specs=[
            pl.BlockSpec((tm, K), lambda i: (i, 0)),
            pl.BlockSpec((K, N), lambda i: (0, 0)),
            pl.BlockSpec((1, N), lambda i: (0, 0)),
        ],
        out_specs=pl.BlockSpec((tm, N), lambda i: (i, 0)),
        compiler_params=pltpu.CompilerParams(dimension_semantics=("parallel",)),
        cost_estimate=cost,
    )(xp, w, b2d)
    return out[:M] if Mp != M else out


# ------------------------- Conv2d via NHWC im2col + MXU -------------------- #
def conv2d_relu(x, w_mat, b2d, *, kh, kw, stride, tile_m=512):
    """x: (B,H,W,Cin) bf16 NHWC; w_mat: (kh*kw*Cin, Cout) bf16; b2d: (1,Cout).
    Valid (no-pad) convolution + ReLU. Output stays bf16 NHWC."""
    B, H, W, Cin = x.shape
    Hout = (H - kh) // stride + 1
    Wout = (W - kw) // stride + 1

    # im2col: strided slices along H/W, concat on the channel (lane) axis.
    cols = []
    for ih in range(kh):
        for iw in range(kw):
            cols.append(x[:, ih: ih + (Hout - 1) * stride + 1: stride,
                             iw: iw + (Wout - 1) * stride + 1: stride, :])
    cols = jnp.concatenate(cols, axis=-1)                    # (B,Hout,Wout,kh*kw*Cin)
    cols = cols.reshape(B * Hout * Wout, kh * kw * Cin)      # K ordered (kh,kw,Cin)

    y = pallas_matmul_bias(cols, w_mat, b2d, relu=True,
                           out_dtype=jnp.bfloat16, tile_m=tile_m)
    return y.reshape(B, Hout, Wout, -1)                      # NHWC, true Cout


# -------------------- Fused conv4 + concat(action) + fc head --------------- #
def pallas_head(x4, act, prep, *, tile_m=128):
    """x4: (B, 3136) bf16 (conv3 output flattened h,w,c); act: (B, A) bf16."""
    M, K4 = x4.shape
    A = act.shape[1]
    tm, Mp = _tile_m(M, tile_m)
    x4p = _pad_rows(x4, Mp)
    actp = _pad_rows(act, Mp)
    grid = (pl.cdiv(Mp, tm),)

    w4, b4 = prep["c4_w"], prep["c4_b"]
    w1s, w1a, b1 = prep["fc1_ws"], prep["fc1_wa"], prep["fc1_b"]
    w2, b2 = prep["fc2_w"], prep["fc2_b"]

    flops = 2 * Mp * (K4 * 512 + 512 * 512 + A * 512 + 512 * 128)
    bytes_acc = (x4p.size * 2 + actp.size * 2
                 + (w4.size + w1s.size + w1a.size + w2.size) * 2
                 + (b4.size + b1.size + b2.size) * 4 + Mp * 128 * 4)

    out = pl.pallas_call(
        _head_kernel,
        out_shape=jax.ShapeDtypeStruct((Mp, 128), jnp.float32),
        grid=grid,
        in_specs=[
            pl.BlockSpec((tm, K4), lambda i: (i, 0)),     # x4 tile
            pl.BlockSpec((tm, A), lambda i: (i, 0)),      # action tile
            pl.BlockSpec((K4, 512), lambda i: (0, 0)),    # conv4 weight (resident)
            pl.BlockSpec((1, 512), lambda i: (0, 0)),
            pl.BlockSpec((512, 512), lambda i: (0, 0)),   # fc1 (state part)
            pl.BlockSpec((A, 512), lambda i: (0, 0)),     # fc1 (action part)
            pl.BlockSpec((1, 512), lambda i: (0, 0)),
            pl.BlockSpec((512, 128), lambda i: (0, 0)),   # fc2 (N padded to 128)
            pl.BlockSpec((1, 128), lambda i: (0, 0)),
        ],
        out_specs=pl.BlockSpec((tm, 128), lambda i: (i, 0)),
        compiler_params=pltpu.CompilerParams(dimension_semantics=("parallel",)),
        cost_estimate=pl.CostEstimate(flops=flops, transcendentals=0,
                                      bytes_accessed=bytes_acc),
    )(x4p, actp, w4, b4, w1s, w1a, b1, w2, b2)
    return out[:M, :1]


# ------------------------------ Reward model ------------------------------- #
def init_params(key, action_size):
    """Demo params in PyTorch layout (conv: (Cout,Cin,kh,kw); linear: (out,in)).
    Note: simple normal/sqrt(fan_in) init, not PyTorch's Kaiming-uniform —
    irrelevant when loading a real checkpoint."""
    ks = jax.random.split(key, 6)

    def w(k, shape, fan_in):
        return jax.random.normal(k, shape, jnp.float32) / jnp.sqrt(fan_in)

    return {
        "c1_w": w(ks[0], (32, 3, 8, 8), 3 * 8 * 8),   "c1_b": jnp.zeros((32,), jnp.float32),
        "c2_w": w(ks[1], (64, 32, 4, 4), 32 * 4 * 4), "c2_b": jnp.zeros((64,), jnp.float32),
        "c3_w": w(ks[2], (64, 64, 3, 3), 64 * 3 * 3), "c3_b": jnp.zeros((64,), jnp.float32),
        "c4_w": w(ks[3], (512, 64, 7, 7), 64 * 7 * 7), "c4_b": jnp.zeros((512,), jnp.float32),
        "fc1_w": w(ks[4], (512, 512 + action_size), 512 + action_size),
        "fc1_b": jnp.zeros((512,), jnp.float32),
        "fc2_w": w(ks[5], (1, 512), 512),
        "fc2_b": jnp.zeros((1,), jnp.float32),
    }


def prepare_params(params, action_size):
    """One-time conversion: PyTorch layout -> kernel-ready bf16 layout.
    (transpose to (kh,kw,Cin,Cout) / (in,out), pad fc2 N to 128, reshape biases)."""
    def conv_w(w):
        cout, cin, kh, kw = w.shape
        return (jnp.transpose(w, (2, 3, 1, 0))
                   .reshape(kh * kw * cin, cout).astype(jnp.bfloat16))

    def bias(b):
        return b.reshape(1, -1).astype(jnp.float32)

    fc1_wT = params["fc1_w"].T                      # (512+A, 512)
    fc2_col = params["fc2_w"].T                     # (512, 1)
    fc2_pad = jnp.zeros((512, 128), jnp.float32).at[:, :1].set(fc2_col)
    fc2_b_pad = jnp.zeros((1, 128), jnp.float32).at[0, 0].set(params["fc2_b"][0])

    return {
        "c1_w": conv_w(params["c1_w"]), "c1_b": bias(params["c1_b"]),
        "c2_w": conv_w(params["c2_w"]), "c2_b": bias(params["c2_b"]),
        "c3_w": conv_w(params["c3_w"]), "c3_b": bias(params["c3_b"]),
        "c4_w": conv_w(params["c4_w"]), "c4_b": bias(params["c4_b"]),
        "fc1_ws": fc1_wT[:512].astype(jnp.bfloat16),
        "fc1_wa": fc1_wT[512:].astype(jnp.bfloat16),
        "fc1_b": bias(params["fc1_b"]),
        "fc2_w": fc2_pad.astype(jnp.bfloat16),
        "fc2_b": fc2_b_pad,
    }


@functools.partial(jax.jit, static_argnums=(2,))
def cnn_reward_forward(prep, sa_pair, action_size):
    """'batch' mode forward: sa_pair (B, state_size + action_size) -> (B, 1)."""
    state = sa_pair[:, :STATE_SIZE]
    action = sa_pair[:, -action_size:].astype(jnp.bfloat16)
    x = state.reshape(-1, 3, 84, 84)
    x = jnp.transpose(x, (0, 2, 3, 1)).astype(jnp.bfloat16)            # NHWC bf16
    x = conv2d_relu(x, prep["c1_w"], prep["c1_b"], kh=8, kw=8, stride=4)  # (B,20,20,32)
    x = conv2d_relu(x, prep["c2_w"], prep["c2_b"], kh=4, kw=4, stride=2)  # (B,9,9,64)
    x = conv2d_relu(x, prep["c3_w"], prep["c3_b"], kh=3, kw=3, stride=1)  # (B,7,7,64)
    x4 = x.reshape(-1, 7 * 7 * 64)                                        # (B,3136)
    r_hat = pallas_head(x4, action, prep)                                 # (B,1) f32
    # TODO(synk): RunningStat-based normalisation (normalise=True) is stateful
    # host-side running mean/var; not translated (default is False).
    return r_hat


if __name__ == "__main__":
    key = jax.random.PRNGKey(0)
    k_in, k_par = jax.random.split(key)
    B = 2
    sa_pair = jax.random.normal(k_in, (B, STATE_SIZE + ACTION_SIZE), jnp.float32)
    params = init_params(k_par, ACTION_SIZE)
    prep = prepare_params(params, ACTION_SIZE)

    r_hat = cnn_reward_forward(prep, sa_pair, ACTION_SIZE)
    r_hat = jax.block_until_ready(r_hat)
    assert r_hat.shape == (B, 1) and r_hat.dtype == jnp.float32
    print("KERNEL_OK")
</pallas_src>

<mosaic_0001>
module attributes {stable_mosaic.version = 11 : i64} {
  func.func @_mm_bias_kernel(%arg0: i32, %arg1: memref<512x192xbf16, #tpu.memory_space<vmem>>, %arg2: memref<192x32xbf16, #tpu.memory_space<vmem>>, %arg3: memref<1x32xf32, #tpu.memory_space<vmem>>, %arg4: memref<512x32xbf16, #tpu.memory_space<vmem>>) attributes {dimension_semantics = [#tpu.dimension_semantics<parallel>], iteration_bounds = array<i64: 2>, scalar_prefetch = 0 : i64, scratch_operands = 0 : i64, tpu.core_type = #tpu.core_type<tc>, window_params = [{transform_indices = @transform_0, window_bounds = array<i64: 512, 192>}, {pipeline_mode = #tpu.pipeline_mode<synchronous>, transform_indices = @transform_1, window_bounds = array<i64: 192, 32>}, {pipeline_mode = #tpu.pipeline_mode<synchronous>, transform_indices = @transform_2, window_bounds = array<i64: 1, 32>}, {transform_indices = @transform_3, window_bounds = array<i64: 512, 32>}]} {
    %c0 = arith.constant 0 : index
    %c0_0 = arith.constant 0 : index
    %0 = vector.load %arg1[%c0, %c0_0] : memref<512x192xbf16, #tpu.memory_space<vmem>>, vector<512x192xbf16>
    %c0_1 = arith.constant 0 : index
    %c0_2 = arith.constant 0 : index
    %1 = vector.load %arg2[%c0_1, %c0_2] : memref<192x32xbf16, #tpu.memory_space<vmem>>, vector<192x32xbf16>
    %cst = arith.constant dense<0.000000e+00> : vector<512x32xf32>
    %2 = tpu.matmul %0, %1, %cst {dimension_numbers = #tpu.dot_dimension_numbers<[1], [0], [0], [1], [0, 0, 1, 1], [], []>} : vector<512x192xbf16>, vector<192x32xbf16>, vector<512x32xf32> -> vector<512x32xf32>
    %c0_3 = arith.constant 0 : index
    %c0_4 = arith.constant 0 : index
    %3 = vector.load %arg3[%c0_3, %c0_4] : memref<1x32xf32, #tpu.memory_space<vmem>>, vector<1x32xf32>
    %4 = vector.broadcast %3 : vector<1x32xf32> to vector<512x32xf32>
    %5 = arith.addf %2, %4 : vector<512x32xf32>
    %cst_5 = arith.constant 0.000000e+00 : f32
    %6 = vector.broadcast %cst_5 : f32 to vector<512x32xf32>
    %7 = arith.maximumf %5, %6 : vector<512x32xf32>
    %8 = arith.truncf %7 : vector<512x32xf32> to vector<512x32xbf16>
    %c0_6 = arith.constant 0 : index
    %c0_7 = arith.constant 0 : index
    %9 = vector.load %arg4[%c0_6, %c0_7] : memref<512x32xbf16, #tpu.memory_space<vmem>>, vector<512x32xbf16>
    tpu.vector_store %arg4[%c0_6, %c0_7], %8 {strides = array<i32>} : memref<512x32xbf16, #tpu.memory_space<vmem>>, vector<512x32xbf16>,
    return
  }
  func.func @transform_0(%arg0: i32) -> (i32, i32) {
    %c0_i32 = arith.constant 0 : i32
    %c0_i32_0 = arith.constant 0 : i32
    return %arg0, %c0_i32 : i32, i32
  }
  func.func @transform_1(%arg0: i32) -> (i32, i32) {
    %c0_i32 = arith.constant 0 : i32
    %c0_i32_0 = arith.constant 0 : i32
    %c0_i32_1 = arith.constant 0 : i32
    return %c0_i32, %c0_i32_0 : i32, i32
  }
  func.func @transform_2(%arg0: i32) -> (i32, i32) {
    %c0_i32 = arith.constant 0 : i32
    %c0_i32_0 = arith.constant 0 : i32
    %c0_i32_1 = arith.constant 0 : i32
    return %c0_i32, %c0_i32_0 : i32, i32
  }
  func.func @transform_3(%arg0: i32) -> (i32, i32) {
    %c0_i32 = arith.constant 0 : i32
    %c0_i32_0 = arith.constant 0 : i32
    return %arg0, %c0_i32 : i32, i32
  }
}

module attributes {stable_mosaic.version = 11 : i64} {
  func.func @_mm_bias_kernel(%arg0: i32, %arg1: memref<176x512xbf16, #tpu.memory_space<vmem>>, %arg2: memref<512x64xbf16, #tpu.memory_space<vmem>>, %arg3: memref<1x64xf32, #tpu.memory_space<vmem>>, %arg4: memref<176x64xbf16, #tpu.memory_space<vmem>>) attributes {dimension_semantics = [#tpu.dimension_semantics<parallel>], iteration_bounds = array<i64: 1>, scalar_prefetch = 0 : i64, scratch_operands = 0 : i64, tpu.core_type = #tpu.core_type<tc>, window_params = [{transform_indices = @transform_0, window_bounds = array<i64: 176, 512>}, {pipeline_mode = #tpu.pipeline_mode<synchronous>, transform_indices = @transform_1, window_bounds = array<i64: 512, 64>}, {pipeline_mode = #tpu.pipeline_mode<synchronous>, transform_indices = @transform_2, window_bounds = array<i64: 1, 64>}, {transform_indices = @transform_3, window_bounds = array<i64: 176, 64>}]} {
    %c0 = arith.constant 0 : index
    %c0_0 = arith.constant 0 : index
    %0 = vector.load %arg1[%c0, %c0_0] : memref<176x512xbf16, #tpu.memory_space<vmem>>, vector<176x512xbf16>
    %c0_1 = arith.constant 0 : index
    %c0_2 = arith.constant 0 : index
    %1 = vector.load %arg2[%c0_1, %c0_2] : memref<512x64xbf16, #tpu.memory_space<vmem>>, vector<512x64xbf16>
    %cst = arith.constant dense<0.000000e+00> : vector<176x64xf32>
    %2 = tpu.matmul %0, %1, %cst {dimension_numbers = #tpu.dot_dimension_numbers<[1], [0], [0], [1], [0, 0, 1, 1], [], []>} : vector<176x512xbf16>, vector<512x64xbf16>, vector<176x64xf32> -> vector<176x64xf32>
    %c0_3 = arith.constant 0 : index
    %c0_4 = arith.constant 0 : index
    %3 = vector.load %arg3[%c0_3, %c0_4] : memref<1x64xf32, #tpu.memory_space<vmem>>, vector<1x64xf32>
    %4 = vector.broadcast %3 : vector<1x64xf32> to vector<176x64xf32>
    %5 = arith.addf %2, %4 : vector<176x64xf32>
    %cst_5 = arith.constant 0.000000e+00 : f32
    %6 = vector.broadcast %cst_5 : f32 to vector<176x64xf32>
    %7 = arith.maximumf %5, %6 : vector<176x64xf32>
    %8 = arith.truncf %7 : vector<176x64xf32> to vector<176x64xbf16>
    %c0_6 = arith.constant 0 : index
    %c0_7 = arith.constant 0 : index
    %9 = vector.load %arg4[%c0_6, %c0_7] : memref<176x64xbf16, #tpu.memory_space<vmem>>, vector<176x64xbf16>
    tpu.vector_store %arg4[%c0_6, %c0_7], %8 {strides = array<i32>} : memref<176x64xbf16, #tpu.memory_space<vmem>>, vector<176x64xbf16>,
    return
  }
  func.func @transform_0(%arg0: i32) -> (i32, i32) {
    %c0_i32 = arith.constant 0 : i32
    %c0_i32_0 = arith.constant 0 : i32
    return %arg0, %c0_i32 : i32, i32
  }
  func.func @transform_1(%arg0: i32) -> (i32, i32) {
    %c0_i32 = arith.constant 0 : i32
    %c0_i32_0 = arith.constant 0 : i32
    %c0_i32_1 = arith.constant 0 : i32
    return %c0_i32, %c0_i32_0 : i32, i32
  }
  func.func @transform_2(%arg0: i32) -> (i32, i32) {
    %c0_i32 = arith.constant 0 : i32
    %c0_i32_0 = arith.constant 0 : i32
    %c0_i32_1 = arith.constant 0 : i32
    return %c0_i32, %c0_i32_0 : i32, i32
  }
  func.func @transform_3(%arg0: i32) -> (i32, i32) {
    %c0_i32 = arith.constant 0 : i32
    %c0_i32_0 = arith.constant 0 : i32
    return %arg0, %c0_i32 : i32, i32
  }
}

module attributes {stable_mosaic.version = 11 : i64} {
  func.func @_mm_bias_kernel(%arg0: i32, %arg1: memref<112x576xbf16, #tpu.memory_space<vmem>>, %arg2: memref<576x64xbf16, #tpu.memory_space<vmem>>, %arg3: memref<1x64xf32, #tpu.memory_space<vmem>>, %arg4: memref<112x64xbf16, #tpu.memory_space<vmem>>) attributes {dimension_semantics = [#tpu.dimension_semantics<parallel>], iteration_bounds = array<i64: 1>, scalar_prefetch = 0 : i64, scratch_operands = 0 : i64, tpu.core_type = #tpu.core_type<tc>, window_params = [{transform_indices = @transform_0, window_bounds = array<i64: 112, 576>}, {pipeline_mode = #tpu.pipeline_mode<synchronous>, transform_indices = @transform_1, window_bounds = array<i64: 576, 64>}, {pipeline_mode = #tpu.pipeline_mode<synchronous>, transform_indices = @transform_2, window_bounds = array<i64: 1, 64>}, {transform_indices = @transform_3, window_bounds = array<i64: 112, 64>}]} {
    %c0 = arith.constant 0 : index
    %c0_0 = arith.constant 0 : index
    %0 = vector.load %arg1[%c0, %c0_0] : memref<112x576xbf16, #tpu.memory_space<vmem>>, vector<112x576xbf16>
    %c0_1 = arith.constant 0 : index
    %c0_2 = arith.constant 0 : index
    %1 = vector.load %arg2[%c0_1, %c0_2] : memref<576x64xbf16, #tpu.memory_space<vmem>>, vector<576x64xbf16>
    %cst = arith.constant dense<0.000000e+00> : vector<112x64xf32>
    %2 = tpu.matmul %0, %1, %cst {dimension_numbers = #tpu.dot_dimension_numbers<[1], [0], [0], [1], [0, 0, 1, 1], [], []>} : vector<112x576xbf16>, vector<576x64xbf16>, vector<112x64xf32> -> vector<112x64xf32>
    %c0_3 = arith.constant 0 : index
    %c0_4 = arith.constant 0 : index
    %3 = vector.load %arg3[%c0_3, %c0_4] : memref<1x64xf32, #tpu.memory_space<vmem>>, vector<1x64xf32>
    %4 = vector.broadcast %3 : vector<1x64xf32> to vector<112x64xf32>
    %5 = arith.addf %2, %4 : vector<112x64xf32>
    %cst_5 = arith.constant 0.000000e+00 : f32
    %6 = vector.broadcast %cst_5 : f32 to vector<112x64xf32>
    %7 = arith.maximumf %5, %6 : vector<112x64xf32>
    %8 = arith.truncf %7 : vector<112x64xf32> to vector<112x64xbf16>
    %c0_6 = arith.constant 0 : index
    %c0_7 = arith.constant 0 : index
    %9 = vector.load %arg4[%c0_6, %c0_7] : memref<112x64xbf16, #tpu.memory_space<vmem>>, vector<112x64xbf16>
    tpu.vector_store %arg4[%c0_6, %c0_7], %8 {strides = array<i32>} : memref<112x64xbf16, #tpu.memory_space<vmem>>, vector<112x64xbf16>,
    return
  }
  func.func @transform_0(%arg0: i32) -> (i32, i32) {
    %c0_i32 = arith.constant 0 : i32
    %c0_i32_0 = arith.constant 0 : i32
    return %arg0, %c0_i32 : i32, i32
  }
  func.func @transform_1(%arg0: i32) -> (i32, i32) {
    %c0_i32 = arith.constant 0 : i32
    %c0_i32_0 = arith.constant 0 : i32
    %c0_i32_1 = arith.constant 0 : i32
    return %c0_i32, %c0_i32_0 : i32, i32
  }
  func.func @transform_2(%arg0: i32) -> (i32, i32) {
    %c0_i32 = arith.constant 0 : i32
    %c0_i32_0 = arith.constant 0 : i32
    %c0_i32_1 = arith.constant 0 : i32
    return %c0_i32, %c0_i32_0 : i32, i32
  }
  func.func @transform_3(%arg0: i32) -> (i32, i32) {
    %c0_i32 = arith.constant 0 : i32
    %c0_i32_0 = arith.constant 0 : i32
    return %arg0, %c0_i32 : i32, i32
  }
}

module attributes {stable_mosaic.version = 11 : i64} {
  func.func @_head_kernel(%arg0: i32, %arg1: memref<16x3136xbf16, #tpu.memory_space<vmem>>, %arg2: memref<16x4xbf16, #tpu.memory_space<vmem>>, %arg3: memref<3136x512xbf16, #tpu.memory_space<vmem>>, %arg4: memref<1x512xf32, #tpu.memory_space<vmem>>, %arg5: memref<512x512xbf16, #tpu.memory_space<vmem>>, %arg6: memref<4x512xbf16, #tpu.memory_space<vmem>>, %arg7: memref<1x512xf32, #tpu.memory_space<vmem>>, %arg8: memref<512x128xbf16, #tpu.memory_space<vmem>>, %arg9: memref<1x128xf32, #tpu.memory_space<vmem>>, %arg10: memref<16x128xf32, #tpu.memory_space<vmem>>) attributes {dimension_semantics = [#tpu.dimension_semantics<parallel>], iteration_bounds = array<i64: 1>, scalar_prefetch = 0 : i64, scratch_operands = 0 : i64, tpu.core_type = #tpu.core_type<tc>, window_params = [{transform_indices = @transform_0, window_bounds = array<i64: 16, 3136>}, {transform_indices = @transform_1, window_bounds = array<i64: 16, 4>}, {pipeline_mode = #tpu.pipeline_mode<synchronous>, transform_indices = @transform_2, window_bounds = array<i64: 3136, 512>}, {pipeline_mode = #tpu.pipeline_mode<synchronous>, transform_indices = @transform_3, window_bounds = array<i64: 1, 512>}, {pipeline_mode = #tpu.pipeline_mode<synchronous>, transform_indices = @transform_4, window_bounds = array<i64: 512, 512>}, {pipeline_mode = #tpu.pipeline_mode<synchronous>, transform_indices = @transform_5, window_bounds = array<i64: 4, 512>}, {pipeline_mode = #tpu.pipeline_mode<synchronous>, transform_indices = @transform_6, window_bounds = array<i64: 1, 512>}, {pipeline_mode = #tpu.pipeline_mode<synchronous>, transform_indices = @transform_7, window_bounds = array<i64: 512, 128>}, {pipeline_mode = #tpu.pipeline_mode<synchronous>, transform_indices = @transform_8, window_bounds = array<i64: 1, 128>}, {transform_indices = @transform_9, window_bounds = array<i64: 16, 128>}]} {
    %c0 = arith.constant 0 : index
    %c0_0 = arith.constant 0 : index
    %0 = vector.load %arg1[%c0, %c0_0] : memref<16x3136xbf16, #tpu.memory_space<vmem>>, vector<16x3136xbf16>
    %c0_1 = arith.constant 0 : index
    %c0_2 = arith.constant 0 : index
    %1 = vector.load %arg3[%c0_1, %c0_2] : memref<3136x512xbf16, #tpu.memory_space<vmem>>, vector<3136x512xbf16>
    %cst = arith.constant dense<0.000000e+00> : vector<16x512xf32>
    %2 = tpu.matmul %0, %1, %cst {dimension_numbers = #tpu.dot_dimension_numbers<[1], [0], [0], [1], [0, 0, 1, 1], [], []>} : vector<16x3136xbf16>, vector<3136x512xbf16>, vector<16x512xf32> -> vector<16x512xf32>
    %c0_3 = arith.constant 0 : index
    %c0_4 = arith.constant 0 : index
    %3 = vector.load %arg4[%c0_3, %c0_4] : memref<1x512xf32, #tpu.memory_space<vmem>>, vector<1x512xf32>
    %4 = vector.broadcast %3 : vector<1x512xf32> to vector<16x512xf32>
    %5 = arith.addf %2, %4 : vector<16x512xf32>
    %cst_5 = arith.constant 0.000000e+00 : f32
    %6 = vector.broadcast %cst_5 : f32 to vector<16x512xf32>
    %7 = arith.maximumf %5, %6 : vector<16x512xf32>
    %8 = arith.truncf %7 : vector<16x512xf32> to vector<16x512xbf16>
    %c0_6 = arith.constant 0 : index
    %c0_7 = arith.constant 0 : index
    %9 = vector.load %arg5[%c0_6, %c0_7] : memref<512x512xbf16, #tpu.memory_space<vmem>>, vector<512x512xbf16>
    %cst_8 = arith.constant dense<0.000000e+00> : vector<16x512xf32>
    %10 = tpu.matmul %8, %9, %cst_8 {dimension_numbers = #tpu.dot_dimension_numbers<[1], [0], [0], [1], [0, 0, 1, 1], [], []>} : vector<16x512xbf16>, vector<512x512xbf16>, vector<16x512xf32> -> vector<16x512xf32>
    %c0_9 = arith.constant 0 : index
    %c0_10 = arith.constant 0 : index
    %11 = vector.load %arg2[%c0_9, %c0_10] : memref<16x4xbf16, #tpu.memory_space<vmem>>, vector<16x4xbf16>
    %c0_11 = arith.constant 0 : index
    %c0_12 = arith.constant 0 : index
    %12 = vector.load %arg6[%c0_11, %c0_12] : memref<4x512xbf16, #tpu.memory_space<vmem>>, vector<4x512xbf16>
    %cst_13 = arith.constant dense<0.000000e+00> : vector<16x512xf32>
    %13 = tpu.matmul %11, %12, %cst_13 {dimension_numbers = #tpu.dot_dimension_numbers<[1], [0], [0], [1], [0, 0, 1, 1], [], []>} : vector<16x4xbf16>, vector<4x512xbf16>, vector<16x512xf32> -> vector<16x512xf32>
    %14 = arith.addf %10, %13 : vector<16x512xf32>
    %c0_14 = arith.constant 0 : index
    %c0_15 = arith.constant 0 : index
    %15 = vector.load %arg7[%c0_14, %c0_15] : memref<1x512xf32, #tpu.memory_space<vmem>>, vector<1x512xf32>
    %16 = vector.broadcast %15 : vector<1x512xf32> to vector<16x512xf32>
    %17 = arith.addf %14, %16 : vector<16x512xf32>
    %cst_16 = arith.constant 0.000000e+00 : f32
    %18 = vector.broadcast %cst_16 : f32 to vector<16x512xf32>
    %19 = arith.maximumf %17, %18 : vector<16x512xf32>
    %20 = arith.truncf %19 : vector<16x512xf32> to vector<16x512xbf16>
    %c0_17 = arith.constant 0 : index
    %c0_18 = arith.constant 0 : index
    %21 = vector.load %arg8[%c0_17, %c0_18] : memref<512x128xbf16, #tpu.memory_space<vmem>>, vector<512x128xbf16>
    %cst_19 = arith.constant dense<0.000000e+00> : vector<16x128xf32>
    %22 = tpu.matmul %20, %21, %cst_19 {dimension_numbers = #tpu.dot_dimension_numbers<[1], [0], [0], [1], [0, 0, 1, 1], [], []>} : vector<16x512xbf16>, vector<512x128xbf16>, vector<16x128xf32> -> vector<16x128xf32>
    %c0_20 = arith.constant 0 : index
    %c0_21 = arith.constant 0 : index
    %23 = vector.load %arg9[%c0_20, %c0_21] : memref<1x128xf32, #tpu.memory_space<vmem>>, vector<1x128xf32>
    %24 = vector.broadcast %23 : vector<1x128xf32> to vector<16x128xf32>
    %25 = arith.addf %22, %24 : vector<16x128xf32>
    %c0_22 = arith.constant 0 : index
    %c0_23 = arith.constant 0 : index
    %26 = vector.load %arg10[%c0_22, %c0_23] : memref<16x128xf32, #tpu.memory_space<vmem>>, vector<16x128xf32>
    tpu.vector_store %arg10[%c0_22, %c0_23], %25 {strides = array<i32>} : memref<16x128xf32, #tpu.memory_space<vmem>>, vector<16x128xf32>,
    return
  }
  func.func @transform_0(%arg0: i32) -> (i32, i32) {
    %c0_i32 = arith.constant 0 : i32
    %c0_i32_0 = arith.constant 0 : i32
    return %arg0, %c0_i32 : i32, i32
  }
  func.func @transform_1(%arg0: i32) -> (i32, i32) {
    %c0_i32 = arith.constant 0 : i32
    %c0_i32_0 = arith.constant 0 : i32
    return %arg0, %c0_i32 : i32, i32
  }
  func.func @transform_2(%arg0: i32) -> (i32, i32) {
    %c0_i32 = arith.constant 0 : i32
    %c0_i32_0 = arith.constant 0 : i32
    %c0_i32_1 = arith.constant 0 : i32
    return %c0_i32, %c0_i32_0 : i32, i32
  }
  func.func @transform_3(%arg0: i32) -> (i32, i32) {
    %c0_i32 = arith.constant 0 : i32
    %c0_i32_0 = arith.constant 0 : i32
    %c0_i32_1 = arith.constant 0 : i32
    return %c0_i32, %c0_i32_0 : i32, i32
  }
  func.func @transform_4(%arg0: i32) -> (i32, i32) {
    %c0_i32 = arith.constant 0 : i32
    %c0_i32_0 = arith.constant 0 : i32
    %c0_i32_1 = arith.constant 0 : i32
    return %c0_i32, %c0_i32_0 : i32, i32
  }
  func.func @transform_5(%arg0: i32) -> (i32, i32) {
    %c0_i32 = arith.constant 0 : i32
    %c0_i32_0 = arith.constant 0 : i32
    %c0_i32_1 = arith.constant 0 : i32
    return %c0_i32, %c0_i32_0 : i32, i32
  }
  func.func @transform_6(%arg0: i32) -> (i32, i32) {
    %c0_i32 = arith.constant 0 : i32
    %c0_i32_0 = arith.constant 0 : i32
    %c0_i32_1 = arith.constant 0 : i32
    return %c0_i32, %c0_i32_0 : i32, i32
  }
  func.func @transform_7(%arg0: i32) -> (i32, i32) {
    %c0_i32 = arith.constant 0 : i32
    %c0_i32_0 = arith.constant 0 : i32
    %c0_i32_1 = arith.constant 0 : i32
    return %c0_i32, %c0_i32_0 : i32, i32
  }
  func.func @transform_8(%arg0: i32) -> (i32, i32) {
    %c0_i32 = arith.constant 0 : i32
    %c0_i32_0 = arith.constant 0 : i32
    %c0_i32_1 = arith.constant 0 : i32
    return %c0_i32, %c0_i32_0 : i32, i32
  }
  func.func @transform_9(%arg0: i32) -> (i32, i32) {
    %c0_i32 = arith.constant 0 : i32
    %c0_i32_0 = arith.constant 0 : i32
    return %arg0, %c0_i32 : i32, i32
  }
}

</mosaic_0001>

<llo_original>
// kernel: cnn_reward_forward.4
$region0: #{cnn_reward_forward.4}
  #allocation0 [shape = 'u32[]', space=smem, size = 0x4, offset = 0x4, fixed_abs, tag = 'smem constant byte address 0x4 - core index']
  #allocation1 [shape = 'u32[144,128]{1,0:T(1,128)}', space=vmem, size = 0x12000, scoped, tag = 'internal scratch']
  %s0 = inlined_call_operand.vmem [shape: bf16[800,192], index: 0, kind: input, shape index: {}]
  %s1 = inlined_call_operand.vmem [shape: bf16[192,32], index: 1, kind: input, shape index: {}]
  %s2 = inlined_call_operand.vmem [shape: f32[1,32], index: 2, kind: input, shape index: {}]
  %s3 = inlined_call_operand.vmem [shape: bf16[800,32], index: 3, kind: output, shape index: {}]
  %s4 = sld [smem:[#allocation0]]
  $region89: #{cnn_reward_forward.4} parent=0
    _
  %s6 = ssub.s32 1, %s4
  %s7 = scalar_select 0, %s6, %s4
  $region1: #{cnn_reward_forward.4} parent=0
    #allocation2 [shape = 'u8[262144]{0}', space=vmem, size = 0x40000, scoped, tag = 'output window, operand 0']
    loop: start=0, step=1, limit=4
    $region2: #{cnn_reward_forward.4} parent=1 // loop_pre_header
      _
    $region3: #{cnn_reward_forward.4} parent=1 // loop_header
      %s9 = sphi 0, %s13
      %p10 = scmp.ge.s32.totalorder %s9, 4
      %s19 = sphi 0, %s21
      %s22 = sphi 0, %s19
      %s23 = sphi 0, %s22
      %s39 = sphi 0, %s23
      %s43 = sphi 0, %s43
      %s45 = sphi 0, %s43
      %s46 = sphi 0, %s45
      %s60 = sphi 0, %s46
      %s64 = sphi 0, %s64
      %s66 = sphi 0, %s64
      %s67 = sphi 0, %s66
      %s81 = sphi 0, %s67
      %s87 = sphi 0, %s89
      %s90 = sphi 0, %s87
      %s91 = sphi 0, %s90
      %s107 = sphi 0, %s91
    $region4: #{cnn_reward_forward.4} parent=1 // loop_header_branch
      %12 = sbr.rel (%p10) target = $region8
    $region5: #{cnn_reward_forward.4} parent=1 // loop_body
      %s14 = ssub.s32 %s9, 1
      %s15 = ssub.s32 %s9, 2
      %s16 = sadd.s32 %s9, 1
      %s17 = ssub.s32 %s9, %s16
      %p18 = scmp.eq.s32.totalorder %s17, 0
      %s20 = sadd.s32 %s19, 1
      %s21 = scalar_select %p18, %s19, %s20
      %p24 = pneg %p18
      %p25 = scmp.eq.s32.totalorder %s9, 1
      %p26 = por %p24, %p25
      %p27 = scmp.ne.s32.totalorder %s19, %s22
      %p28 = scmp.eq.s32.totalorder %s9, 0
      %p29 = por %p27, %p28
      %p30 = scmp.ne.s32.totalorder %s19, %s22
      %p31 = scmp.eq.s32.totalorder %s14, 1
      %p32 = por %p30, %p31
      %p33 = scmp.ne.s32.totalorder %s22, %s23
      %p34 = scmp.eq.s32.totalorder %s14, 0
      %p35 = por %p33, %p34
      %p36 = scmp.ne.s32.totalorder %s22, %s23
      %p37 = scmp.eq.s32.totalorder %s15, 1
      %p38 = por %p36, %p37
      %p40 = scmp.ne.s32.totalorder %s23, %s39
      %p41 = scmp.eq.s32.totalorder %s15, 0
      %p42 = por %p40, %p41
      %s44 = sadd.s32 %s43, 1
      %p47 = scmp.eq.s32.totalorder %s9, 1
      %p48 = scmp.ne.s32.totalorder %s43, %s45
      %p49 = scmp.eq.s32.totalorder %s9, 0
      %p50 = por %p48, %p49
      %p51 = scmp.ne.s32.totalorder %s43, %s45
      %p52 = scmp.eq.s32.totalorder %s14, 1
      %p53 = por %p51, %p52
      %p54 = scmp.ne.s32.totalorder %s45, %s46
      %p55 = scmp.eq.s32.totalorder %s14, 0
      %p56 = por %p54, %p55
      %p57 = scmp.ne.s32.totalorder %s45, %s46
      %p58 = scmp.eq.s32.totalorder %s15, 1
      %p59 = por %p57, %p58
      %p61 = scmp.ne.s32.totalorder %s46, %s60
      %p62 = scmp.eq.s32.totalorder %s15, 0
      %p63 = por %p61, %p62
      %s65 = sadd.s32 %s64, 1
      %p68 = scmp.eq.s32.totalorder %s9, 1
      %p69 = scmp.ne.s32.totalorder %s64, %s66
      %p70 = scmp.eq.s32.totalorder %s9, 0
      %p71 = por %p69, %p70
      %p72 = scmp.ne.s32.totalorder %s64, %s66
      %p73 = scmp.eq.s32.totalorder %s14, 1
      %p74 = por %p72, %p73
      %p75 = scmp.ne.s32.totalorder %s66, %s67
      %p76 = scmp.eq.s32.totalorder %s14, 0
      %p77 = por %p75, %p76
      %p78 = scmp.ne.s32.totalorder %s66, %s67
      %p79 = scmp.eq.s32.totalorder %s15, 1
      %p80 = por %p78, %p79
      %p82 = scmp.ne.s32.totalorder %s67, %s81
      %p83 = scmp.eq.s32.totalorder %s15, 0
      %p84 = por %p82, %p83
      %s85 = ssub.s32 %s9, %s16
      %p86 = scmp.eq.s32.totalorder %s85, 0
      %s88 = sadd.s32 %s87, 1
      %s89 = scalar_select %p86, %s87, %s88
      %p92 = pneg %p86
      %p93 = scmp.eq.s32.totalorder %s9, 1
      %p94 = por %p92, %p93
      %p95 = scmp.ne.s32.totalorder %s87, %s90
      %p96 = scmp.eq.s32.totalorder %s9, 0
      %p97 = por %p95, %p96
      %p98 = scmp.ne.s32.totalorder %s87, %s90
      %p99 = scmp.eq.s32.totalorder %s14, 1
      %p100 = por %p98, %p99
      %p101 = scmp.ne.s32.totalorder %s90, %s91
      %p102 = scmp.eq.s32.totalorder %s14, 0
      %p103 = por %p101, %p102
      %p104 = scmp.ne.s32.totalorder %s90, %s91
      %p105 = scmp.eq.s32.totalorder %s15, 1
      %p106 = por %p104, %p105
      %p108 = scmp.ne.s32.totalorder %s91, %s107
      %p109 = scmp.eq.s32.totalorder %s15, 0
      %p110 = por %p108, %p109
      %p111 = scmp.le.s32.totalorder 1, %s9
      %p112 = scmp.lt.s32.totalorder %s9, 3
      %p113 = pnand %p111, %p112
      %p114 = pneg %p113
      // Predicated region
      $region9: #{cnn_reward_forward.4} parent=5 // pred_check
        _
      $region10: #{cnn_reward_forward.4} parent=5 // pred_check_branch
        %116 = sbr.rel (%p113) target = $region12
      $region11: #{cnn_reward_forward.4} parent=5 // pred_region
        %s117 = ssub.s32 %s9, 1
        // Predicated region
        $region13: #{cnn_reward_forward.4} parent=11 // pred_check
          %p118 = pneg %p56
        $region14: #{cnn_reward_forward.4} parent=11 // pred_check_branch
          %120 = sbr.rel (%p118) target = $region16
        $region15: #{cnn_reward_forward.4} parent=11 // pred_region
          _
        $region16: #{cnn_reward_forward.4} parent=11 // pred_fallthru
          _
        // Predicated region
        $region17: #{cnn_reward_forward.4} parent=11 // pred_check
          %p121 = pneg %p77
        $region18: #{cnn_reward_forward.4} parent=11 // pred_check_branch
          %123 = sbr.rel (%p121) target = $region20
        $region19: #{cnn_reward_forward.4} parent=11 // pred_region
          _
        $region20: #{cnn_reward_forward.4} parent=11 // pred_fallthru
          _
      $region12: #{cnn_reward_forward.4} parent=5 // pred_fallthru
        _
      %p124 = scmp.lt.s32.totalorder %s9, 2
      // Predicated region
      $region21: #{cnn_reward_forward.4} parent=5 // pred_check
        %p125 = pneg %p124
      $region22: #{cnn_reward_forward.4} parent=5 // pred_check_branch
        %127 = sbr.rel (%p125) target = $region24
      $region23: #{cnn_reward_forward.4} parent=5 // pred_region
        // Predicated region
        $region25: #{cnn_reward_forward.4} parent=23 // pred_check
          %p128 = pneg %p29
        $region26: #{cnn_reward_forward.4} parent=23 // pred_check_branch
          %130 = sbr.rel (%p128) target = $region28
        $region27: #{cnn_reward_forward.4} parent=23 // pred_region
          %s131 = smul.u32 64, %s9
          %s132 = ssub.s32 100, %s131
          %p133 = scmp.lt.s32.totalorder %s132, 64
          %s134 = scalar_select %p133, %s132, 64
          %s135 = smul.u32 64, %s134
          %s136 = smul.u32 %s135, 2
          %p137 = scmp.lt.s32.totalorder %s131, 99
          %s138 = scalar_select %p137, %s131, 99
          %s139 = smul.addr %s138, 2
          %s140 = smul.addr %s139, 4
          %s141 = scalar_lea.vmem %s0, %s140
          %s142 = smul.u32 64, %s9
          %s143 = ssub.s32 100, %s142
          %p144 = scmp.lt.s32.totalorder %s143, 64
          %s145 = scalar_select %p144, %s143, 64
          %s146 = smul.u32 64, %s145
          %s147 = smul.u32 %s146, 2
        $region28: #{cnn_reward_forward.4} parent=23 // pred_fallthru
          _
      $region24: #{cnn_reward_forward.4} parent=5 // pred_fallthru
        _
      %p148 = scmp.le.s32.totalorder 1, %s9
      %p149 = scmp.lt.s32.totalorder %s9, 3
      %p150 = pnand %p148, %p149
      %p151 = pneg %p150
      // Predicated region
      $region29: #{cnn_reward_forward.4} parent=5 // pred_check
        _
      $region30: #{cnn_reward_forward.4} parent=5 // pred_check_branch
        %153 = sbr.rel (%p150) target = $region32
      $region31: #{cnn_reward_forward.4} parent=5 // pred_region
        %s154 = ssub.s32 %s9, 1
        %s155 = smul.u32 64, %s14
        %s156 = ssub.s32 100, %s155
        %p157 = scmp.lt.s32.totalorder %s156, 64
        %s158 = scalar_select %p157, %s156, 64
        %s159 = smul.u32 64, %s158
        %s160 = smul.u32 %s159, 2
        %p161 = scmp.lt.s32.totalorder %s155, 99
        %s162 = scalar_select %p161, %s155, 99
        %s163 = smul.addr %s162, 2
        %s164 = smul.addr %s163, 4
        %s165 = scalar_lea.vmem %s0, %s164
        %p166 = pneg %p35
        %p167 = pneg %p32
        %p168 = pneg %p56
        %p169 = pneg %p53
        %p170 = pneg %p77
        %p171 = pneg %p74
        %p172 = pneg %p103
        %p173 = pneg %p100
        %s174 = sand.u32 %s90, 1
        %s175 = sand.u32 %s90, 1
        %s176 = smul.addr %s175, 256
        %s177 = scalar_lea.vmem [#allocation2], %s176
        %s178 = smul.u32 64, %s14
        %s179 = ssub.s32 100, %s178
        %p180 = scmp.lt.s32.totalorder %s179, 64
        %s181 = scalar_select %p180, %s179, 64
        %s182 = smul.u32 64, %s181
        %s183 = smul.u32 %s182, 2
        %p184 = scmp.lt.s32.totalorder %s178, 99
        %s185 = scalar_select %p184, %s178, 99
        %s186 = smul.addr %s185, 2
        %s187 = smul.addr %s186, 4
        %s188 = scalar_lea.vmem %s0, %s187
        %s189 = smul.u32 64, %s14
        %s190 = ssub.s32 100, %s189
        %p191 = scmp.lt.s32.totalorder %s190, 64
        %s192 = scalar_select %p191, %s190, 64
        %s193 = smul.u32 64, %s192
        %s194 = smul.u32 %s193, 2
        %s195 = smul.u32 64, %s14
        %s196 = ssub.s32 100, %s195
        %p197 = scmp.lt.s32.totalorder %s196, 64
        %s198 = scalar_select %p197, %s196, 64
        %s199 = smul.u32 64, %s198
        %v201 = vld [vmem:[%s188] sm:$0xff]
        %v202 = vld [vmem:[%s188 + $0x8] sm:$0xff]
        %v203 = vld [vmem:[%s188 + $0x10] sm:$0xff]
        %v204 = vld [vmem:[%s188 + $0x18] sm:$0xff]
        %v205 = vld [vmem:[%s188 + $0x20] sm:$0xff]
        %v206 = vld [vmem:[%s188 + $0x28] sm:$0xff]
        %v207 = vld [vmem:[%s188 + $0x30] sm:$0xff]
        %v208 = vld [vmem:[%s188 + $0x38] sm:$0xff]
        %v209 = vld [vmem:[%s188 + $0x40] sm:$0xff]
        %v210 = vld [vmem:[%s188 + $0x48] sm:$0xff]
        %v211 = vld [vmem:[%s188 + $0x50] sm:$0xff]
        %v212 = vld [vmem:[%s188 + $0x58] sm:$0xff]
        %v213 = vld [vmem:[%s188 + $0x60] sm:$0xff]
        %v214 = vld [vmem:[%s188 + $0x68] sm:$0xff]
        %v215 = vld [vmem:[%s188 + $0x70] sm:$0xff]
        %v216 = vld [vmem:[%s188 + $0x78] sm:$0xff]
        %v217 = vld [vmem:[%s188 + $0x80] sm:$0xff]
        %v218 = vld [vmem:[%s188 + $0x88] sm:$0xff]
        %v219 = vld [vmem:[%s188 + $0x90] sm:$0xff]
        %v220 = vld [vmem:[%s188 + $0x98] sm:$0xff]
        %v221 = vld [vmem:[%s188 + $0xa0] sm:$0xff]
        %v222 = vld [vmem:[%s188 + $0xa8] sm:$0xff]
        %v223 = vld [vmem:[%s188 + $0xb0] sm:$0xff]
        %v224 = vld [vmem:[%s188 + $0xb8] sm:$0xff]
        %v225 = vld [vmem:[%s188 + $0xc0] sm:$0xff]
        %v226 = vld [vmem:[%s188 + $0xc8] sm:$0xff]
        %v227 = vld [vmem:[%s188 + $0xd0] sm:$0xff]
        %v228 = vld [vmem:[%s188 + $0xd8] sm:$0xff]
        %v229 = vld [vmem:[%s188 + $0xe0] sm:$0xff]
        %v230 = vld [vmem:[%s188 + $0xe8] sm:$0xff]
        %v231 = vld [vmem:[%s188 + $0xf0] sm:$0xff]
        %v232 = vld [vmem:[%s188 + $0xf8] sm:$0xff]
        %v233 = vld [vmem:[%s188 + $0x100] sm:$0xff]
        %v234 = vld [vmem:[%s188 + $0x108] sm:$0xff]
        %v235 = vld [vmem:[%s188 + $0x110] sm:$0xff]
        %v236 = vld [vmem:[%s188 + $0x118] sm:$0xff]
        %v237 = vld [vmem:[%s188 + $0x120] sm:$0xff]
        %v238 = vld [vmem:[%s188 + $0x128] sm:$0xff]
        %v239 = vld [vmem:[%s188 + $0x130] sm:$0xff]
        %v240 = vld [vmem:[%s188 + $0x138] sm:$0xff]
        %v241 = vld [vmem:[%s188 + $0x140] sm:$0xff]
        %v242 = vld [vmem:[%s188 + $0x148] sm:$0xff]
        %v243 = vld [vmem:[%s188 + $0x150] sm:$0xff]
        %v244 = vld [vmem:[%s188 + $0x158] sm:$0xff]
        %v245 = vld [vmem:[%s188 + $0x160] sm:$0xff]
        %v246 = vld [vmem:[%s188 + $0x168] sm:$0xff]
        %v247 = vld [vmem:[%s188 + $0x170] sm:$0xff]
        %v248 = vld [vmem:[%s188 + $0x178] sm:$0xff]
        %v249 = vld [vmem:[%s188 + $0x180] sm:$0xff]
        %v250 = vld [vmem:[%s188 + $0x188] sm:$0xff]
        %v251 = vld [vmem:[%s188 + $0x190] sm:$0xff]
        %v252 = vld [vmem:[%s188 + $0x198] sm:$0xff]
        %v253 = vld [vmem:[%s188 + $0x1a0] sm:$0xff]
        %v254 = vld [vmem:[%s188 + $0x1a8] sm:$0xff]
        %v255 = vld [vmem:[%s188 + $0x1b0] sm:$0xff]
        %v256 = vld [vmem:[%s188 + $0x1b8] sm:$0xff]
        %v257 = vld [vmem:[%s188 + $0x1c0] sm:$0xff]
        %v258 = vld [vmem:[%s188 + $0x1c8] sm:$0xff]
        %v259 = vld [vmem:[%s188 + $0x1d0] sm:$0xff]
        %v260 = vld [vmem:[%s188 + $0x1d8] sm:$0xff]
        %v261 = vld [vmem:[%s188 + $0x1e0] sm:$0xff]
        %v262 = vld [vmem:[%s188 + $0x1e8] sm:$0xff]
        %v263 = vld [vmem:[%s188 + $0x1f0] sm:$0xff]
        %v264 = vld [vmem:[%s188 + $0x1f8] sm:$0xff]
        %v265 = vld [vmem:[%s1] sm:$0xf]
        %v266 = vld [vmem:[%s1 + $0x4] sm:$0xf]
        %v267 = vld [vmem:[%s1 + $0x8] sm:$0xf]
        %v268 = vld [vmem:[%s1 + $0xc] sm:$0xf]
        %v269 = vld [vmem:[%s1 + $0x10] sm:$0xf]
        %v270 = vld [vmem:[%s1 + $0x14] sm:$0xf]
        %v271 = vld [vmem:[%s1 + $0x18] sm:$0xf]
        %v272 = vld [vmem:[%s1 + $0x1c] sm:$0xf]
        %v273 = vld [vmem:[%s1 + $0x20] sm:$0xf]
        %v274 = vld [vmem:[%s1 + $0x24] sm:$0xf]
        %v275 = vld [vmem:[%s1 + $0x28] sm:$0xf]
        %v276 = vld [vmem:[%s1 + $0x2c] sm:$0xf]
        %v277 = vld [vmem:[%s1 + $0x30] sm:$0xf]
        %v278 = vld [vmem:[%s1 + $0x34] sm:$0xf]
        %v279 = vld [vmem:[%s1 + $0x38] sm:$0xf]
        %v280 = vld [vmem:[%s1 + $0x3c] sm:$0xf]
        %v281 = vld [vmem:[%s1 + $0x40] sm:$0xf]
        %v282 = vld [vmem:[%s1 + $0x44] sm:$0xf]
        %v283 = vld [vmem:[%s1 + $0x48] sm:$0xf]
        %v284 = vld [vmem:[%s1 + $0x4c] sm:$0xf]
        %v285 = vld [vmem:[%s1 + $0x50] sm:$0xf]
        %v286 = vld [vmem:[%s1 + $0x54] sm:$0xf]
        %v287 = vld [vmem:[%s1 + $0x58] sm:$0xf]
        %v288 = vld [vmem:[%s1 + $0x5c] sm:$0xf]
        %v289 = vld [vmem:[%s2] sm:$0x1]
        %v291 = vlaneseq
        %v292 = vshrl.u32 %v291, 7
        %v293 = vsub.s32 0, %v292
        %v294 = vrot.slane %v289, %v293
        %v360 = vunpack.c.l.b16 %v201
        %v361 = vunpack.c.h.b16 %v201
        %v362 = vunpack.c.l.b16 %v202
        %v363 = vunpack.c.h.b16 %v202
        %v364 = vunpack.c.l.b16 %v203
        %v365 = vunpack.c.h.b16 %v203
        %v366 = vunpack.c.l.b16 %v204
        %v367 = vunpack.c.h.b16 %v204
        %v368 = vunpack.c.l.b16 %v205
        %v369 = vunpack.c.h.b16 %v205
        %v370 = vunpack.c.l.b16 %v206
        %v371 = vunpack.c.h.b16 %v206
        %v372 = vunpack.c.l.b16 %v207
        %v373 = vunpack.c.h.b16 %v207
        %v374 = vunpack.c.l.b16 %v208
        %v375 = vunpack.c.h.b16 %v208
        %v376 = vunpack.c.l.b16 %v209
        %v377 = vunpack.c.h.b16 %v209
        %v378 = vunpack.c.l.b16 %v210
        %v379 = vunpack.c.h.b16 %v210
        %v380 = vunpack.c.l.b16 %v211
        %v381 = vunpack.c.h.b16 %v211
        %v382 = vunpack.c.l.b16 %v212
        %v383 = vunpack.c.h.b16 %v212
        %v384 = vunpack.c.l.b16 %v213
        %v385 = vunpack.c.h.b16 %v213
        %v386 = vunpack.c.l.b16 %v214
        %v387 = vunpack.c.h.b16 %v214
        %v388 = vunpack.c.l.b16 %v215
        %v389 = vunpack.c.h.b16 %v215
        %v390 = vunpack.c.l.b16 %v216
        %v391 = vunpack.c.h.b16 %v216
        %v392 = vunpack.c.l.b16 %v217
        %v393 = vunpack.c.h.b16 %v217
        %v394 = vunpack.c.l.b16 %v218
        %v395 = vunpack.c.h.b16 %v218
        %v396 = vunpack.c.l.b16 %v219
        %v397 = vunpack.c.h.b16 %v219
        %v398 = vunpack.c.l.b16 %v220
        %v399 = vunpack.c.h.b16 %v220
        %v400 = vunpack.c.l.b16 %v221
        %v401 = vunpack.c.h.b16 %v221
        %v402 = vunpack.c.l.b16 %v222
        %v403 = vunpack.c.h.b16 %v222
        %v404 = vunpack.c.l.b16 %v223
        %v405 = vunpack.c.h.b16 %v223
        %v406 = vunpack.c.l.b16 %v224
        %v407 = vunpack.c.h.b16 %v224
        %v408 = vunpack.c.l.b16 %v225
        %v409 = vunpack.c.h.b16 %v225
        %v410 = vunpack.c.l.b16 %v226
        %v411 = vunpack.c.h.b16 %v226
        %v412 = vunpack.c.l.b16 %v227
        %v413 = vunpack.c.h.b16 %v227
        %v414 = vunpack.c.l.b16 %v228
        %v415 = vunpack.c.h.b16 %v228
        %v416 = vunpack.c.l.b16 %v229
        %v417 = vunpack.c.h.b16 %v229
        %v418 = vunpack.c.l.b16 %v230
        %v419 = vunpack.c.h.b16 %v230
        %v420 = vunpack.c.l.b16 %v231
        %v421 = vunpack.c.h.b16 %v231
        %v422 = vunpack.c.l.b16 %v232
        %v423 = vunpack.c.h.b16 %v232
        %v424 = vunpack.c.l.b16 %v233
        %v425 = vunpack.c.h.b16 %v233
        %v426 = vunpack.c.l.b16 %v234
        %v427 = vunpack.c.h.b16 %v234
        %v428 = vunpack.c.l.b16 %v235
        %v429 = vunpack.c.h.b16 %v235
        %v430 = vunpack.c.l.b16 %v236
        %v431 = vunpack.c.h.b16 %v236
        %v432 = vunpack.c.l.b16 %v237
        %v433 = vunpack.c.h.b16 %v237
        %v434 = vunpack.c.l.b16 %v238
        %v435 = vunpack.c.h.b16 %v238
        %v436 = vunpack.c.l.b16 %v239
        %v437 = vunpack.c.h.b16 %v239
        %v438 = vunpack.c.l.b16 %v240
        %v439 = vunpack.c.h.b16 %v240
        %v440 = vunpack.c.l.b16 %v241
        %v441 = vunpack.c.h.b16 %v241
        %v442 = vunpack.c.l.b16 %v242
        %v443 = vunpack.c.h.b16 %v242
        %v444 = vunpack.c.l.b16 %v243
        %v445 = vunpack.c.h.b16 %v243
        %v446 = vunpack.c.l.b16 %v244
        %v447 = vunpack.c.h.b16 %v244
        %v448 = vunpack.c.l.b16 %v245
        %v449 = vunpack.c.h.b16 %v245
        %v450 = vunpack.c.l.b16 %v246
        %v451 = vunpack.c.h.b16 %v246
        %v452 = vunpack.c.l.b16 %v247
        %v453 = vunpack.c.h.b16 %v247
        %v454 = vunpack.c.l.b16 %v248
        %v455 = vunpack.c.h.b16 %v248
        %v456 = vunpack.c.l.b16 %v249
        %v457 = vunpack.c.h.b16 %v249
        %v458 = vunpack.c.l.b16 %v250
        %v459 = vunpack.c.h.b16 %v250
        %v460 = vunpack.c.l.b16 %v251
        %v461 = vunpack.c.h.b16 %v251
        %v462 = vunpack.c.l.b16 %v252
        %v463 = vunpack.c.h.b16 %v252
        %v464 = vunpack.c.l.b16 %v253
        %v465 = vunpack.c.h.b16 %v253
        %v466 = vunpack.c.l.b16 %v254
        %v467 = vunpack.c.h.b16 %v254
        %v468 = vunpack.c.l.b16 %v255
        %v469 = vunpack.c.h.b16 %v255
        %v470 = vunpack.c.l.b16 %v256
        %v471 = vunpack.c.h.b16 %v256
        %v472 = vunpack.c.l.b16 %v257
        %v473 = vunpack.c.h.b16 %v257
        %v474 = vunpack.c.l.b16 %v258
        %v475 = vunpack.c.h.b16 %v258
        %v476 = vunpack.c.l.b16 %v259
        %v477 = vunpack.c.h.b16 %v259
        %v478 = vunpack.c.l.b16 %v260
        %v479 = vunpack.c.h.b16 %v260
        %v480 = vunpack.c.l.b16 %v261
        %v481 = vunpack.c.h.b16 %v261
        %v482 = vunpack.c.l.b16 %v262
        %v483 = vunpack.c.h.b16 %v262
        %v484 = vunpack.c.l.b16 %v263
        %v485 = vunpack.c.h.b16 %v263
        %v486 = vunpack.c.l.b16 %v264
        %v487 = vunpack.c.h.b16 %v264
        %v488 = vpack.c.b16 %v362, %v360
        %v489 = vpack.c.b16 %v363, %v361
        %v490 = vpack.c.b16 %v366, %v364
        %v491 = vpack.c.b16 %v367, %v365
        %v492 = vpack.c.b16 %v370, %v368
        %v493 = vpack.c.b16 %v371, %v369
        %v494 = vpack.c.b16 %v374, %v372
        %v495 = vpack.c.b16 %v375, %v373
        %v496 = vpack.c.b16 %v378, %v376
        %v497 = vpack.c.b16 %v379, %v377
        %v498 = vpack.c.b16 %v382, %v380
        %v499 = vpack.c.b16 %v383, %v381
        %v500 = vpack.c.b16 %v386, %v384
        %v501 = vpack.c.b16 %v387, %v385
        %v502 = vpack.c.b16 %v390, %v388
        %v503 = vpack.c.b16 %v391, %v389
        %v504 = vpack.c.b16 %v394, %v392
        %v505 = vpack.c.b16 %v395, %v393
        %v506 = vpack.c.b16 %v398, %v396
        %v507 = vpack.c.b16 %v399, %v397
        %v508 = vpack.c.b16 %v402, %v400
        %v509 = vpack.c.b16 %v403, %v401
        %v510 = vpack.c.b16 %v406, %v404
        %v511 = vpack.c.b16 %v407, %v405
        %v512 = vpack.c.b16 %v410, %v408
        %v513 = vpack.c.b16 %v411, %v409
        %v514 = vpack.c.b16 %v414, %v412
        %v515 = vpack.c.b16 %v415, %v413
        %v516 = vpack.c.b16 %v418, %v416
        %v517 = vpack.c.b16 %v419, %v417
        %v518 = vpack.c.b16 %v422, %v420
        %v519 = vpack.c.b16 %v423, %v421
        %v520 = vpack.c.b16 %v426, %v424
        %v521 = vpack.c.b16 %v427, %v425
        %v522 = vpack.c.b16 %v430, %v428
        %v523 = vpack.c.b16 %v431, %v429
        %v524 = vpack.c.b16 %v434, %v432
        %v525 = vpack.c.b16 %v435, %v433
        %v526 = vpack.c.b16 %v438, %v436
        %v527 = vpack.c.b16 %v439, %v437
        %v528 = vpack.c.b16 %v442, %v440
        %v529 = vpack.c.b16 %v443, %v441
        %v530 = vpack.c.b16 %v446, %v444
        %v531 = vpack.c.b16 %v447, %v445
        %v532 = vpack.c.b16 %v450, %v448
        %v533 = vpack.c.b16 %v451, %v449
        %v534 = vpack.c.b16 %v454, %v452
        %v535 = vpack.c.b16 %v455, %v453
        %v536 = vpack.c.b16 %v458, %v456
        %v537 = vpack.c.b16 %v459, %v457
        %v538 = vpack.c.b16 %v462, %v460
        %v539 = vpack.c.b16 %v463, %v461
        %v540 = vpack.c.b16 %v466, %v464
        %v541 = vpack.c.b16 %v467, %v465
        %v542 = vpack.c.b16 %v470, %v468
        %v543 = vpack.c.b16 %v471, %v469
        %v544 = vpack.c.b16 %v474, %v472
        %v545 = vpack.c.b16 %v475, %v473
        %v546 = vpack.c.b16 %v478, %v476
        %v547 = vpack.c.b16 %v479, %v477
        %v548 = vpack.c.b16 %v482, %v480
        %v549 = vpack.c.b16 %v483, %v481
        %v550 = vpack.c.b16 %v486, %v484
        %v551 = vpack.c.b16 %v487, %v485
        %v608 = vunpack.c.l.b16 %v265
        %v609 = vunpack.c.l.b16 %v266
        %v610 = vunpack.c.l.b16 %v267
        %v611 = vunpack.c.l.b16 %v268
        %v612 = vunpack.c.l.b16 %v269
        %v613 = vunpack.c.l.b16 %v270
        %v614 = vunpack.c.l.b16 %v271
        %v615 = vunpack.c.l.b16 %v272
        %v616 = vunpack.c.l.b16 %v273
        %v617 = vunpack.c.l.b16 %v274
        %v618 = vunpack.c.l.b16 %v275
        %v619 = vunpack.c.l.b16 %v276
        %v620 = vunpack.c.l.b16 %v277
        %v621 = vunpack.c.l.b16 %v278
        %v622 = vunpack.c.l.b16 %v279
        %v623 = vunpack.c.l.b16 %v280
        %v624 = vunpack.c.l.b16 %v281
        %v625 = vunpack.c.l.b16 %v282
        %v626 = vunpack.c.l.b16 %v283
        %v627 = vunpack.c.l.b16 %v284
        %v628 = vunpack.c.l.b16 %v285
        %v629 = vunpack.c.l.b16 %v286
        %v630 = vunpack.c.l.b16 %v287
        %v631 = vunpack.c.l.b16 %v288
        %v632 = vpack.c.b16 %v609, %v608
        %v633 = vpack.c.b16 %v611, %v610
        %v634 = vpack.c.b16 %v613, %v612
        %v635 = vpack.c.b16 %v615, %v614
        %v636 = vpack.c.b16 %v617, %v616
        %v637 = vpack.c.b16 %v619, %v618
        %v638 = vpack.c.b16 %v621, %v620
        %v639 = vpack.c.b16 %v623, %v622
        %v640 = vpack.c.b16 %v625, %v624
        %v641 = vpack.c.b16 %v627, %v626
        %v642 = vpack.c.b16 %v629, %v628
        %v643 = vpack.c.b16 %v631, %v630
        %vm656 = vcmask 523264
        %v658 = vsel %vm656, %v489, 0
        %v661 = vsel %vm656, %v491, 0
        %v664 = vsel %vm656, %v493, 0
        %v667 = vsel %vm656, %v495, 0
        %v670 = vsel %vm656, %v497, 0
        %v673 = vsel %vm656, %v499, 0
        %v676 = vsel %vm656, %v501, 0
        %v679 = vsel %vm656, %v503, 0
        %v682 = vsel %vm656, %v505, 0
        %v685 = vsel %vm656, %v507, 0
        %v688 = vsel %vm656, %v509, 0
        %v691 = vsel %vm656, %v511, 0
        %v694 = vsel %vm656, %v513, 0
        %v697 = vsel %vm656, %v515, 0
        %v700 = vsel %vm656, %v517, 0
        %v703 = vsel %vm656, %v519, 0
        %v706 = vsel %vm656, %v521, 0
        %v709 = vsel %vm656, %v523, 0
        %v712 = vsel %vm656, %v525, 0
        %v715 = vsel %vm656, %v527, 0
        %v718 = vsel %vm656, %v529, 0
        %v721 = vsel %vm656, %v531, 0
        %v724 = vsel %vm656, %v533, 0
        %v727 = vsel %vm656, %v535, 0
        %v730 = vsel %vm656, %v537, 0
        %v733 = vsel %vm656, %v539, 0
        %v736 = vsel %vm656, %v541, 0
        %v739 = vsel %vm656, %v543, 0
        %v742 = vsel %vm656, %v545, 0
        %v745 = vsel %vm656, %v547, 0
        %v748 = vsel %vm656, %v549, 0
        %v751 = vsel %vm656, %v551, 0
        %753 = vmatprep.subr.bf16.mxu0 0
        %754 = vmatpush1.bf16.msra.mxu0 %v639
        %755 = vmatprep.subr.bf16.mxu0 0
        %756 = vmatpush1.bf16.msra.mxu0 %v638
        %757 = vmatprep.subr.bf16.mxu0 0
        %758 = vmatpush1.bf16.msra.mxu0 %v637
        %759 = vmatprep.subr.bf16.mxu0 0
        %760 = vmatpush1.bf16.msra.mxu0 %v636
        %761 = vmatprep.subr.bf16.mxu0 0
        %762 = vmatpush1.bf16.msra.mxu0 %v635
        %763 = vmatprep.subr.bf16.mxu0 0
        %764 = vmatpush1.bf16.msra.mxu0 %v634
        %765 = vmatprep.subr.bf16.mxu0 0
        %766 = vmatpush1.bf16.msra.mxu0 %v633
        %767 = vmatprep.subr.bf16.mxu0 0
        %768 = vmatpush1.bf16.msra.mxu0 %v632
        %769 = vmatprep.subr.bf16.mxu0 0
        %770 = vmatpush2.bf16.msra.mxu0 0
        %771 = vmatprep.subr.bf16.mxu0 0
        %772 = vmatpush2.bf16.msra.mxu0 0
        %773 = vmatprep.subr.bf16.mxu0 0
        %774 = vmatpush2.bf16.msra.mxu0 0
        %775 = vmatprep.subr.bf16.mxu0 0
        %776 = vmatpush2.bf16.msra.mxu0 0
        %777 = vmatprep.subr.bf16.mxu0 0
        %778 = vmatpush2.bf16.msra.mxu0 %v643
        %779 = vmatprep.subr.bf16.mxu0 0
        %780 = vmatpush2.bf16.msra.mxu0 %v642
        %781 = vmatprep.subr.bf16.mxu0 0
        %782 = vmatpush2.bf16.msra.mxu0 %v641
        %783 = vmatprep.subr.bf16.mxu0 0
        %784 = vmatpush2.bf16.msra.mxu0 %v640
        %785 = vmatprep.mubr.bf16.mxu0 %v658
        %786 = vmatmul.mubr.bf16.gmra.mxu0 %v488
        %v787 = vpop.f32.mrf.mxu0
        %v788 = vadd.f32 %v294, %v787
        %v789 = vpop.f32.mrf.mxu0
        %v790 = vpop.f32.mrf.mxu0
        %v791 = vadd.f32 %v294, %v790
        %v792 = vpop.f32.mrf.mxu0
        %793 = vmatprep.mubr.bf16.mxu0 %v661
        %794 = vmatmul.mubr.bf16.gmra.mxu0 %v490
        %v795 = vpop.f32.mrf.mxu0
        %v796 = vadd.f32 %v294, %v795
        %v797 = vpop.f32.mrf.mxu0
        %v798 = vpop.f32.mrf.mxu0
        %v799 = vadd.f32 %v294, %v798
        %v800 = vpop.f32.mrf.mxu0
        %801 = vmatprep.mubr.bf16.mxu0 %v664
        %802 = vmatmul.mubr.bf16.gmra.mxu0 %v492
        %v803 = vpop.f32.mrf.mxu0
        %v804 = vadd.f32 %v294, %v803
        %v805 = vpop.f32.mrf.mxu0
        %v806 = vpop.f32.mrf.mxu0
        %v807 = vadd.f32 %v294, %v806
        %v808 = vpop.f32.mrf.mxu0
        %809 = vmatprep.mubr.bf16.mxu0 %v667
        %810 = vmatmul.mubr.bf16.gmra.mxu0 %v494
        %v811 = vpop.f32.mrf.mxu0
        %v812 = vadd.f32 %v294, %v811
        %v813 = vpop.f32.mrf.mxu0
        %v814 = vpop.f32.mrf.mxu0
        %v815 = vadd.f32 %v294, %v814
        %v816 = vpop.f32.mrf.mxu0
        %817 = vmatprep.mubr.bf16.mxu0 %v670
        %818 = vmatmul.mubr.bf16.gmra.mxu0 %v496
        %v819 = vpop.f32.mrf.mxu0
        %v820 = vadd.f32 %v294, %v819
        %v821 = vpop.f32.mrf.mxu0
        %v822 = vpop.f32.mrf.mxu0
        %v823 = vadd.f32 %v294, %v822
        %v824 = vpop.f32.mrf.mxu0
        %825 = vmatprep.mubr.bf16.mxu0 %v673
        %826 = vmatmul.mubr.bf16.gmra.mxu0 %v498
        %v827 = vpop.f32.mrf.mxu0
        %v828 = vadd.f32 %v294, %v827
        %v829 = vpop.f32.mrf.mxu0
        %v830 = vpop.f32.mrf.mxu0
        %v831 = vadd.f32 %v294, %v830
        %v832 = vpop.f32.mrf.mxu0
        %833 = vmatprep.mubr.bf16.mxu0 %v676
        %834 = vmatmul.mubr.bf16.gmra.mxu0 %v500
        %v835 = vpop.f32.mrf.mxu0
        %v836 = vadd.f32 %v294, %v835
        %v837 = vpop.f32.mrf.mxu0
        %v838 = vpop.f32.mrf.mxu0
        %v839 = vadd.f32 %v294, %v838
        %v840 = vpop.f32.mrf.mxu0
        %841 = vmatprep.mubr.bf16.mxu0 %v679
        %842 = vmatmul.mubr.bf16.gmra.mxu0 %v502
        %v843 = vpop.f32.mrf.mxu0
        %v844 = vadd.f32 %v294, %v843
        %v845 = vpop.f32.mrf.mxu0
        %v846 = vpop.f32.mrf.mxu0
        %v847 = vadd.f32 %v294, %v846
        %v848 = vpop.f32.mrf.mxu0
        %849 = vmatprep.mubr.bf16.mxu0 %v682
        %850 = vmatmul.mubr.bf16.gmra.mxu0 %v504
        %v851 = vpop.f32.mrf.mxu0
        %v852 = vadd.f32 %v294, %v851
        %v853 = vpop.f32.mrf.mxu0
        %v854 = vpop.f32.mrf.mxu0
        %v855 = vadd.f32 %v294, %v854
        %v856 = vpop.f32.mrf.mxu0
        %857 = vmatprep.mubr.bf16.mxu0 %v685
        %858 = vmatmul.mubr.bf16.gmra.mxu0 %v506
        %v859 = vpop.f32.mrf.mxu0
        %v860 = vadd.f32 %v294, %v859
        %v861 = vpop.f32.mrf.mxu0
        %v862 = vpop.f32.mrf.mxu0
        %v863 = vadd.f32 %v294, %v862
        %v864 = vpop.f32.mrf.mxu0
        %865 = vmatprep.mubr.bf16.mxu0 %v688
        %866 = vmatmul.mubr.bf16.gmra.mxu0 %v508
        %v867 = vpop.f32.mrf.mxu0
        %v868 = vadd.f32 %v294, %v867
        %v869 = vpop.f32.mrf.mxu0
        %v870 = vpop.f32.mrf.mxu0
        %v871 = vadd.f32 %v294, %v870
        %v872 = vpop.f32.mrf.mxu0
        %873 = vmatprep.mubr.bf16.mxu0 %v691
        %874 = vmatmul.mubr.bf16.gmra.mxu0 %v510
        %v875 = vpop.f32.mrf.mxu0
        %v876 = vadd.f32 %v294, %v875
        %v877 = vpop.f32.mrf.mxu0
        %v878 = vpop.f32.mrf.mxu0
        %v879 = vadd.f32 %v294, %v878
        %v880 = vpop.f32.mrf.mxu0
        %881 = vmatprep.mubr.bf16.mxu0 %v694
        %882 = vmatmul.mubr.bf16.gmra.mxu0 %v512
        %v883 = vpop.f32.mrf.mxu0
        %v884 = vadd.f32 %v294, %v883
        %v885 = vpop.f32.mrf.mxu0
        %v886 = vpop.f32.mrf.mxu0
        %v887 = vadd.f32 %v294, %v886
        %v888 = vpop.f32.mrf.mxu0
        %889 = vmatprep.mubr.bf16.mxu0 %v697
        %890 = vmatmul.mubr.bf16.gmra.mxu0 %v514
        %v891 = vpop.f32.mrf.mxu0
        %v892 = vadd.f32 %v294, %v891
        %v893 = vpop.f32.mrf.mxu0
        %v894 = vpop.f32.mrf.mxu0
        %v895 = vadd.f32 %v294, %v894
        %v896 = vpop.f32.mrf.mxu0
        %897 = vmatprep.mubr.bf16.mxu0 %v700
        %898 = vmatmul.mubr.bf16.gmra.mxu0 %v516
        %v899 = vpop.f32.mrf.mxu0
        %v900 = vadd.f32 %v294, %v899
        %v901 = vpop.f32.mrf.mxu0
        %v902 = vpop.f32.mrf.mxu0
        %v903 = vadd.f32 %v294, %v902
        %v904 = vpop.f32.mrf.mxu0
        %905 = vmatprep.mubr.bf16.mxu0 %v703
        %906 = vmatmul.mubr.bf16.gmra.mxu0 %v518
        %v907 = vpop.f32.mrf.mxu0
        %v908 = vadd.f32 %v294, %v907
        %v909 = vpop.f32.mrf.mxu0
        %v910 = vpop.f32.mrf.mxu0
        %v911 = vadd.f32 %v294, %v910
        %v912 = vpop.f32.mrf.mxu0
        %913 = vmatprep.mubr.bf16.mxu0 %v706
        %914 = vmatmul.mubr.bf16.gmra.mxu0 %v520
        %v915 = vpop.f32.mrf.mxu0
        %v916 = vadd.f32 %v294, %v915
        %v917 = vpop.f32.mrf.mxu0
        %v918 = vpop.f32.mrf.mxu0
        %v919 = vadd.f32 %v294, %v918
        %v920 = vpop.f32.mrf.mxu0
        %921 = vmatprep.mubr.bf16.mxu0 %v709
        %922 = vmatmul.mubr.bf16.gmra.mxu0 %v522
        %v923 = vpop.f32.mrf.mxu0
        %v924 = vadd.f32 %v294, %v923
        %v925 = vpop.f32.mrf.mxu0
        %v926 = vpop.f32.mrf.mxu0
        %v927 = vadd.f32 %v294, %v926
        %v928 = vpop.f32.mrf.mxu0
        %929 = vmatprep.mubr.bf16.mxu0 %v712
        %930 = vmatmul.mubr.bf16.gmra.mxu0 %v524
        %v931 = vpop.f32.mrf.mxu0
        %v932 = vadd.f32 %v294, %v931
        %v933 = vpop.f32.mrf.mxu0
        %v934 = vpop.f32.mrf.mxu0
        %v935 = vadd.f32 %v294, %v934
        %v936 = vpop.f32.mrf.mxu0
        %937 = vmatprep.mubr.bf16.mxu0 %v715
        %938 = vmatmul.mubr.bf16.gmra.mxu0 %v526
        %v939 = vpop.f32.mrf.mxu0
        %v940 = vadd.f32 %v294, %v939
        %v941 = vpop.f32.mrf.mxu0
        %v942 = vpop.f32.mrf.mxu0
        %v943 = vadd.f32 %v294, %v942
        %v944 = vpop.f32.mrf.mxu0
        %945 = vmatprep.mubr.bf16.mxu0 %v718
        %946 = vmatmul.mubr.bf16.gmra.mxu0 %v528
        %v947 = vpop.f32.mrf.mxu0
        %v948 = vadd.f32 %v294, %v947
        %v949 = vpop.f32.mrf.mxu0
        %v950 = vpop.f32.mrf.mxu0
        %v951 = vadd.f32 %v294, %v950
        %v952 = vpop.f32.mrf.mxu0
        %953 = vmatprep.mubr.bf16.mxu0 %v721
        %954 = vmatmul.mubr.bf16.gmra.mxu0 %v530
        %v955 = vpop.f32.mrf.mxu0
        %v956 = vadd.f32 %v294, %v955
        %v957 = vpop.f32.mrf.mxu0
        %v958 = vpop.f32.mrf.mxu0
        %v959 = vadd.f32 %v294, %v958
        %v960 = vpop.f32.mrf.mxu0
        %961 = vmatprep.mubr.bf16.mxu0 %v724
        %962 = vmatmul.mubr.bf16.gmra.mxu0 %v532
        %v963 = vpop.f32.mrf.mxu0
        %v964 = vadd.f32 %v294, %v963
        %v965 = vpop.f32.mrf.mxu0
        %v966 = vpop.f32.mrf.mxu0
        %v967 = vadd.f32 %v294, %v966
        %v968 = vpop.f32.mrf.mxu0
        %969 = vmatprep.mubr.bf16.mxu0 %v727
        %970 = vmatmul.mubr.bf16.gmra.mxu0 %v534
        %v971 = vpop.f32.mrf.mxu0
        %v972 = vadd.f32 %v294, %v971
        %v973 = vpop.f32.mrf.mxu0
        %v974 = vpop.f32.mrf.mxu0
        %v975 = vadd.f32 %v294, %v974
        %v976 = vpop.f32.mrf.mxu0
        %977 = vmatprep.mubr.bf16.mxu0 %v730
        %978 = vmatmul.mubr.bf16.gmra.mxu0 %v536
        %v979 = vpop.f32.mrf.mxu0
        %v980 = vadd.f32 %v294, %v979
        %v981 = vpop.f32.mrf.mxu0
        %v982 = vpop.f32.mrf.mxu0
        %v983 = vadd.f32 %v294, %v982
        %v984 = vpop.f32.mrf.mxu0
        %985 = vmatprep.mubr.bf16.mxu0 %v733
        %986 = vmatmul.mubr.bf16.gmra.mxu0 %v538
        %v987 = vpop.f32.mrf.mxu0
        %v988 = vadd.f32 %v294, %v987
        %v989 = vpop.f32.mrf.mxu0
        %v990 = vpop.f32.mrf.mxu0
        %v991 = vadd.f32 %v294, %v990
        %v992 = vpop.f32.mrf.mxu0
        %993 = vmatprep.mubr.bf16.mxu0 %v736
        %994 = vmatmul.mubr.bf16.gmra.mxu0 %v540
        %v995 = vpop.f32.mrf.mxu0
        %v996 = vadd.f32 %v294, %v995
        %v997 = vpop.f32.mrf.mxu0
        %v998 = vpop.f32.mrf.mxu0
        %v999 = vadd.f32 %v294, %v998
        %v1000 = vpop.f32.mrf.mxu0
        %1001 = vmatprep.mubr.bf16.mxu0 %v739
        %1002 = vmatmul.mubr.bf16.gmra.mxu0 %v542
        %v1003 = vpop.f32.mrf.mxu0
        %v1004 = vadd.f32 %v294, %v1003
        %v1005 = vpop.f32.mrf.mxu0
        %v1006 = vpop.f32.mrf.mxu0
        %v1007 = vadd.f32 %v294, %v1006
        %v1008 = vpop.f32.mrf.mxu0
        %1009 = vmatprep.mubr.bf16.mxu0 %v742
        %1010 = vmatmul.mubr.bf16.gmra.mxu0 %v544
        %v1011 = vpop.f32.mrf.mxu0
        %v1012 = vadd.f32 %v294, %v1011
        %v1013 = vpop.f32.mrf.mxu0
        %v1014 = vpop.f32.mrf.mxu0
        %v1015 = vadd.f32 %v294, %v1014
        %v1016 = vpop.f32.mrf.mxu0
        %1017 = vmatprep.mubr.bf16.mxu0 %v745
        %1018 = vmatmul.mubr.bf16.gmra.mxu0 %v546
        %v1019 = vpop.f32.mrf.mxu0
        %v1020 = vadd.f32 %v294, %v1019
        %v1021 = vpop.f32.mrf.mxu0
        %v1022 = vpop.f32.mrf.mxu0
        %v1023 = vadd.f32 %v294, %v1022
        %v1024 = vpop.f32.mrf.mxu0
        %1025 = vmatprep.mubr.bf16.mxu0 %v748
        %1026 = vmatmul.mubr.bf16.gmra.mxu0 %v548
        %v1027 = vpop.f32.mrf.mxu0
        %v1028 = vadd.f32 %v294, %v1027
        %v1029 = vpop.f32.mrf.mxu0
        %v1030 = vpop.f32.mrf.mxu0
        %v1031 = vadd.f32 %v294, %v1030
        %v1032 = vpop.f32.mrf.mxu0
        %1033 = vmatprep.mubr.bf16.mxu0 %v751
        %1034 = vmatmul.mubr.bf16.gmra.mxu0 %v550
        %v1035 = vpop.f32.mrf.mxu0
        %v1036 = vadd.f32 %v294, %v1035
        %v1037 = vpop.f32.mrf.mxu0
        %v1038 = vpop.f32.mrf.mxu0
        %v1039 = vadd.f32 %v294, %v1038
        %v1040 = vpop.f32.mrf.mxu0
        %1041 = vdwg.mxu0
        %v1042 = vmax.f32 %v788, 0.0
        %v1043 = vmax.f32 %v791, 0.0
        %v1044 = vmax.f32 %v796, 0.0
        %v1045 = vmax.f32 %v799, 0.0
        %v1046 = vmax.f32 %v804, 0.0
        %v1047 = vmax.f32 %v807, 0.0
        %v1048 = vmax.f32 %v812, 0.0
        %v1049 = vmax.f32 %v815, 0.0
        %v1050 = vmax.f32 %v820, 0.0
        %v1051 = vmax.f32 %v823, 0.0
        %v1052 = vmax.f32 %v828, 0.0
        %v1053 = vmax.f32 %v831, 0.0
        %v1054 = vmax.f32 %v836, 0.0
        %v1055 = vmax.f32 %v839, 0.0
        %v1056 = vmax.f32 %v844, 0.0
        %v1057 = vmax.f32 %v847, 0.0
        %v1058 = vmax.f32 %v852, 0.0
        %v1059 = vmax.f32 %v855, 0.0
        %v1060 = vmax.f32 %v860, 0.0
        %v1061 = vmax.f32 %v863, 0.0
        %v1062 = vmax.f32 %v868, 0.0
        %v1063 = vmax.f32 %v871, 0.0
        %v1064 = vmax.f32 %v876, 0.0
        %v1065 = vmax.f32 %v879, 0.0
        %v1066 = vmax.f32 %v884, 0.0
        %v1067 = vmax.f32 %v887, 0.0
        %v1068 = vmax.f32 %v892, 0.0
        %v1069 = vmax.f32 %v895, 0.0
        %v1070 = vmax.f32 %v900, 0.0
        %v1071 = vmax.f32 %v903, 0.0
        %v1072 = vmax.f32 %v908, 0.0
        %v1073 = vmax.f32 %v911, 0.0
        %v1074 = vmax.f32 %v916, 0.0
        %v1075 = vmax.f32 %v919, 0.0
        %v1076 = vmax.f32 %v924, 0.0
        %v1077 = vmax.f32 %v927, 0.0
        %v1078 = vmax.f32 %v932, 0.0
        %v1079 = vmax.f32 %v935, 0.0
        %v1080 = vmax.f32 %v940, 0.0
        %v1081 = vmax.f32 %v943, 0.0
        %v1082 = vmax.f32 %v948, 0.0
        %v1083 = vmax.f32 %v951, 0.0
        %v1084 = vmax.f32 %v956, 0.0
        %v1085 = vmax.f32 %v959, 0.0
        %v1086 = vmax.f32 %v964, 0.0
        %v1087 = vmax.f32 %v967, 0.0
        %v1088 = vmax.f32 %v972, 0.0
        %v1089 = vmax.f32 %v975, 0.0
        %v1090 = vmax.f32 %v980, 0.0
        %v1091 = vmax.f32 %v983, 0.0
        %v1092 = vmax.f32 %v988, 0.0
        %v1093 = vmax.f32 %v991, 0.0
        %v1094 = vmax.f32 %v996, 0.0
        %v1095 = vmax.f32 %v999, 0.0
        %v1096 = vmax.f32 %v1004, 0.0
        %v1097 = vmax.f32 %v1007, 0.0
        %v1098 = vmax.f32 %v1012, 0.0
        %v1099 = vmax.f32 %v1015, 0.0
        %v1100 = vmax.f32 %v1020, 0.0
        %v1101 = vmax.f32 %v1023, 0.0
        %v1102 = vmax.f32 %v1028, 0.0
        %v1103 = vmax.f32 %v1031, 0.0
        %v1104 = vmax.f32 %v1036, 0.0
        %v1105 = vmax.f32 %v1039, 0.0
        %v1106 = vpack.c.bf16 %v1043, %v1042
        %v1107 = vpack.c.bf16 %v1045, %v1044
        %v1108 = vpack.c.bf16 %v1047, %v1046
        %v1109 = vpack.c.bf16 %v1049, %v1048
        %v1110 = vpack.c.bf16 %v1051, %v1050
        %v1111 = vpack.c.bf16 %v1053, %v1052
        %v1112 = vpack.c.bf16 %v1055, %v1054
        %v1113 = vpack.c.bf16 %v1057, %v1056
        %v1114 = vpack.c.bf16 %v1059, %v1058
        %v1115 = vpack.c.bf16 %v1061, %v1060
        %v1116 = vpack.c.bf16 %v1063, %v1062
        %v1117 = vpack.c.bf16 %v1065, %v1064
        %v1118 = vpack.c.bf16 %v1067, %v1066
        %v1119 = vpack.c.bf16 %v1069, %v1068
        %v1120 = vpack.c.bf16 %v1071, %v1070
        %v1121 = vpack.c.bf16 %v1073, %v1072
        %v1122 = vpack.c.bf16 %v1075, %v1074
        %v1123 = vpack.c.bf16 %v1077, %v1076
        %v1124 = vpack.c.bf16 %v1079, %v1078
        %v1125 = vpack.c.bf16 %v1081, %v1080
        %v1126 = vpack.c.bf16 %v1083, %v1082
        %v1127 = vpack.c.bf16 %v1085, %v1084
        %v1128 = vpack.c.bf16 %v1087, %v1086
        %v1129 = vpack.c.bf16 %v1089, %v1088
        %v1130 = vpack.c.bf16 %v1091, %v1090
        %v1131 = vpack.c.bf16 %v1093, %v1092
        %v1132 = vpack.c.bf16 %v1095, %v1094
        %v1133 = vpack.c.bf16 %v1097, %v1096
        %v1134 = vpack.c.bf16 %v1099, %v1098
        %v1135 = vpack.c.bf16 %v1101, %v1100
        %v1136 = vpack.c.bf16 %v1103, %v1102
        %v1137 = vpack.c.bf16 %v1105, %v1104
        %v1170 = vunpack.c.l.b16 %v1106
        %v1171 = vunpack.c.h.b16 %v1106
        %v1172 = vunpack.c.l.b16 %v1107
        %v1173 = vunpack.c.h.b16 %v1107
        %v1174 = vunpack.c.l.b16 %v1108
        %v1175 = vunpack.c.h.b16 %v1108
        %v1176 = vunpack.c.l.b16 %v1109
        %v1177 = vunpack.c.h.b16 %v1109
        %v1178 = vunpack.c.l.b16 %v1110
        %v1179 = vunpack.c.h.b16 %v1110
        %v1180 = vunpack.c.l.b16 %v1111
        %v1181 = vunpack.c.h.b16 %v1111
        %v1182 = vunpack.c.l.b16 %v1112
        %v1183 = vunpack.c.h.b16 %v1112
        %v1184 = vunpack.c.l.b16 %v1113
        %v1185 = vunpack.c.h.b16 %v1113
        %v1186 = vunpack.c.l.b16 %v1114
        %v1187 = vunpack.c.h.b16 %v1114
        %v1188 = vunpack.c.l.b16 %v1115
        %v1189 = vunpack.c.h.b16 %v1115
        %v1190 = vunpack.c.l.b16 %v1116
        %v1191 = vunpack.c.h.b16 %v1116
        %v1192 = vunpack.c.l.b16 %v1117
        %v1193 = vunpack.c.h.b16 %v1117
        %v1194 = vunpack.c.l.b16 %v1118
        %v1195 = vunpack.c.h.b16 %v1118
        %v1196 = vunpack.c.l.b16 %v1119
        %v1197 = vunpack.c.h.b16 %v1119
        %v1198 = vunpack.c.l.b16 %v1120
        %v1199 = vunpack.c.h.b16 %v1120
        %v1200 = vunpack.c.l.b16 %v1121
        %v1201 = vunpack.c.h.b16 %v1121
        %v1202 = vunpack.c.l.b16 %v1122
        %v1203 = vunpack.c.h.b16 %v1122
        %v1204 = vunpack.c.l.b16 %v1123
        %v1205 = vunpack.c.h.b16 %v1123
        %v1206 = vunpack.c.l.b16 %v1124
        %v1207 = vunpack.c.h.b16 %v1124
        %v1208 = vunpack.c.l.b16 %v1125
        %v1209 = vunpack.c.h.b16 %v1125
        %v1210 = vunpack.c.l.b16 %v1126
        %v1211 = vunpack.c.h.b16 %v1126
        %v1212 = vunpack.c.l.b16 %v1127
        %v1213 = vunpack.c.h.b16 %v1127
        %v1214 = vunpack.c.l.b16 %v1128
        %v1215 = vunpack.c.h.b16 %v1128
        %v1216 = vunpack.c.l.b16 %v1129
        %v1217 = vunpack.c.h.b16 %v1129
        %v1218 = vunpack.c.l.b16 %v1130
        %v1219 = vunpack.c.h.b16 %v1130
        %v1220 = vunpack.c.l.b16 %v1131
        %v1221 = vunpack.c.h.b16 %v1131
        %v1222 = vunpack.c.l.b16 %v1132
        %v1223 = vunpack.c.h.b16 %v1132
        %v1224 = vunpack.c.l.b16 %v1133
        %v1225 = vunpack.c.h.b16 %v1133
        %v1226 = vunpack.c.l.b16 %v1134
        %v1227 = vunpack.c.h.b16 %v1134
        %v1228 = vunpack.c.l.b16 %v1135
        %v1229 = vunpack.c.h.b16 %v1135
        %v1230 = vunpack.c.l.b16 %v1136
        %v1231 = vunpack.c.h.b16 %v1136
        %v1232 = vunpack.c.l.b16 %v1137
        %v1233 = vunpack.c.h.b16 %v1137
        %v1234 = vpack.c.b16 %v1170, %v1170
        %v1235 = vpack.c.b16 %v1171, %v1171
        %v1236 = vpack.c.b16 %v1172, %v1172
        %v1237 = vpack.c.b16 %v1173, %v1173
        %v1238 = vpack.c.b16 %v1174, %v1174
        %v1239 = vpack.c.b16 %v1175, %v1175
        %v1240 = vpack.c.b16 %v1176, %v1176
        %v1241 = vpack.c.b16 %v1177, %v1177
        %v1242 = vpack.c.b16 %v1178, %v1178
        %v1243 = vpack.c.b16 %v1179, %v1179
        %v1244 = vpack.c.b16 %v1180, %v1180
        %v1245 = vpack.c.b16 %v1181, %v1181
        %v1246 = vpack.c.b16 %v1182, %v1182
        %v1247 = vpack.c.b16 %v1183, %v1183
        %v1248 = vpack.c.b16 %v1184, %v1184
        %v1249 = vpack.c.b16 %v1185, %v1185
        %v1250 = vpack.c.b16 %v1186, %v1186
        %v1251 = vpack.c.b16 %v1187, %v1187
        %v1252 = vpack.c.b16 %v1188, %v1188
        %v1253 = vpack.c.b16 %v1189, %v1189
        %v1254 = vpack.c.b16 %v1190, %v1190
        %v1255 = vpack.c.b16 %v1191, %v1191
        %v1256 = vpack.c.b16 %v1192, %v1192
        %v1257 = vpack.c.b16 %v1193, %v1193
        %v1258 = vpack.c.b16 %v1194, %v1194
        %v1259 = vpack.c.b16 %v1195, %v1195
        %v1260 = vpack.c.b16 %v1196, %v1196
        %v1261 = vpack.c.b16 %v1197, %v1197
        %v1262 = vpack.c.b16 %v1198, %v1198
        %v1263 = vpack.c.b16 %v1199, %v1199
        %v1264 = vpack.c.b16 %v1200, %v1200
        %v1265 = vpack.c.b16 %v1201, %v1201
        %v1266 = vpack.c.b16 %v1202, %v1202
        %v1267 = vpack.c.b16 %v1203, %v1203
        %v1268 = vpack.c.b16 %v1204, %v1204
        %v1269 = vpack.c.b16 %v1205, %v1205
        %v1270 = vpack.c.b16 %v1206, %v1206
        %v1271 = vpack.c.b16 %v1207, %v1207
        %v1272 = vpack.c.b16 %v1208, %v1208
        %v1273 = vpack.c.b16 %v1209, %v1209
        %v1274 = vpack.c.b16 %v1210, %v1210
        %v1275 = vpack.c.b16 %v1211, %v1211
        %v1276 = vpack.c.b16 %v1212, %v1212
        %v1277 = vpack.c.b16 %v1213, %v1213
        %v1278 = vpack.c.b16 %v1214, %v1214
        %v1279 = vpack.c.b16 %v1215, %v1215
        %v1280 = vpack.c.b16 %v1216, %v1216
        %v1281 = vpack.c.b16 %v1217, %v1217
        %v1282 = vpack.c.b16 %v1218, %v1218
        %v1283 = vpack.c.b16 %v1219, %v1219
        %v1284 = vpack.c.b16 %v1220, %v1220
        %v1285 = vpack.c.b16 %v1221, %v1221
        %v1286 = vpack.c.b16 %v1222, %v1222
        %v1287 = vpack.c.b16 %v1223, %v1223
        %v1288 = vpack.c.b16 %v1224, %v1224
        %v1289 = vpack.c.b16 %v1225, %v1225
        %v1290 = vpack.c.b16 %v1226, %v1226
        %v1291 = vpack.c.b16 %v1227, %v1227
        %v1292 = vpack.c.b16 %v1228, %v1228
        %v1293 = vpack.c.b16 %v1229, %v1229
        %v1294 = vpack.c.b16 %v1230, %v1230
        %v1295 = vpack.c.b16 %v1231, %v1231
        %v1296 = vpack.c.b16 %v1232, %v1232
        %v1297 = vpack.c.b16 %v1233, %v1233
        %vm1362 = vcmask 257024
        %1363 = vst.msk [vmem:[%s177] sm:$0xf] %vm1362, %v1234
        %1364 = vst.msk [vmem:[%s177 + $0x4] sm:$0xf] %vm1362, %v1235
        %1365 = vst.msk [vmem:[%s177 + $0x8] sm:$0xf] %vm1362, %v1236
        %1366 = vst.msk [vmem:[%s177 + $0xc] sm:$0xf] %vm1362, %v1237
        %1367 = vst.msk [vmem:[%s177 + $0x10] sm:$0xf] %vm1362, %v1238
        %1368 = vst.msk [vmem:[%s177 + $0x14] sm:$0xf] %vm1362, %v1239
        %1369 = vst.msk [vmem:[%s177 + $0x18] sm:$0xf] %vm1362, %v1240
        %1370 = vst.msk [vmem:[%s177 + $0x1c] sm:$0xf] %vm1362, %v1241
        %1371 = vst.msk [vmem:[%s177 + $0x20] sm:$0xf] %vm1362, %v1242
        %1372 = vst.msk [vmem:[%s177 + $0x24] sm:$0xf] %vm1362, %v1243
        %1373 = vst.msk [vmem:[%s177 + $0x28] sm:$0xf] %vm1362, %v1244
        %1374 = vst.msk [vmem:[%s177 + $0x2c] sm:$0xf] %vm1362, %v1245
        %1375 = vst.msk [vmem:[%s177 + $0x30] sm:$0xf] %vm1362, %v1246
        %1376 = vst.msk [vmem:[%s177 + $0x34] sm:$0xf] %vm1362, %v1247
        %1377 = vst.msk [vmem:[%s177 + $0x38] sm:$0xf] %vm1362, %v1248
        %1378 = vst.msk [vmem:[%s177 + $0x3c] sm:$0xf] %vm1362, %v1249
        %1379 = vst.msk [vmem:[%s177 + $0x40] sm:$0xf] %vm1362, %v1250
        %1380 = vst.msk [vmem:[%s177 + $0x44] sm:$0xf] %vm1362, %v1251
        %1381 = vst.msk [vmem:[%s177 + $0x48] sm:$0xf] %vm1362, %v1252
        %1382 = vst.msk [vmem:[%s177 + $0x4c] sm:$0xf] %vm1362, %v1253
        %1383 = vst.msk [vmem:[%s177 + $0x50] sm:$0xf] %vm1362, %v1254
        %1384 = vst.msk [vmem:[%s177 + $0x54] sm:$0xf] %vm1362, %v1255
        %1385 = vst.msk [vmem:[%s177 + $0x58] sm:$0xf] %vm1362, %v1256
        %1386 = vst.msk [vmem:[%s177 + $0x5c] sm:$0xf] %vm1362, %v1257
        %1387 = vst.msk [vmem:[%s177 + $0x60] sm:$0xf] %vm1362, %v1258
        %1388 = vst.msk [vmem:[%s177 + $0x64] sm:$0xf] %vm1362, %v1259
        %1389 = vst.msk [vmem:[%s177 + $0x68] sm:$0xf] %vm1362, %v1260
        %1390 = vst.msk [vmem:[%s177 + $0x6c] sm:$0xf] %vm1362, %v1261
        %1391 = vst.msk [vmem:[%s177 + $0x70] sm:$0xf] %vm1362, %v1262
        %1392 = vst.msk [vmem:[%s177 + $0x74] sm:$0xf] %vm1362, %v1263
        %1393 = vst.msk [vmem:[%s177 + $0x78] sm:$0xf] %vm1362, %v1264
        %1394 = vst.msk [vmem:[%s177 + $0x7c] sm:$0xf] %vm1362, %v1265
        %1395 = vst.msk [vmem:[%s177 + $0x80] sm:$0xf] %vm1362, %v1266
        %1396 = vst.msk [vmem:[%s177 + $0x84] sm:$0xf] %vm1362, %v1267
        %1397 = vst.msk [vmem:[%s177 + $0x88] sm:$0xf] %vm1362, %v1268
        %1398 = vst.msk [vmem:[%s177 + $0x8c] sm:$0xf] %vm1362, %v1269
        %1399 = vst.msk [vmem:[%s177 + $0x90] sm:$0xf] %vm1362, %v1270
        %1400 = vst.msk [vmem:[%s177 + $0x94] sm:$0xf] %vm1362, %v1271
        %1401 = vst.msk [vmem:[%s177 + $0x98] sm:$0xf] %vm1362, %v1272
        %1402 = vst.msk [vmem:[%s177 + $0x9c] sm:$0xf] %vm1362, %v1273
        %1403 = vst.msk [vmem:[%s177 + $0xa0] sm:$0xf] %vm1362, %v1274
        %1404 = vst.msk [vmem:[%s177 + $0xa4] sm:$0xf] %vm1362, %v1275
        %1405 = vst.msk [vmem:[%s177 + $0xa8] sm:$0xf] %vm1362, %v1276
        %1406 = vst.msk [vmem:[%s177 + $0xac] sm:$0xf] %vm1362, %v1277
        %1407 = vst.msk [vmem:[%s177 + $0xb0] sm:$0xf] %vm1362, %v1278
        %1408 = vst.msk [vmem:[%s177 + $0xb4] sm:$0xf] %vm1362, %v1279
        %1409 = vst.msk [vmem:[%s177 + $0xb8] sm:$0xf] %vm1362, %v1280
        %1410 = vst.msk [vmem:[%s177 + $0xbc] sm:$0xf] %vm1362, %v1281
        %1411 = vst.msk [vmem:[%s177 + $0xc0] sm:$0xf] %vm1362, %v1282
        %1412 = vst.msk [vmem:[%s177 + $0xc4] sm:$0xf] %vm1362, %v1283
        %1413 = vst.msk [vmem:[%s177 + $0xc8] sm:$0xf] %vm1362, %v1284
        %1414 = vst.msk [vmem:[%s177 + $0xcc] sm:$0xf] %vm1362, %v1285
        %1415 = vst.msk [vmem:[%s177 + $0xd0] sm:$0xf] %vm1362, %v1286
        %1416 = vst.msk [vmem:[%s177 + $0xd4] sm:$0xf] %vm1362, %v1287
        %1417 = vst.msk [vmem:[%s177 + $0xd8] sm:$0xf] %vm1362, %v1288
        %1418 = vst.msk [vmem:[%s177 + $0xdc] sm:$0xf] %vm1362, %v1289
        %1419 = vst.msk [vmem:[%s177 + $0xe0] sm:$0xf] %vm1362, %v1290
        %1420 = vst.msk [vmem:[%s177 + $0xe4] sm:$0xf] %vm1362, %v1291
        %1421 = vst.msk [vmem:[%s177 + $0xe8] sm:$0xf] %vm1362, %v1292
        %1422 = vst.msk [vmem:[%s177 + $0xec] sm:$0xf] %vm1362, %v1293
        %1423 = vst.msk [vmem:[%s177 + $0xf0] sm:$0xf] %vm1362, %v1294
        %1424 = vst.msk [vmem:[%s177 + $0xf4] sm:$0xf] %vm1362, %v1295
        %1425 = vst.msk [vmem:[%s177 + $0xf8] sm:$0xf] %vm1362, %v1296
        %1426 = vst.msk [vmem:[%s177 + $0xfc] sm:$0xf] %vm1362, %v1297
        %s1427 = sand.u32 %s90, 1
        %s1428 = sand.u32 %s90, 1
        %s1429 = smul.addr %s1428, 256
        %s1430 = scalar_lea.vmem [#allocation2], %s1429
        // Predicated region
        $region33: #{cnn_reward_forward.4} parent=31 // pred_check
          %p1431 = pneg %p100
        $region34: #{cnn_reward_forward.4} parent=31 // pred_check_branch
          %1433 = sbr.rel (%p1431) target = $region36
        $region35: #{cnn_reward_forward.4} parent=31 // pred_region
          %s1434 = smul.u32 64, %s14
          %s1435 = ssub.s32 100, %s1434
          %p1436 = scmp.lt.s32.totalorder %s1435, 64
          %s1437 = scalar_select %p1436, %s1435, 64
          %s1438 = smul.u32 64, %s1437
          %p1439 = scmp.ne.s32.totalorder 0, %s1438
          %s1440 = smul.addr %s1434, 4
          %s1441 = scalar_lea.vmem %s3, %s1440
          // Predicated region
          $region37: #{cnn_reward_forward.4} parent=35 // pred_check
            %p1442 = pneg %p1439
          $region38: #{cnn_reward_forward.4} parent=35 // pred_check_branch
            %1444 = sbr.rel (%p1442) target = $region40
          $region39: #{cnn_reward_forward.4} parent=35 // pred_region
            // Predicated region
            $region41: #{cnn_reward_forward.4} parent=39 // pred_check
              _
            $region42: #{cnn_reward_forward.4} parent=39 // pred_check_branch
              %1446 = sbr.rel target = $region44
            $region43: #{cnn_reward_forward.4} parent=39 // pred_region
              // Predicated region
              $region63: #{cnn_reward_forward.4} parent=43 // pred_check
                _
              $region64: #{cnn_reward_forward.4} parent=43 // pred_check_branch
                %1622 = sbr.rel (0) target = $region66
              $region65: #{cnn_reward_forward.4} parent=43 // pred_region
                %s1624 = ssub.s32 16, 1
                %s1625 = sshrl.u32 %s1437, 6
                // While loop
                $region67: #{cnn_reward_forward.4} parent=65 // loop_pre_header
                  _
                $region68: #{cnn_reward_forward.4} parent=65 // loop_header
                  %s1627 = sphi 0, %s1629
                  %p1628 = scmp.ge.s32.totalorder %s1627, %s1625
                  %s1632 = sphi 0, %s1765
                  %s1633 = sphi %s1430, %s1768
                  %s1634 = sphi %s1441, %s1769
                $region69: #{cnn_reward_forward.4} parent=65 // loop_header_branch
                  %1631 = sbr.rel (%p1628) target = $region73
                $region70: #{cnn_reward_forward.4} parent=65 // loop_body
                  %v1635 = vld [vmem:[%s1633] sm:%s1624]
                  %1636 = vst [vmem:[%s1634] sm:%s1624] %v1635
                  %v1637 = vld [vmem:[%s1633 + $0x4] sm:%s1624]
                  %1638 = vst [vmem:[%s1634 + $0x4] sm:%s1624] %v1637
                  %v1639 = vld [vmem:[%s1633 + $0x8] sm:%s1624]
                  %1640 = vst [vmem:[%s1634 + $0x8] sm:%s1624] %v1639
                  %v1641 = vld [vmem:[%s1633 + $0xc] sm:%s1624]
                  %1642 = vst [vmem:[%s1634 + $0xc] sm:%s1624] %v1641
                  %v1643 = vld [vmem:[%s1633 + $0x10] sm:%s1624]
                  %1644 = vst [vmem:[%s1634 + $0x10] sm:%s1624] %v1643
                  %v1645 = vld [vmem:[%s1633 + $0x14] sm:%s1624]
                  %1646 = vst [vmem:[%s1634 + $0x14] sm:%s1624] %v1645
                  %v1647 = vld [vmem:[%s1633 + $0x18] sm:%s1624]
                  %1648 = vst [vmem:[%s1634 + $0x18] sm:%s1624] %v1647
                  %v1649 = vld [vmem:[%s1633 + $0x1c] sm:%s1624]
                  %1650 = vst [vmem:[%s1634 + $0x1c] sm:%s1624] %v1649
                  %v1651 = vld [vmem:[%s1633 + $0x20] sm:%s1624]
                  %1652 = vst [vmem:[%s1634 + $0x20] sm:%s1624] %v1651
                  %v1653 = vld [vmem:[%s1633 + $0x24] sm:%s1624]
                  %1654 = vst [vmem:[%s1634 + $0x24] sm:%s1624] %v1653
                  %v1655 = vld [vmem:[%s1633 + $0x28] sm:%s1624]
                  %1656 = vst [vmem:[%s1634 + $0x28] sm:%s1624] %v1655
                  %v1657 = vld [vmem:[%s1633 + $0x2c] sm:%s1624]
                  %1658 = vst [vmem:[%s1634 + $0x2c] sm:%s1624] %v1657
                  %v1659 = vld [vmem:[%s1633 + $0x30] sm:%s1624]
                  %1660 = vst [vmem:[%s1634 + $0x30] sm:%s1624] %v1659
                  %v1661 = vld [vmem:[%s1633 + $0x34] sm:%s1624]
                  %1662 = vst [vmem:[%s1634 + $0x34] sm:%s1624] %v1661
                  %v1663 = vld [vmem:[%s1633 + $0x38] sm:%s1624]
                  %1664 = vst [vmem:[%s1634 + $0x38] sm:%s1624] %v1663
                  %v1665 = vld [vmem:[%s1633 + $0x3c] sm:%s1624]
                  %1666 = vst [vmem:[%s1634 + $0x3c] sm:%s1624] %v1665
                  %v1667 = vld [vmem:[%s1633 + $0x40] sm:%s1624]
                  %1668 = vst [vmem:[%s1634 + $0x40] sm:%s1624] %v1667
                  %v1669 = vld [vmem:[%s1633 + $0x44] sm:%s1624]
                  %1670 = vst [vmem:[%s1634 + $0x44] sm:%s1624] %v1669
                  %v1671 = vld [vmem:[%s1633 + $0x48] sm:%s1624]
                  %1672 = vst [vmem:[%s1634 + $0x48] sm:%s1624] %v1671
                  %v1673 = vld [vmem:[%s1633 + $0x4c] sm:%s1624]
                  %1674 = vst [vmem:[%s1634 + $0x4c] sm:%s1624] %v1673
                  %v1675 = vld [vmem:[%s1633 + $0x50] sm:%s1624]
                  %1676 = vst [vmem:[%s1634 + $0x50] sm:%s1624] %v1675
                  %v1677 = vld [vmem:[%s1633 + $0x54] sm:%s1624]
                  %1678 = vst [vmem:[%s1634 + $0x54] sm:%s1624] %v1677
                  %v1679 = vld [vmem:[%s1633 + $0x58] sm:%s1624]
                  %1680 = vst [vmem:[%s1634 + $0x58] sm:%s1624] %v1679
                  %v1681 = vld [vmem:[%s1633 + $0x5c] sm:%s1624]
                  %1682 = vst [vmem:[%s1634 + $0x5c] sm:%s1624] %v1681
                  %v1683 = vld [vmem:[%s1633 + $0x60] sm:%s1624]
                  %1684 = vst [vmem:[%s1634 + $0x60] sm:%s1624] %v1683
                  %v1685 = vld [vmem:[%s1633 + $0x64] sm:%s1624]
                  %1686 = vst [vmem:[%s1634 + $0x64] sm:%s1624] %v1685
                  %v1687 = vld [vmem:[%s1633 + $0x68] sm:%s1624]
                  %1688 = vst [vmem:[%s1634 + $0x68] sm:%s1624] %v1687
                  %v1689 = vld [vmem:[%s1633 + $0x6c] sm:%s1624]
                  %1690 = vst [vmem:[%s1634 + $0x6c] sm:%s1624] %v1689
                  %v1691 = vld [vmem:[%s1633 + $0x70] sm:%s1624]
                  %1692 = vst [vmem:[%s1634 + $0x70] sm:%s1624] %v1691
                  %v1693 = vld [vmem:[%s1633 + $0x74] sm:%s1624]
                  %1694 = vst [vmem:[%s1634 + $0x74] sm:%s1624] %v1693
                  %v1695 = vld [vmem:[%s1633 + $0x78] sm:%s1624]
                  %1696 = vst [vmem:[%s1634 + $0x78] sm:%s1624] %v1695
                  %v1697 = vld [vmem:[%s1633 + $0x7c] sm:%s1624]
                  %1698 = vst [vmem:[%s1634 + $0x7c] sm:%s1624] %v1697
                  %v1699 = vld [vmem:[%s1633 + $0x80] sm:%s1624]
                  %1700 = vst [vmem:[%s1634 + $0x80] sm:%s1624] %v1699
                  %v1701 = vld [vmem:[%s1633 + $0x84] sm:%s1624]
                  %1702 = vst [vmem:[%s1634 + $0x84] sm:%s1624] %v1701
                  %v1703 = vld [vmem:[%s1633 + $0x88] sm:%s1624]
                  %1704 = vst [vmem:[%s1634 + $0x88] sm:%s1624] %v1703
                  %v1705 = vld [vmem:[%s1633 + $0x8c] sm:%s1624]
                  %1706 = vst [vmem:[%s1634 + $0x8c] sm:%s1624] %v1705
                  %v1707 = vld [vmem:[%s1633 + $0x90] sm:%s1624]
                  %1708 = vst [vmem:[%s1634 + $0x90] sm:%s1624] %v1707
                  %v1709 = vld [vmem:[%s1633 + $0x94] sm:%s1624]
                  %1710 = vst [vmem:[%s1634 + $0x94] sm:%s1624] %v1709
                  %v1711 = vld [vmem:[%s1633 + $0x98] sm:%s1624]
                  %1712 = vst [vmem:[%s1634 + $0x98] sm:%s1624] %v1711
                  %v1713 = vld [vmem:[%s1633 + $0x9c] sm:%s1624]
                  %1714 = vst [vmem:[%s1634 + $0x9c] sm:%s1624] %v1713
                  %v1715 = vld [vmem:[%s1633 + $0xa0] sm:%s1624]
                  %1716 = vst [vmem:[%s1634 + $0xa0] sm:%s1624] %v1715
                  %v1717 = vld [vmem:[%s1633 + $0xa4] sm:%s1624]
                  %1718 = vst [vmem:[%s1634 + $0xa4] sm:%s1624] %v1717
                  %v1719 = vld [vmem:[%s1633 + $0xa8] sm:%s1624]
                  %1720 = vst [vmem:[%s1634 + $0xa8] sm:%s1624] %v1719
                  %v1721 = vld [vmem:[%s1633 + $0xac] sm:%s1624]
                  %1722 = vst [vmem:[%s1634 + $0xac] sm:%s1624] %v1721
                  %v1723 = vld [vmem:[%s1633 + $0xb0] sm:%s1624]
                  %1724 = vst [vmem:[%s1634 + $0xb0] sm:%s1624] %v1723
                  %v1725 = vld [vmem:[%s1633 + $0xb4] sm:%s1624]
                  %1726 = vst [vmem:[%s1634 + $0xb4] sm:%s1624] %v1725
                  %v1727 = vld [vmem:[%s1633 + $0xb8] sm:%s1624]
                  %1728 = vst [vmem:[%s1634 + $0xb8] sm:%s1624] %v1727
                  %v1729 = vld [vmem:[%s1633 + $0xbc] sm:%s1624]
                  %1730 = vst [vmem:[%s1634 + $0xbc] sm:%s1624] %v1729
                  %v1731 = vld [vmem:[%s1633 + $0xc0] sm:%s1624]
                  %1732 = vst [vmem:[%s1634 + $0xc0] sm:%s1624] %v1731
                  %v1733 = vld [vmem:[%s1633 + $0xc4] sm:%s1624]
                  %1734 = vst [vmem:[%s1634 + $0xc4] sm:%s1624] %v1733
                  %v1735 = vld [vmem:[%s1633 + $0xc8] sm:%s1624]
                  %1736 = vst [vmem:[%s1634 + $0xc8] sm:%s1624] %v1735
                  %v1737 = vld [vmem:[%s1633 + $0xcc] sm:%s1624]
                  %1738 = vst [vmem:[%s1634 + $0xcc] sm:%s1624] %v1737
                  %v1739 = vld [vmem:[%s1633 + $0xd0] sm:%s1624]
                  %1740 = vst [vmem:[%s1634 + $0xd0] sm:%s1624] %v1739
                  %v1741 = vld [vmem:[%s1633 + $0xd4] sm:%s1624]
                  %1742 = vst [vmem:[%s1634 + $0xd4] sm:%s1624] %v1741
                  %v1743 = vld [vmem:[%s1633 + $0xd8] sm:%s1624]
                  %1744 = vst [vmem:[%s1634 + $0xd8] sm:%s1624] %v1743
                  %v1745 = vld [vmem:[%s1633 + $0xdc] sm:%s1624]
                  %1746 = vst [vmem:[%s1634 + $0xdc] sm:%s1624] %v1745
                  %v1747 = vld [vmem:[%s1633 + $0xe0] sm:%s1624]
                  %1748 = vst [vmem:[%s1634 + $0xe0] sm:%s1624] %v1747
                  %v1749 = vld [vmem:[%s1633 + $0xe4] sm:%s1624]
                  %1750 = vst [vmem:[%s1634 + $0xe4] sm:%s1624] %v1749
                  %v1751 = vld [vmem:[%s1633 + $0xe8] sm:%s1624]
                  %1752 = vst [vmem:[%s1634 + $0xe8] sm:%s1624] %v1751
                  %v1753 = vld [vmem:[%s1633 + $0xec] sm:%s1624]
                  %1754 = vst [vmem:[%s1634 + $0xec] sm:%s1624] %v1753
                  %v1755 = vld [vmem:[%s1633 + $0xf0] sm:%s1624]
                  %1756 = vst [vmem:[%s1634 + $0xf0] sm:%s1624] %v1755
                  %v1757 = vld [vmem:[%s1633 + $0xf4] sm:%s1624]
                  %1758 = vst [vmem:[%s1634 + $0xf4] sm:%s1624] %v1757
                  %v1759 = vld [vmem:[%s1633 + $0xf8] sm:%s1624]
                  %1760 = vst [vmem:[%s1634 + $0xf8] sm:%s1624] %v1759
                  %v1761 = vld [vmem:[%s1633 + $0xfc] sm:%s1624]
                  %1762 = vst [vmem:[%s1634 + $0xfc] sm:%s1624] %v1761
                  %s1763 = sadd.s32 1, %s1632
                  %p1764 = scmp.ge.s32.totalorder %s1763, %s1625
                  %s1765 = scalar_select %p1764, 0, %s1763
                  %s1766 = smul.u32 %s1765, 256
                  %s1767 = smul.u32 %s1765, 256
                  %s1768 = scalar_lea.vmem %s1430, %s1766 [#allocation2]
                  %s1769 = scalar_lea.vmem %s1441, %s1767
                $region71: #{cnn_reward_forward.4} parent=65 // loop_footer
                  %s1629 = sadd.s32 %s1627, 1
                $region72: #{cnn_reward_forward.4} parent=65 // loop_footer_branch
                  %1626 = sbr.rel target = $region68
                $region73: #{cnn_reward_forward.4} parent=65 // loop_exit
                  _
                %s1770 = sshrl.u32 %s1437, 6
                %s1771 = sand.u32 %s1437, 63
                %s1772 = smul.u32 %s1770, 64
                %s1773 = smul.u32 4, %s1772
                %s1774 = scalar_lea.vmem %s1430, %s1773 [#allocation2]
                %s1775 = smul.u32 4, %s1772
                %s1776 = scalar_lea.vmem %s1441, %s1775
                // While loop
                $region74: #{cnn_reward_forward.4} parent=65 // loop_pre_header
                  _
                $region75: #{cnn_reward_forward.4} parent=65 // loop_header
                  %s1778 = sphi 0, %s1780
                  %p1779 = scmp.ge.s32.totalorder %s1778, %s1771
                  %s1783 = sphi 0, %s1790
                  %s1784 = sphi %s1774, %s1793
                  %s1785 = sphi %s1776, %s1794
                $region76: #{cnn_reward_forward.4} parent=65 // loop_header_branch
                  %1782 = sbr.rel (%p1779) target = $region80
                $region77: #{cnn_reward_forward.4} parent=65 // loop_body
                  %v1786 = vld [vmem:[%s1784] sm:%s1624]
                  %1787 = vst [vmem:[%s1785] sm:%s1624] %v1786
                  %s1788 = sadd.s32 1, %s1783
                  %p1789 = scmp.ge.s32.totalorder %s1788, %s1771
                  %s1790 = scalar_select %p1789, 0, %s1788
                  %s1791 = smul.u32 %s1790, 4
                  %s1792 = smul.u32 %s1790, 4
                  %s1793 = scalar_lea.vmem %s1774, %s1791 [#allocation2]
                  %s1794 = scalar_lea.vmem %s1776, %s1792
                $region78: #{cnn_reward_forward.4} parent=65 // loop_footer
                  %s1780 = sadd.s32 %s1778, 1
                $region79: #{cnn_reward_forward.4} parent=65 // loop_footer_branch
                  %1777 = sbr.rel target = $region75
                $region80: #{cnn_reward_forward.4} parent=65 // loop_exit
                  _
              $region66: #{cnn_reward_forward.4} parent=43 // pred_fallthru
                _
            $region44: #{cnn_reward_forward.4} parent=39 // pred_fallthru
              _
            // Predicated region
            $region45: #{cnn_reward_forward.4} parent=39 // pred_check
              _
            $region46: #{cnn_reward_forward.4} parent=39 // pred_check_branch
              %1448 = sbr.rel (0) target = $region48
            $region47: #{cnn_reward_forward.4} parent=39 // pred_region
              %s1450 = ssub.s32 16, 1
              %s1451 = sshrl.u32 %s1437, 6
              // While loop
              $region49: #{cnn_reward_forward.4} parent=47 // loop_pre_header
                _
              $region50: #{cnn_reward_forward.4} parent=47 // loop_header
                %s1453 = sphi 0, %s1455
                %p1454 = scmp.ge.s32.totalorder %s1453, %s1451
                %s1458 = sphi 0, %s1591
                %s1459 = sphi %s1430, %s1594
                %s1460 = sphi %s1441, %s1595
              $region51: #{cnn_reward_forward.4} parent=47 // loop_header_branch
                %1457 = sbr.rel (%p1454) target = $region55
              $region52: #{cnn_reward_forward.4} parent=47 // loop_body
                %v1461 = vld [vmem:[%s1459] sm:%s1450]
                %1462 = vst [vmem:[%s1460] sm:%s1450] %v1461
                %v1463 = vld [vmem:[%s1459 + $0x4] sm:%s1450]
                %1464 = vst [vmem:[%s1460 + $0x4] sm:%s1450] %v1463
                %v1465 = vld [vmem:[%s1459 + $0x8] sm:%s1450]
                %1466 = vst [vmem:[%s1460 + $0x8] sm:%s1450] %v1465
                %v1467 = vld [vmem:[%s1459 + $0xc] sm:%s1450]
                %1468 = vst [vmem:[%s1460 + $0xc] sm:%s1450] %v1467
                %v1469 = vld [vmem:[%s1459 + $0x10] sm:%s1450]
                %1470 = vst [vmem:[%s1460 + $0x10] sm:%s1450] %v1469
                %v1471 = vld [vmem:[%s1459 + $0x14] sm:%s1450]
                %1472 = vst [vmem:[%s1460 + $0x14] sm:%s1450] %v1471
                %v1473 = vld [vmem:[%s1459 + $0x18] sm:%s1450]
                %1474 = vst [vmem:[%s1460 + $0x18] sm:%s1450] %v1473
                %v1475 = vld [vmem:[%s1459 + $0x1c] sm:%s1450]
                %1476 = vst [vmem:[%s1460 + $0x1c] sm:%s1450] %v1475
                %v1477 = vld [vmem:[%s1459 + $0x20] sm:%s1450]
                %1478 = vst [vmem:[%s1460 + $0x20] sm:%s1450] %v1477
                %v1479 = vld [vmem:[%s1459 + $0x24] sm:%s1450]
                %1480 = vst [vmem:[%s1460 + $0x24] sm:%s1450] %v1479
                %v1481 = vld [vmem:[%s1459 + $0x28] sm:%s1450]
                %1482 = vst [vmem:[%s1460 + $0x28] sm:%s1450] %v1481
                %v1483 = vld [vmem:[%s1459 + $0x2c] sm:%s1450]
                %1484 = vst [vmem:[%s1460 + $0x2c] sm:%s1450] %v1483
                %v1485 = vld [vmem:[%s1459 + $0x30] sm:%s1450]
                %1486 = vst [vmem:[%s1460 + $0x30] sm:%s1450] %v1485
                %v1487 = vld [vmem:[%s1459 + $0x34] sm:%s1450]
                %1488 = vst [vmem:[%s1460 + $0x34] sm:%s1450] %v1487
                %v1489 = vld [vmem:[%s1459 + $0x38] sm:%s1450]
                %1490 = vst [vmem:[%s1460 + $0x38] sm:%s1450] %v1489
                %v1491 = vld [vmem:[%s1459 + $0x3c] sm:%s1450]
                %1492 = vst [vmem:[%s1460 + $0x3c] sm:%s1450] %v1491
                %v1493 = vld [vmem:[%s1459 + $0x40] sm:%s1450]
                %1494 = vst [vmem:[%s1460 + $0x40] sm:%s1450] %v1493
                %v1495 = vld [vmem:[%s1459 + $0x44] sm:%s1450]
                %1496 = vst [vmem:[%s1460 + $0x44] sm:%s1450] %v1495
                %v1497 = vld [vmem:[%s1459 + $0x48] sm:%s1450]
                %1498 = vst [vmem:[%s1460 + $0x48] sm:%s1450] %v1497
                %v1499 = vld [vmem:[%s1459 + $0x4c] sm:%s1450]
                %1500 = vst [vmem:[%s1460 + $0x4c] sm:%s1450] %v1499
                %v1501 = vld [vmem:[%s1459 + $0x50] sm:%s1450]
                %1502 = vst [vmem:[%s1460 + $0x50] sm:%s1450] %v1501
                %v1503 = vld [vmem:[%s1459 + $0x54] sm:%s1450]
                %1504 = vst [vmem:[%s1460 + $0x54] sm:%s1450] %v1503
                %v1505 = vld [vmem:[%s1459 + $0x58] sm:%s1450]
                %1506 = vst [vmem:[%s1460 + $0x58] sm:%s1450] %v1505
                %v1507 = vld [vmem:[%s1459 + $0x5c] sm:%s1450]
                %1508 = vst [vmem:[%s1460 + $0x5c] sm:%s1450] %v1507
                %v1509 = vld [vmem:[%s1459 + $0x60] sm:%s1450]
                %1510 = vst [vmem:[%s1460 + $0x60] sm:%s1450] %v1509
                %v1511 = vld [vmem:[%s1459 + $0x64] sm:%s1450]
                %1512 = vst [vmem:[%s1460 + $0x64] sm:%s1450] %v1511
                %v1513 = vld [vmem:[%s1459 + $0x68] sm:%s1450]
                %1514 = vst [vmem:[%s1460 + $0x68] sm:%s1450] %v1513
                %v1515 = vld [vmem:[%s1459 + $0x6c] sm:%s1450]
                %1516 = vst [vmem:[%s1460 + $0x6c] sm:%s1450] %v1515
                %v1517 = vld [vmem:[%s1459 + $0x70] sm:%s1450]
                %1518 = vst [vmem:[%s1460 + $0x70] sm:%s1450] %v1517
                %v1519 = vld [vmem:[%s1459 + $0x74] sm:%s1450]
                %1520 = vst [vmem:[%s1460 + $0x74] sm:%s1450] %v1519
                %v1521 = vld [vmem:[%s1459 + $0x78] sm:%s1450]
                %1522 = vst [vmem:[%s1460 + $0x78] sm:%s1450] %v1521
                %v1523 = vld [vmem:[%s1459 + $0x7c] sm:%s1450]
                %1524 = vst [vmem:[%s1460 + $0x7c] sm:%s1450] %v1523
                %v1525 = vld [vmem:[%s1459 + $0x80] sm:%s1450]
                %1526 = vst [vmem:[%s1460 + $0x80] sm:%s1450] %v1525
                %v1527 = vld [vmem:[%s1459 + $0x84] sm:%s1450]
                %1528 = vst [vmem:[%s1460 + $0x84] sm:%s1450] %v1527
                %v1529 = vld [vmem:[%s1459 + $0x88] sm:%s1450]
                %1530 = vst [vmem:[%s1460 + $0x88] sm:%s1450] %v1529
                %v1531 = vld [vmem:[%s1459 + $0x8c] sm:%s1450]
                %1532 = vst [vmem:[%s1460 + $0x8c] sm:%s1450] %v1531
                %v1533 = vld [vmem:[%s1459 + $0x90] sm:%s1450]
                %1534 = vst [vmem:[%s1460 + $0x90] sm:%s1450] %v1533
                %v1535 = vld [vmem:[%s1459 + $0x94] sm:%s1450]
                %1536 = vst [vmem:[%s1460 + $0x94] sm:%s1450] %v1535
                %v1537 = vld [vmem:[%s1459 + $0x98] sm:%s1450]
                %1538 = vst [vmem:[%s1460 + $0x98] sm:%s1450] %v1537
                %v1539 = vld [vmem:[%s1459 + $0x9c] sm:%s1450]
                %1540 = vst [vmem:[%s1460 + $0x9c] sm:%s1450] %v1539
                %v1541 = vld [vmem:[%s1459 + $0xa0] sm:%s1450]
                %1542 = vst [vmem:[%s1460 + $0xa0] sm:%s1450] %v1541
                %v1543 = vld [vmem:[%s1459 + $0xa4] sm:%s1450]
                %1544 = vst [vmem:[%s1460 + $0xa4] sm:%s1450] %v1543
                %v1545 = vld [vmem:[%s1459 + $0xa8] sm:%s1450]
                %1546 = vst [vmem:[%s1460 + $0xa8] sm:%s1450] %v1545
                %v1547 = vld [vmem:[%s1459 + $0xac] sm:%s1450]
                %1548 = vst [vmem:[%s1460 + $0xac] sm:%s1450] %v1547
                %v1549 = vld [vmem:[%s1459 + $0xb0] sm:%s1450]
                %1550 = vst [vmem:[%s1460 + $0xb0] sm:%s1450] %v1549
                %v1551 = vld [vmem:[%s1459 + $0xb4] sm:%s1450]
                %1552 = vst [vmem:[%s1460 + $0xb4] sm:%s1450] %v1551
                %v1553 = vld [vmem:[%s1459 + $0xb8] sm:%s1450]
                %1554 = vst [vmem:[%s1460 + $0xb8] sm:%s1450] %v1553
                %v1555 = vld [vmem:[%s1459 + $0xbc] sm:%s1450]
                %1556 = vst [vmem:[%s1460 + $0xbc] sm:%s1450] %v1555
                %v1557 = vld [vmem:[%s1459 + $0xc0] sm:%s1450]
                %1558 = vst [vmem:[%s1460 + $0xc0] sm:%s1450] %v1557
                %v1559 = vld [vmem:[%s1459 + $0xc4] sm:%s1450]
                %1560 = vst [vmem:[%s1460 + $0xc4] sm:%s1450] %v1559
                %v1561 = vld [vmem:[%s1459 + $0xc8] sm:%s1450]
                %1562 = vst [vmem:[%s1460 + $0xc8] sm:%s1450] %v1561
                %v1563 = vld [vmem:[%s1459 + $0xcc] sm:%s1450]
                %1564 = vst [vmem:[%s1460 + $0xcc] sm:%s1450] %v1563
                %v1565 = vld [vmem:[%s1459 + $0xd0] sm:%s1450]
                %1566 = vst [vmem:[%s1460 + $0xd0] sm:%s1450] %v1565
                %v1567 = vld [vmem:[%s1459 + $0xd4] sm:%s1450]
                %1568 = vst [vmem:[%s1460 + $0xd4] sm:%s1450] %v1567
                %v1569 = vld [vmem:[%s1459 + $0xd8] sm:%s1450]
                %1570 = vst [vmem:[%s1460 + $0xd8] sm:%s1450] %v1569
                %v1571 = vld [vmem:[%s1459 + $0xdc] sm:%s1450]
                %1572 = vst [vmem:[%s1460 + $0xdc] sm:%s1450] %v1571
                %v1573 = vld [vmem:[%s1459 + $0xe0] sm:%s1450]
                %1574 = vst [vmem:[%s1460 + $0xe0] sm:%s1450] %v1573
                %v1575 = vld [vmem:[%s1459 + $0xe4] sm:%s1450]
                %1576 = vst [vmem:[%s1460 + $0xe4] sm:%s1450] %v1575
                %v1577 = vld [vmem:[%s1459 + $0xe8] sm:%s1450]
                %1578 = vst [vmem:[%s1460 + $0xe8] sm:%s1450] %v1577
                %v1579 = vld [vmem:[%s1459 + $0xec] sm:%s1450]
                %1580 = vst [vmem:[%s1460 + $0xec] sm:%s1450] %v1579
                %v1581 = vld [vmem:[%s1459 + $0xf0] sm:%s1450]
                %1582 = vst [vmem:[%s1460 + $0xf0] sm:%s1450] %v1581
                %v1583 = vld [vmem:[%s1459 + $0xf4] sm:%s1450]
                %1584 = vst [vmem:[%s1460 + $0xf4] sm:%s1450] %v1583
                %v1585 = vld [vmem:[%s1459 + $0xf8] sm:%s1450]
                %1586 = vst [vmem:[%s1460 + $0xf8] sm:%s1450] %v1585
                %v1587 = vld [vmem:[%s1459 + $0xfc] sm:%s1450]
                %1588 = vst [vmem:[%s1460 + $0xfc] sm:%s1450] %v1587
                %s1589 = sadd.s32 1, %s1458
                %p1590 = scmp.ge.s32.totalorder %s1589, %s1451
                %s1591 = scalar_select %p1590, 0, %s1589
                %s1592 = smul.u32 %s1591, 256
                %s1593 = smul.u32 %s1591, 256
                %s1594 = scalar_lea.vmem %s1430, %s1592 [#allocation2]
                %s1595 = scalar_lea.vmem %s1441, %s1593
              $region53: #{cnn_reward_forward.4} parent=47 // loop_footer
                %s1455 = sadd.s32 %s1453, 1
              $region54: #{cnn_reward_forward.4} parent=47 // loop_footer_branch
                %1452 = sbr.rel target = $region50
              $region55: #{cnn_reward_forward.4} parent=47 // loop_exit
                _
              %s1596 = sshrl.u32 %s1437, 6
              %s1597 = sand.u32 %s1437, 63
              %s1598 = smul.u32 %s1596, 64
              %s1599 = smul.u32 4, %s1598
              %s1600 = scalar_lea.vmem %s1430, %s1599 [#allocation2]
              %s1601 = smul.u32 4, %s1598
              %s1602 = scalar_lea.vmem %s1441, %s1601
              // While loop
              $region56: #{cnn_reward_forward.4} parent=47 // loop_pre_header
                _
              $region57: #{cnn_reward_forward.4} parent=47 // loop_header
                %s1604 = sphi 0, %s1606
                %p1605 = scmp.ge.s32.totalorder %s1604, %s1597
                %s1609 = sphi 0, %s1616
                %s1610 = sphi %s1600, %s1619
                %s1611 = sphi %s1602, %s1620
              $region58: #{cnn_reward_forward.4} parent=47 // loop_header_branch
                %1608 = sbr.rel (%p1605) target = $region62
              $region59: #{cnn_reward_forward.4} parent=47 // loop_body
                %v1612 = vld [vmem:[%s1610] sm:%s1450]
                %1613 = vst [vmem:[%s1611] sm:%s1450] %v1612
                %s1614 = sadd.s32 1, %s1609
                %p1615 = scmp.ge.s32.totalorder %s1614, %s1597
                %s1616 = scalar_select %p1615, 0, %s1614
                %s1617 = smul.u32 %s1616, 4
                %s1618 = smul.u32 %s1616, 4
                %s1619 = scalar_lea.vmem %s1600, %s1617 [#allocation2]
                %s1620 = scalar_lea.vmem %s1602, %s1618
              $region60: #{cnn_reward_forward.4} parent=47 // loop_footer
                %s1606 = sadd.s32 %s1604, 1
              $region61: #{cnn_reward_forward.4} parent=47 // loop_footer_branch
                %1603 = sbr.rel target = $region57
              $region62: #{cnn_reward_forward.4} parent=47 // loop_exit
                _
            $region48: #{cnn_reward_forward.4} parent=39 // pred_fallthru
              _
          $region40: #{cnn_reward_forward.4} parent=35 // pred_fallthru
            _
          %1795 = vnop
        $region36: #{cnn_reward_forward.4} parent=31 // pred_fallthru
          _
      $region32: #{cnn_reward_forward.4} parent=5 // pred_fallthru
        _
      %p1796 = scmp.le.s32.totalorder 2, %s9
      // Predicated region
      $region81: #{cnn_reward_forward.4} parent=5 // pred_check
        %p1797 = pneg %p1796
      $region82: #{cnn_reward_forward.4} parent=5 // pred_check_branch
        %1799 = sbr.rel (%p1797) target = $region84
      $region83: #{cnn_reward_forward.4} parent=5 // pred_region
        %s1800 = ssub.s32 %s9, 2
        // Predicated region
        $region85: #{cnn_reward_forward.4} parent=83 // pred_check
          %p1801 = pneg %p106
        $region86: #{cnn_reward_forward.4} parent=83 // pred_check_branch
          %1803 = sbr.rel (%p1801) target = $region88
        $region87: #{cnn_reward_forward.4} parent=83 // pred_region
          %s1804 = sand.u32 %s91, 1
          %s1805 = sand.u32 %s91, 1
          %s1806 = smul.addr %s1805, 256
          %s1807 = scalar_lea.vmem [#allocation2], %s1806
        $region88: #{cnn_reward_forward.4} parent=83 // pred_fallthru
          _
      $region84: #{cnn_reward_forward.4} parent=5 // pred_fallthru
        _
    $region6: #{cnn_reward_forward.4} parent=1 // loop_footer
      %s13 = sadd.s32 1, %s9
    $region7: #{cnn_reward_forward.4} parent=1 // loop_footer_branch
      %8 = sbr.rel target = $region3
    $region8: #{cnn_reward_forward.4} parent=1 // loop_exit
      _

// kernel: cnn_reward_forward.5
$region0: #{cnn_reward_forward.5}
  #allocation0 [shape = 'u32[]', space=smem, size = 0x4, offset = 0x4, fixed_abs, tag = 'smem constant byte address 0x4 - core index']
  #allocation1 [shape = 'u32[144,128]{1,0:T(1,128)}', space=vmem, size = 0x12000, scoped, tag = 'internal scratch']
  %s0 = inlined_call_operand.vmem [shape: bf16[176,512], index: 0, kind: input, shape index: {}]
  %s1 = inlined_call_operand.vmem [shape: bf16[512,64], index: 1, kind: input, shape index: {}]
  %s2 = inlined_call_operand.vmem [shape: f32[1,64], index: 2, kind: input, shape index: {}]
  %s3 = inlined_call_operand.vmem [shape: bf16[176,64], index: 3, kind: output, shape index: {}]
  %s4 = sld [smem:[#allocation0]]
  $region22: #{cnn_reward_forward.5} parent=0
    _
  %s6 = ssub.s32 1, %s4
  %s7 = scalar_select 0, %s6, %s4
  // Predicated region
  $region2: #{cnn_reward_forward.5} parent=0 // pred_check
    _
  $region3: #{cnn_reward_forward.5} parent=0 // pred_check_branch
    %9 = sbr.rel (0) target = $region5
  $region4: #{cnn_reward_forward.5} parent=0 // pred_region
    _
  $region5: #{cnn_reward_forward.5} parent=0 // pred_fallthru
    _
  // Predicated region
  $region6: #{cnn_reward_forward.5} parent=0 // pred_check
    _
  $region7: #{cnn_reward_forward.5} parent=0 // pred_check_branch
    %11 = sbr.rel (0) target = $region9
  $region8: #{cnn_reward_forward.5} parent=0 // pred_region
    _
  $region9: #{cnn_reward_forward.5} parent=0 // pred_fallthru
    _
  // Predicated region
  $region10: #{cnn_reward_forward.5} parent=0 // pred_check
    _
  $region11: #{cnn_reward_forward.5} parent=0 // pred_check_branch
    %13 = sbr.rel (0) target = $region13
  $region12: #{cnn_reward_forward.5} parent=0 // pred_region
    _
  $region13: #{cnn_reward_forward.5} parent=0 // pred_fallthru
    _
  %v15 = vld [vmem:[%s0] sm:$0xff]
  %v16 = vld [vmem:[%s0 + $0x8] sm:$0xff]
  %v17 = vld [vmem:[%s0 + $0x10] sm:$0xff]
  %v18 = vld [vmem:[%s0 + $0x18] sm:$0xff]
  %v19 = vld [vmem:[%s0 + $0x20] sm:$0xff]
  %v20 = vld [vmem:[%s0 + $0x28] sm:$0xff]
  %v21 = vld [vmem:[%s0 + $0x30] sm:$0xff]
  %v22 = vld [vmem:[%s0 + $0x38] sm:$0xff]
  %v23 = vld [vmem:[%s0 + $0x40] sm:$0xff]
  %v24 = vld [vmem:[%s0 + $0x48] sm:$0xff]
  %v25 = vld [vmem:[%s0 + $0x50] sm:$0xff]
  %v26 = vld [vmem:[%s0 + $0x58] sm:$0xff]
  %v27 = vld [vmem:[%s0 + $0x60] sm:$0xff]
  %v28 = vld [vmem:[%s0 + $0x68] sm:$0xff]
  %v29 = vld [vmem:[%s0 + $0x70] sm:$0xff]
  %v30 = vld [vmem:[%s0 + $0x78] sm:$0xff]
  %v31 = vld [vmem:[%s0 + $0x80] sm:$0xff]
  %v32 = vld [vmem:[%s0 + $0x88] sm:$0xff]
  %v33 = vld [vmem:[%s0 + $0x90] sm:$0xff]
  %v34 = vld [vmem:[%s0 + $0x98] sm:$0xff]
  %v35 = vld [vmem:[%s0 + $0xa0] sm:$0xff]
  %v36 = vld [vmem:[%s0 + $0xa8] sm:$0xff]
  %v37 = vld [vmem:[%s0 + $0xb0] sm:$0xff]
  %v38 = vld [vmem:[%s0 + $0xb8] sm:$0xff]
  %v39 = vld [vmem:[%s0 + $0xc0] sm:$0xff]
  %v40 = vld [vmem:[%s0 + $0xc8] sm:$0xff]
  %v41 = vld [vmem:[%s0 + $0xd0] sm:$0xff]
  %v42 = vld [vmem:[%s0 + $0xd8] sm:$0xff]
  %v43 = vld [vmem:[%s0 + $0xe0] sm:$0xff]
  %v44 = vld [vmem:[%s0 + $0xe8] sm:$0xff]
  %v45 = vld [vmem:[%s0 + $0xf0] sm:$0xff]
  %v46 = vld [vmem:[%s0 + $0xf8] sm:$0xff]
  %v47 = vld [vmem:[%s0 + $0x100] sm:$0xff]
  %v48 = vld [vmem:[%s0 + $0x108] sm:$0xff]
  %v49 = vld [vmem:[%s0 + $0x110] sm:$0xff]
  %v50 = vld [vmem:[%s0 + $0x118] sm:$0xff]
  %v51 = vld [vmem:[%s0 + $0x120] sm:$0xff]
  %v52 = vld [vmem:[%s0 + $0x128] sm:$0xff]
  %v53 = vld [vmem:[%s0 + $0x130] sm:$0xff]
  %v54 = vld [vmem:[%s0 + $0x138] sm:$0xff]
  %v55 = vld [vmem:[%s0 + $0x140] sm:$0xff]
  %v56 = vld [vmem:[%s0 + $0x148] sm:$0xff]
  %v57 = vld [vmem:[%s0 + $0x150] sm:$0xff]
  %v58 = vld [vmem:[%s0 + $0x158] sm:$0xff]
  %v59 = vld [vmem:[%s1] sm:$0xf]
  %v60 = vld [vmem:[%s1 + $0x4] sm:$0xf]
  %v61 = vld [vmem:[%s1 + $0x8] sm:$0xf]
  %v62 = vld [vmem:[%s1 + $0xc] sm:$0xf]
  %v63 = vld [vmem:[%s1 + $0x10] sm:$0xf]
  %v64 = vld [vmem:[%s1 + $0x14] sm:$0xf]
  %v65 = vld [vmem:[%s1 + $0x18] sm:$0xf]
  %v66 = vld [vmem:[%s1 + $0x1c] sm:$0xf]
  %v67 = vld [vmem:[%s1 + $0x20] sm:$0xf]
  %v68 = vld [vmem:[%s1 + $0x24] sm:$0xf]
  %v69 = vld [vmem:[%s1 + $0x28] sm:$0xf]
  %v70 = vld [vmem:[%s1 + $0x2c] sm:$0xf]
  %v71 = vld [vmem:[%s1 + $0x30] sm:$0xf]
  %v72 = vld [vmem:[%s1 + $0x34] sm:$0xf]
  %v73 = vld [vmem:[%s1 + $0x38] sm:$0xf]
  %v74 = vld [vmem:[%s1 + $0x3c] sm:$0xf]
  %v75 = vld [vmem:[%s1 + $0x40] sm:$0xf]
  %v76 = vld [vmem:[%s1 + $0x44] sm:$0xf]
  %v77 = vld [vmem:[%s1 + $0x48] sm:$0xf]
  %v78 = vld [vmem:[%s1 + $0x4c] sm:$0xf]
  %v79 = vld [vmem:[%s1 + $0x50] sm:$0xf]
  %v80 = vld [vmem:[%s1 + $0x54] sm:$0xf]
  %v81 = vld [vmem:[%s1 + $0x58] sm:$0xf]
  %v82 = vld [vmem:[%s1 + $0x5c] sm:$0xf]
  %v83 = vld [vmem:[%s1 + $0x60] sm:$0xf]
  %v84 = vld [vmem:[%s1 + $0x64] sm:$0xf]
  %v85 = vld [vmem:[%s1 + $0x68] sm:$0xf]
  %v86 = vld [vmem:[%s1 + $0x6c] sm:$0xf]
  %v87 = vld [vmem:[%s1 + $0x70] sm:$0xf]
  %v88 = vld [vmem:[%s1 + $0x74] sm:$0xf]
  %v89 = vld [vmem:[%s1 + $0x78] sm:$0xf]
  %v90 = vld [vmem:[%s1 + $0x7c] sm:$0xf]
  %v91 = vld [vmem:[%s1 + $0x80] sm:$0xf]
  %v92 = vld [vmem:[%s1 + $0x84] sm:$0xf]
  %v93 = vld [vmem:[%s1 + $0x88] sm:$0xf]
  %v94 = vld [vmem:[%s1 + $0x8c] sm:$0xf]
  %v95 = vld [vmem:[%s1 + $0x90] sm:$0xf]
  %v96 = vld [vmem:[%s1 + $0x94] sm:$0xf]
  %v97 = vld [vmem:[%s1 + $0x98] sm:$0xf]
  %v98 = vld [vmem:[%s1 + $0x9c] sm:$0xf]
  %v99 = vld [vmem:[%s1 + $0xa0] sm:$0xf]
  %v100 = vld [vmem:[%s1 + $0xa4] sm:$0xf]
  %v101 = vld [vmem:[%s1 + $0xa8] sm:$0xf]
  %v102 = vld [vmem:[%s1 + $0xac] sm:$0xf]
  %v103 = vld [vmem:[%s1 + $0xb0] sm:$0xf]
  %v104 = vld [vmem:[%s1 + $0xb4] sm:$0xf]
  %v105 = vld [vmem:[%s1 + $0xb8] sm:$0xf]
  %v106 = vld [vmem:[%s1 + $0xbc] sm:$0xf]
  %v107 = vld [vmem:[%s1 + $0xc0] sm:$0xf]
  %v108 = vld [vmem:[%s1 + $0xc4] sm:$0xf]
  %v109 = vld [vmem:[%s1 + $0xc8] sm:$0xf]
  %v110 = vld [vmem:[%s1 + $0xcc] sm:$0xf]
  %v111 = vld [vmem:[%s1 + $0xd0] sm:$0xf]
  %v112 = vld [vmem:[%s1 + $0xd4] sm:$0xf]
  %v113 = vld [vmem:[%s1 + $0xd8] sm:$0xf]
  %v114 = vld [vmem:[%s1 + $0xdc] sm:$0xf]
  %v115 = vld [vmem:[%s1 + $0xe0] sm:$0xf]
  %v116 = vld [vmem:[%s1 + $0xe4] sm:$0xf]
  %v117 = vld [vmem:[%s1 + $0xe8] sm:$0xf]
  %v118 = vld [vmem:[%s1 + $0xec] sm:$0xf]
  %v119 = vld [vmem:[%s1 + $0xf0] sm:$0xf]
  %v120 = vld [vmem:[%s1 + $0xf4] sm:$0xf]
  %v121 = vld [vmem:[%s1 + $0xf8] sm:$0xf]
  %v122 = vld [vmem:[%s1 + $0xfc] sm:$0xf]
  %v123 = vld [vmem:[%s2] sm:$0x1]
  %v125 = vlaneseq
  %v126 = vshrl.u32 %v125, 7
  %v127 = vsub.s32 0, %v126
  %v128 = vrot.slane %v123, %v127
  %v174 = vunpack.c.l.b16 %v15
  %v175 = vunpack.c.h.b16 %v15
  %v176 = vunpack.c.l.b16 %v16
  %v177 = vunpack.c.h.b16 %v16
  %v178 = vunpack.c.l.b16 %v17
  %v179 = vunpack.c.h.b16 %v17
  %v180 = vunpack.c.l.b16 %v18
  %v181 = vunpack.c.h.b16 %v18
  %v182 = vunpack.c.l.b16 %v19
  %v183 = vunpack.c.h.b16 %v19
  %v184 = vunpack.c.l.b16 %v20
  %v185 = vunpack.c.h.b16 %v20
  %v186 = vunpack.c.l.b16 %v21
  %v187 = vunpack.c.h.b16 %v21
  %v188 = vunpack.c.l.b16 %v22
  %v189 = vunpack.c.h.b16 %v22
  %v190 = vunpack.c.l.b16 %v23
  %v191 = vunpack.c.h.b16 %v23
  %v192 = vunpack.c.l.b16 %v24
  %v193 = vunpack.c.h.b16 %v24
  %v194 = vunpack.c.l.b16 %v25
  %v195 = vunpack.c.h.b16 %v25
  %v196 = vunpack.c.l.b16 %v26
  %v197 = vunpack.c.h.b16 %v26
  %v198 = vunpack.c.l.b16 %v27
  %v199 = vunpack.c.h.b16 %v27
  %v200 = vunpack.c.l.b16 %v28
  %v201 = vunpack.c.h.b16 %v28
  %v202 = vunpack.c.l.b16 %v29
  %v203 = vunpack.c.h.b16 %v29
  %v204 = vunpack.c.l.b16 %v30
  %v205 = vunpack.c.h.b16 %v30
  %v206 = vunpack.c.l.b16 %v31
  %v207 = vunpack.c.h.b16 %v31
  %v208 = vunpack.c.l.b16 %v32
  %v209 = vunpack.c.h.b16 %v32
  %v210 = vunpack.c.l.b16 %v33
  %v211 = vunpack.c.h.b16 %v33
  %v212 = vunpack.c.l.b16 %v34
  %v213 = vunpack.c.h.b16 %v34
  %v214 = vunpack.c.l.b16 %v35
  %v215 = vunpack.c.h.b16 %v35
  %v216 = vunpack.c.l.b16 %v36
  %v217 = vunpack.c.h.b16 %v36
  %v218 = vunpack.c.l.b16 %v37
  %v219 = vunpack.c.h.b16 %v37
  %v220 = vunpack.c.l.b16 %v38
  %v221 = vunpack.c.h.b16 %v38
  %v222 = vunpack.c.l.b16 %v39
  %v223 = vunpack.c.h.b16 %v39
  %v224 = vunpack.c.l.b16 %v40
  %v225 = vunpack.c.h.b16 %v40
  %v226 = vunpack.c.l.b16 %v41
  %v227 = vunpack.c.h.b16 %v41
  %v228 = vunpack.c.l.b16 %v42
  %v229 = vunpack.c.h.b16 %v42
  %v230 = vunpack.c.l.b16 %v43
  %v231 = vunpack.c.h.b16 %v43
  %v232 = vunpack.c.l.b16 %v44
  %v233 = vunpack.c.h.b16 %v44
  %v234 = vunpack.c.l.b16 %v45
  %v235 = vunpack.c.h.b16 %v45
  %v236 = vunpack.c.l.b16 %v46
  %v237 = vunpack.c.h.b16 %v46
  %v238 = vunpack.c.l.b16 %v47
  %v239 = vunpack.c.h.b16 %v47
  %v240 = vunpack.c.l.b16 %v48
  %v241 = vunpack.c.h.b16 %v48
  %v242 = vunpack.c.l.b16 %v49
  %v243 = vunpack.c.h.b16 %v49
  %v244 = vunpack.c.l.b16 %v50
  %v245 = vunpack.c.h.b16 %v50
  %v246 = vunpack.c.l.b16 %v51
  %v247 = vunpack.c.h.b16 %v51
  %v248 = vunpack.c.l.b16 %v52
  %v249 = vunpack.c.h.b16 %v52
  %v250 = vunpack.c.l.b16 %v53
  %v251 = vunpack.c.h.b16 %v53
  %v252 = vunpack.c.l.b16 %v54
  %v253 = vunpack.c.h.b16 %v54
  %v254 = vunpack.c.l.b16 %v55
  %v255 = vunpack.c.h.b16 %v55
  %v256 = vunpack.c.l.b16 %v56
  %v257 = vunpack.c.h.b16 %v56
  %v258 = vunpack.c.l.b16 %v57
  %v259 = vunpack.c.h.b16 %v57
  %v260 = vunpack.c.l.b16 %v58
  %v261 = vunpack.c.h.b16 %v58
  %v262 = vpack.c.b16 %v178, %v174
  %v263 = vpack.c.b16 %v179, %v175
  %v264 = vpack.c.b16 %v180, %v176
  %v265 = vpack.c.b16 %v181, %v177
  %v266 = vpack.c.b16 %v186, %v182
  %v267 = vpack.c.b16 %v187, %v183
  %v268 = vpack.c.b16 %v188, %v184
  %v269 = vpack.c.b16 %v189, %v185
  %v270 = vpack.c.b16 %v194, %v190
  %v271 = vpack.c.b16 %v195, %v191
  %v272 = vpack.c.b16 %v196, %v192
  %v273 = vpack.c.b16 %v197, %v193
  %v274 = vpack.c.b16 %v202, %v198
  %v275 = vpack.c.b16 %v203, %v199
  %v276 = vpack.c.b16 %v204, %v200
  %v277 = vpack.c.b16 %v205, %v201
  %v278 = vpack.c.b16 %v210, %v206
  %v279 = vpack.c.b16 %v211, %v207
  %v280 = vpack.c.b16 %v212, %v208
  %v281 = vpack.c.b16 %v213, %v209
  %v282 = vpack.c.b16 %v218, %v214
  %v283 = vpack.c.b16 %v219, %v215
  %v284 = vpack.c.b16 %v220, %v216
  %v285 = vpack.c.b16 %v221, %v217
  %v286 = vpack.c.b16 %v226, %v222
  %v287 = vpack.c.b16 %v227, %v223
  %v288 = vpack.c.b16 %v228, %v224
  %v289 = vpack.c.b16 %v229, %v225
  %v290 = vpack.c.b16 %v234, %v230
  %v291 = vpack.c.b16 %v235, %v231
  %v292 = vpack.c.b16 %v236, %v232
  %v293 = vpack.c.b16 %v237, %v233
  %v294 = vpack.c.b16 %v242, %v238
  %v295 = vpack.c.b16 %v243, %v239
  %v296 = vpack.c.b16 %v244, %v240
  %v297 = vpack.c.b16 %v245, %v241
  %v298 = vpack.c.b16 %v250, %v246
  %v299 = vpack.c.b16 %v251, %v247
  %v300 = vpack.c.b16 %v252, %v248
  %v301 = vpack.c.b16 %v253, %v249
  %v302 = vpack.c.b16 %v258, %v254
  %v303 = vpack.c.b16 %v259, %v255
  %v304 = vpack.c.b16 %v260, %v256
  %v305 = vpack.c.b16 %v261, %v257
  %v414 = vunpack.c.l.b16 %v59
  %v415 = vunpack.c.l.b16 %v60
  %v416 = vunpack.c.l.b16 %v61
  %v417 = vunpack.c.l.b16 %v62
  %v418 = vunpack.c.l.b16 %v63
  %v419 = vunpack.c.l.b16 %v64
  %v420 = vunpack.c.l.b16 %v65
  %v421 = vunpack.c.l.b16 %v66
  %v422 = vunpack.c.l.b16 %v67
  %v423 = vunpack.c.l.b16 %v68
  %v424 = vunpack.c.l.b16 %v69
  %v425 = vunpack.c.l.b16 %v70
  %v426 = vunpack.c.l.b16 %v71
  %v427 = vunpack.c.l.b16 %v72
  %v428 = vunpack.c.l.b16 %v73
  %v429 = vunpack.c.l.b16 %v74
  %v430 = vunpack.c.l.b16 %v75
  %v431 = vunpack.c.l.b16 %v76
  %v432 = vunpack.c.l.b16 %v77
  %v433 = vunpack.c.l.b16 %v78
  %v434 = vunpack.c.l.b16 %v79
  %v435 = vunpack.c.l.b16 %v80
  %v436 = vunpack.c.l.b16 %v81
  %v437 = vunpack.c.l.b16 %v82
  %v438 = vunpack.c.l.b16 %v83
  %v439 = vunpack.c.l.b16 %v84
  %v440 = vunpack.c.l.b16 %v85
  %v441 = vunpack.c.l.b16 %v86
  %v442 = vunpack.c.l.b16 %v87
  %v443 = vunpack.c.l.b16 %v88
  %v444 = vunpack.c.l.b16 %v89
  %v445 = vunpack.c.l.b16 %v90
  %v446 = vunpack.c.l.b16 %v91
  %v447 = vunpack.c.l.b16 %v92
  %v448 = vunpack.c.l.b16 %v93
  %v449 = vunpack.c.l.b16 %v94
  %v450 = vunpack.c.l.b16 %v95
  %v451 = vunpack.c.l.b16 %v96
  %v452 = vunpack.c.l.b16 %v97
  %v453 = vunpack.c.l.b16 %v98
  %v454 = vunpack.c.l.b16 %v99
  %v455 = vunpack.c.l.b16 %v100
  %v456 = vunpack.c.l.b16 %v101
  %v457 = vunpack.c.l.b16 %v102
  %v458 = vunpack.c.l.b16 %v103
  %v459 = vunpack.c.l.b16 %v104
  %v460 = vunpack.c.l.b16 %v105
  %v461 = vunpack.c.l.b16 %v106
  %v462 = vunpack.c.l.b16 %v107
  %v463 = vunpack.c.l.b16 %v108
  %v464 = vunpack.c.l.b16 %v109
  %v465 = vunpack.c.l.b16 %v110
  %v466 = vunpack.c.l.b16 %v111
  %v467 = vunpack.c.l.b16 %v112
  %v468 = vunpack.c.l.b16 %v113
  %v469 = vunpack.c.l.b16 %v114
  %v470 = vunpack.c.l.b16 %v115
  %v471 = vunpack.c.l.b16 %v116
  %v472 = vunpack.c.l.b16 %v117
  %v473 = vunpack.c.l.b16 %v118
  %v474 = vunpack.c.l.b16 %v119
  %v475 = vunpack.c.l.b16 %v120
  %v476 = vunpack.c.l.b16 %v121
  %v477 = vunpack.c.l.b16 %v122
  %v478 = vpack.c.b16 %v415, %v414
  %v479 = vpack.c.b16 %v417, %v416
  %v480 = vpack.c.b16 %v419, %v418
  %v481 = vpack.c.b16 %v421, %v420
  %v482 = vpack.c.b16 %v423, %v422
  %v483 = vpack.c.b16 %v425, %v424
  %v484 = vpack.c.b16 %v427, %v426
  %v485 = vpack.c.b16 %v429, %v428
  %v486 = vpack.c.b16 %v431, %v430
  %v487 = vpack.c.b16 %v433, %v432
  %v488 = vpack.c.b16 %v435, %v434
  %v489 = vpack.c.b16 %v437, %v436
  %v490 = vpack.c.b16 %v439, %v438
  %v491 = vpack.c.b16 %v441, %v440
  %v492 = vpack.c.b16 %v443, %v442
  %v493 = vpack.c.b16 %v445, %v444
  %v494 = vpack.c.b16 %v447, %v446
  %v495 = vpack.c.b16 %v449, %v448
  %v496 = vpack.c.b16 %v451, %v450
  %v497 = vpack.c.b16 %v453, %v452
  %v498 = vpack.c.b16 %v455, %v454
  %v499 = vpack.c.b16 %v457, %v456
  %v500 = vpack.c.b16 %v459, %v458
  %v501 = vpack.c.b16 %v461, %v460
  %v502 = vpack.c.b16 %v463, %v462
  %v503 = vpack.c.b16 %v465, %v464
  %v504 = vpack.c.b16 %v467, %v466
  %v505 = vpack.c.b16 %v469, %v468
  %v506 = vpack.c.b16 %v471, %v470
  %v507 = vpack.c.b16 %v473, %v472
  %v508 = vpack.c.b16 %v475, %v474
  %v509 = vpack.c.b16 %v477, %v476
  %542 = vmatprep.subr.bf16.mxu0 0
  %543 = vmatpush1.bf16.msra.mxu0 %v485
  %544 = vmatprep.subr.bf16.mxu0 0
  %545 = vmatpush1.bf16.msra.mxu0 %v484
  %546 = vmatprep.subr.bf16.mxu0 0
  %547 = vmatpush1.bf16.msra.mxu0 %v483
  %548 = vmatprep.subr.bf16.mxu0 0
  %549 = vmatpush1.bf16.msra.mxu0 %v482
  %550 = vmatprep.subr.bf16.mxu0 0
  %551 = vmatpush1.bf16.msra.mxu0 %v481
  %552 = vmatprep.subr.bf16.mxu0 0
  %553 = vmatpush1.bf16.msra.mxu0 %v480
  %554 = vmatprep.subr.bf16.mxu0 0
  %555 = vmatpush1.bf16.msra.mxu0 %v479
  %556 = vmatprep.subr.bf16.mxu0 0
  %557 = vmatpush1.bf16.msra.mxu0 %v478
  %558 = vmatprep.subr.bf16.mxu0 0
  %559 = vmatpush2.bf16.msra.mxu0 %v493
  %560 = vmatprep.subr.bf16.mxu0 0
  %561 = vmatpush2.bf16.msra.mxu0 %v492
  %562 = vmatprep.subr.bf16.mxu0 0
  %563 = vmatpush2.bf16.msra.mxu0 %v491
  %564 = vmatprep.subr.bf16.mxu0 0
  %565 = vmatpush2.bf16.msra.mxu0 %v490
  %566 = vmatprep.subr.bf16.mxu0 0
  %567 = vmatpush2.bf16.msra.mxu0 %v489
  %568 = vmatprep.subr.bf16.mxu0 0
  %569 = vmatpush2.bf16.msra.mxu0 %v488
  %570 = vmatprep.subr.bf16.mxu0 0
  %571 = vmatpush2.bf16.msra.mxu0 %v487
  %572 = vmatprep.subr.bf16.mxu0 0
  %573 = vmatpush2.bf16.msra.mxu0 %v486
  %574 = vmatprep.mubr.bf16.mxu0 %v263
  %575 = vmatmul.mubr.bf16.gmra.mxu0 %v262
  %v576 = vpop.f32.mrf.mxu0
  %v577 = vadd.f32 %v128, %v576
  %v578 = vpop.f32.mrf.mxu0
  %v579 = vpop.f32.mrf.mxu0
  %v580 = vadd.f32 %v128, %v579
  %v581 = vpop.f32.mrf.mxu0
  %582 = vmatprep.mubr.bf16.mxu0 %v267
  %583 = vmatmul.mubr.bf16.gmra.mxu0 %v266
  %v584 = vpop.f32.mrf.mxu0
  %v585 = vadd.f32 %v128, %v584
  %v586 = vpop.f32.mrf.mxu0
  %v587 = vpop.f32.mrf.mxu0
  %v588 = vadd.f32 %v128, %v587
  %v589 = vpop.f32.mrf.mxu0
  %590 = vmatprep.mubr.bf16.mxu0 %v271
  %591 = vmatmul.mubr.bf16.gmra.mxu0 %v270
  %v592 = vpop.f32.mrf.mxu0
  %v593 = vadd.f32 %v128, %v592
  %v594 = vpop.f32.mrf.mxu0
  %v595 = vpop.f32.mrf.mxu0
  %v596 = vadd.f32 %v128, %v595
  %v597 = vpop.f32.mrf.mxu0
  %598 = vmatprep.mubr.bf16.mxu0 %v275
  %599 = vmatmul.mubr.bf16.gmra.mxu0 %v274
  %v600 = vpop.f32.mrf.mxu0
  %v601 = vadd.f32 %v128, %v600
  %v602 = vpop.f32.mrf.mxu0
  %v603 = vpop.f32.mrf.mxu0
  %v604 = vadd.f32 %v128, %v603
  %v605 = vpop.f32.mrf.mxu0
  %606 = vmatprep.mubr.bf16.mxu0 %v279
  %607 = vmatmul.mubr.bf16.gmra.mxu0 %v278
  %v608 = vpop.f32.mrf.mxu0
  %v609 = vadd.f32 %v128, %v608
  %v610 = vpop.f32.mrf.mxu0
  %v611 = vpop.f32.mrf.mxu0
  %v612 = vadd.f32 %v128, %v611
  %v613 = vpop.f32.mrf.mxu0
  %614 = vmatprep.mubr.bf16.mxu0 %v283
  %615 = vmatmul.mubr.bf16.gmra.mxu0 %v282
  %v616 = vpop.f32.mrf.mxu0
  %v617 = vadd.f32 %v128, %v616
  %v618 = vpop.f32.mrf.mxu0
  %v619 = vpop.f32.mrf.mxu0
  %v620 = vadd.f32 %v128, %v619
  %v621 = vpop.f32.mrf.mxu0
  %622 = vmatprep.mubr.bf16.mxu0 %v287
  %623 = vmatmul.mubr.bf16.gmra.mxu0 %v286
  %v624 = vpop.f32.mrf.mxu0
  %v625 = vadd.f32 %v128, %v624
  %v626 = vpop.f32.mrf.mxu0
  %v627 = vpop.f32.mrf.mxu0
  %v628 = vadd.f32 %v128, %v627
  %v629 = vpop.f32.mrf.mxu0
  %630 = vmatprep.mubr.bf16.mxu0 %v291
  %631 = vmatmul.mubr.bf16.gmra.mxu0 %v290
  %v632 = vpop.f32.mrf.mxu0
  %v633 = vadd.f32 %v128, %v632
  %v634 = vpop.f32.mrf.mxu0
  %v635 = vpop.f32.mrf.mxu0
  %v636 = vadd.f32 %v128, %v635
  %v637 = vpop.f32.mrf.mxu0
  %638 = vmatprep.mubr.bf16.mxu0 %v295
  %639 = vmatmul.mubr.bf16.gmra.mxu0 %v294
  %v640 = vpop.f32.mrf.mxu0
  %v641 = vadd.f32 %v128, %v640
  %v642 = vpop.f32.mrf.mxu0
  %v643 = vpop.f32.mrf.mxu0
  %v644 = vadd.f32 %v128, %v643
  %v645 = vpop.f32.mrf.mxu0
  %646 = vmatprep.mubr.bf16.mxu0 %v299
  %647 = vmatmul.mubr.bf16.gmra.mxu0 %v298
  %v648 = vpop.f32.mrf.mxu0
  %v649 = vadd.f32 %v128, %v648
  %v650 = vpop.f32.mrf.mxu0
  %v651 = vpop.f32.mrf.mxu0
  %v652 = vadd.f32 %v128, %v651
  %v653 = vpop.f32.mrf.mxu0
  %654 = vmatprep.mubr.bf16.mxu0 %v303
  %655 = vmatmul.mubr.bf16.gmra.mxu0 %v302
  %v656 = vpop.f32.mrf.mxu0
  %v657 = vadd.f32 %v128, %v656
  %v658 = vpop.f32.mrf.mxu0
  %v659 = vpop.f32.mrf.mxu0
  %v660 = vadd.f32 %v128, %v659
  %v661 = vpop.f32.mrf.mxu0
  %662 = vdwg.mxu0
  %663 = vmatprep.subr.bf16.mxu0 0
  %664 = vmatpush1.bf16.msra.mxu0 %v501
  %665 = vmatprep.subr.bf16.mxu0 0
  %666 = vmatpush1.bf16.msra.mxu0 %v500
  %667 = vmatprep.subr.bf16.mxu0 0
  %668 = vmatpush1.bf16.msra.mxu0 %v499
  %669 = vmatprep.subr.bf16.mxu0 0
  %670 = vmatpush1.bf16.msra.mxu0 %v498
  %671 = vmatprep.subr.bf16.mxu0 0
  %672 = vmatpush1.bf16.msra.mxu0 %v497
  %673 = vmatprep.subr.bf16.mxu0 0
  %674 = vmatpush1.bf16.msra.mxu0 %v496
  %675 = vmatprep.subr.bf16.mxu0 0
  %676 = vmatpush1.bf16.msra.mxu0 %v495
  %677 = vmatprep.subr.bf16.mxu0 0
  %678 = vmatpush1.bf16.msra.mxu0 %v494
  %679 = vmatprep.subr.bf16.mxu0 0
  %680 = vmatpush2.bf16.msra.mxu0 %v509
  %681 = vmatprep.subr.bf16.mxu0 0
  %682 = vmatpush2.bf16.msra.mxu0 %v508
  %683 = vmatprep.subr.bf16.mxu0 0
  %684 = vmatpush2.bf16.msra.mxu0 %v507
  %685 = vmatprep.subr.bf16.mxu0 0
  %686 = vmatpush2.bf16.msra.mxu0 %v506
  %687 = vmatprep.subr.bf16.mxu0 0
  %688 = vmatpush2.bf16.msra.mxu0 %v505
  %689 = vmatprep.subr.bf16.mxu0 0
  %690 = vmatpush2.bf16.msra.mxu0 %v504
  %691 = vmatprep.subr.bf16.mxu0 0
  %692 = vmatpush2.bf16.msra.mxu0 %v503
  %693 = vmatprep.subr.bf16.mxu0 0
  %694 = vmatpush2.bf16.msra.mxu0 %v502
  %695 = vmatprep.mubr.bf16.mxu0 %v265
  %696 = vmatmul.mubr.bf16.gmra.mxu0 %v264
  %v697 = vpop.f32.mrf.mxu0
  %v698 = vadd.f32 %v577, %v697
  %v699 = vpop.f32.mrf.mxu0
  %v700 = vpop.f32.mrf.mxu0
  %v701 = vadd.f32 %v580, %v700
  %v702 = vpop.f32.mrf.mxu0
  %703 = vmatprep.mubr.bf16.mxu0 %v269
  %704 = vmatmul.mubr.bf16.gmra.mxu0 %v268
  %v705 = vpop.f32.mrf.mxu0
  %v706 = vadd.f32 %v585, %v705
  %v707 = vpop.f32.mrf.mxu0
  %v708 = vpop.f32.mrf.mxu0
  %v709 = vadd.f32 %v588, %v708
  %v710 = vpop.f32.mrf.mxu0
  %711 = vmatprep.mubr.bf16.mxu0 %v273
  %712 = vmatmul.mubr.bf16.gmra.mxu0 %v272
  %v713 = vpop.f32.mrf.mxu0
  %v714 = vadd.f32 %v593, %v713
  %v715 = vpop.f32.mrf.mxu0
  %v716 = vpop.f32.mrf.mxu0
  %v717 = vadd.f32 %v596, %v716
  %v718 = vpop.f32.mrf.mxu0
  %719 = vmatprep.mubr.bf16.mxu0 %v277
  %720 = vmatmul.mubr.bf16.gmra.mxu0 %v276
  %v721 = vpop.f32.mrf.mxu0
  %v722 = vadd.f32 %v601, %v721
  %v723 = vpop.f32.mrf.mxu0
  %v724 = vpop.f32.mrf.mxu0
  %v725 = vadd.f32 %v604, %v724
  %v726 = vpop.f32.mrf.mxu0
  %727 = vmatprep.mubr.bf16.mxu0 %v281
  %728 = vmatmul.mubr.bf16.gmra.mxu0 %v280
  %v729 = vpop.f32.mrf.mxu0
  %v730 = vadd.f32 %v609, %v729
  %v731 = vpop.f32.mrf.mxu0
  %v732 = vpop.f32.mrf.mxu0
  %v733 = vadd.f32 %v612, %v732
  %v734 = vpop.f32.mrf.mxu0
  %735 = vmatprep.mubr.bf16.mxu0 %v285
  %736 = vmatmul.mubr.bf16.gmra.mxu0 %v284
  %v737 = vpop.f32.mrf.mxu0
  %v738 = vadd.f32 %v617, %v737
  %v739 = vpop.f32.mrf.mxu0
  %v740 = vpop.f32.mrf.mxu0
  %v741 = vadd.f32 %v620, %v740
  %v742 = vpop.f32.mrf.mxu0
  %743 = vmatprep.mubr.bf16.mxu0 %v289
  %744 = vmatmul.mubr.bf16.gmra.mxu0 %v288
  %v745 = vpop.f32.mrf.mxu0
  %v746 = vadd.f32 %v625, %v745
  %v747 = vpop.f32.mrf.mxu0
  %v748 = vpop.f32.mrf.mxu0
  %v749 = vadd.f32 %v628, %v748
  %v750 = vpop.f32.mrf.mxu0
  %751 = vmatprep.mubr.bf16.mxu0 %v293
  %752 = vmatmul.mubr.bf16.gmra.mxu0 %v292
  %v753 = vpop.f32.mrf.mxu0
  %v754 = vadd.f32 %v633, %v753
  %v755 = vpop.f32.mrf.mxu0
  %v756 = vpop.f32.mrf.mxu0
  %v757 = vadd.f32 %v636, %v756
  %v758 = vpop.f32.mrf.mxu0
  %759 = vmatprep.mubr.bf16.mxu0 %v297
  %760 = vmatmul.mubr.bf16.gmra.mxu0 %v296
  %v761 = vpop.f32.mrf.mxu0
  %v762 = vadd.f32 %v641, %v761
  %v763 = vpop.f32.mrf.mxu0
  %v764 = vpop.f32.mrf.mxu0
  %v765 = vadd.f32 %v644, %v764
  %v766 = vpop.f32.mrf.mxu0
  %767 = vmatprep.mubr.bf16.mxu0 %v301
  %768 = vmatmul.mubr.bf16.gmra.mxu0 %v300
  %v769 = vpop.f32.mrf.mxu0
  %v770 = vadd.f32 %v649, %v769
  %v771 = vpop.f32.mrf.mxu0
  %v772 = vpop.f32.mrf.mxu0
  %v773 = vadd.f32 %v652, %v772
  %v774 = vpop.f32.mrf.mxu0
  %775 = vmatprep.mubr.bf16.mxu0 %v305
  %776 = vmatmul.mubr.bf16.gmra.mxu0 %v304
  %v777 = vpop.f32.mrf.mxu0
  %v778 = vadd.f32 %v657, %v777
  %v779 = vpop.f32.mrf.mxu0
  %v780 = vpop.f32.mrf.mxu0
  %v781 = vadd.f32 %v660, %v780
  %v782 = vpop.f32.mrf.mxu0
  %783 = vdwg.mxu0
  %v784 = vmax.f32 %v698, 0.0
  %v785 = vmax.f32 %v701, 0.0
  %v786 = vmax.f32 %v706, 0.0
  %v787 = vmax.f32 %v709, 0.0
  %v788 = vmax.f32 %v714, 0.0
  %v789 = vmax.f32 %v717, 0.0
  %v790 = vmax.f32 %v722, 0.0
  %v791 = vmax.f32 %v725, 0.0
  %v792 = vmax.f32 %v730, 0.0
  %v793 = vmax.f32 %v733, 0.0
  %v794 = vmax.f32 %v738, 0.0
  %v795 = vmax.f32 %v741, 0.0
  %v796 = vmax.f32 %v746, 0.0
  %v797 = vmax.f32 %v749, 0.0
  %v798 = vmax.f32 %v754, 0.0
  %v799 = vmax.f32 %v757, 0.0
  %v800 = vmax.f32 %v762, 0.0
  %v801 = vmax.f32 %v765, 0.0
  %v802 = vmax.f32 %v770, 0.0
  %v803 = vmax.f32 %v773, 0.0
  %v804 = vmax.f32 %v778, 0.0
  %v805 = vmax.f32 %v781, 0.0
  %v806 = vpack.c.bf16 %v785, %v784
  %v807 = vpack.c.bf16 %v787, %v786
  %v808 = vpack.c.bf16 %v789, %v788
  %v809 = vpack.c.bf16 %v791, %v790
  %v810 = vpack.c.bf16 %v793, %v792
  %v811 = vpack.c.bf16 %v795, %v794
  %v812 = vpack.c.bf16 %v797, %v796
  %v813 = vpack.c.bf16 %v799, %v798
  %v814 = vpack.c.bf16 %v801, %v800
  %v815 = vpack.c.bf16 %v803, %v802
  %v816 = vpack.c.bf16 %v805, %v804
  %v828 = vunpack.c.l.b16 %v806
  %v829 = vunpack.c.h.b16 %v806
  %v830 = vunpack.c.l.b16 %v807
  %v831 = vunpack.c.h.b16 %v807
  %v832 = vunpack.c.l.b16 %v808
  %v833 = vunpack.c.h.b16 %v808
  %v834 = vunpack.c.l.b16 %v809
  %v835 = vunpack.c.h.b16 %v809
  %v836 = vunpack.c.l.b16 %v810
  %v837 = vunpack.c.h.b16 %v810
  %v838 = vunpack.c.l.b16 %v811
  %v839 = vunpack.c.h.b16 %v811
  %v840 = vunpack.c.l.b16 %v812
  %v841 = vunpack.c.h.b16 %v812
  %v842 = vunpack.c.l.b16 %v813
  %v843 = vunpack.c.h.b16 %v813
  %v844 = vunpack.c.l.b16 %v814
  %v845 = vunpack.c.h.b16 %v814
  %v846 = vunpack.c.l.b16 %v815
  %v847 = vunpack.c.h.b16 %v815
  %v848 = vunpack.c.l.b16 %v816
  %v849 = vunpack.c.h.b16 %v816
  %v850 = vpack.c.b16 %v828, %v828
  %v851 = vpack.c.b16 %v829, %v829
  %v852 = vpack.c.b16 %v830, %v830
  %v853 = vpack.c.b16 %v831, %v831
  %v854 = vpack.c.b16 %v832, %v832
  %v855 = vpack.c.b16 %v833, %v833
  %v856 = vpack.c.b16 %v834, %v834
  %v857 = vpack.c.b16 %v835, %v835
  %v858 = vpack.c.b16 %v836, %v836
  %v859 = vpack.c.b16 %v837, %v837
  %v860 = vpack.c.b16 %v838, %v838
  %v861 = vpack.c.b16 %v839, %v839
  %v862 = vpack.c.b16 %v840, %v840
  %v863 = vpack.c.b16 %v841, %v841
  %v864 = vpack.c.b16 %v842, %v842
  %v865 = vpack.c.b16 %v843, %v843
  %v866 = vpack.c.b16 %v844, %v844
  %v867 = vpack.c.b16 %v845, %v845
  %v868 = vpack.c.b16 %v846, %v846
  %v869 = vpack.c.b16 %v847, %v847
  %v870 = vpack.c.b16 %v848, %v848
  %v871 = vpack.c.b16 %v849, %v849
  %vm894 = vcmask 519168
  %895 = vst.msk [vmem:[%s3] sm:$0xf] %vm894, %v850
  %896 = vst.msk [vmem:[%s3 + $0x4] sm:$0xf] %vm894, %v851
  %897 = vst.msk [vmem:[%s3 + $0x8] sm:$0xf] %vm894, %v852
  %898 = vst.msk [vmem:[%s3 + $0xc] sm:$0xf] %vm894, %v853
  %899 = vst.msk [vmem:[%s3 + $0x10] sm:$0xf] %vm894, %v854
  %900 = vst.msk [vmem:[%s3 + $0x14] sm:$0xf] %vm894, %v855
  %901 = vst.msk [vmem:[%s3 + $0x18] sm:$0xf] %vm894, %v856
  %902 = vst.msk [vmem:[%s3 + $0x1c] sm:$0xf] %vm894, %v857
  %903 = vst.msk [vmem:[%s3 + $0x20] sm:$0xf] %vm894, %v858
  %904 = vst.msk [vmem:[%s3 + $0x24] sm:$0xf] %vm894, %v859
  %905 = vst.msk [vmem:[%s3 + $0x28] sm:$0xf] %vm894, %v860
  %906 = vst.msk [vmem:[%s3 + $0x2c] sm:$0xf] %vm894, %v861
  %907 = vst.msk [vmem:[%s3 + $0x30] sm:$0xf] %vm894, %v862
  %908 = vst.msk [vmem:[%s3 + $0x34] sm:$0xf] %vm894, %v863
  %909 = vst.msk [vmem:[%s3 + $0x38] sm:$0xf] %vm894, %v864
  %910 = vst.msk [vmem:[%s3 + $0x3c] sm:$0xf] %vm894, %v865
  %911 = vst.msk [vmem:[%s3 + $0x40] sm:$0xf] %vm894, %v866
  %912 = vst.msk [vmem:[%s3 + $0x44] sm:$0xf] %vm894, %v867
  %913 = vst.msk [vmem:[%s3 + $0x48] sm:$0xf] %vm894, %v868
  %914 = vst.msk [vmem:[%s3 + $0x4c] sm:$0xf] %vm894, %v869
  %915 = vst.msk [vmem:[%s3 + $0x50] sm:$0xf] %vm894, %v870
  %916 = vst.msk [vmem:[%s3 + $0x54] sm:$0xf] %vm894, %v871
  // Predicated region
  $region14: #{cnn_reward_forward.5} parent=0 // pred_check
    _
  $region15: #{cnn_reward_forward.5} parent=0 // pred_check_branch
    %918 = sbr.rel (0) target = $region17
  $region16: #{cnn_reward_forward.5} parent=0 // pred_region
    _
  $region17: #{cnn_reward_forward.5} parent=0 // pred_fallthru
    _
  // Predicated region
  $region18: #{cnn_reward_forward.5} parent=0 // pred_check
    _
  $region19: #{cnn_reward_forward.5} parent=0 // pred_check_branch
    %920 = sbr.rel (0) target = $region21
  $region20: #{cnn_reward_forward.5} parent=0 // pred_region
    _
  $region21: #{cnn_reward_forward.5} parent=0 // pred_fallthru
    _

// kernel: cnn_reward_forward.6
$region0: #{cnn_reward_forward.6}
  #allocation0 [shape = 'u32[]', space=smem, size = 0x4, offset = 0x4, fixed_abs, tag = 'smem constant byte address 0x4 - core index']
  #allocation1 [shape = 'u32[144,128]{1,0:T(1,128)}', space=vmem, size = 0x12000, scoped, tag = 'internal scratch']
  %s0 = inlined_call_operand.vmem [shape: bf16[112,576], index: 0, kind: input, shape index: {}]
  %s1 = inlined_call_operand.vmem [shape: bf16[576,64], index: 1, kind: input, shape index: {}]
  %s2 = inlined_call_operand.vmem [shape: f32[1,64], index: 2, kind: input, shape index: {}]
  %s3 = inlined_call_operand.vmem [shape: bf16[112,64], index: 3, kind: output, shape index: {}]
  %s4 = sld [smem:[#allocation0]]
  $region22: #{cnn_reward_forward.6} parent=0
    _
  %s6 = ssub.s32 1, %s4
  %s7 = scalar_select 0, %s6, %s4
  // Predicated region
  $region2: #{cnn_reward_forward.6} parent=0 // pred_check
    _
  $region3: #{cnn_reward_forward.6} parent=0 // pred_check_branch
    %9 = sbr.rel (0) target = $region5
  $region4: #{cnn_reward_forward.6} parent=0 // pred_region
    _
  $region5: #{cnn_reward_forward.6} parent=0 // pred_fallthru
    _
  // Predicated region
  $region6: #{cnn_reward_forward.6} parent=0 // pred_check
    _
  $region7: #{cnn_reward_forward.6} parent=0 // pred_check_branch
    %11 = sbr.rel (0) target = $region9
  $region8: #{cnn_reward_forward.6} parent=0 // pred_region
    _
  $region9: #{cnn_reward_forward.6} parent=0 // pred_fallthru
    _
  // Predicated region
  $region10: #{cnn_reward_forward.6} parent=0 // pred_check
    _
  $region11: #{cnn_reward_forward.6} parent=0 // pred_check_branch
    %13 = sbr.rel (0) target = $region13
  $region12: #{cnn_reward_forward.6} parent=0 // pred_region
    _
  $region13: #{cnn_reward_forward.6} parent=0 // pred_fallthru
    _
  %v15 = vld [vmem:[%s0] sm:$0xff]
  %v16 = vld [vmem:[%s0 + $0x8] sm:$0xff]
  %v17 = vld [vmem:[%s0 + $0x10] sm:$0xf]
  %v18 = vld [vmem:[%s0 + $0x14] sm:$0xff]
  %v19 = vld [vmem:[%s0 + $0x1c] sm:$0xff]
  %v20 = vld [vmem:[%s0 + $0x24] sm:$0xf]
  %v21 = vld [vmem:[%s0 + $0x28] sm:$0xff]
  %v22 = vld [vmem:[%s0 + $0x30] sm:$0xff]
  %v23 = vld [vmem:[%s0 + $0x38] sm:$0xf]
  %v24 = vld [vmem:[%s0 + $0x3c] sm:$0xff]
  %v25 = vld [vmem:[%s0 + $0x44] sm:$0xff]
  %v26 = vld [vmem:[%s0 + $0x4c] sm:$0xf]
  %v27 = vld [vmem:[%s0 + $0x50] sm:$0xff]
  %v28 = vld [vmem:[%s0 + $0x58] sm:$0xff]
  %v29 = vld [vmem:[%s0 + $0x60] sm:$0xf]
  %v30 = vld [vmem:[%s0 + $0x64] sm:$0xff]
  %v31 = vld [vmem:[%s0 + $0x6c] sm:$0xff]
  %v32 = vld [vmem:[%s0 + $0x74] sm:$0xf]
  %v33 = vld [vmem:[%s0 + $0x78] sm:$0xff]
  %v34 = vld [vmem:[%s0 + $0x80] sm:$0xff]
  %v35 = vld [vmem:[%s0 + $0x88] sm:$0xf]
  %v36 = vld [vmem:[%s0 + $0x8c] sm:$0xff]
  %v37 = vld [vmem:[%s0 + $0x94] sm:$0xff]
  %v38 = vld [vmem:[%s0 + $0x9c] sm:$0xf]
  %v39 = vld [vmem:[%s0 + $0xa0] sm:$0xff]
  %v40 = vld [vmem:[%s0 + $0xa8] sm:$0xff]
  %v41 = vld [vmem:[%s0 + $0xb0] sm:$0xf]
  %v42 = vld [vmem:[%s0 + $0xb4] sm:$0xff]
  %v43 = vld [vmem:[%s0 + $0xbc] sm:$0xff]
  %v44 = vld [vmem:[%s0 + $0xc4] sm:$0xf]
  %v45 = vld [vmem:[%s0 + $0xc8] sm:$0xff]
  %v46 = vld [vmem:[%s0 + $0xd0] sm:$0xff]
  %v47 = vld [vmem:[%s0 + $0xd8] sm:$0xf]
  %v48 = vld [vmem:[%s0 + $0xdc] sm:$0xff]
  %v49 = vld [vmem:[%s0 + $0xe4] sm:$0xff]
  %v50 = vld [vmem:[%s0 + $0xec] sm:$0xf]
  %v51 = vld [vmem:[%s0 + $0xf0] sm:$0xff]
  %v52 = vld [vmem:[%s0 + $0xf8] sm:$0xff]
  %v53 = vld [vmem:[%s0 + $0x100] sm:$0xf]
  %v54 = vld [vmem:[%s0 + $0x104] sm:$0xff]
  %v55 = vld [vmem:[%s0 + $0x10c] sm:$0xff]
  %v56 = vld [vmem:[%s0 + $0x114] sm:$0xf]
  %v57 = vld [vmem:[%s1] sm:$0xf]
  %v58 = vld [vmem:[%s1 + $0x4] sm:$0xf]
  %v59 = vld [vmem:[%s1 + $0x8] sm:$0xf]
  %v60 = vld [vmem:[%s1 + $0xc] sm:$0xf]
  %v61 = vld [vmem:[%s1 + $0x10] sm:$0xf]
  %v62 = vld [vmem:[%s1 + $0x14] sm:$0xf]
  %v63 = vld [vmem:[%s1 + $0x18] sm:$0xf]
  %v64 = vld [vmem:[%s1 + $0x1c] sm:$0xf]
  %v65 = vld [vmem:[%s1 + $0x20] sm:$0xf]
  %v66 = vld [vmem:[%s1 + $0x24] sm:$0xf]
  %v67 = vld [vmem:[%s1 + $0x28] sm:$0xf]
  %v68 = vld [vmem:[%s1 + $0x2c] sm:$0xf]
  %v69 = vld [vmem:[%s1 + $0x30] sm:$0xf]
  %v70 = vld [vmem:[%s1 + $0x34] sm:$0xf]
  %v71 = vld [vmem:[%s1 + $0x38] sm:$0xf]
  %v72 = vld [vmem:[%s1 + $0x3c] sm:$0xf]
  %v73 = vld [vmem:[%s1 + $0x40] sm:$0xf]
  %v74 = vld [vmem:[%s1 + $0x44] sm:$0xf]
  %v75 = vld [vmem:[%s1 + $0x48] sm:$0xf]
  %v76 = vld [vmem:[%s1 + $0x4c] sm:$0xf]
  %v77 = vld [vmem:[%s1 + $0x50] sm:$0xf]
  %v78 = vld [vmem:[%s1 + $0x54] sm:$0xf]
  %v79 = vld [vmem:[%s1 + $0x58] sm:$0xf]
  %v80 = vld [vmem:[%s1 + $0x5c] sm:$0xf]
  %v81 = vld [vmem:[%s1 + $0x60] sm:$0xf]
  %v82 = vld [vmem:[%s1 + $0x64] sm:$0xf]
  %v83 = vld [vmem:[%s1 + $0x68] sm:$0xf]
  %v84 = vld [vmem:[%s1 + $0x6c] sm:$0xf]
  %v85 = vld [vmem:[%s1 + $0x70] sm:$0xf]
  %v86 = vld [vmem:[%s1 + $0x74] sm:$0xf]
  %v87 = vld [vmem:[%s1 + $0x78] sm:$0xf]
  %v88 = vld [vmem:[%s1 + $0x7c] sm:$0xf]
  %v89 = vld [vmem:[%s1 + $0x80] sm:$0xf]
  %v90 = vld [vmem:[%s1 + $0x84] sm:$0xf]
  %v91 = vld [vmem:[%s1 + $0x88] sm:$0xf]
  %v92 = vld [vmem:[%s1 + $0x8c] sm:$0xf]
  %v93 = vld [vmem:[%s1 + $0x90] sm:$0xf]
  %v94 = vld [vmem:[%s1 + $0x94] sm:$0xf]
  %v95 = vld [vmem:[%s1 + $0x98] sm:$0xf]
  %v96 = vld [vmem:[%s1 + $0x9c] sm:$0xf]
  %v97 = vld [vmem:[%s1 + $0xa0] sm:$0xf]
  %v98 = vld [vmem:[%s1 + $0xa4] sm:$0xf]
  %v99 = vld [vmem:[%s1 + $0xa8] sm:$0xf]
  %v100 = vld [vmem:[%s1 + $0xac] sm:$0xf]
  %v101 = vld [vmem:[%s1 + $0xb0] sm:$0xf]
  %v102 = vld [vmem:[%s1 + $0xb4] sm:$0xf]
  %v103 = vld [vmem:[%s1 + $0xb8] sm:$0xf]
  %v104 = vld [vmem:[%s1 + $0xbc] sm:$0xf]
  %v105 = vld [vmem:[%s1 + $0xc0] sm:$0xf]
  %v106 = vld [vmem:[%s1 + $0xc4] sm:$0xf]
  %v107 = vld [vmem:[%s1 + $0xc8] sm:$0xf]
  %v108 = vld [vmem:[%s1 + $0xcc] sm:$0xf]
  %v109 = vld [vmem:[%s1 + $0xd0] sm:$0xf]
  %v110 = vld [vmem:[%s1 + $0xd4] sm:$0xf]
  %v111 = vld [vmem:[%s1 + $0xd8] sm:$0xf]
  %v112 = vld [vmem:[%s1 + $0xdc] sm:$0xf]
  %v113 = vld [vmem:[%s1 + $0xe0] sm:$0xf]
  %v114 = vld [vmem:[%s1 + $0xe4] sm:$0xf]
  %v115 = vld [vmem:[%s1 + $0xe8] sm:$0xf]
  %v116 = vld [vmem:[%s1 + $0xec] sm:$0xf]
  %v117 = vld [vmem:[%s1 + $0xf0] sm:$0xf]
  %v118 = vld [vmem:[%s1 + $0xf4] sm:$0xf]
  %v119 = vld [vmem:[%s1 + $0xf8] sm:$0xf]
  %v120 = vld [vmem:[%s1 + $0xfc] sm:$0xf]
  %v121 = vld [vmem:[%s1 + $0x100] sm:$0xf]
  %v122 = vld [vmem:[%s1 + $0x104] sm:$0xf]
  %v123 = vld [vmem:[%s1 + $0x108] sm:$0xf]
  %v124 = vld [vmem:[%s1 + $0x10c] sm:$0xf]
  %v125 = vld [vmem:[%s1 + $0x110] sm:$0xf]
  %v126 = vld [vmem:[%s1 + $0x114] sm:$0xf]
  %v127 = vld [vmem:[%s1 + $0x118] sm:$0xf]
  %v128 = vld [vmem:[%s1 + $0x11c] sm:$0xf]
  %v129 = vld [vmem:[%s2] sm:$0x1]
  %v131 = vlaneseq
  %v132 = vshrl.u32 %v131, 7
  %v133 = vsub.s32 0, %v132
  %v134 = vrot.slane %v129, %v133
  %v178 = vunpack.c.l.b16 %v15
  %v179 = vunpack.c.h.b16 %v15
  %v180 = vunpack.c.l.b16 %v16
  %v181 = vunpack.c.h.b16 %v16
  %v182 = vunpack.c.l.b16 %v17
  %v183 = vunpack.c.l.b16 %v18
  %v184 = vunpack.c.h.b16 %v18
  %v185 = vunpack.c.l.b16 %v19
  %v186 = vunpack.c.h.b16 %v19
  %v187 = vunpack.c.l.b16 %v20
  %v188 = vunpack.c.l.b16 %v21
  %v189 = vunpack.c.h.b16 %v21
  %v190 = vunpack.c.l.b16 %v22
  %v191 = vunpack.c.h.b16 %v22
  %v192 = vunpack.c.l.b16 %v23
  %v193 = vunpack.c.l.b16 %v24
  %v194 = vunpack.c.h.b16 %v24
  %v195 = vunpack.c.l.b16 %v25
  %v196 = vunpack.c.h.b16 %v25
  %v197 = vunpack.c.l.b16 %v26
  %v198 = vunpack.c.l.b16 %v27
  %v199 = vunpack.c.h.b16 %v27
  %v200 = vunpack.c.l.b16 %v28
  %v201 = vunpack.c.h.b16 %v28
  %v202 = vunpack.c.l.b16 %v29
  %v203 = vunpack.c.l.b16 %v30
  %v204 = vunpack.c.h.b16 %v30
  %v205 = vunpack.c.l.b16 %v31
  %v206 = vunpack.c.h.b16 %v31
  %v207 = vunpack.c.l.b16 %v32
  %v208 = vunpack.c.l.b16 %v33
  %v209 = vunpack.c.h.b16 %v33
  %v210 = vunpack.c.l.b16 %v34
  %v211 = vunpack.c.h.b16 %v34
  %v212 = vunpack.c.l.b16 %v35
  %v213 = vunpack.c.l.b16 %v36
  %v214 = vunpack.c.h.b16 %v36
  %v215 = vunpack.c.l.b16 %v37
  %v216 = vunpack.c.h.b16 %v37
  %v217 = vunpack.c.l.b16 %v38
  %v218 = vunpack.c.l.b16 %v39
  %v219 = vunpack.c.h.b16 %v39
  %v220 = vunpack.c.l.b16 %v40
  %v221 = vunpack.c.h.b16 %v40
  %v222 = vunpack.c.l.b16 %v41
  %v223 = vunpack.c.l.b16 %v42
  %v224 = vunpack.c.h.b16 %v42
  %v225 = vunpack.c.l.b16 %v43
  %v226 = vunpack.c.h.b16 %v43
  %v227 = vunpack.c.l.b16 %v44
  %v228 = vunpack.c.l.b16 %v45
  %v229 = vunpack.c.h.b16 %v45
  %v230 = vunpack.c.l.b16 %v46
  %v231 = vunpack.c.h.b16 %v46
  %v232 = vunpack.c.l.b16 %v47
  %v233 = vunpack.c.l.b16 %v48
  %v234 = vunpack.c.h.b16 %v48
  %v235 = vunpack.c.l.b16 %v49
  %v236 = vunpack.c.h.b16 %v49
  %v237 = vunpack.c.l.b16 %v50
  %v238 = vunpack.c.l.b16 %v51
  %v239 = vunpack.c.h.b16 %v51
  %v240 = vunpack.c.l.b16 %v52
  %v241 = vunpack.c.h.b16 %v52
  %v242 = vunpack.c.l.b16 %v53
  %v243 = vunpack.c.l.b16 %v54
  %v244 = vunpack.c.h.b16 %v54
  %v245 = vunpack.c.l.b16 %v55
  %v246 = vunpack.c.h.b16 %v55
  %v247 = vunpack.c.l.b16 %v56
  %v248 = vpack.c.b16 %v183, %v178
  %v249 = vpack.c.b16 %v184, %v179
  %v250 = vpack.c.b16 %v185, %v180
  %v251 = vpack.c.b16 %v186, %v181
  %v252 = vpack.c.b16 %v187, %v182
  %v253 = vpack.c.b16 %v193, %v188
  %v254 = vpack.c.b16 %v194, %v189
  %v255 = vpack.c.b16 %v195, %v190
  %v256 = vpack.c.b16 %v196, %v191
  %v257 = vpack.c.b16 %v197, %v192
  %v258 = vpack.c.b16 %v203, %v198
  %v259 = vpack.c.b16 %v204, %v199
  %v260 = vpack.c.b16 %v205, %v200
  %v261 = vpack.c.b16 %v206, %v201
  %v262 = vpack.c.b16 %v207, %v202
  %v263 = vpack.c.b16 %v213, %v208
  %v264 = vpack.c.b16 %v214, %v209
  %v265 = vpack.c.b16 %v215, %v210
  %v266 = vpack.c.b16 %v216, %v211
  %v267 = vpack.c.b16 %v217, %v212
  %v268 = vpack.c.b16 %v223, %v218
  %v269 = vpack.c.b16 %v224, %v219
  %v270 = vpack.c.b16 %v225, %v220
  %v271 = vpack.c.b16 %v226, %v221
  %v272 = vpack.c.b16 %v227, %v222
  %v273 = vpack.c.b16 %v233, %v228
  %v274 = vpack.c.b16 %v234, %v229
  %v275 = vpack.c.b16 %v235, %v230
  %v276 = vpack.c.b16 %v236, %v231
  %v277 = vpack.c.b16 %v237, %v232
  %v278 = vpack.c.b16 %v243, %v238
  %v279 = vpack.c.b16 %v244, %v239
  %v280 = vpack.c.b16 %v245, %v240
  %v281 = vpack.c.b16 %v246, %v241
  %v282 = vpack.c.b16 %v247, %v242
  %v383 = vunpack.c.l.b16 %v57
  %v384 = vunpack.c.l.b16 %v58
  %v385 = vunpack.c.l.b16 %v59
  %v386 = vunpack.c.l.b16 %v60
  %v387 = vunpack.c.l.b16 %v61
  %v388 = vunpack.c.l.b16 %v62
  %v389 = vunpack.c.l.b16 %v63
  %v390 = vunpack.c.l.b16 %v64
  %v391 = vunpack.c.l.b16 %v65
  %v392 = vunpack.c.l.b16 %v66
  %v393 = vunpack.c.l.b16 %v67
  %v394 = vunpack.c.l.b16 %v68
  %v395 = vunpack.c.l.b16 %v69
  %v396 = vunpack.c.l.b16 %v70
  %v397 = vunpack.c.l.b16 %v71
  %v398 = vunpack.c.l.b16 %v72
  %v399 = vunpack.c.l.b16 %v73
  %v400 = vunpack.c.l.b16 %v74
  %v401 = vunpack.c.l.b16 %v75
  %v402 = vunpack.c.l.b16 %v76
  %v403 = vunpack.c.l.b16 %v77
  %v404 = vunpack.c.l.b16 %v78
  %v405 = vunpack.c.l.b16 %v79
  %v406 = vunpack.c.l.b16 %v80
  %v407 = vunpack.c.l.b16 %v81
  %v408 = vunpack.c.l.b16 %v82
  %v409 = vunpack.c.l.b16 %v83
  %v410 = vunpack.c.l.b16 %v84
  %v411 = vunpack.c.l.b16 %v85
  %v412 = vunpack.c.l.b16 %v86
  %v413 = vunpack.c.l.b16 %v87
  %v414 = vunpack.c.l.b16 %v88
  %v415 = vunpack.c.l.b16 %v89
  %v416 = vunpack.c.l.b16 %v90
  %v417 = vunpack.c.l.b16 %v91
  %v418 = vunpack.c.l.b16 %v92
  %v419 = vunpack.c.l.b16 %v93
  %v420 = vunpack.c.l.b16 %v94
  %v421 = vunpack.c.l.b16 %v95
  %v422 = vunpack.c.l.b16 %v96
  %v423 = vunpack.c.l.b16 %v97
  %v424 = vunpack.c.l.b16 %v98
  %v425 = vunpack.c.l.b16 %v99
  %v426 = vunpack.c.l.b16 %v100
  %v427 = vunpack.c.l.b16 %v101
  %v428 = vunpack.c.l.b16 %v102
  %v429 = vunpack.c.l.b16 %v103
  %v430 = vunpack.c.l.b16 %v104
  %v431 = vunpack.c.l.b16 %v105
  %v432 = vunpack.c.l.b16 %v106
  %v433 = vunpack.c.l.b16 %v107
  %v434 = vunpack.c.l.b16 %v108
  %v435 = vunpack.c.l.b16 %v109
  %v436 = vunpack.c.l.b16 %v110
  %v437 = vunpack.c.l.b16 %v111
  %v438 = vunpack.c.l.b16 %v112
  %v439 = vunpack.c.l.b16 %v113
  %v440 = vunpack.c.l.b16 %v114
  %v441 = vunpack.c.l.b16 %v115
  %v442 = vunpack.c.l.b16 %v116
  %v443 = vunpack.c.l.b16 %v117
  %v444 = vunpack.c.l.b16 %v118
  %v445 = vunpack.c.l.b16 %v119
  %v446 = vunpack.c.l.b16 %v120
  %v447 = vunpack.c.l.b16 %v121
  %v448 = vunpack.c.l.b16 %v122
  %v449 = vunpack.c.l.b16 %v123
  %v450 = vunpack.c.l.b16 %v124
  %v451 = vunpack.c.l.b16 %v125
  %v452 = vunpack.c.l.b16 %v126
  %v453 = vunpack.c.l.b16 %v127
  %v454 = vunpack.c.l.b16 %v128
  %v455 = vpack.c.b16 %v384, %v383
  %v456 = vpack.c.b16 %v386, %v385
  %v457 = vpack.c.b16 %v388, %v387
  %v458 = vpack.c.b16 %v390, %v389
  %v459 = vpack.c.b16 %v392, %v391
  %v460 = vpack.c.b16 %v394, %v393
  %v461 = vpack.c.b16 %v396, %v395
  %v462 = vpack.c.b16 %v398, %v397
  %v463 = vpack.c.b16 %v400, %v399
  %v464 = vpack.c.b16 %v402, %v401
  %v465 = vpack.c.b16 %v404, %v403
  %v466 = vpack.c.b16 %v406, %v405
  %v467 = vpack.c.b16 %v408, %v407
  %v468 = vpack.c.b16 %v410, %v409
  %v469 = vpack.c.b16 %v412, %v411
  %v470 = vpack.c.b16 %v414, %v413
  %v471 = vpack.c.b16 %v416, %v415
  %v472 = vpack.c.b16 %v418, %v417
  %v473 = vpack.c.b16 %v420, %v419
  %v474 = vpack.c.b16 %v422, %v421
  %v475 = vpack.c.b16 %v424, %v423
  %v476 = vpack.c.b16 %v426, %v425
  %v477 = vpack.c.b16 %v428, %v427
  %v478 = vpack.c.b16 %v430, %v429
  %v479 = vpack.c.b16 %v432, %v431
  %v480 = vpack.c.b16 %v434, %v433
  %v481 = vpack.c.b16 %v436, %v435
  %v482 = vpack.c.b16 %v438, %v437
  %v483 = vpack.c.b16 %v440, %v439
  %v484 = vpack.c.b16 %v442, %v441
  %v485 = vpack.c.b16 %v444, %v443
  %v486 = vpack.c.b16 %v446, %v445
  %v487 = vpack.c.b16 %v448, %v447
  %v488 = vpack.c.b16 %v450, %v449
  %v489 = vpack.c.b16 %v452, %v451
  %v490 = vpack.c.b16 %v454, %v453
  %vm527 = vcmask 523264
  %v529 = vsel %vm527, %v252, 0
  %v532 = vsel %vm527, %v257, 0
  %v535 = vsel %vm527, %v262, 0
  %v538 = vsel %vm527, %v267, 0
  %v541 = vsel %vm527, %v272, 0
  %v544 = vsel %vm527, %v277, 0
  %v547 = vsel %vm527, %v282, 0
  %549 = vmatprep.subr.bf16.mxu0 0
  %550 = vmatpush1.bf16.msra.mxu0 %v462
  %551 = vmatprep.subr.bf16.mxu0 0
  %552 = vmatpush1.bf16.msra.mxu0 %v461
  %553 = vmatprep.subr.bf16.mxu0 0
  %554 = vmatpush1.bf16.msra.mxu0 %v460
  %555 = vmatprep.subr.bf16.mxu0 0
  %556 = vmatpush1.bf16.msra.mxu0 %v459
  %557 = vmatprep.subr.bf16.mxu0 0
  %558 = vmatpush1.bf16.msra.mxu0 %v458
  %559 = vmatprep.subr.bf16.mxu0 0
  %560 = vmatpush1.bf16.msra.mxu0 %v457
  %561 = vmatprep.subr.bf16.mxu0 0
  %562 = vmatpush1.bf16.msra.mxu0 %v456
  %563 = vmatprep.subr.bf16.mxu0 0
  %564 = vmatpush1.bf16.msra.mxu0 %v455
  %565 = vmatprep.subr.bf16.mxu0 0
  %566 = vmatpush2.bf16.msra.mxu0 %v470
  %567 = vmatprep.subr.bf16.mxu0 0
  %568 = vmatpush2.bf16.msra.mxu0 %v469
  %569 = vmatprep.subr.bf16.mxu0 0
  %570 = vmatpush2.bf16.msra.mxu0 %v468
  %571 = vmatprep.subr.bf16.mxu0 0
  %572 = vmatpush2.bf16.msra.mxu0 %v467
  %573 = vmatprep.subr.bf16.mxu0 0
  %574 = vmatpush2.bf16.msra.mxu0 %v466
  %575 = vmatprep.subr.bf16.mxu0 0
  %576 = vmatpush2.bf16.msra.mxu0 %v465
  %577 = vmatprep.subr.bf16.mxu0 0
  %578 = vmatpush2.bf16.msra.mxu0 %v464
  %579 = vmatprep.subr.bf16.mxu0 0
  %580 = vmatpush2.bf16.msra.mxu0 %v463
  %581 = vmatprep.mubr.bf16.mxu0 %v249
  %582 = vmatmul.mubr.bf16.gmra.mxu0 %v248
  %v583 = vpop.f32.mrf.mxu0
  %v584 = vadd.f32 %v134, %v583
  %v585 = vpop.f32.mrf.mxu0
  %v586 = vpop.f32.mrf.mxu0
  %v587 = vadd.f32 %v134, %v586
  %v588 = vpop.f32.mrf.mxu0
  %589 = vmatprep.mubr.bf16.mxu0 %v254
  %590 = vmatmul.mubr.bf16.gmra.mxu0 %v253
  %v591 = vpop.f32.mrf.mxu0
  %v592 = vadd.f32 %v134, %v591
  %v593 = vpop.f32.mrf.mxu0
  %v594 = vpop.f32.mrf.mxu0
  %v595 = vadd.f32 %v134, %v594
  %v596 = vpop.f32.mrf.mxu0
  %597 = vmatprep.mubr.bf16.mxu0 %v259
  %598 = vmatmul.mubr.bf16.gmra.mxu0 %v258
  %v599 = vpop.f32.mrf.mxu0
  %v600 = vadd.f32 %v134, %v599
  %v601 = vpop.f32.mrf.mxu0
  %v602 = vpop.f32.mrf.mxu0
  %v603 = vadd.f32 %v134, %v602
  %v604 = vpop.f32.mrf.mxu0
  %605 = vmatprep.mubr.bf16.mxu0 %v264
  %606 = vmatmul.mubr.bf16.gmra.mxu0 %v263
  %v607 = vpop.f32.mrf.mxu0
  %v608 = vadd.f32 %v134, %v607
  %v609 = vpop.f32.mrf.mxu0
  %v610 = vpop.f32.mrf.mxu0
  %v611 = vadd.f32 %v134, %v610
  %v612 = vpop.f32.mrf.mxu0
  %613 = vmatprep.mubr.bf16.mxu0 %v269
  %614 = vmatmul.mubr.bf16.gmra.mxu0 %v268
  %v615 = vpop.f32.mrf.mxu0
  %v616 = vadd.f32 %v134, %v615
  %v617 = vpop.f32.mrf.mxu0
  %v618 = vpop.f32.mrf.mxu0
  %v619 = vadd.f32 %v134, %v618
  %v620 = vpop.f32.mrf.mxu0
  %621 = vmatprep.mubr.bf16.mxu0 %v274
  %622 = vmatmul.mubr.bf16.gmra.mxu0 %v273
  %v623 = vpop.f32.mrf.mxu0
  %v624 = vadd.f32 %v134, %v623
  %v625 = vpop.f32.mrf.mxu0
  %v626 = vpop.f32.mrf.mxu0
  %v627 = vadd.f32 %v134, %v626
  %v628 = vpop.f32.mrf.mxu0
  %629 = vmatprep.mubr.bf16.mxu0 %v279
  %630 = vmatmul.mubr.bf16.gmra.mxu0 %v278
  %v631 = vpop.f32.mrf.mxu0
  %v632 = vadd.f32 %v134, %v631
  %v633 = vpop.f32.mrf.mxu0
  %v634 = vpop.f32.mrf.mxu0
  %v635 = vadd.f32 %v134, %v634
  %v636 = vpop.f32.mrf.mxu0
  %637 = vdwg.mxu0
  %638 = vmatprep.subr.bf16.mxu0 0
  %639 = vmatpush1.bf16.msra.mxu0 %v478
  %640 = vmatprep.subr.bf16.mxu0 0
  %641 = vmatpush1.bf16.msra.mxu0 %v477
  %642 = vmatprep.subr.bf16.mxu0 0
  %643 = vmatpush1.bf16.msra.mxu0 %v476
  %644 = vmatprep.subr.bf16.mxu0 0
  %645 = vmatpush1.bf16.msra.mxu0 %v475
  %646 = vmatprep.subr.bf16.mxu0 0
  %647 = vmatpush1.bf16.msra.mxu0 %v474
  %648 = vmatprep.subr.bf16.mxu0 0
  %649 = vmatpush1.bf16.msra.mxu0 %v473
  %650 = vmatprep.subr.bf16.mxu0 0
  %651 = vmatpush1.bf16.msra.mxu0 %v472
  %652 = vmatprep.subr.bf16.mxu0 0
  %653 = vmatpush1.bf16.msra.mxu0 %v471
  %654 = vmatprep.subr.bf16.mxu0 0
  %655 = vmatpush2.bf16.msra.mxu0 %v486
  %656 = vmatprep.subr.bf16.mxu0 0
  %657 = vmatpush2.bf16.msra.mxu0 %v485
  %658 = vmatprep.subr.bf16.mxu0 0
  %659 = vmatpush2.bf16.msra.mxu0 %v484
  %660 = vmatprep.subr.bf16.mxu0 0
  %661 = vmatpush2.bf16.msra.mxu0 %v483
  %662 = vmatprep.subr.bf16.mxu0 0
  %663 = vmatpush2.bf16.msra.mxu0 %v482
  %664 = vmatprep.subr.bf16.mxu0 0
  %665 = vmatpush2.bf16.msra.mxu0 %v481
  %666 = vmatprep.subr.bf16.mxu0 0
  %667 = vmatpush2.bf16.msra.mxu0 %v480
  %668 = vmatprep.subr.bf16.mxu0 0
  %669 = vmatpush2.bf16.msra.mxu0 %v479
  %670 = vmatprep.mubr.bf16.mxu0 %v251
  %671 = vmatmul.mubr.bf16.gmra.mxu0 %v250
  %v672 = vpop.f32.mrf.mxu0
  %v673 = vadd.f32 %v584, %v672
  %v674 = vpop.f32.mrf.mxu0
  %v675 = vpop.f32.mrf.mxu0
  %v676 = vadd.f32 %v587, %v675
  %v677 = vpop.f32.mrf.mxu0
  %678 = vmatprep.mubr.bf16.mxu0 %v256
  %679 = vmatmul.mubr.bf16.gmra.mxu0 %v255
  %v680 = vpop.f32.mrf.mxu0
  %v681 = vadd.f32 %v592, %v680
  %v682 = vpop.f32.mrf.mxu0
  %v683 = vpop.f32.mrf.mxu0
  %v684 = vadd.f32 %v595, %v683
  %v685 = vpop.f32.mrf.mxu0
  %686 = vmatprep.mubr.bf16.mxu0 %v261
  %687 = vmatmul.mubr.bf16.gmra.mxu0 %v260
  %v688 = vpop.f32.mrf.mxu0
  %v689 = vadd.f32 %v600, %v688
  %v690 = vpop.f32.mrf.mxu0
  %v691 = vpop.f32.mrf.mxu0
  %v692 = vadd.f32 %v603, %v691
  %v693 = vpop.f32.mrf.mxu0
  %694 = vmatprep.mubr.bf16.mxu0 %v266
  %695 = vmatmul.mubr.bf16.gmra.mxu0 %v265
  %v696 = vpop.f32.mrf.mxu0
  %v697 = vadd.f32 %v608, %v696
  %v698 = vpop.f32.mrf.mxu0
  %v699 = vpop.f32.mrf.mxu0
  %v700 = vadd.f32 %v611, %v699
  %v701 = vpop.f32.mrf.mxu0
  %702 = vmatprep.mubr.bf16.mxu0 %v271
  %703 = vmatmul.mubr.bf16.gmra.mxu0 %v270
  %v704 = vpop.f32.mrf.mxu0
  %v705 = vadd.f32 %v616, %v704
  %v706 = vpop.f32.mrf.mxu0
  %v707 = vpop.f32.mrf.mxu0
  %v708 = vadd.f32 %v619, %v707
  %v709 = vpop.f32.mrf.mxu0
  %710 = vmatprep.mubr.bf16.mxu0 %v276
  %711 = vmatmul.mubr.bf16.gmra.mxu0 %v275
  %v712 = vpop.f32.mrf.mxu0
  %v713 = vadd.f32 %v624, %v712
  %v714 = vpop.f32.mrf.mxu0
  %v715 = vpop.f32.mrf.mxu0
  %v716 = vadd.f32 %v627, %v715
  %v717 = vpop.f32.mrf.mxu0
  %718 = vmatprep.mubr.bf16.mxu0 %v281
  %719 = vmatmul.mubr.bf16.gmra.mxu0 %v280
  %v720 = vpop.f32.mrf.mxu0
  %v721 = vadd.f32 %v632, %v720
  %v722 = vpop.f32.mrf.mxu0
  %v723 = vpop.f32.mrf.mxu0
  %v724 = vadd.f32 %v635, %v723
  %v725 = vpop.f32.mrf.mxu0
  %726 = vdwg.mxu0
  %727 = vmatprep.subr.bf16.mxu0 0
  %728 = vmatpush1.bf16.msra.mxu0 0
  %729 = vmatprep.subr.bf16.mxu0 0
  %730 = vmatpush1.bf16.msra.mxu0 0
  %731 = vmatprep.subr.bf16.mxu0 0
  %732 = vmatpush1.bf16.msra.mxu0 0
  %733 = vmatprep.subr.bf16.mxu0 0
  %734 = vmatpush1.bf16.msra.mxu0 0
  %735 = vmatprep.subr.bf16.mxu0 0
  %736 = vmatpush1.bf16.msra.mxu0 %v490
  %737 = vmatprep.subr.bf16.mxu0 0
  %738 = vmatpush1.bf16.msra.mxu0 %v489
  %739 = vmatprep.subr.bf16.mxu0 0
  %740 = vmatpush1.bf16.msra.mxu0 %v488
  %741 = vmatprep.subr.bf16.mxu0 0
  %742 = vmatpush1.bf16.msra.mxu0 %v487
  %743 = vmatprep.subr.bf16.mxu0 0
  %744 = vmatpush2.bf16.msra.mxu0 0
  %745 = vmatprep.subr.bf16.mxu0 0
  %746 = vmatpush2.bf16.msra.mxu0 0
  %747 = vmatprep.subr.bf16.mxu0 0
  %748 = vmatpush2.bf16.msra.mxu0 0
  %749 = vmatprep.subr.bf16.mxu0 0
  %750 = vmatpush2.bf16.msra.mxu0 0
  %751 = vmatprep.subr.bf16.mxu0 0
  %752 = vmatpush2.bf16.msra.mxu0 0
  %753 = vmatprep.subr.bf16.mxu0 0
  %754 = vmatpush2.bf16.msra.mxu0 0
  %755 = vmatprep.subr.bf16.mxu0 0
  %756 = vmatpush2.bf16.msra.mxu0 0
  %757 = vmatprep.subr.bf16.mxu0 0
  %758 = vmatpush2.bf16.msra.mxu0 0
  %759 = vmatprep.mubr.bf16.mxu0 0
  %760 = vmatmul.mubr.bf16.gmra.mxu0 %v529
  %v761 = vpop.f32.mrf.mxu0
  %v762 = vadd.f32 %v673, %v761
  %v763 = vpop.f32.mrf.mxu0
  %v764 = vpop.f32.mrf.mxu0
  %v765 = vadd.f32 %v676, %v764
  %v766 = vpop.f32.mrf.mxu0
  %767 = vmatprep.mubr.bf16.mxu0 0
  %768 = vmatmul.mubr.bf16.gmra.mxu0 %v532
  %v769 = vpop.f32.mrf.mxu0
  %v770 = vadd.f32 %v681, %v769
  %v771 = vpop.f32.mrf.mxu0
  %v772 = vpop.f32.mrf.mxu0
  %v773 = vadd.f32 %v684, %v772
  %v774 = vpop.f32.mrf.mxu0
  %775 = vmatprep.mubr.bf16.mxu0 0
  %776 = vmatmul.mubr.bf16.gmra.mxu0 %v535
  %v777 = vpop.f32.mrf.mxu0
  %v778 = vadd.f32 %v689, %v777
  %v779 = vpop.f32.mrf.mxu0
  %v780 = vpop.f32.mrf.mxu0
  %v781 = vadd.f32 %v692, %v780
  %v782 = vpop.f32.mrf.mxu0
  %783 = vmatprep.mubr.bf16.mxu0 0
  %784 = vmatmul.mubr.bf16.gmra.mxu0 %v538
  %v785 = vpop.f32.mrf.mxu0
  %v786 = vadd.f32 %v697, %v785
  %v787 = vpop.f32.mrf.mxu0
  %v788 = vpop.f32.mrf.mxu0
  %v789 = vadd.f32 %v700, %v788
  %v790 = vpop.f32.mrf.mxu0
  %791 = vmatprep.mubr.bf16.mxu0 0
  %792 = vmatmul.mubr.bf16.gmra.mxu0 %v541
  %v793 = vpop.f32.mrf.mxu0
  %v794 = vadd.f32 %v705, %v793
  %v795 = vpop.f32.mrf.mxu0
  %v796 = vpop.f32.mrf.mxu0
  %v797 = vadd.f32 %v708, %v796
  %v798 = vpop.f32.mrf.mxu0
  %799 = vmatprep.mubr.bf16.mxu0 0
  %800 = vmatmul.mubr.bf16.gmra.mxu0 %v544
  %v801 = vpop.f32.mrf.mxu0
  %v802 = vadd.f32 %v713, %v801
  %v803 = vpop.f32.mrf.mxu0
  %v804 = vpop.f32.mrf.mxu0
  %v805 = vadd.f32 %v716, %v804
  %v806 = vpop.f32.mrf.mxu0
  %807 = vmatprep.mubr.bf16.mxu0 0
  %808 = vmatmul.mubr.bf16.gmra.mxu0 %v547
  %v809 = vpop.f32.mrf.mxu0
  %v810 = vadd.f32 %v721, %v809
  %v811 = vpop.f32.mrf.mxu0
  %v812 = vpop.f32.mrf.mxu0
  %v813 = vadd.f32 %v724, %v812
  %v814 = vpop.f32.mrf.mxu0
  %815 = vdwg.mxu0
  %v816 = vmax.f32 %v762, 0.0
  %v817 = vmax.f32 %v765, 0.0
  %v818 = vmax.f32 %v770, 0.0
  %v819 = vmax.f32 %v773, 0.0
  %v820 = vmax.f32 %v778, 0.0
  %v821 = vmax.f32 %v781, 0.0
  %v822 = vmax.f32 %v786, 0.0
  %v823 = vmax.f32 %v789, 0.0
  %v824 = vmax.f32 %v794, 0.0
  %v825 = vmax.f32 %v797, 0.0
  %v826 = vmax.f32 %v802, 0.0
  %v827 = vmax.f32 %v805, 0.0
  %v828 = vmax.f32 %v810, 0.0
  %v829 = vmax.f32 %v813, 0.0
  %v830 = vpack.c.bf16 %v817, %v816
  %v831 = vpack.c.bf16 %v819, %v818
  %v832 = vpack.c.bf16 %v821, %v820
  %v833 = vpack.c.bf16 %v823, %v822
  %v834 = vpack.c.bf16 %v825, %v824
  %v835 = vpack.c.bf16 %v827, %v826
  %v836 = vpack.c.bf16 %v829, %v828
  %v844 = vunpack.c.l.b16 %v830
  %v845 = vunpack.c.h.b16 %v830
  %v846 = vunpack.c.l.b16 %v831
  %v847 = vunpack.c.h.b16 %v831
  %v848 = vunpack.c.l.b16 %v832
  %v849 = vunpack.c.h.b16 %v832
  %v850 = vunpack.c.l.b16 %v833
  %v851 = vunpack.c.h.b16 %v833
  %v852 = vunpack.c.l.b16 %v834
  %v853 = vunpack.c.h.b16 %v834
  %v854 = vunpack.c.l.b16 %v835
  %v855 = vunpack.c.h.b16 %v835
  %v856 = vunpack.c.l.b16 %v836
  %v857 = vunpack.c.h.b16 %v836
  %v858 = vpack.c.b16 %v844, %v844
  %v859 = vpack.c.b16 %v845, %v845
  %v860 = vpack.c.b16 %v846, %v846
  %v861 = vpack.c.b16 %v847, %v847
  %v862 = vpack.c.b16 %v848, %v848
  %v863 = vpack.c.b16 %v849, %v849
  %v864 = vpack.c.b16 %v850, %v850
  %v865 = vpack.c.b16 %v851, %v851
  %v866 = vpack.c.b16 %v852, %v852
  %v867 = vpack.c.b16 %v853, %v853
  %v868 = vpack.c.b16 %v854, %v854
  %v869 = vpack.c.b16 %v855, %v855
  %v870 = vpack.c.b16 %v856, %v856
  %v871 = vpack.c.b16 %v857, %v857
  %vm886 = vcmask 519168
  %887 = vst.msk [vmem:[%s3] sm:$0xf] %vm886, %v858
  %888 = vst.msk [vmem:[%s3 + $0x4] sm:$0xf] %vm886, %v859
  %889 = vst.msk [vmem:[%s3 + $0x8] sm:$0xf] %vm886, %v860
  %890 = vst.msk [vmem:[%s3 + $0xc] sm:$0xf] %vm886, %v861
  %891 = vst.msk [vmem:[%s3 + $0x10] sm:$0xf] %vm886, %v862
  %892 = vst.msk [vmem:[%s3 + $0x14] sm:$0xf] %vm886, %v863
  %893 = vst.msk [vmem:[%s3 + $0x18] sm:$0xf] %vm886, %v864
  %894 = vst.msk [vmem:[%s3 + $0x1c] sm:$0xf] %vm886, %v865
  %895 = vst.msk [vmem:[%s3 + $0x20] sm:$0xf] %vm886, %v866
  %896 = vst.msk [vmem:[%s3 + $0x24] sm:$0xf] %vm886, %v867
  %897 = vst.msk [vmem:[%s3 + $0x28] sm:$0xf] %vm886, %v868
  %898 = vst.msk [vmem:[%s3 + $0x2c] sm:$0xf] %vm886, %v869
  %899 = vst.msk [vmem:[%s3 + $0x30] sm:$0xf] %vm886, %v870
  %900 = vst.msk [vmem:[%s3 + $0x34] sm:$0xf] %vm886, %v871
  // Predicated region
  $region14: #{cnn_reward_forward.6} parent=0 // pred_check
    _
  $region15: #{cnn_reward_forward.6} parent=0 // pred_check_branch
    %902 = sbr.rel (0) target = $region17
  $region16: #{cnn_reward_forward.6} parent=0 // pred_region
    _
  $region17: #{cnn_reward_forward.6} parent=0 // pred_fallthru
    _
  // Predicated region
  $region18: #{cnn_reward_forward.6} parent=0 // pred_check
    _
  $region19: #{cnn_reward_forward.6} parent=0 // pred_check_branch
    %904 = sbr.rel (0) target = $region21
  $region20: #{cnn_reward_forward.6} parent=0 // pred_region
    _
  $region21: #{cnn_reward_forward.6} parent=0 // pred_fallthru
    _

// kernel: cnn_reward_forward.7
$region0: #{cnn_reward_forward.7}
  #allocation0 [shape = 'u32[]', space=smem, size = 0x4, offset = 0x4, fixed_abs, tag = 'smem constant byte address 0x4 - core index']
  #allocation1 [shape = 'u32[144,128]{1,0:T(1,128)}', space=vmem, size = 0x12000, scoped, tag = 'internal scratch']
  %s0 = inlined_call_operand.vmem [shape: bf16[16,3136], index: 0, kind: input, shape index: {}]
  %s1 = inlined_call_operand.vmem [shape: bf16[16,4], index: 1, kind: input, shape index: {}]
  %s2 = inlined_call_operand.vmem [shape: bf16[3136,512], index: 2, kind: input, shape index: {}]
  %s3 = inlined_call_operand.vmem [shape: f32[1,512], index: 3, kind: input, shape index: {}]
  %s4 = inlined_call_operand.vmem [shape: bf16[512,512], index: 4, kind: input, shape index: {}]
  %s5 = inlined_call_operand.vmem [shape: bf16[4,512], index: 5, kind: input, shape index: {}]
  %s6 = inlined_call_operand.vmem [shape: f32[1,512], index: 6, kind: input, shape index: {}]
  %s7 = inlined_call_operand.vmem [shape: bf16[512,128], index: 7, kind: input, shape index: {}]
  %s8 = inlined_call_operand.vmem [shape: f32[1,128], index: 8, kind: input, shape index: {}]
  %s9 = inlined_call_operand.vmem [shape: f32[16,128], index: 9, kind: output, shape index: {}]
  %s10 = sld [smem:[#allocation0]]
  $region46: #{cnn_reward_forward.7} parent=0
    _
  %s12 = ssub.s32 1, %s10
  %s13 = scalar_select 0, %s12, %s10
  // Predicated region
  $region2: #{cnn_reward_forward.7} parent=0 // pred_check
    _
  $region3: #{cnn_reward_forward.7} parent=0 // pred_check_branch
    %15 = sbr.rel (0) target = $region5
  $region4: #{cnn_reward_forward.7} parent=0 // pred_region
    _
  $region5: #{cnn_reward_forward.7} parent=0 // pred_fallthru
    _
  // Predicated region
  $region6: #{cnn_reward_forward.7} parent=0 // pred_check
    _
  $region7: #{cnn_reward_forward.7} parent=0 // pred_check_branch
    %17 = sbr.rel (0) target = $region9
  $region8: #{cnn_reward_forward.7} parent=0 // pred_region
    _
  $region9: #{cnn_reward_forward.7} parent=0 // pred_fallthru
    _
  // Predicated region
  $region10: #{cnn_reward_forward.7} parent=0 // pred_check
    _
  $region11: #{cnn_reward_forward.7} parent=0 // pred_check_branch
    %19 = sbr.rel (0) target = $region13
  $region12: #{cnn_reward_forward.7} parent=0 // pred_region
    _
  $region13: #{cnn_reward_forward.7} parent=0 // pred_fallthru
    _
  // Predicated region
  $region14: #{cnn_reward_forward.7} parent=0 // pred_check
    _
  $region15: #{cnn_reward_forward.7} parent=0 // pred_check_branch
    %21 = sbr.rel (0) target = $region17
  $region16: #{cnn_reward_forward.7} parent=0 // pred_region
    _
  $region17: #{cnn_reward_forward.7} parent=0 // pred_fallthru
    _
  // Predicated region
  $region18: #{cnn_reward_forward.7} parent=0 // pred_check
    _
  $region19: #{cnn_reward_forward.7} parent=0 // pred_check_branch
    %23 = sbr.rel (0) target = $region21
  $region20: #{cnn_reward_forward.7} parent=0 // pred_region
    _
  $region21: #{cnn_reward_forward.7} parent=0 // pred_fallthru
    _
  // Predicated region
  $region22: #{cnn_reward_forward.7} parent=0 // pred_check
    _
  $region23: #{cnn_reward_forward.7} parent=0 // pred_check_branch
    %25 = sbr.rel (0) target = $region25
  $region24: #{cnn_reward_forward.7} parent=0 // pred_region
    _
  $region25: #{cnn_reward_forward.7} parent=0 // pred_fallthru
    _
  // Predicated region
  $region26: #{cnn_reward_forward.7} parent=0 // pred_check
    _
  $region27: #{cnn_reward_forward.7} parent=0 // pred_check_branch
    %27 = sbr.rel (0) target = $region29
  $region28: #{cnn_reward_forward.7} parent=0 // pred_region
    _
  $region29: #{cnn_reward_forward.7} parent=0 // pred_fallthru
    _
  // Predicated region
  $region30: #{cnn_reward_forward.7} parent=0 // pred_check
    _
  $region31: #{cnn_reward_forward.7} parent=0 // pred_check_branch
    %29 = sbr.rel (0) target = $region33
  $region32: #{cnn_reward_forward.7} parent=0 // pred_region
    _
  $region33: #{cnn_reward_forward.7} parent=0 // pred_fallthru
    _
  // Predicated region
  $region34: #{cnn_reward_forward.7} parent=0 // pred_check
    _
  $region35: #{cnn_reward_forward.7} parent=0 // pred_check_branch
    %31 = sbr.rel (0) target = $region37
  $region36: #{cnn_reward_forward.7} parent=0 // pred_region
    _
  $region37: #{cnn_reward_forward.7} parent=0 // pred_fallthru
    _
  %v33 = vld [vmem:[%s0] sm:$0xff]
  %v34 = vld [vmem:[%s0 + $0x8] sm:$0xff]
  %v35 = vld [vmem:[%s0 + $0x10] sm:$0xff]
  %v36 = vld [vmem:[%s0 + $0x18] sm:$0xff]
  %v37 = vld [vmem:[%s0 + $0x20] sm:$0xff]
  %v38 = vld [vmem:[%s0 + $0x28] sm:$0xff]
  %v39 = vld [vmem:[%s0 + $0x30] sm:$0xff]
  %v40 = vld [vmem:[%s0 + $0x38] sm:$0xff]
  %v41 = vld [vmem:[%s0 + $0x40] sm:$0xff]
  %v42 = vld [vmem:[%s0 + $0x48] sm:$0xff]
  %v43 = vld [vmem:[%s0 + $0x50] sm:$0xff]
  %v44 = vld [vmem:[%s0 + $0x58] sm:$0xff]
  %v45 = vld [vmem:[%s0 + $0x60] sm:$0xf]
  %v46 = vld [vmem:[%s0 + $0x64] sm:$0xff]
  %v47 = vld [vmem:[%s0 + $0x6c] sm:$0xff]
  %v48 = vld [vmem:[%s0 + $0x74] sm:$0xff]
  %v49 = vld [vmem:[%s0 + $0x7c] sm:$0xff]
  %v50 = vld [vmem:[%s0 + $0x84] sm:$0xff]
  %v51 = vld [vmem:[%s0 + $0x8c] sm:$0xff]
  %v52 = vld [vmem:[%s0 + $0x94] sm:$0xff]
  %v53 = vld [vmem:[%s0 + $0x9c] sm:$0xff]
  %v54 = vld [vmem:[%s0 + $0xa4] sm:$0xff]
  %v55 = vld [vmem:[%s0 + $0xac] sm:$0xff]
  %v56 = vld [vmem:[%s0 + $0xb4] sm:$0xff]
  %v57 = vld [vmem:[%s0 + $0xbc] sm:$0xff]
  %v58 = vld [vmem:[%s0 + $0xc4] sm:$0xf]
  %v59 = vld [vmem:[%s2] sm:$0xff]
  %v60 = vld [vmem:[%s2 + $0x8] sm:$0xff]
  %v61 = vld [vmem:[%s2 + $0x10] sm:$0xff]
  %v62 = vld [vmem:[%s2 + $0x18] sm:$0xff]
  %v63 = vld [vmem:[%s2 + $0x20] sm:$0xff]
  %v64 = vld [vmem:[%s2 + $0x28] sm:$0xff]
  %v65 = vld [vmem:[%s2 + $0x30] sm:$0xff]
  %v66 = vld [vmem:[%s2 + $0x38] sm:$0xff]
  %v67 = vld [vmem:[%s2 + $0x40] sm:$0xff]
  %v68 = vld [vmem:[%s2 + $0x48] sm:$0xff]
  %v69 = vld [vmem:[%s2 + $0x50] sm:$0xff]
  %v70 = vld [vmem:[%s2 + $0x58] sm:$0xff]
  %v71 = vld [vmem:[%s2 + $0x60] sm:$0xff]
  %v72 = vld [vmem:[%s2 + $0x68] sm:$0xff]
  %v73 = vld [vmem:[%s2 + $0x70] sm:$0xff]
  %v74 = vld [vmem:[%s2 + $0x78] sm:$0xff]
  %v75 = vld [vmem:[%s2 + $0x80] sm:$0xff]
  %v76 = vld [vmem:[%s2 + $0x88] sm:$0xff]
  %v77 = vld [vmem:[%s2 + $0x90] sm:$0xff]
  %v78 = vld [vmem:[%s2 + $0x98] sm:$0xff]
  %v79 = vld [vmem:[%s2 + $0xa0] sm:$0xff]
  %v80 = vld [vmem:[%s2 + $0xa8] sm:$0xff]
  %v81 = vld [vmem:[%s2 + $0xb0] sm:$0xff]
  %v82 = vld [vmem:[%s2 + $0xb8] sm:$0xff]
  %v83 = vld [vmem:[%s2 + $0xc0] sm:$0xff]
  %v84 = vld [vmem:[%s2 + $0xc8] sm:$0xff]
  %v85 = vld [vmem:[%s2 + $0xd0] sm:$0xff]
  %v86 = vld [vmem:[%s2 + $0xd8] sm:$0xff]
  %v87 = vld [vmem:[%s2 + $0xe0] sm:$0xff]
  %v88 = vld [vmem:[%s2 + $0xe8] sm:$0xff]
  %v89 = vld [vmem:[%s2 + $0xf0] sm:$0xff]
  %v90 = vld [vmem:[%s2 + $0xf8] sm:$0xff]
  %v91 = vld [vmem:[%s2 + $0x100] sm:$0xff]
  %v92 = vld [vmem:[%s2 + $0x108] sm:$0xff]
  %v93 = vld [vmem:[%s2 + $0x110] sm:$0xff]
  %v94 = vld [vmem:[%s2 + $0x118] sm:$0xff]
  %v95 = vld [vmem:[%s2 + $0x120] sm:$0xff]
  %v96 = vld [vmem:[%s2 + $0x128] sm:$0xff]
  %v97 = vld [vmem:[%s2 + $0x130] sm:$0xff]
  %v98 = vld [vmem:[%s2 + $0x138] sm:$0xff]
  %v99 = vld [vmem:[%s2 + $0x140] sm:$0xff]
  %v100 = vld [vmem:[%s2 + $0x148] sm:$0xff]
  %v101 = vld [vmem:[%s2 + $0x150] sm:$0xff]
  %v102 = vld [vmem:[%s2 + $0x158] sm:$0xff]
  %v103 = vld [vmem:[%s2 + $0x160] sm:$0xff]
  %v104 = vld [vmem:[%s2 + $0x168] sm:$0xff]
  %v105 = vld [vmem:[%s2 + $0x170] sm:$0xff]
  %v106 = vld [vmem:[%s2 + $0x178] sm:$0xff]
  %v107 = vld [vmem:[%s2 + $0x180] sm:$0xff]
  %v108 = vld [vmem:[%s2 + $0x188] sm:$0xff]
  %v109 = vld [vmem:[%s2 + $0x190] sm:$0xff]
  %v110 = vld [vmem:[%s2 + $0x198] sm:$0xff]
  %v111 = vld [vmem:[%s2 + $0x1a0] sm:$0xff]
  %v112 = vld [vmem:[%s2 + $0x1a8] sm:$0xff]
  %v113 = vld [vmem:[%s2 + $0x1b0] sm:$0xff]
  %v114 = vld [vmem:[%s2 + $0x1b8] sm:$0xff]
  %v115 = vld [vmem:[%s2 + $0x1c0] sm:$0xff]
  %v116 = vld [vmem:[%s2 + $0x1c8] sm:$0xff]
  %v117 = vld [vmem:[%s2 + $0x1d0] sm:$0xff]
  %v118 = vld [vmem:[%s2 + $0x1d8] sm:$0xff]
  %v119 = vld [vmem:[%s2 + $0x1e0] sm:$0xff]
  %v120 = vld [vmem:[%s2 + $0x1e8] sm:$0xff]
  %v121 = vld [vmem:[%s2 + $0x1f0] sm:$0xff]
  %v122 = vld [vmem:[%s2 + $0x1f8] sm:$0xff]
  %v123 = vld [vmem:[%s2 + $0x200] sm:$0xff]
  %v124 = vld [vmem:[%s2 + $0x208] sm:$0xff]
  %v125 = vld [vmem:[%s2 + $0x210] sm:$0xff]
  %v126 = vld [vmem:[%s2 + $0x218] sm:$0xff]
  %v127 = vld [vmem:[%s2 + $0x220] sm:$0xff]
  %v128 = vld [vmem:[%s2 + $0x228] sm:$0xff]
  %v129 = vld [vmem:[%s2 + $0x230] sm:$0xff]
  %v130 = vld [vmem:[%s2 + $0x238] sm:$0xff]
  %v131 = vld [vmem:[%s2 + $0x240] sm:$0xff]
  %v132 = vld [vmem:[%s2 + $0x248] sm:$0xff]
  %v133 = vld [vmem:[%s2 + $0x250] sm:$0xff]
  %v134 = vld [vmem:[%s2 + $0x258] sm:$0xff]
  %v135 = vld [vmem:[%s2 + $0x260] sm:$0xff]
  %v136 = vld [vmem:[%s2 + $0x268] sm:$0xff]
  %v137 = vld [vmem:[%s2 + $0x270] sm:$0xff]
  %v138 = vld [vmem:[%s2 + $0x278] sm:$0xff]
  %v139 = vld [vmem:[%s2 + $0x280] sm:$0xff]
  %v140 = vld [vmem:[%s2 + $0x288] sm:$0xff]
  %v141 = vld [vmem:[%s2 + $0x290] sm:$0xff]
  %v142 = vld [vmem:[%s2 + $0x298] sm:$0xff]
  %v143 = vld [vmem:[%s2 + $0x2a0] sm:$0xff]
  %v144 = vld [vmem:[%s2 + $0x2a8] sm:$0xff]
  %v145 = vld [vmem:[%s2 + $0x2b0] sm:$0xff]
  %v146 = vld [vmem:[%s2 + $0x2b8] sm:$0xff]
  %v147 = vld [vmem:[%s2 + $0x2c0] sm:$0xff]
  %v148 = vld [vmem:[%s2 + $0x2c8] sm:$0xff]
  %v149 = vld [vmem:[%s2 + $0x2d0] sm:$0xff]
  %v150 = vld [vmem:[%s2 + $0x2d8] sm:$0xff]
  %v151 = vld [vmem:[%s2 + $0x2e0] sm:$0xff]
  %v152 = vld [vmem:[%s2 + $0x2e8] sm:$0xff]
  %v153 = vld [vmem:[%s2 + $0x2f0] sm:$0xff]
  %v154 = vld [vmem:[%s2 + $0x2f8] sm:$0xff]
  %v155 = vld [vmem:[%s2 + $0x300] sm:$0xff]
  %v156 = vld [vmem:[%s2 + $0x308] sm:$0xff]
  %v157 = vld [vmem:[%s2 + $0x310] sm:$0xff]
  %v158 = vld [vmem:[%s2 + $0x318] sm:$0xff]
  %v159 = vld [vmem:[%s2 + $0x320] sm:$0xff]
  %v160 = vld [vmem:[%s2 + $0x328] sm:$0xff]
  %v161 = vld [vmem:[%s2 + $0x330] sm:$0xff]
  %v162 = vld [vmem:[%s2 + $0x338] sm:$0xff]
  %v163 = vld [vmem:[%s2 + $0x340] sm:$0xff]
  %v164 = vld [vmem:[%s2 + $0x348] sm:$0xff]
  %v165 = vld [vmem:[%s2 + $0x350] sm:$0xff]
  %v166 = vld [vmem:[%s2 + $0x358] sm:$0xff]
  %v167 = vld [vmem:[%s2 + $0x360] sm:$0xff]
  %v168 = vld [vmem:[%s2 + $0x368] sm:$0xff]
  %v169 = vld [vmem:[%s2 + $0x370] sm:$0xff]
  %v170 = vld [vmem:[%s2 + $0x378] sm:$0xff]
  %v171 = vld [vmem:[%s2 + $0x380] sm:$0xff]
  %v172 = vld [vmem:[%s2 + $0x388] sm:$0xff]
  %v173 = vld [vmem:[%s2 + $0x390] sm:$0xff]
  %v174 = vld [vmem:[%s2 + $0x398] sm:$0xff]
  %v175 = vld [vmem:[%s2 + $0x3a0] sm:$0xff]
  %v176 = vld [vmem:[%s2 + $0x3a8] sm:$0xff]
  %v177 = vld [vmem:[%s2 + $0x3b0] sm:$0xff]
  %v178 = vld [vmem:[%s2 + $0x3b8] sm:$0xff]
  %v179 = vld [vmem:[%s2 + $0x3c0] sm:$0xff]
  %v180 = vld [vmem:[%s2 + $0x3c8] sm:$0xff]
  %v181 = vld [vmem:[%s2 + $0x3d0] sm:$0xff]
  %v182 = vld [vmem:[%s2 + $0x3d8] sm:$0xff]
  %v183 = vld [vmem:[%s2 + $0x3e0] sm:$0xff]
  %v184 = vld [vmem:[%s2 + $0x3e8] sm:$0xff]
  %v185 = vld [vmem:[%s2 + $0x3f0] sm:$0xff]
  %v186 = vld [vmem:[%s2 + $0x3f8] sm:$0xff]
  %v187 = vld [vmem:[%s2 + $0x400] sm:$0xff]
  %v188 = vld [vmem:[%s2 + $0x408] sm:$0xff]
  %v189 = vld [vmem:[%s2 + $0x410] sm:$0xff]
  %v190 = vld [vmem:[%s2 + $0x418] sm:$0xff]
  %v191 = vld [vmem:[%s2 + $0x420] sm:$0xff]
  %v192 = vld [vmem:[%s2 + $0x428] sm:$0xff]
  %v193 = vld [vmem:[%s2 + $0x430] sm:$0xff]
  %v194 = vld [vmem:[%s2 + $0x438] sm:$0xff]
  %v195 = vld [vmem:[%s2 + $0x440] sm:$0xff]
  %v196 = vld [vmem:[%s2 + $0x448] sm:$0xff]
  %v197 = vld [vmem:[%s2 + $0x450] sm:$0xff]
  %v198 = vld [vmem:[%s2 + $0x458] sm:$0xff]
  %v199 = vld [vmem:[%s2 + $0x460] sm:$0xff]
  %v200 = vld [vmem:[%s2 + $0x468] sm:$0xff]
  %v201 = vld [vmem:[%s2 + $0x470] sm:$0xff]
  %v202 = vld [vmem:[%s2 + $0x478] sm:$0xff]
  %v203 = vld [vmem:[%s2 + $0x480] sm:$0xff]
  %v204 = vld [vmem:[%s2 + $0x488] sm:$0xff]
  %v205 = vld [vmem:[%s2 + $0x490] sm:$0xff]
  %v206 = vld [vmem:[%s2 + $0x498] sm:$0xff]
  %v207 = vld [vmem:[%s2 + $0x4a0] sm:$0xff]
  %v208 = vld [vmem:[%s2 + $0x4a8] sm:$0xff]
  %v209 = vld [vmem:[%s2 + $0x4b0] sm:$0xff]
  %v210 = vld [vmem:[%s2 + $0x4b8] sm:$0xff]
  %v211 = vld [vmem:[%s2 + $0x4c0] sm:$0xff]
  %v212 = vld [vmem:[%s2 + $0x4c8] sm:$0xff]
  %v213 = vld [vmem:[%s2 + $0x4d0] sm:$0xff]
  %v214 = vld [vmem:[%s2 + $0x4d8] sm:$0xff]
  %v215 = vld [vmem:[%s2 + $0x4e0] sm:$0xff]
  %v216 = vld [vmem:[%s2 + $0x4e8] sm:$0xff]
  %v217 = vld [vmem:[%s2 + $0x4f0] sm:$0xff]
  %v218 = vld [vmem:[%s2 + $0x4f8] sm:$0xff]
  %v219 = vld [vmem:[%s2 + $0x500] sm:$0xff]
  %v220 = vld [vmem:[%s2 + $0x508] sm:$0xff]
  %v221 = vld [vmem:[%s2 + $0x510] sm:$0xff]
  %v222 = vld [vmem:[%s2 + $0x518] sm:$0xff]
  %v223 = vld [vmem:[%s2 + $0x520] sm:$0xff]
  %v224 = vld [vmem:[%s2 + $0x528] sm:$0xff]
  %v225 = vld [vmem:[%s2 + $0x530] sm:$0xff]
  %v226 = vld [vmem:[%s2 + $0x538] sm:$0xff]
  %v227 = vld [vmem:[%s2 + $0x540] sm:$0xff]
  %v228 = vld [vmem:[%s2 + $0x548] sm:$0xff]
  %v229 = vld [vmem:[%s2 + $0x550] sm:$0xff]
  %v230 = vld [vmem:[%s2 + $0x558] sm:$0xff]
  %v231 = vld [vmem:[%s2 + $0x560] sm:$0xff]
  %v232 = vld [vmem:[%s2 + $0x568] sm:$0xff]
  %v233 = vld [vmem:[%s2 + $0x570] sm:$0xff]
  %v234 = vld [vmem:[%s2 + $0x578] sm:$0xff]
  %v235 = vld [vmem:[%s2 + $0x580] sm:$0xff]
  %v236 = vld [vmem:[%s2 + $0x588] sm:$0xff]
  %v237 = vld [vmem:[%s2 + $0x590] sm:$0xff]
  %v238 = vld [vmem:[%s2 + $0x598] sm:$0xff]
  %v239 = vld [vmem:[%s2 + $0x5a0] sm:$0xff]
  %v240 = vld [vmem:[%s2 + $0x5a8] sm:$0xff]
  %v241 = vld [vmem:[%s2 + $0x5b0] sm:$0xff]
  %v242 = vld [vmem:[%s2 + $0x5b8] sm:$0xff]
  %v243 = vld [vmem:[%s2 + $0x5c0] sm:$0xff]
  %v244 = vld [vmem:[%s2 + $0x5c8] sm:$0xff]
  %v245 = vld [vmem:[%s2 + $0x5d0] sm:$0xff]
  %v246 = vld [vmem:[%s2 + $0x5d8] sm:$0xff]
  %v247 = vld [vmem:[%s2 + $0x5e0] sm:$0xff]
  %v248 = vld [vmem:[%s2 + $0x5e8] sm:$0xff]
  %v249 = vld [vmem:[%s2 + $0x5f0] sm:$0xff]
  %v250 = vld [vmem:[%s2 + $0x5f8] sm:$0xff]
  %v251 = vld [vmem:[%s2 + $0x600] sm:$0xff]
  %v252 = vld [vmem:[%s2 + $0x608] sm:$0xff]
  %v253 = vld [vmem:[%s2 + $0x610] sm:$0xff]
  %v254 = vld [vmem:[%s2 + $0x618] sm:$0xff]
  %v255 = vld [vmem:[%s2 + $0x620] sm:$0xff]
  %v256 = vld [vmem:[%s2 + $0x628] sm:$0xff]
  %v257 = vld [vmem:[%s2 + $0x630] sm:$0xff]
  %v258 = vld [vmem:[%s2 + $0x638] sm:$0xff]
  %v259 = vld [vmem:[%s2 + $0x640] sm:$0xff]
  %v260 = vld [vmem:[%s2 + $0x648] sm:$0xff]
  %v261 = vld [vmem:[%s2 + $0x650] sm:$0xff]
  %v262 = vld [vmem:[%s2 + $0x658] sm:$0xff]
  %v263 = vld [vmem:[%s2 + $0x660] sm:$0xff]
  %v264 = vld [vmem:[%s2 + $0x668] sm:$0xff]
  %v265 = vld [vmem:[%s2 + $0x670] sm:$0xff]
  %v266 = vld [vmem:[%s2 + $0x678] sm:$0xff]
  %v267 = vld [vmem:[%s2 + $0x680] sm:$0xff]
  %v268 = vld [vmem:[%s2 + $0x688] sm:$0xff]
  %v269 = vld [vmem:[%s2 + $0x690] sm:$0xff]
  %v270 = vld [vmem:[%s2 + $0x698] sm:$0xff]
  %v271 = vld [vmem:[%s2 + $0x6a0] sm:$0xff]
  %v272 = vld [vmem:[%s2 + $0x6a8] sm:$0xff]
  %v273 = vld [vmem:[%s2 + $0x6b0] sm:$0xff]
  %v274 = vld [vmem:[%s2 + $0x6b8] sm:$0xff]
  %v275 = vld [vmem:[%s2 + $0x6c0] sm:$0xff]
  %v276 = vld [vmem:[%s2 + $0x6c8] sm:$0xff]
  %v277 = vld [vmem:[%s2 + $0x6d0] sm:$0xff]
  %v278 = vld [vmem:[%s2 + $0x6d8] sm:$0xff]
  %v279 = vld [vmem:[%s2 + $0x6e0] sm:$0xff]
  %v280 = vld [vmem:[%s2 + $0x6e8] sm:$0xff]
  %v281 = vld [vmem:[%s2 + $0x6f0] sm:$0xff]
  %v282 = vld [vmem:[%s2 + $0x6f8] sm:$0xff]
  %v283 = vld [vmem:[%s2 + $0x700] sm:$0xff]
  %v284 = vld [vmem:[%s2 + $0x708] sm:$0xff]
  %v285 = vld [vmem:[%s2 + $0x710] sm:$0xff]
  %v286 = vld [vmem:[%s2 + $0x718] sm:$0xff]
  %v287 = vld [vmem:[%s2 + $0x720] sm:$0xff]
  %v288 = vld [vmem:[%s2 + $0x728] sm:$0xff]
  %v289 = vld [vmem:[%s2 + $0x730] sm:$0xff]
  %v290 = vld [vmem:[%s2 + $0x738] sm:$0xff]
  %v291 = vld [vmem:[%s2 + $0x740] sm:$0xff]
  %v292 = vld [vmem:[%s2 + $0x748] sm:$0xff]
  %v293 = vld [vmem:[%s2 + $0x750] sm:$0xff]
  %v294 = vld [vmem:[%s2 + $0x758] sm:$0xff]
  %v295 = vld [vmem:[%s2 + $0x760] sm:$0xff]
  %v296 = vld [vmem:[%s2 + $0x768] sm:$0xff]
  %v297 = vld [vmem:[%s2 + $0x770] sm:$0xff]
  %v298 = vld [vmem:[%s2 + $0x778] sm:$0xff]
  %v299 = vld [vmem:[%s2 + $0x780] sm:$0xff]
  %v300 = vld [vmem:[%s2 + $0x788] sm:$0xff]
  %v301 = vld [vmem:[%s2 + $0x790] sm:$0xff]
  %v302 = vld [vmem:[%s2 + $0x798] sm:$0xff]
  %v303 = vld [vmem:[%s2 + $0x7a0] sm:$0xff]
  %v304 = vld [vmem:[%s2 + $0x7a8] sm:$0xff]
  %v305 = vld [vmem:[%s2 + $0x7b0] sm:$0xff]
  %v306 = vld [vmem:[%s2 + $0x7b8] sm:$0xff]
  %v307 = vld [vmem:[%s2 + $0x7c0] sm:$0xff]
  %v308 = vld [vmem:[%s2 + $0x7c8] sm:$0xff]
  %v309 = vld [vmem:[%s2 + $0x7d0] sm:$0xff]
  %v310 = vld [vmem:[%s2 + $0x7d8] sm:$0xff]
  %v311 = vld [vmem:[%s2 + $0x7e0] sm:$0xff]
  %v312 = vld [vmem:[%s2 + $0x7e8] sm:$0xff]
  %v313 = vld [vmem:[%s2 + $0x7f0] sm:$0xff]
  %v314 = vld [vmem:[%s2 + $0x7f8] sm:$0xff]
  %v315 = vld [vmem:[%s2 + $0x800] sm:$0xff]
  %v316 = vld [vmem:[%s2 + $0x808] sm:$0xff]
  %v317 = vld [vmem:[%s2 + $0x810] sm:$0xff]
  %v318 = vld [vmem:[%s2 + $0x818] sm:$0xff]
  %v319 = vld [vmem:[%s2 + $0x820] sm:$0xff]
  %v320 = vld [vmem:[%s2 + $0x828] sm:$0xff]
  %v321 = vld [vmem:[%s2 + $0x830] sm:$0xff]
  %v322 = vld [vmem:[%s2 + $0x838] sm:$0xff]
  %v323 = vld [vmem:[%s2 + $0x840] sm:$0xff]
  %v324 = vld [vmem:[%s2 + $0x848] sm:$0xff]
  %v325 = vld [vmem:[%s2 + $0x850] sm:$0xff]
  %v326 = vld [vmem:[%s2 + $0x858] sm:$0xff]
  %v327 = vld [vmem:[%s2 + $0x860] sm:$0xff]
  %v328 = vld [vmem:[%s2 + $0x868] sm:$0xff]
  %v329 = vld [vmem:[%s2 + $0x870] sm:$0xff]
  %v330 = vld [vmem:[%s2 + $0x878] sm:$0xff]
  %v331 = vld [vmem:[%s2 + $0x880] sm:$0xff]
  %v332 = vld [vmem:[%s2 + $0x888] sm:$0xff]
  %v333 = vld [vmem:[%s2 + $0x890] sm:$0xff]
  %v334 = vld [vmem:[%s2 + $0x898] sm:$0xff]
  %v335 = vld [vmem:[%s2 + $0x8a0] sm:$0xff]
  %v336 = vld [vmem:[%s2 + $0x8a8] sm:$0xff]
  %v337 = vld [vmem:[%s2 + $0x8b0] sm:$0xff]
  %v338 = vld [vmem:[%s2 + $0x8b8] sm:$0xff]
  %v339 = vld [vmem:[%s2 + $0x8c0] sm:$0xff]
  %v340 = vld [vmem:[%s2 + $0x8c8] sm:$0xff]
  %v341 = vld [vmem:[%s2 + $0x8d0] sm:$0xff]
  %v342 = vld [vmem:[%s2 + $0x8d8] sm:$0xff]
  %v343 = vld [vmem:[%s2 + $0x8e0] sm:$0xff]
  %v344 = vld [vmem:[%s2 + $0x8e8] sm:$0xff]
  %v345 = vld [vmem:[%s2 + $0x8f0] sm:$0xff]
  %v346 = vld [vmem:[%s2 + $0x8f8] sm:$0xff]
  %v347 = vld [vmem:[%s2 + $0x900] sm:$0xff]
  %v348 = vld [vmem:[%s2 + $0x908] sm:$0xff]
  %v349 = vld [vmem:[%s2 + $0x910] sm:$0xff]
  %v350 = vld [vmem:[%s2 + $0x918] sm:$0xff]
  %v351 = vld [vmem:[%s2 + $0x920] sm:$0xff]
  %v352 = vld [vmem:[%s2 + $0x928] sm:$0xff]
  %v353 = vld [vmem:[%s2 + $0x930] sm:$0xff]
  %v354 = vld [vmem:[%s2 + $0x938] sm:$0xff]
  %v355 = vld [vmem:[%s2 + $0x940] sm:$0xff]
  %v356 = vld [vmem:[%s2 + $0x948] sm:$0xff]
  %v357 = vld [vmem:[%s2 + $0x950] sm:$0xff]
  %v358 = vld [vmem:[%s2 + $0x958] sm:$0xff]
  %v359 = vld [vmem:[%s2 + $0x960] sm:$0xff]
  %v360 = vld [vmem:[%s2 + $0x968] sm:$0xff]
  %v361 = vld [vmem:[%s2 + $0x970] sm:$0xff]
  %v362 = vld [vmem:[%s2 + $0x978] sm:$0xff]
  %v363 = vld [vmem:[%s2 + $0x980] sm:$0xff]
  %v364 = vld [vmem:[%s2 + $0x988] sm:$0xff]
  %v365 = vld [vmem:[%s2 + $0x990] sm:$0xff]
  %v366 = vld [vmem:[%s2 + $0x998] sm:$0xff]
  %v367 = vld [vmem:[%s2 + $0x9a0] sm:$0xff]
  %v368 = vld [vmem:[%s2 + $0x9a8] sm:$0xff]
  %v369 = vld [vmem:[%s2 + $0x9b0] sm:$0xff]
  %v370 = vld [vmem:[%s2 + $0x9b8] sm:$0xff]
  %v371 = vld [vmem:[%s2 + $0x9c0] sm:$0xff]
  %v372 = vld [vmem:[%s2 + $0x9c8] sm:$0xff]
  %v373 = vld [vmem:[%s2 + $0x9d0] sm:$0xff]
  %v374 = vld [vmem:[%s2 + $0x9d8] sm:$0xff]
  %v375 = vld [vmem:[%s2 + $0x9e0] sm:$0xff]
  %v376 = vld [vmem:[%s2 + $0x9e8] sm:$0xff]
  %v377 = vld [vmem:[%s2 + $0x9f0] sm:$0xff]
  %v378 = vld [vmem:[%s2 + $0x9f8] sm:$0xff]
  %v379 = vld [vmem:[%s2 + $0xa00] sm:$0xff]
  %v380 = vld [vmem:[%s2 + $0xa08] sm:$0xff]
  %v381 = vld [vmem:[%s2 + $0xa10] sm:$0xff]
  %v382 = vld [vmem:[%s2 + $0xa18] sm:$0xff]
  %v383 = vld [vmem:[%s2 + $0xa20] sm:$0xff]
  %v384 = vld [vmem:[%s2 + $0xa28] sm:$0xff]
  %v385 = vld [vmem:[%s2 + $0xa30] sm:$0xff]
  %v386 = vld [vmem:[%s2 + $0xa38] sm:$0xff]
  %v387 = vld [vmem:[%s2 + $0xa40] sm:$0xff]
  %v388 = vld [vmem:[%s2 + $0xa48] sm:$0xff]
  %v389 = vld [vmem:[%s2 + $0xa50] sm:$0xff]
  %v390 = vld [vmem:[%s2 + $0xa58] sm:$0xff]
  %v391 = vld [vmem:[%s2 + $0xa60] sm:$0xff]
  %v392 = vld [vmem:[%s2 + $0xa68] sm:$0xff]
  %v393 = vld [vmem:[%s2 + $0xa70] sm:$0xff]
  %v394 = vld [vmem:[%s2 + $0xa78] sm:$0xff]
  %v395 = vld [vmem:[%s2 + $0xa80] sm:$0xff]
  %v396 = vld [vmem:[%s2 + $0xa88] sm:$0xff]
  %v397 = vld [vmem:[%s2 + $0xa90] sm:$0xff]
  %v398 = vld [vmem:[%s2 + $0xa98] sm:$0xff]
  %v399 = vld [vmem:[%s2 + $0xaa0] sm:$0xff]
  %v400 = vld [vmem:[%s2 + $0xaa8] sm:$0xff]
  %v401 = vld [vmem:[%s2 + $0xab0] sm:$0xff]
  %v402 = vld [vmem:[%s2 + $0xab8] sm:$0xff]
  %v403 = vld [vmem:[%s2 + $0xac0] sm:$0xff]
  %v404 = vld [vmem:[%s2 + $0xac8] sm:$0xff]
  %v405 = vld [vmem:[%s2 + $0xad0] sm:$0xff]
  %v406 = vld [vmem:[%s2 + $0xad8] sm:$0xff]
  %v407 = vld [vmem:[%s2 + $0xae0] sm:$0xff]
  %v408 = vld [vmem:[%s2 + $0xae8] sm:$0xff]
  %v409 = vld [vmem:[%s2 + $0xaf0] sm:$0xff]
  %v410 = vld [vmem:[%s2 + $0xaf8] sm:$0xff]
  %v411 = vld [vmem:[%s2 + $0xb00] sm:$0xff]
  %v412 = vld [vmem:[%s2 + $0xb08] sm:$0xff]
  %v413 = vld [vmem:[%s2 + $0xb10] sm:$0xff]
  %v414 = vld [vmem:[%s2 + $0xb18] sm:$0xff]
  %v415 = vld [vmem:[%s2 + $0xb20] sm:$0xff]
  %v416 = vld [vmem:[%s2 + $0xb28] sm:$0xff]
  %v417 = vld [vmem:[%s2 + $0xb30] sm:$0xff]
  %v418 = vld [vmem:[%s2 + $0xb38] sm:$0xff]
  %v419 = vld [vmem:[%s2 + $0xb40] sm:$0xff]
  %v420 = vld [vmem:[%s2 + $0xb48] sm:$0xff]
  %v421 = vld [vmem:[%s2 + $0xb50] sm:$0xff]
  %v422 = vld [vmem:[%s2 + $0xb58] sm:$0xff]
  %v423 = vld [vmem:[%s2 + $0xb60] sm:$0xff]
  %v424 = vld [vmem:[%s2 + $0xb68] sm:$0xff]
  %v425 = vld [vmem:[%s2 + $0xb70] sm:$0xff]
  %v426 = vld [vmem:[%s2 + $0xb78] sm:$0xff]
  %v427 = vld [vmem:[%s2 + $0xb80] sm:$0xff]
  %v428 = vld [vmem:[%s2 + $0xb88] sm:$0xff]
  %v429 = vld [vmem:[%s2 + $0xb90] sm:$0xff]
  %v430 = vld [vmem:[%s2 + $0xb98] sm:$0xff]
  %v431 = vld [vmem:[%s2 + $0xba0] sm:$0xff]
  %v432 = vld [vmem:[%s2 + $0xba8] sm:$0xff]
  %v433 = vld [vmem:[%s2 + $0xbb0] sm:$0xff]
  %v434 = vld [vmem:[%s2 + $0xbb8] sm:$0xff]
  %v435 = vld [vmem:[%s2 + $0xbc0] sm:$0xff]
  %v436 = vld [vmem:[%s2 + $0xbc8] sm:$0xff]
  %v437 = vld [vmem:[%s2 + $0xbd0] sm:$0xff]
  %v438 = vld [vmem:[%s2 + $0xbd8] sm:$0xff]
  %v439 = vld [vmem:[%s2 + $0xbe0] sm:$0xff]
  %v440 = vld [vmem:[%s2 + $0xbe8] sm:$0xff]
  %v441 = vld [vmem:[%s2 + $0xbf0] sm:$0xff]
  %v442 = vld [vmem:[%s2 + $0xbf8] sm:$0xff]
  %v443 = vld [vmem:[%s2 + $0xc00] sm:$0xff]
  %v444 = vld [vmem:[%s2 + $0xc08] sm:$0xff]
  %v445 = vld [vmem:[%s2 + $0xc10] sm:$0xff]
  %v446 = vld [vmem:[%s2 + $0xc18] sm:$0xff]
  %v447 = vld [vmem:[%s2 + $0xc20] sm:$0xff]
  %v448 = vld [vmem:[%s2 + $0xc28] sm:$0xff]
  %v449 = vld [vmem:[%s2 + $0xc30] sm:$0xff]
  %v450 = vld [vmem:[%s2 + $0xc38] sm:$0xff]
  %v451 = vld [vmem:[%s2 + $0xc40] sm:$0xff]
  %v452 = vld [vmem:[%s2 + $0xc48] sm:$0xff]
  %v453 = vld [vmem:[%s2 + $0xc50] sm:$0xff]
  %v454 = vld [vmem:[%s2 + $0xc58] sm:$0xff]
  %v455 = vld [vmem:[%s2 + $0xc60] sm:$0xff]
  %v456 = vld [vmem:[%s2 + $0xc68] sm:$0xff]
  %v457 = vld [vmem:[%s2 + $0xc70] sm:$0xff]
  %v458 = vld [vmem:[%s2 + $0xc78] sm:$0xff]
  %v459 = vld [vmem:[%s2 + $0xc80] sm:$0xff]
  %v460 = vld [vmem:[%s2 + $0xc88] sm:$0xff]
  %v461 = vld [vmem:[%s2 + $0xc90] sm:$0xff]
  %v462 = vld [vmem:[%s2 + $0xc98] sm:$0xff]
  %v463 = vld [vmem:[%s2 + $0xca0] sm:$0xff]
  %v464 = vld [vmem:[%s2 + $0xca8] sm:$0xff]
  %v465 = vld [vmem:[%s2 + $0xcb0] sm:$0xff]
  %v466 = vld [vmem:[%s2 + $0xcb8] sm:$0xff]
  %v467 = vld [vmem:[%s2 + $0xcc0] sm:$0xff]
  %v468 = vld [vmem:[%s2 + $0xcc8] sm:$0xff]
  %v469 = vld [vmem:[%s2 + $0xcd0] sm:$0xff]
  %v470 = vld [vmem:[%s2 + $0xcd8] sm:$0xff]
  %v471 = vld [vmem:[%s2 + $0xce0] sm:$0xff]
  %v472 = vld [vmem:[%s2 + $0xce8] sm:$0xff]
  %v473 = vld [vmem:[%s2 + $0xcf0] sm:$0xff]
  %v474 = vld [vmem:[%s2 + $0xcf8] sm:$0xff]
  %v475 = vld [vmem:[%s2 + $0xd00] sm:$0xff]
  %v476 = vld [vmem:[%s2 + $0xd08] sm:$0xff]
  %v477 = vld [vmem:[%s2 + $0xd10] sm:$0xff]
  %v478 = vld [vmem:[%s2 + $0xd18] sm:$0xff]
  %v479 = vld [vmem:[%s2 + $0xd20] sm:$0xff]
  %v480 = vld [vmem:[%s2 + $0xd28] sm:$0xff]
  %v481 = vld [vmem:[%s2 + $0xd30] sm:$0xff]
  %v482 = vld [vmem:[%s2 + $0xd38] sm:$0xff]
  %v483 = vld [vmem:[%s2 + $0xd40] sm:$0xff]
  %v484 = vld [vmem:[%s2 + $0xd48] sm:$0xff]
  %v485 = vld [vmem:[%s2 + $0xd50] sm:$0xff]
  %v486 = vld [vmem:[%s2 + $0xd58] sm:$0xff]
  %v487 = vld [vmem:[%s2 + $0xd60] sm:$0xff]
  %v488 = vld [vmem:[%s2 + $0xd68] sm:$0xff]
  %v489 = vld [vmem:[%s2 + $0xd70] sm:$0xff]
  %v490 = vld [vmem:[%s2 + $0xd78] sm:$0xff]
  %v491 = vld [vmem:[%s2 + $0xd80] sm:$0xff]
  %v492 = vld [vmem:[%s2 + $0xd88] sm:$0xff]
  %v493 = vld [vmem:[%s2 + $0xd90] sm:$0xff]
  %v494 = vld [vmem:[%s2 + $0xd98] sm:$0xff]
  %v495 = vld [vmem:[%s2 + $0xda0] sm:$0xff]
  %v496 = vld [vmem:[%s2 + $0xda8] sm:$0xff]
  %v497 = vld [vmem:[%s2 + $0xdb0] sm:$0xff]
  %v498 = vld [vmem:[%s2 + $0xdb8] sm:$0xff]
  %v499 = vld [vmem:[%s2 + $0xdc0] sm:$0xff]
  %v500 = vld [vmem:[%s2 + $0xdc8] sm:$0xff]
  %v501 = vld [vmem:[%s2 + $0xdd0] sm:$0xff]
  %v502 = vld [vmem:[%s2 + $0xdd8] sm:$0xff]
  %v503 = vld [vmem:[%s2 + $0xde0] sm:$0xff]
  %v504 = vld [vmem:[%s2 + $0xde8] sm:$0xff]
  %v505 = vld [vmem:[%s2 + $0xdf0] sm:$0xff]
  %v506 = vld [vmem:[%s2 + $0xdf8] sm:$0xff]
  %v507 = vld [vmem:[%s2 + $0xe00] sm:$0xff]
  %v508 = vld [vmem:[%s2 + $0xe08] sm:$0xff]
  %v509 = vld [vmem:[%s2 + $0xe10] sm:$0xff]
  %v510 = vld [vmem:[%s2 + $0xe18] sm:$0xff]
  %v511 = vld [vmem:[%s2 + $0xe20] sm:$0xff]
  %v512 = vld [vmem:[%s2 + $0xe28] sm:$0xff]
  %v513 = vld [vmem:[%s2 + $0xe30] sm:$0xff]
  %v514 = vld [vmem:[%s2 + $0xe38] sm:$0xff]
  %v515 = vld [vmem:[%s2 + $0xe40] sm:$0xff]
  %v516 = vld [vmem:[%s2 + $0xe48] sm:$0xff]
  %v517 = vld [vmem:[%s2 + $0xe50] sm:$0xff]
  %v518 = vld [vmem:[%s2 + $0xe58] sm:$0xff]
  %v519 = vld [vmem:[%s2 + $0xe60] sm:$0xff]
  %v520 = vld [vmem:[%s2 + $0xe68] sm:$0xff]
  %v521 = vld [vmem:[%s2 + $0xe70] sm:$0xff]
  %v522 = vld [vmem:[%s2 + $0xe78] sm:$0xff]
  %v523 = vld [vmem:[%s2 + $0xe80] sm:$0xff]
  %v524 = vld [vmem:[%s2 + $0xe88] sm:$0xff]
  %v525 = vld [vmem:[%s2 + $0xe90] sm:$0xff]
  %v526 = vld [vmem:[%s2 + $0xe98] sm:$0xff]
  %v527 = vld [vmem:[%s2 + $0xea0] sm:$0xff]
  %v528 = vld [vmem:[%s2 + $0xea8] sm:$0xff]
  %v529 = vld [vmem:[%s2 + $0xeb0] sm:$0xff]
  %v530 = vld [vmem:[%s2 + $0xeb8] sm:$0xff]
  %v531 = vld [vmem:[%s2 + $0xec0] sm:$0xff]
  %v532 = vld [vmem:[%s2 + $0xec8] sm:$0xff]
  %v533 = vld [vmem:[%s2 + $0xed0] sm:$0xff]
  %v534 = vld [vmem:[%s2 + $0xed8] sm:$0xff]
  %v535 = vld [vmem:[%s2 + $0xee0] sm:$0xff]
  %v536 = vld [vmem:[%s2 + $0xee8] sm:$0xff]
  %v537 = vld [vmem:[%s2 + $0xef0] sm:$0xff]
  %v538 = vld [vmem:[%s2 + $0xef8] sm:$0xff]
  %v539 = vld [vmem:[%s2 + $0xf00] sm:$0xff]
  %v540 = vld [vmem:[%s2 + $0xf08] sm:$0xff]
  %v541 = vld [vmem:[%s2 + $0xf10] sm:$0xff]
  %v542 = vld [vmem:[%s2 + $0xf18] sm:$0xff]
  %v543 = vld [vmem:[%s2 + $0xf20] sm:$0xff]
  %v544 = vld [vmem:[%s2 + $0xf28] sm:$0xff]
  %v545 = vld [vmem:[%s2 + $0xf30] sm:$0xff]
  %v546 = vld [vmem:[%s2 + $0xf38] sm:$0xff]
  %v547 = vld [vmem:[%s2 + $0xf40] sm:$0xff]
  %v548 = vld [vmem:[%s2 + $0xf48] sm:$0xff]
  %v549 = vld [vmem:[%s2 + $0xf50] sm:$0xff]
  %v550 = vld [vmem:[%s2 + $0xf58] sm:$0xff]
  %v551 = vld [vmem:[%s2 + $0xf60] sm:$0xff]
  %v552 = vld [vmem:[%s2 + $0xf68] sm:$0xff]
  %v553 = vld [vmem:[%s2 + $0xf70] sm:$0xff]
  %v554 = vld [vmem:[%s2 + $0xf78] sm:$0xff]
  %v555 = vld [vmem:[%s2 + $0xf80] sm:$0xff]
  %v556 = vld [vmem:[%s2 + $0xf88] sm:$0xff]
  %v557 = vld [vmem:[%s2 + $0xf90] sm:$0xff]
  %v558 = vld [vmem:[%s2 + $0xf98] sm:$0xff]
  %v559 = vld [vmem:[%s2 + $0xfa0] sm:$0xff]
  %v560 = vld [vmem:[%s2 + $0xfa8] sm:$0xff]
  %v561 = vld [vmem:[%s2 + $0xfb0] sm:$0xff]
  %v562 = vld [vmem:[%s2 + $0xfb8] sm:$0xff]
  %v563 = vld [vmem:[%s2 + $0xfc0] sm:$0xff]
  %v564 = vld [vmem:[%s2 + $0xfc8] sm:$0xff]
  %v565 = vld [vmem:[%s2 + $0xfd0] sm:$0xff]
  %v566 = vld [vmem:[%s2 + $0xfd8] sm:$0xff]
  %v567 = vld [vmem:[%s2 + $0xfe0] sm:$0xff]
  %v568 = vld [vmem:[%s2 + $0xfe8] sm:$0xff]
  %v569 = vld [vmem:[%s2 + $0xff0] sm:$0xff]
  %v570 = vld [vmem:[%s2 + $0xff8] sm:$0xff]
  %v571 = vld [vmem:[%s2 + $0x1000] sm:$0xff]
  %v572 = vld [vmem:[%s2 + $0x1008] sm:$0xff]
  %v573 = vld [vmem:[%s2 + $0x1010] sm:$0xff]
  %v574 = vld [vmem:[%s2 + $0x1018] sm:$0xff]
  %v575 = vld [vmem:[%s2 + $0x1020] sm:$0xff]
  %v576 = vld [vmem:[%s2 + $0x1028] sm:$0xff]
  %v577 = vld [vmem:[%s2 + $0x1030] sm:$0xff]
  %v578 = vld [vmem:[%s2 + $0x1038] sm:$0xff]
  %v579 = vld [vmem:[%s2 + $0x1040] sm:$0xff]
  %v580 = vld [vmem:[%s2 + $0x1048] sm:$0xff]
  %v581 = vld [vmem:[%s2 + $0x1050] sm:$0xff]
  %v582 = vld [vmem:[%s2 + $0x1058] sm:$0xff]
  %v583 = vld [vmem:[%s2 + $0x1060] sm:$0xff]
  %v584 = vld [vmem:[%s2 + $0x1068] sm:$0xff]
  %v585 = vld [vmem:[%s2 + $0x1070] sm:$0xff]
  %v586 = vld [vmem:[%s2 + $0x1078] sm:$0xff]
  %v587 = vld [vmem:[%s2 + $0x1080] sm:$0xff]
  %v588 = vld [vmem:[%s2 + $0x1088] sm:$0xff]
  %v589 = vld [vmem:[%s2 + $0x1090] sm:$0xff]
  %v590 = vld [vmem:[%s2 + $0x1098] sm:$0xff]
  %v591 = vld [vmem:[%s2 + $0x10a0] sm:$0xff]
  %v592 = vld [vmem:[%s2 + $0x10a8] sm:$0xff]
  %v593 = vld [vmem:[%s2 + $0x10b0] sm:$0xff]
  %v594 = vld [vmem:[%s2 + $0x10b8] sm:$0xff]
  %v595 = vld [vmem:[%s2 + $0x10c0] sm:$0xff]
  %v596 = vld [vmem:[%s2 + $0x10c8] sm:$0xff]
  %v597 = vld [vmem:[%s2 + $0x10d0] sm:$0xff]
  %v598 = vld [vmem:[%s2 + $0x10d8] sm:$0xff]
  %v599 = vld [vmem:[%s2 + $0x10e0] sm:$0xff]
  %v600 = vld [vmem:[%s2 + $0x10e8] sm:$0xff]
  %v601 = vld [vmem:[%s2 + $0x10f0] sm:$0xff]
  %v602 = vld [vmem:[%s2 + $0x10f8] sm:$0xff]
  %v603 = vld [vmem:[%s2 + $0x1100] sm:$0xff]
  %v604 = vld [vmem:[%s2 + $0x1108] sm:$0xff]
  %v605 = vld [vmem:[%s2 + $0x1110] sm:$0xff]
  %v606 = vld [vmem:[%s2 + $0x1118] sm:$0xff]
  %v607 = vld [vmem:[%s2 + $0x1120] sm:$0xff]
  %v608 = vld [vmem:[%s2 + $0x1128] sm:$0xff]
  %v609 = vld [vmem:[%s2 + $0x1130] sm:$0xff]
  %v610 = vld [vmem:[%s2 + $0x1138] sm:$0xff]
  %v611 = vld [vmem:[%s2 + $0x1140] sm:$0xff]
  %v612 = vld [vmem:[%s2 + $0x1148] sm:$0xff]
  %v613 = vld [vmem:[%s2 + $0x1150] sm:$0xff]
  %v614 = vld [vmem:[%s2 + $0x1158] sm:$0xff]
  %v615 = vld [vmem:[%s2 + $0x1160] sm:$0xff]
  %v616 = vld [vmem:[%s2 + $0x1168] sm:$0xff]
  %v617 = vld [vmem:[%s2 + $0x1170] sm:$0xff]
  %v618 = vld [vmem:[%s2 + $0x1178] sm:$0xff]
  %v619 = vld [vmem:[%s2 + $0x1180] sm:$0xff]
  %v620 = vld [vmem:[%s2 + $0x1188] sm:$0xff]
  %v621 = vld [vmem:[%s2 + $0x1190] sm:$0xff]
  %v622 = vld [vmem:[%s2 + $0x1198] sm:$0xff]
  %v623 = vld [vmem:[%s2 + $0x11a0] sm:$0xff]
  %v624 = vld [vmem:[%s2 + $0x11a8] sm:$0xff]
  %v625 = vld [vmem:[%s2 + $0x11b0] sm:$0xff]
  %v626 = vld [vmem:[%s2 + $0x11b8] sm:$0xff]
  %v627 = vld [vmem:[%s2 + $0x11c0] sm:$0xff]
  %v628 = vld [vmem:[%s2 + $0x11c8] sm:$0xff]
  %v629 = vld [vmem:[%s2 + $0x11d0] sm:$0xff]
  %v630 = vld [vmem:[%s2 + $0x11d8] sm:$0xff]
  %v631 = vld [vmem:[%s2 + $0x11e0] sm:$0xff]
  %v632 = vld [vmem:[%s2 + $0x11e8] sm:$0xff]
  %v633 = vld [vmem:[%s2 + $0x11f0] sm:$0xff]
  %v634 = vld [vmem:[%s2 + $0x11f8] sm:$0xff]
  %v635 = vld [vmem:[%s2 + $0x1200] sm:$0xff]
  %v636 = vld [vmem:[%s2 + $0x1208] sm:$0xff]
  %v637 = vld [vmem:[%s2 + $0x1210] sm:$0xff]
  %v638 = vld [vmem:[%s2 + $0x1218] sm:$0xff]
  %v639 = vld [vmem:[%s2 + $0x1220] sm:$0xff]
  %v640 = vld [vmem:[%s2 + $0x1228] sm:$0xff]
  %v641 = vld [vmem:[%s2 + $0x1230] sm:$0xff]
  %v642 = vld [vmem:[%s2 + $0x1238] sm:$0xff]
  %v643 = vld [vmem:[%s2 + $0x1240] sm:$0xff]
  %v644 = vld [vmem:[%s2 + $0x1248] sm:$0xff]
  %v645 = vld [vmem:[%s2 + $0x1250] sm:$0xff]
  %v646 = vld [vmem:[%s2 + $0x1258] sm:$0xff]
  %v647 = vld [vmem:[%s2 + $0x1260] sm:$0xff]
  %v648 = vld [vmem:[%s2 + $0x1268] sm:$0xff]
  %v649 = vld [vmem:[%s2 + $0x1270] sm:$0xff]
  %v650 = vld [vmem:[%s2 + $0x1278] sm:$0xff]
  %v651 = vld [vmem:[%s2 + $0x1280] sm:$0xff]
  %v652 = vld [vmem:[%s2 + $0x1288] sm:$0xff]
  %v653 = vld [vmem:[%s2 + $0x1290] sm:$0xff]
  %v654 = vld [vmem:[%s2 + $0x1298] sm:$0xff]
  %v655 = vld [vmem:[%s2 + $0x12a0] sm:$0xff]
  %v656 = vld [vmem:[%s2 + $0x12a8] sm:$0xff]
  %v657 = vld [vmem:[%s2 + $0x12b0] sm:$0xff]
  %v658 = vld [vmem:[%s2 + $0x12b8] sm:$0xff]
  %v659 = vld [vmem:[%s2 + $0x12c0] sm:$0xff]
  %v660 = vld [vmem:[%s2 + $0x12c8] sm:$0xff]
  %v661 = vld [vmem:[%s2 + $0x12d0] sm:$0xff]
  %v662 = vld [vmem:[%s2 + $0x12d8] sm:$0xff]
  %v663 = vld [vmem:[%s2 + $0x12e0] sm:$0xff]
  %v664 = vld [vmem:[%s2 + $0x12e8] sm:$0xff]
  %v665 = vld [vmem:[%s2 + $0x12f0] sm:$0xff]
  %v666 = vld [vmem:[%s2 + $0x12f8] sm:$0xff]
  %v667 = vld [vmem:[%s2 + $0x1300] sm:$0xff]
  %v668 = vld [vmem:[%s2 + $0x1308] sm:$0xff]
  %v669 = vld [vmem:[%s2 + $0x1310] sm:$0xff]
  %v670 = vld [vmem:[%s2 + $0x1318] sm:$0xff]
  %v671 = vld [vmem:[%s2 + $0x1320] sm:$0xff]
  %v672 = vld [vmem:[%s2 + $0x1328] sm:$0xff]
  %v673 = vld [vmem:[%s2 + $0x1330] sm:$0xff]
  %v674 = vld [vmem:[%s2 + $0x1338] sm:$0xff]
  %v675 = vld [vmem:[%s2 + $0x1340] sm:$0xff]
  %v676 = vld [vmem:[%s2 + $0x1348] sm:$0xff]
  %v677 = vld [vmem:[%s2 + $0x1350] sm:$0xff]
  %v678 = vld [vmem:[%s2 + $0x1358] sm:$0xff]
  %v679 = vld [vmem:[%s2 + $0x1360] sm:$0xff]
  %v680 = vld [vmem:[%s2 + $0x1368] sm:$0xff]
  %v681 = vld [vmem:[%s2 + $0x1370] sm:$0xff]
  %v682 = vld [vmem:[%s2 + $0x1378] sm:$0xff]
  %v683 = vld [vmem:[%s2 + $0x1380] sm:$0xff]
  %v684 = vld [vmem:[%s2 + $0x1388] sm:$0xff]
  %v685 = vld [vmem:[%s2 + $0x1390] sm:$0xff]
  %v686 = vld [vmem:[%s2 + $0x1398] sm:$0xff]
  %v687 = vld [vmem:[%s2 + $0x13a0] sm:$0xff]
  %v688 = vld [vmem:[%s2 + $0x13a8] sm:$0xff]
  %v689 = vld [vmem:[%s2 + $0x13b0] sm:$0xff]
  %v690 = vld [vmem:[%s2 + $0x13b8] sm:$0xff]
  %v691 = vld [vmem:[%s2 + $0x13c0] sm:$0xff]
  %v692 = vld [vmem:[%s2 + $0x13c8] sm:$0xff]
  %v693 = vld [vmem:[%s2 + $0x13d0] sm:$0xff]
  %v694 = vld [vmem:[%s2 + $0x13d8] sm:$0xff]
  %v695 = vld [vmem:[%s2 + $0x13e0] sm:$0xff]
  %v696 = vld [vmem:[%s2 + $0x13e8] sm:$0xff]
  %v697 = vld [vmem:[%s2 + $0x13f0] sm:$0xff]
  %v698 = vld [vmem:[%s2 + $0x13f8] sm:$0xff]
  %v699 = vld [vmem:[%s2 + $0x1400] sm:$0xff]
  %v700 = vld [vmem:[%s2 + $0x1408] sm:$0xff]
  %v701 = vld [vmem:[%s2 + $0x1410] sm:$0xff]
  %v702 = vld [vmem:[%s2 + $0x1418] sm:$0xff]
  %v703 = vld [vmem:[%s2 + $0x1420] sm:$0xff]
  %v704 = vld [vmem:[%s2 + $0x1428] sm:$0xff]
  %v705 = vld [vmem:[%s2 + $0x1430] sm:$0xff]
  %v706 = vld [vmem:[%s2 + $0x1438] sm:$0xff]
  %v707 = vld [vmem:[%s2 + $0x1440] sm:$0xff]
  %v708 = vld [vmem:[%s2 + $0x1448] sm:$0xff]
  %v709 = vld [vmem:[%s2 + $0x1450] sm:$0xff]
  %v710 = vld [vmem:[%s2 + $0x1458] sm:$0xff]
  %v711 = vld [vmem:[%s2 + $0x1460] sm:$0xff]
  %v712 = vld [vmem:[%s2 + $0x1468] sm:$0xff]
  %v713 = vld [vmem:[%s2 + $0x1470] sm:$0xff]
  %v714 = vld [vmem:[%s2 + $0x1478] sm:$0xff]
  %v715 = vld [vmem:[%s2 + $0x1480] sm:$0xff]
  %v716 = vld [vmem:[%s2 + $0x1488] sm:$0xff]
  %v717 = vld [vmem:[%s2 + $0x1490] sm:$0xff]
  %v718 = vld [vmem:[%s2 + $0x1498] sm:$0xff]
  %v719 = vld [vmem:[%s2 + $0x14a0] sm:$0xff]
  %v720 = vld [vmem:[%s2 + $0x14a8] sm:$0xff]
  %v721 = vld [vmem:[%s2 + $0x14b0] sm:$0xff]
  %v722 = vld [vmem:[%s2 + $0x14b8] sm:$0xff]
  %v723 = vld [vmem:[%s2 + $0x14c0] sm:$0xff]
  %v724 = vld [vmem:[%s2 + $0x14c8] sm:$0xff]
  %v725 = vld [vmem:[%s2 + $0x14d0] sm:$0xff]
  %v726 = vld [vmem:[%s2 + $0x14d8] sm:$0xff]
  %v727 = vld [vmem:[%s2 + $0x14e0] sm:$0xff]
  %v728 = vld [vmem:[%s2 + $0x14e8] sm:$0xff]
  %v729 = vld [vmem:[%s2 + $0x14f0] sm:$0xff]
  %v730 = vld [vmem:[%s2 + $0x14f8] sm:$0xff]
  %v731 = vld [vmem:[%s2 + $0x1500] sm:$0xff]
  %v732 = vld [vmem:[%s2 + $0x1508] sm:$0xff]
  %v733 = vld [vmem:[%s2 + $0x1510] sm:$0xff]
  %v734 = vld [vmem:[%s2 + $0x1518] sm:$0xff]
  %v735 = vld [vmem:[%s2 + $0x1520] sm:$0xff]
  %v736 = vld [vmem:[%s2 + $0x1528] sm:$0xff]
  %v737 = vld [vmem:[%s2 + $0x1530] sm:$0xff]
  %v738 = vld [vmem:[%s2 + $0x1538] sm:$0xff]
  %v739 = vld [vmem:[%s2 + $0x1540] sm:$0xff]
  %v740 = vld [vmem:[%s2 + $0x1548] sm:$0xff]
  %v741 = vld [vmem:[%s2 + $0x1550] sm:$0xff]
  %v742 = vld [vmem:[%s2 + $0x1558] sm:$0xff]
  %v743 = vld [vmem:[%s2 + $0x1560] sm:$0xff]
  %v744 = vld [vmem:[%s2 + $0x1568] sm:$0xff]
  %v745 = vld [vmem:[%s2 + $0x1570] sm:$0xff]
  %v746 = vld [vmem:[%s2 + $0x1578] sm:$0xff]
  %v747 = vld [vmem:[%s2 + $0x1580] sm:$0xff]
  %v748 = vld [vmem:[%s2 + $0x1588] sm:$0xff]
  %v749 = vld [vmem:[%s2 + $0x1590] sm:$0xff]
  %v750 = vld [vmem:[%s2 + $0x1598] sm:$0xff]
  %v751 = vld [vmem:[%s2 + $0x15a0] sm:$0xff]
  %v752 = vld [vmem:[%s2 + $0x15a8] sm:$0xff]
  %v753 = vld [vmem:[%s2 + $0x15b0] sm:$0xff]
  %v754 = vld [vmem:[%s2 + $0x15b8] sm:$0xff]
  %v755 = vld [vmem:[%s2 + $0x15c0] sm:$0xff]
  %v756 = vld [vmem:[%s2 + $0x15c8] sm:$0xff]
  %v757 = vld [vmem:[%s2 + $0x15d0] sm:$0xff]
  %v758 = vld [vmem:[%s2 + $0x15d8] sm:$0xff]
  %v759 = vld [vmem:[%s2 + $0x15e0] sm:$0xff]
  %v760 = vld [vmem:[%s2 + $0x15e8] sm:$0xff]
  %v761 = vld [vmem:[%s2 + $0x15f0] sm:$0xff]
  %v762 = vld [vmem:[%s2 + $0x15f8] sm:$0xff]
  %v763 = vld [vmem:[%s2 + $0x1600] sm:$0xff]
  %v764 = vld [vmem:[%s2 + $0x1608] sm:$0xff]
  %v765 = vld [vmem:[%s2 + $0x1610] sm:$0xff]
  %v766 = vld [vmem:[%s2 + $0x1618] sm:$0xff]
  %v767 = vld [vmem:[%s2 + $0x1620] sm:$0xff]
  %v768 = vld [vmem:[%s2 + $0x1628] sm:$0xff]
  %v769 = vld [vmem:[%s2 + $0x1630] sm:$0xff]
  %v770 = vld [vmem:[%s2 + $0x1638] sm:$0xff]
  %v771 = vld [vmem:[%s2 + $0x1640] sm:$0xff]
  %v772 = vld [vmem:[%s2 + $0x1648] sm:$0xff]
  %v773 = vld [vmem:[%s2 + $0x1650] sm:$0xff]
  %v774 = vld [vmem:[%s2 + $0x1658] sm:$0xff]
  %v775 = vld [vmem:[%s2 + $0x1660] sm:$0xff]
  %v776 = vld [vmem:[%s2 + $0x1668] sm:$0xff]
  %v777 = vld [vmem:[%s2 + $0x1670] sm:$0xff]
  %v778 = vld [vmem:[%s2 + $0x1678] sm:$0xff]
  %v779 = vld [vmem:[%s2 + $0x1680] sm:$0xff]
  %v780 = vld [vmem:[%s2 + $0x1688] sm:$0xff]
  %v781 = vld [vmem:[%s2 + $0x1690] sm:$0xff]
  %v782 = vld [vmem:[%s2 + $0x1698] sm:$0xff]
  %v783 = vld [vmem:[%s2 + $0x16a0] sm:$0xff]
  %v784 = vld [vmem:[%s2 + $0x16a8] sm:$0xff]
  %v785 = vld [vmem:[%s2 + $0x16b0] sm:$0xff]
  %v786 = vld [vmem:[%s2 + $0x16b8] sm:$0xff]
  %v787 = vld [vmem:[%s2 + $0x16c0] sm:$0xff]
  %v788 = vld [vmem:[%s2 + $0x16c8] sm:$0xff]
  %v789 = vld [vmem:[%s2 + $0x16d0] sm:$0xff]
  %v790 = vld [vmem:[%s2 + $0x16d8] sm:$0xff]
  %v791 = vld [vmem:[%s2 + $0x16e0] sm:$0xff]
  %v792 = vld [vmem:[%s2 + $0x16e8] sm:$0xff]
  %v793 = vld [vmem:[%s2 + $0x16f0] sm:$0xff]
  %v794 = vld [vmem:[%s2 + $0x16f8] sm:$0xff]
  %v795 = vld [vmem:[%s2 + $0x1700] sm:$0xff]
  %v796 = vld [vmem:[%s2 + $0x1708] sm:$0xff]
  %v797 = vld [vmem:[%s2 + $0x1710] sm:$0xff]
  %v798 = vld [vmem:[%s2 + $0x1718] sm:$0xff]
  %v799 = vld [vmem:[%s2 + $0x1720] sm:$0xff]
  %v800 = vld [vmem:[%s2 + $0x1728] sm:$0xff]
  %v801 = vld [vmem:[%s2 + $0x1730] sm:$0xff]
  %v802 = vld [vmem:[%s2 + $0x1738] sm:$0xff]
  %v803 = vld [vmem:[%s2 + $0x1740] sm:$0xff]
  %v804 = vld [vmem:[%s2 + $0x1748] sm:$0xff]
  %v805 = vld [vmem:[%s2 + $0x1750] sm:$0xff]
  %v806 = vld [vmem:[%s2 + $0x1758] sm:$0xff]
  %v807 = vld [vmem:[%s2 + $0x1760] sm:$0xff]
  %v808 = vld [vmem:[%s2 + $0x1768] sm:$0xff]
  %v809 = vld [vmem:[%s2 + $0x1770] sm:$0xff]
  %v810 = vld [vmem:[%s2 + $0x1778] sm:$0xff]
  %v811 = vld [vmem:[%s2 + $0x1780] sm:$0xff]
  %v812 = vld [vmem:[%s2 + $0x1788] sm:$0xff]
  %v813 = vld [vmem:[%s2 + $0x1790] sm:$0xff]
  %v814 = vld [vmem:[%s2 + $0x1798] sm:$0xff]
  %v815 = vld [vmem:[%s2 + $0x17a0] sm:$0xff]
  %v816 = vld [vmem:[%s2 + $0x17a8] sm:$0xff]
  %v817 = vld [vmem:[%s2 + $0x17b0] sm:$0xff]
  %v818 = vld [vmem:[%s2 + $0x17b8] sm:$0xff]
  %v819 = vld [vmem:[%s2 + $0x17c0] sm:$0xff]
  %v820 = vld [vmem:[%s2 + $0x17c8] sm:$0xff]
  %v821 = vld [vmem:[%s2 + $0x17d0] sm:$0xff]
  %v822 = vld [vmem:[%s2 + $0x17d8] sm:$0xff]
  %v823 = vld [vmem:[%s2 + $0x17e0] sm:$0xff]
  %v824 = vld [vmem:[%s2 + $0x17e8] sm:$0xff]
  %v825 = vld [vmem:[%s2 + $0x17f0] sm:$0xff]
  %v826 = vld [vmem:[%s2 + $0x17f8] sm:$0xff]
  %v827 = vld [vmem:[%s2 + $0x1800] sm:$0xff]
  %v828 = vld [vmem:[%s2 + $0x1808] sm:$0xff]
  %v829 = vld [vmem:[%s2 + $0x1810] sm:$0xff]
  %v830 = vld [vmem:[%s2 + $0x1818] sm:$0xff]
  %v831 = vld [vmem:[%s2 + $0x1820] sm:$0xff]
  %v832 = vld [vmem:[%s2 + $0x1828] sm:$0xff]
  %v833 = vld [vmem:[%s2 + $0x1830] sm:$0xff]
  %v834 = vld [vmem:[%s2 + $0x1838] sm:$0xff]
  %v835 = vld [vmem:[%s2 + $0x1840] sm:$0xff]
  %v836 = vld [vmem:[%s2 + $0x1848] sm:$0xff]
  %v837 = vld [vmem:[%s2 + $0x1850] sm:$0xff]
  %v838 = vld [vmem:[%s2 + $0x1858] sm:$0xff]
  %v839 = vld [vmem:[%s2 + $0x1860] sm:$0xff]
  %v840 = vld [vmem:[%s2 + $0x1868] sm:$0xff]
  %v841 = vld [vmem:[%s2 + $0x1870] sm:$0xff]
  %v842 = vld [vmem:[%s2 + $0x1878] sm:$0xff]
  %v843 = vld [vmem:[%s3] sm:$0xf]
  %v845 = vlaneseq
  %v846 = vshrl.u32 %v845, 7
  %v847 = vsub.s32 0, %v846
  %v848 = vrot.slane %v843, %v847
  %v849 = vlaneseq
  %v850 = vshrl.u32 %v849, 7
  %v851 = vsub.s32 1, %v850
  %v852 = vrot.slane %v843, %v851
  %v853 = vlaneseq
  %v854 = vshrl.u32 %v853, 7
  %v855 = vsub.s32 2, %v854
  %v856 = vrot.slane %v843, %v855
  %v857 = vlaneseq
  %v858 = vshrl.u32 %v857, 7
  %v859 = vsub.s32 3, %v858
  %v860 = vrot.slane %v843, %v859
  %v891 = vunpack.c.l.b16 %v33
  %v892 = vunpack.c.h.b16 %v33
  %v893 = vunpack.c.l.b16 %v34
  %v894 = vunpack.c.h.b16 %v34
  %v895 = vunpack.c.l.b16 %v35
  %v896 = vunpack.c.h.b16 %v35
  %v897 = vunpack.c.l.b16 %v36
  %v898 = vunpack.c.h.b16 %v36
  %v899 = vunpack.c.l.b16 %v37
  %v900 = vunpack.c.h.b16 %v37
  %v901 = vunpack.c.l.b16 %v38
  %v902 = vunpack.c.h.b16 %v38
  %v903 = vunpack.c.l.b16 %v39
  %v904 = vunpack.c.h.b16 %v39
  %v905 = vunpack.c.l.b16 %v40
  %v906 = vunpack.c.h.b16 %v40
  %v907 = vunpack.c.l.b16 %v41
  %v908 = vunpack.c.h.b16 %v41
  %v909 = vunpack.c.l.b16 %v42
  %v910 = vunpack.c.h.b16 %v42
  %v911 = vunpack.c.l.b16 %v43
  %v912 = vunpack.c.h.b16 %v43
  %v913 = vunpack.c.l.b16 %v44
  %v914 = vunpack.c.h.b16 %v44
  %v915 = vunpack.c.l.b16 %v45
  %v916 = vunpack.c.l.b16 %v46
  %v917 = vunpack.c.h.b16 %v46
  %v918 = vunpack.c.l.b16 %v47
  %v919 = vunpack.c.h.b16 %v47
  %v920 = vunpack.c.l.b16 %v48
  %v921 = vunpack.c.h.b16 %v48
  %v922 = vunpack.c.l.b16 %v49
  %v923 = vunpack.c.h.b16 %v49
  %v924 = vunpack.c.l.b16 %v50
  %v925 = vunpack.c.h.b16 %v50
  %v926 = vunpack.c.l.b16 %v51
  %v927 = vunpack.c.h.b16 %v51
  %v928 = vunpack.c.l.b16 %v52
  %v929 = vunpack.c.h.b16 %v52
  %v930 = vunpack.c.l.b16 %v53
  %v931 = vunpack.c.h.b16 %v53
  %v932 = vunpack.c.l.b16 %v54
  %v933 = vunpack.c.h.b16 %v54
  %v934 = vunpack.c.l.b16 %v55
  %v935 = vunpack.c.h.b16 %v55
  %v936 = vunpack.c.l.b16 %v56
  %v937 = vunpack.c.h.b16 %v56
  %v938 = vunpack.c.l.b16 %v57
  %v939 = vunpack.c.h.b16 %v57
  %v940 = vunpack.c.l.b16 %v58
  %v941 = vpack.c.b16 %v916, %v891
  %v942 = vpack.c.b16 %v917, %v892
  %v943 = vpack.c.b16 %v918, %v893
  %v944 = vpack.c.b16 %v919, %v894
  %v945 = vpack.c.b16 %v920, %v895
  %v946 = vpack.c.b16 %v921, %v896
  %v947 = vpack.c.b16 %v922, %v897
  %v948 = vpack.c.b16 %v923, %v898
  %v949 = vpack.c.b16 %v924, %v899
  %v950 = vpack.c.b16 %v925, %v900
  %v951 = vpack.c.b16 %v926, %v901
  %v952 = vpack.c.b16 %v927, %v902
  %v953 = vpack.c.b16 %v928, %v903
  %v954 = vpack.c.b16 %v929, %v904
  %v955 = vpack.c.b16 %v930, %v905
  %v956 = vpack.c.b16 %v931, %v906
  %v957 = vpack.c.b16 %v932, %v907
  %v958 = vpack.c.b16 %v933, %v908
  %v959 = vpack.c.b16 %v934, %v909
  %v960 = vpack.c.b16 %v935, %v910
  %v961 = vpack.c.b16 %v936, %v911
  %v962 = vpack.c.b16 %v937, %v912
  %v963 = vpack.c.b16 %v938, %v913
  %v964 = vpack.c.b16 %v939, %v914
  %v965 = vpack.c.b16 %v940, %v915
  %v1774 = vunpack.c.l.b16 %v59
  %v1775 = vunpack.c.h.b16 %v59
  %v1776 = vunpack.c.l.b16 %v60
  %v1777 = vunpack.c.h.b16 %v60
  %v1778 = vunpack.c.l.b16 %v61
  %v1779 = vunpack.c.h.b16 %v61
  %v1780 = vunpack.c.l.b16 %v62
  %v1781 = vunpack.c.h.b16 %v62
  %v1782 = vunpack.c.l.b16 %v63
  %v1783 = vunpack.c.h.b16 %v63
  %v1784 = vunpack.c.l.b16 %v64
  %v1785 = vunpack.c.h.b16 %v64
  %v1786 = vunpack.c.l.b16 %v65
  %v1787 = vunpack.c.h.b16 %v65
  %v1788 = vunpack.c.l.b16 %v66
  %v1789 = vunpack.c.h.b16 %v66
  %v1790 = vunpack.c.l.b16 %v67
  %v1791 = vunpack.c.h.b16 %v67
  %v1792 = vunpack.c.l.b16 %v68
  %v1793 = vunpack.c.h.b16 %v68
  %v1794 = vunpack.c.l.b16 %v69
  %v1795 = vunpack.c.h.b16 %v69
  %v1796 = vunpack.c.l.b16 %v70
  %v1797 = vunpack.c.h.b16 %v70
  %v1798 = vunpack.c.l.b16 %v71
  %v1799 = vunpack.c.h.b16 %v71
  %v1800 = vunpack.c.l.b16 %v72
  %v1801 = vunpack.c.h.b16 %v72
  %v1802 = vunpack.c.l.b16 %v73
  %v1803 = vunpack.c.h.b16 %v73
  %v1804 = vunpack.c.l.b16 %v74
  %v1805 = vunpack.c.h.b16 %v74
  %v1806 = vunpack.c.l.b16 %v75
  %v1807 = vunpack.c.h.b16 %v75
  %v1808 = vunpack.c.l.b16 %v76
  %v1809 = vunpack.c.h.b16 %v76
  %v1810 = vunpack.c.l.b16 %v77
  %v1811 = vunpack.c.h.b16 %v77
  %v1812 = vunpack.c.l.b16 %v78
  %v1813 = vunpack.c.h.b16 %v78
  %v1814 = vunpack.c.l.b16 %v79
  %v1815 = vunpack.c.h.b16 %v79
  %v1816 = vunpack.c.l.b16 %v80
  %v1817 = vunpack.c.h.b16 %v80
  %v1818 = vunpack.c.l.b16 %v81
  %v1819 = vunpack.c.h.b16 %v81
  %v1820 = vunpack.c.l.b16 %v82
  %v1821 = vunpack.c.h.b16 %v82
  %v1822 = vunpack.c.l.b16 %v83
  %v1823 = vunpack.c.h.b16 %v83
  %v1824 = vunpack.c.l.b16 %v84
  %v1825 = vunpack.c.h.b16 %v84
  %v1826 = vunpack.c.l.b16 %v85
  %v1827 = vunpack.c.h.b16 %v85
  %v1828 = vunpack.c.l.b16 %v86
  %v1829 = vunpack.c.h.b16 %v86
  %v1830 = vunpack.c.l.b16 %v87
  %v1831 = vunpack.c.h.b16 %v87
  %v1832 = vunpack.c.l.b16 %v88
  %v1833 = vunpack.c.h.b16 %v88
  %v1834 = vunpack.c.l.b16 %v89
  %v1835 = vunpack.c.h.b16 %v89
  %v1836 = vunpack.c.l.b16 %v90
  %v1837 = vunpack.c.h.b16 %v90
  %v1838 = vunpack.c.l.b16 %v91
  %v1839 = vunpack.c.h.b16 %v91
  %v1840 = vunpack.c.l.b16 %v92
  %v1841 = vunpack.c.h.b16 %v92
  %v1842 = vunpack.c.l.b16 %v93
  %v1843 = vunpack.c.h.b16 %v93
  %v1844 = vunpack.c.l.b16 %v94
  %v1845 = vunpack.c.h.b16 %v94
  %v1846 = vunpack.c.l.b16 %v95
  %v1847 = vunpack.c.h.b16 %v95
  %v1848 = vunpack.c.l.b16 %v96
  %v1849 = vunpack.c.h.b16 %v96
  %v1850 = vunpack.c.l.b16 %v97
  %v1851 = vunpack.c.h.b16 %v97
  %v1852 = vunpack.c.l.b16 %v98
  %v1853 = vunpack.c.h.b16 %v98
  %v1854 = vunpack.c.l.b16 %v99
  %v1855 = vunpack.c.h.b16 %v99
  %v1856 = vunpack.c.l.b16 %v100
  %v1857 = vunpack.c.h.b16 %v100
  %v1858 = vunpack.c.l.b16 %v101
  %v1859 = vunpack.c.h.b16 %v101
  %v1860 = vunpack.c.l.b16 %v102
  %v1861 = vunpack.c.h.b16 %v102
  %v1862 = vunpack.c.l.b16 %v103
  %v1863 = vunpack.c.h.b16 %v103
  %v1864 = vunpack.c.l.b16 %v104
  %v1865 = vunpack.c.h.b16 %v104
  %v1866 = vunpack.c.l.b16 %v105
  %v1867 = vunpack.c.h.b16 %v105
  %v1868 = vunpack.c.l.b16 %v106
  %v1869 = vunpack.c.h.b16 %v106
  %v1870 = vunpack.c.l.b16 %v107
  %v1871 = vunpack.c.h.b16 %v107
  %v1872 = vunpack.c.l.b16 %v108
  %v1873 = vunpack.c.h.b16 %v108
  %v1874 = vunpack.c.l.b16 %v109
  %v1875 = vunpack.c.h.b16 %v109
  %v1876 = vunpack.c.l.b16 %v110
  %v1877 = vunpack.c.h.b16 %v110
  %v1878 = vunpack.c.l.b16 %v111
  %v1879 = vunpack.c.h.b16 %v111
  %v1880 = vunpack.c.l.b16 %v112
  %v1881 = vunpack.c.h.b16 %v112
  %v1882 = vunpack.c.l.b16 %v113
  %v1883 = vunpack.c.h.b16 %v113
  %v1884 = vunpack.c.l.b16 %v114
  %v1885 = vunpack.c.h.b16 %v114
  %v1886 = vunpack.c.l.b16 %v115
  %v1887 = vunpack.c.h.b16 %v115
  %v1888 = vunpack.c.l.b16 %v116
  %v1889 = vunpack.c.h.b16 %v116
  %v1890 = vunpack.c.l.b16 %v117
  %v1891 = vunpack.c.h.b16 %v117
  %v1892 = vunpack.c.l.b16 %v118
  %v1893 = vunpack.c.h.b16 %v118
  %v1894 = vunpack.c.l.b16 %v119
  %v1895 = vunpack.c.h.b16 %v119
  %v1896 = vunpack.c.l.b16 %v120
  %v1897 = vunpack.c.h.b16 %v120
  %v1898 = vunpack.c.l.b16 %v121
  %v1899 = vunpack.c.h.b16 %v121
  %v1900 = vunpack.c.l.b16 %v122
  %v1901 = vunpack.c.h.b16 %v122
  %v1902 = vunpack.c.l.b16 %v123
  %v1903 = vunpack.c.h.b16 %v123
  %v1904 = vunpack.c.l.b16 %v124
  %v1905 = vunpack.c.h.b16 %v124
  %v1906 = vunpack.c.l.b16 %v125
  %v1907 = vunpack.c.h.b16 %v125
  %v1908 = vunpack.c.l.b16 %v126
  %v1909 = vunpack.c.h.b16 %v126
  %v1910 = vunpack.c.l.b16 %v127
  %v1911 = vunpack.c.h.b16 %v127
  %v1912 = vunpack.c.l.b16 %v128
  %v1913 = vunpack.c.h.b16 %v128
  %v1914 = vunpack.c.l.b16 %v129
  %v1915 = vunpack.c.h.b16 %v129
  %v1916 = vunpack.c.l.b16 %v130
  %v1917 = vunpack.c.h.b16 %v130
  %v1918 = vunpack.c.l.b16 %v131
  %v1919 = vunpack.c.h.b16 %v131
  %v1920 = vunpack.c.l.b16 %v132
  %v1921 = vunpack.c.h.b16 %v132
  %v1922 = vunpack.c.l.b16 %v133
  %v1923 = vunpack.c.h.b16 %v133
  %v1924 = vunpack.c.l.b16 %v134
  %v1925 = vunpack.c.h.b16 %v134
  %v1926 = vunpack.c.l.b16 %v135
  %v1927 = vunpack.c.h.b16 %v135
  %v1928 = vunpack.c.l.b16 %v136
  %v1929 = vunpack.c.h.b16 %v136
  %v1930 = vunpack.c.l.b16 %v137
  %v1931 = vunpack.c.h.b16 %v137
  %v1932 = vunpack.c.l.b16 %v138
  %v1933 = vunpack.c.h.b16 %v138
  %v1934 = vunpack.c.l.b16 %v139
  %v1935 = vunpack.c.h.b16 %v139
  %v1936 = vunpack.c.l.b16 %v140
  %v1937 = vunpack.c.h.b16 %v140
  %v1938 = vunpack.c.l.b16 %v141
  %v1939 = vunpack.c.h.b16 %v141
  %v1940 = vunpack.c.l.b16 %v142
  %v1941 = vunpack.c.h.b16 %v142
  %v1942 = vunpack.c.l.b16 %v143
  %v1943 = vunpack.c.h.b16 %v143
  %v1944 = vunpack.c.l.b16 %v144
  %v1945 = vunpack.c.h.b16 %v144
  %v1946 = vunpack.c.l.b16 %v145
  %v1947 = vunpack.c.h.b16 %v145
  %v1948 = vunpack.c.l.b16 %v146
  %v1949 = vunpack.c.h.b16 %v146
  %v1950 = vunpack.c.l.b16 %v147
  %v1951 = vunpack.c.h.b16 %v147
  %v1952 = vunpack.c.l.b16 %v148
  %v1953 = vunpack.c.h.b16 %v148
  %v1954 = vunpack.c.l.b16 %v149
  %v1955 = vunpack.c.h.b16 %v149
  %v1956 = vunpack.c.l.b16 %v150
  %v1957 = vunpack.c.h.b16 %v150
  %v1958 = vunpack.c.l.b16 %v151
  %v1959 = vunpack.c.h.b16 %v151
  %v1960 = vunpack.c.l.b16 %v152
  %v1961 = vunpack.c.h.b16 %v152
  %v1962 = vunpack.c.l.b16 %v153
  %v1963 = vunpack.c.h.b16 %v153
  %v1964 = vunpack.c.l.b16 %v154
  %v1965 = vunpack.c.h.b16 %v154
  %v1966 = vunpack.c.l.b16 %v155
  %v1967 = vunpack.c.h.b16 %v155
  %v1968 = vunpack.c.l.b16 %v156
  %v1969 = vunpack.c.h.b16 %v156
  %v1970 = vunpack.c.l.b16 %v157
  %v1971 = vunpack.c.h.b16 %v157
  %v1972 = vunpack.c.l.b16 %v158
  %v1973 = vunpack.c.h.b16 %v158
  %v1974 = vunpack.c.l.b16 %v159
  %v1975 = vunpack.c.h.b16 %v159
  %v1976 = vunpack.c.l.b16 %v160
  %v1977 = vunpack.c.h.b16 %v160
  %v1978 = vunpack.c.l.b16 %v161
  %v1979 = vunpack.c.h.b16 %v161
  %v1980 = vunpack.c.l.b16 %v162
  %v1981 = vunpack.c.h.b16 %v162
  %v1982 = vunpack.c.l.b16 %v163
  %v1983 = vunpack.c.h.b16 %v163
  %v1984 = vunpack.c.l.b16 %v164
  %v1985 = vunpack.c.h.b16 %v164
  %v1986 = vunpack.c.l.b16 %v165
  %v1987 = vunpack.c.h.b16 %v165
  %v1988 = vunpack.c.l.b16 %v166
  %v1989 = vunpack.c.h.b16 %v166
  %v1990 = vunpack.c.l.b16 %v167
  %v1991 = vunpack.c.h.b16 %v167
  %v1992 = vunpack.c.l.b16 %v168
  %v1993 = vunpack.c.h.b16 %v168
  %v1994 = vunpack.c.l.b16 %v169
  %v1995 = vunpack.c.h.b16 %v169
  %v1996 = vunpack.c.l.b16 %v170
  %v1997 = vunpack.c.h.b16 %v170
  %v1998 = vunpack.c.l.b16 %v171
  %v1999 = vunpack.c.h.b16 %v171
  %v2000 = vunpack.c.l.b16 %v172
  %v2001 = vunpack.c.h.b16 %v172
  %v2002 = vunpack.c.l.b16 %v173
  %v2003 = vunpack.c.h.b16 %v173
  %v2004 = vunpack.c.l.b16 %v174
  %v2005 = vunpack.c.h.b16 %v174
  %v2006 = vunpack.c.l.b16 %v175
  %v2007 = vunpack.c.h.b16 %v175
  %v2008 = vunpack.c.l.b16 %v176
  %v2009 = vunpack.c.h.b16 %v176
  %v2010 = vunpack.c.l.b16 %v177
  %v2011 = vunpack.c.h.b16 %v177
  %v2012 = vunpack.c.l.b16 %v178
  %v2013 = vunpack.c.h.b16 %v178
  %v2014 = vunpack.c.l.b16 %v179
  %v2015 = vunpack.c.h.b16 %v179
  %v2016 = vunpack.c.l.b16 %v180
  %v2017 = vunpack.c.h.b16 %v180
  %v2018 = vunpack.c.l.b16 %v181
  %v2019 = vunpack.c.h.b16 %v181
  %v2020 = vunpack.c.l.b16 %v182
  %v2021 = vunpack.c.h.b16 %v182
  %v2022 = vunpack.c.l.b16 %v183
  %v2023 = vunpack.c.h.b16 %v183
  %v2024 = vunpack.c.l.b16 %v184
  %v2025 = vunpack.c.h.b16 %v184
  %v2026 = vunpack.c.l.b16 %v185
  %v2027 = vunpack.c.h.b16 %v185
  %v2028 = vunpack.c.l.b16 %v186
  %v2029 = vunpack.c.h.b16 %v186
  %v2030 = vunpack.c.l.b16 %v187
  %v2031 = vunpack.c.h.b16 %v187
  %v2032 = vunpack.c.l.b16 %v188
  %v2033 = vunpack.c.h.b16 %v188
  %v2034 = vunpack.c.l.b16 %v189
  %v2035 = vunpack.c.h.b16 %v189
  %v2036 = vunpack.c.l.b16 %v190
  %v2037 = vunpack.c.h.b16 %v190
  %v2038 = vunpack.c.l.b16 %v191
  %v2039 = vunpack.c.h.b16 %v191
  %v2040 = vunpack.c.l.b16 %v192
  %v2041 = vunpack.c.h.b16 %v192
  %v2042 = vunpack.c.l.b16 %v193
  %v2043 = vunpack.c.h.b16 %v193
  %v2044 = vunpack.c.l.b16 %v194
  %v2045 = vunpack.c.h.b16 %v194
  %v2046 = vunpack.c.l.b16 %v195
  %v2047 = vunpack.c.h.b16 %v195
  %v2048 = vunpack.c.l.b16 %v196
  %v2049 = vunpack.c.h.b16 %v196
  %v2050 = vunpack.c.l.b16 %v197
  %v2051 = vunpack.c.h.b16 %v197
  %v2052 = vunpack.c.l.b16 %v198
  %v2053 = vunpack.c.h.b16 %v198
  %v2054 = vunpack.c.l.b16 %v199
  %v2055 = vunpack.c.h.b16 %v199
  %v2056 = vunpack.c.l.b16 %v200
  %v2057 = vunpack.c.h.b16 %v200
  %v2058 = vunpack.c.l.b16 %v201
  %v2059 = vunpack.c.h.b16 %v201
  %v2060 = vunpack.c.l.b16 %v202
  %v2061 = vunpack.c.h.b16 %v202
  %v2062 = vunpack.c.l.b16 %v203
  %v2063 = vunpack.c.h.b16 %v203
  %v2064 = vunpack.c.l.b16 %v204
  %v2065 = vunpack.c.h.b16 %v204
  %v2066 = vunpack.c.l.b16 %v205
  %v2067 = vunpack.c.h.b16 %v205
  %v2068 = vunpack.c.l.b16 %v206
  %v2069 = vunpack.c.h.b16 %v206
  %v2070 = vunpack.c.l.b16 %v207
  %v2071 = vunpack.c.h.b16 %v207
  %v2072 = vunpack.c.l.b16 %v208
  %v2073 = vunpack.c.h.b16 %v208
  %v2074 = vunpack.c.l.b16 %v209
  %v2075 = vunpack.c.h.b16 %v209
  %v2076 = vunpack.c.l.b16 %v210
  %v2077 = vunpack.c.h.b16 %v210
  %v2078 = vunpack.c.l.b16 %v211
  %v2079 = vunpack.c.h.b16 %v211
  %v2080 = vunpack.c.l.b16 %v212
  %v2081 = vunpack.c.h.b16 %v212
  %v2082 = vunpack.c.l.b16 %v213
  %v2083 = vunpack.c.h.b16 %v213
  %v2084 = vunpack.c.l.b16 %v214
  %v2085 = vunpack.c.h.b16 %v214
  %v2086 = vunpack.c.l.b16 %v215
  %v2087 = vunpack.c.h.b16 %v215
  %v2088 = vunpack.c.l.b16 %v216
  %v2089 = vunpack.c.h.b16 %v216
  %v2090 = vunpack.c.l.b16 %v217
  %v2091 = vunpack.c.h.b16 %v217
  %v2092 = vunpack.c.l.b16 %v218
  %v2093 = vunpack.c.h.b16 %v218
  %v2094 = vunpack.c.l.b16 %v219
  %v2095 = vunpack.c.h.b16 %v219
  %v2096 = vunpack.c.l.b16 %v220
  %v2097 = vunpack.c.h.b16 %v220
  %v2098 = vunpack.c.l.b16 %v221
  %v2099 = vunpack.c.h.b16 %v221
  %v2100 = vunpack.c.l.b16 %v222
  %v2101 = vunpack.c.h.b16 %v222
  %v2102 = vunpack.c.l.b16 %v223
  %v2103 = vunpack.c.h.b16 %v223
  %v2104 = vunpack.c.l.b16 %v224
  %v2105 = vunpack.c.h.b16 %v224
  %v2106 = vunpack.c.l.b16 %v225
  %v2107 = vunpack.c.h.b16 %v225
  %v2108 = vunpack.c.l.b16 %v226
  %v2109 = vunpack.c.h.b16 %v226
  %v2110 = vunpack.c.l.b16 %v227
  %v2111 = vunpack.c.h.b16 %v227
  %v2112 = vunpack.c.l.b16 %v228
  %v2113 = vunpack.c.h.b16 %v228
  %v2114 = vunpack.c.l.b16 %v229
  %v2115 = vunpack.c.h.b16 %v229
  %v2116 = vunpack.c.l.b16 %v230
  %v2117 = vunpack.c.h.b16 %v230
  %v2118 = vunpack.c.l.b16 %v231
  %v2119 = vunpack.c.h.b16 %v231
  %v2120 = vunpack.c.l.b16 %v232
  %v2121 = vunpack.c.h.b16 %v232
  %v2122 = vunpack.c.l.b16 %v233
  %v2123 = vunpack.c.h.b16 %v233
  %v2124 = vunpack.c.l.b16 %v234
  %v2125 = vunpack.c.h.b16 %v234
  %v2126 = vunpack.c.l.b16 %v235
  %v2127 = vunpack.c.h.b16 %v235
  %v2128 = vunpack.c.l.b16 %v236
  %v2129 = vunpack.c.h.b16 %v236
  %v2130 = vunpack.c.l.b16 %v237
  %v2131 = vunpack.c.h.b16 %v237
  %v2132 = vunpack.c.l.b16 %v238
  %v2133 = vunpack.c.h.b16 %v238
  %v2134 = vunpack.c.l.b16 %v239
  %v2135 = vunpack.c.h.b16 %v239
  %v2136 = vunpack.c.l.b16 %v240
  %v2137 = vunpack.c.h.b16 %v240
  %v2138 = vunpack.c.l.b16 %v241
  %v2139 = vunpack.c.h.b16 %v241
  %v2140 = vunpack.c.l.b16 %v242
  %v2141 = vunpack.c.h.b16 %v242
  %v2142 = vunpack.c.l.b16 %v243
  %v2143 = vunpack.c.h.b16 %v243
  %v2144 = vunpack.c.l.b16 %v244
  %v2145 = vunpack.c.h.b16 %v244
  %v2146 = vunpack.c.l.b16 %v245
  %v2147 = vunpack.c.h.b16 %v245
  %v2148 = vunpack.c.l.b16 %v246
  %v2149 = vunpack.c.h.b16 %v246
  %v2150 = vunpack.c.l.b16 %v247
  %v2151 = vunpack.c.h.b16 %v247
  %v2152 = vunpack.c.l.b16 %v248
  %v2153 = vunpack.c.h.b16 %v248
  %v2154 = vunpack.c.l.b16 %v249
  %v2155 = vunpack.c.h.b16 %v249
  %v2156 = vunpack.c.l.b16 %v250
  %v2157 = vunpack.c.h.b16 %v250
  %v2158 = vunpack.c.l.b16 %v251
  %v2159 = vunpack.c.h.b16 %v251
  %v2160 = vunpack.c.l.b16 %v252
  %v2161 = vunpack.c.h.b16 %v252
  %v2162 = vunpack.c.l.b16 %v253
  %v2163 = vunpack.c.h.b16 %v253
  %v2164 = vunpack.c.l.b16 %v254
  %v2165 = vunpack.c.h.b16 %v254
  %v2166 = vunpack.c.l.b16 %v255
  %v2167 = vunpack.c.h.b16 %v255
  %v2168 = vunpack.c.l.b16 %v256
  %v2169 = vunpack.c.h.b16 %v256
  %v2170 = vunpack.c.l.b16 %v257
  %v2171 = vunpack.c.h.b16 %v257
  %v2172 = vunpack.c.l.b16 %v258
  %v2173 = vunpack.c.h.b16 %v258
  %v2174 = vunpack.c.l.b16 %v259
  %v2175 = vunpack.c.h.b16 %v259
  %v2176 = vunpack.c.l.b16 %v260
  %v2177 = vunpack.c.h.b16 %v260
  %v2178 = vunpack.c.l.b16 %v261
  %v2179 = vunpack.c.h.b16 %v261
  %v2180 = vunpack.c.l.b16 %v262
  %v2181 = vunpack.c.h.b16 %v262
  %v2182 = vunpack.c.l.b16 %v263
  %v2183 = vunpack.c.h.b16 %v263
  %v2184 = vunpack.c.l.b16 %v264
  %v2185 = vunpack.c.h.b16 %v264
  %v2186 = vunpack.c.l.b16 %v265
  %v2187 = vunpack.c.h.b16 %v265
  %v2188 = vunpack.c.l.b16 %v266
  %v2189 = vunpack.c.h.b16 %v266
  %v2190 = vunpack.c.l.b16 %v267
  %v2191 = vunpack.c.h.b16 %v267
  %v2192 = vunpack.c.l.b16 %v268
  %v2193 = vunpack.c.h.b16 %v268
  %v2194 = vunpack.c.l.b16 %v269
  %v2195 = vunpack.c.h.b16 %v269
  %v2196 = vunpack.c.l.b16 %v270
  %v2197 = vunpack.c.h.b16 %v270
  %v2198 = vunpack.c.l.b16 %v271
  %v2199 = vunpack.c.h.b16 %v271
  %v2200 = vunpack.c.l.b16 %v272
  %v2201 = vunpack.c.h.b16 %v272
  %v2202 = vunpack.c.l.b16 %v273
  %v2203 = vunpack.c.h.b16 %v273
  %v2204 = vunpack.c.l.b16 %v274
  %v2205 = vunpack.c.h.b16 %v274
  %v2206 = vunpack.c.l.b16 %v275
  %v2207 = vunpack.c.h.b16 %v275
  %v2208 = vunpack.c.l.b16 %v276
  %v2209 = vunpack.c.h.b16 %v276
  %v2210 = vunpack.c.l.b16 %v277
  %v2211 = vunpack.c.h.b16 %v277
  %v2212 = vunpack.c.l.b16 %v278
  %v2213 = vunpack.c.h.b16 %v278
  %v2214 = vunpack.c.l.b16 %v279
  %v2215 = vunpack.c.h.b16 %v279
  %v2216 = vunpack.c.l.b16 %v280
  %v2217 = vunpack.c.h.b16 %v280
  %v2218 = vunpack.c.l.b16 %v281
  %v2219 = vunpack.c.h.b16 %v281
  %v2220 = vunpack.c.l.b16 %v282
  %v2221 = vunpack.c.h.b16 %v282
  %v2222 = vunpack.c.l.b16 %v283
  %v2223 = vunpack.c.h.b16 %v283
  %v2224 = vunpack.c.l.b16 %v284
  %v2225 = vunpack.c.h.b16 %v284
  %v2226 = vunpack.c.l.b16 %v285
  %v2227 = vunpack.c.h.b16 %v285
  %v2228 = vunpack.c.l.b16 %v286
  %v2229 = vunpack.c.h.b16 %v286
  %v2230 = vunpack.c.l.b16 %v287
  %v2231 = vunpack.c.h.b16 %v287
  %v2232 = vunpack.c.l.b16 %v288
  %v2233 = vunpack.c.h.b16 %v288
  %v2234 = vunpack.c.l.b16 %v289
  %v2235 = vunpack.c.h.b16 %v289
  %v2236 = vunpack.c.l.b16 %v290
  %v2237 = vunpack.c.h.b16 %v290
  %v2238 = vunpack.c.l.b16 %v291
  %v2239 = vunpack.c.h.b16 %v291
  %v2240 = vunpack.c.l.b16 %v292
  %v2241 = vunpack.c.h.b16 %v292
  %v2242 = vunpack.c.l.b16 %v293
  %v2243 = vunpack.c.h.b16 %v293
  %v2244 = vunpack.c.l.b16 %v294
  %v2245 = vunpack.c.h.b16 %v294
  %v2246 = vunpack.c.l.b16 %v295
  %v2247 = vunpack.c.h.b16 %v295
  %v2248 = vunpack.c.l.b16 %v296
  %v2249 = vunpack.c.h.b16 %v296
  %v2250 = vunpack.c.l.b16 %v297
  %v2251 = vunpack.c.h.b16 %v297
  %v2252 = vunpack.c.l.b16 %v298
  %v2253 = vunpack.c.h.b16 %v298
  %v2254 = vunpack.c.l.b16 %v299
  %v2255 = vunpack.c.h.b16 %v299
  %v2256 = vunpack.c.l.b16 %v300
  %v2257 = vunpack.c.h.b16 %v300
  %v2258 = vunpack.c.l.b16 %v301
  %v2259 = vunpack.c.h.b16 %v301
  %v2260 = vunpack.c.l.b16 %v302
  %v2261 = vunpack.c.h.b16 %v302
  %v2262 = vunpack.c.l.b16 %v303
  %v2263 = vunpack.c.h.b16 %v303
  %v2264 = vunpack.c.l.b16 %v304
  %v2265 = vunpack.c.h.b16 %v304
  %v2266 = vunpack.c.l.b16 %v305
  %v2267 = vunpack.c.h.b16 %v305
  %v2268 = vunpack.c.l.b16 %v306
  %v2269 = vunpack.c.h.b16 %v306
  %v2270 = vunpack.c.l.b16 %v307
  %v2271 = vunpack.c.h.b16 %v307
  %v2272 = vunpack.c.l.b16 %v308
  %v2273 = vunpack.c.h.b16 %v308
  %v2274 = vunpack.c.l.b16 %v309
  %v2275 = vunpack.c.h.b16 %v309
  %v2276 = vunpack.c.l.b16 %v310
  %v2277 = vunpack.c.h.b16 %v310
  %v2278 = vunpack.c.l.b16 %v311
  %v2279 = vunpack.c.h.b16 %v311
  %v2280 = vunpack.c.l.b16 %v312
  %v2281 = vunpack.c.h.b16 %v312
  %v2282 = vunpack.c.l.b16 %v313
  %v2283 = vunpack.c.h.b16 %v313
  %v2284 = vunpack.c.l.b16 %v314
  %v2285 = vunpack.c.h.b16 %v314
  %v2286 = vunpack.c.l.b16 %v315
  %v2287 = vunpack.c.h.b16 %v315
  %v2288 = vunpack.c.l.b16 %v316
  %v2289 = vunpack.c.h.b16 %v316
  %v2290 = vunpack.c.l.b16 %v317
  %v2291 = vunpack.c.h.b16 %v317
  %v2292 = vunpack.c.l.b16 %v318
  %v2293 = vunpack.c.h.b16 %v318
  %v2294 = vunpack.c.l.b16 %v319
  %v2295 = vunpack.c.h.b16 %v319
  %v2296 = vunpack.c.l.b16 %v320
  %v2297 = vunpack.c.h.b16 %v320
  %v2298 = vunpack.c.l.b16 %v321
  %v2299 = vunpack.c.h.b16 %v321
  %v2300 = vunpack.c.l.b16 %v322
  %v2301 = vunpack.c.h.b16 %v322
  %v2302 = vunpack.c.l.b16 %v323
  %v2303 = vunpack.c.h.b16 %v323
  %v2304 = vunpack.c.l.b16 %v324
  %v2305 = vunpack.c.h.b16 %v324
  %v2306 = vunpack.c.l.b16 %v325
  %v2307 = vunpack.c.h.b16 %v325
  %v2308 = vunpack.c.l.b16 %v326
  %v2309 = vunpack.c.h.b16 %v326
  %v2310 = vunpack.c.l.b16 %v327
  %v2311 = vunpack.c.h.b16 %v327
  %v2312 = vunpack.c.l.b16 %v328
  %v2313 = vunpack.c.h.b16 %v328
  %v2314 = vunpack.c.l.b16 %v329
  %v2315 = vunpack.c.h.b16 %v329
  %v2316 = vunpack.c.l.b16 %v330
  %v2317 = vunpack.c.h.b16 %v330
  %v2318 = vunpack.c.l.b16 %v331
  %v2319 = vunpack.c.h.b16 %v331
  %v2320 = vunpack.c.l.b16 %v332
  %v2321 = vunpack.c.h.b16 %v332
  %v2322 = vunpack.c.l.b16 %v333
  %v2323 = vunpack.c.h.b16 %v333
  %v2324 = vunpack.c.l.b16 %v334
  %v2325 = vunpack.c.h.b16 %v334
  %v2326 = vunpack.c.l.b16 %v335
  %v2327 = vunpack.c.h.b16 %v335
  %v2328 = vunpack.c.l.b16 %v336
  %v2329 = vunpack.c.h.b16 %v336
  %v2330 = vunpack.c.l.b16 %v337
  %v2331 = vunpack.c.h.b16 %v337
  %v2332 = vunpack.c.l.b16 %v338
  %v2333 = vunpack.c.h.b16 %v338
  %v2334 = vunpack.c.l.b16 %v339
  %v2335 = vunpack.c.h.b16 %v339
  %v2336 = vunpack.c.l.b16 %v340
  %v2337 = vunpack.c.h.b16 %v340
  %v2338 = vunpack.c.l.b16 %v341
  %v2339 = vunpack.c.h.b16 %v341
  %v2340 = vunpack.c.l.b16 %v342
  %v2341 = vunpack.c.h.b16 %v342
  %v2342 = vunpack.c.l.b16 %v343
  %v2343 = vunpack.c.h.b16 %v343
  %v2344 = vunpack.c.l.b16 %v344
  %v2345 = vunpack.c.h.b16 %v344
  %v2346 = vunpack.c.l.b16 %v345
  %v2347 = vunpack.c.h.b16 %v345
  %v2348 = vunpack.c.l.b16 %v346
  %v2349 = vunpack.c.h.b16 %v346
  %v2350 = vunpack.c.l.b16 %v347
  %v2351 = vunpack.c.h.b16 %v347
  %v2352 = vunpack.c.l.b16 %v348
  %v2353 = vunpack.c.h.b16 %v348
  %v2354 = vunpack.c.l.b16 %v349
  %v2355 = vunpack.c.h.b16 %v349
  %v2356 = vunpack.c.l.b16 %v350
  %v2357 = vunpack.c.h.b16 %v350
  %v2358 = vunpack.c.l.b16 %v351
  %v2359 = vunpack.c.h.b16 %v351
  %v2360 = vunpack.c.l.b16 %v352
  %v2361 = vunpack.c.h.b16 %v352
  %v2362 = vunpack.c.l.b16 %v353
  %v2363 = vunpack.c.h.b16 %v353
  %v2364 = vunpack.c.l.b16 %v354
  %v2365 = vunpack.c.h.b16 %v354
  %v2366 = vunpack.c.l.b16 %v355
  %v2367 = vunpack.c.h.b16 %v355
  %v2368 = vunpack.c.l.b16 %v356
  %v2369 = vunpack.c.h.b16 %v356
  %v2370 = vunpack.c.l.b16 %v357
  %v2371 = vunpack.c.h.b16 %v357
  %v2372 = vunpack.c.l.b16 %v358
  %v2373 = vunpack.c.h.b16 %v358
  %v2374 = vunpack.c.l.b16 %v359
  %v2375 = vunpack.c.h.b16 %v359
  %v2376 = vunpack.c.l.b16 %v360
  %v2377 = vunpack.c.h.b16 %v360
  %v2378 = vunpack.c.l.b16 %v361
  %v2379 = vunpack.c.h.b16 %v361
  %v2380 = vunpack.c.l.b16 %v362
  %v2381 = vunpack.c.h.b16 %v362
  %v2382 = vunpack.c.l.b16 %v363
  %v2383 = vunpack.c.h.b16 %v363
  %v2384 = vunpack.c.l.b16 %v364
  %v2385 = vunpack.c.h.b16 %v364
  %v2386 = vunpack.c.l.b16 %v365
  %v2387 = vunpack.c.h.b16 %v365
  %v2388 = vunpack.c.l.b16 %v366
  %v2389 = vunpack.c.h.b16 %v366
  %v2390 = vunpack.c.l.b16 %v367
  %v2391 = vunpack.c.h.b16 %v367
  %v2392 = vunpack.c.l.b16 %v368
  %v2393 = vunpack.c.h.b16 %v368
  %v2394 = vunpack.c.l.b16 %v369
  %v2395 = vunpack.c.h.b16 %v369
  %v2396 = vunpack.c.l.b16 %v370
  %v2397 = vunpack.c.h.b16 %v370
  %v2398 = vunpack.c.l.b16 %v371
  %v2399 = vunpack.c.h.b16 %v371
  %v2400 = vunpack.c.l.b16 %v372
  %v2401 = vunpack.c.h.b16 %v372
  %v2402 = vunpack.c.l.b16 %v373
  %v2403 = vunpack.c.h.b16 %v373
  %v2404 = vunpack.c.l.b16 %v374
  %v2405 = vunpack.c.h.b16 %v374
  %v2406 = vunpack.c.l.b16 %v375
  %v2407 = vunpack.c.h.b16 %v375
  %v2408 = vunpack.c.l.b16 %v376
  %v2409 = vunpack.c.h.b16 %v376
  %v2410 = vunpack.c.l.b16 %v377
  %v2411 = vunpack.c.h.b16 %v377
  %v2412 = vunpack.c.l.b16 %v378
  %v2413 = vunpack.c.h.b16 %v378
  %v2414 = vunpack.c.l.b16 %v379
  %v2415 = vunpack.c.h.b16 %v379
  %v2416 = vunpack.c.l.b16 %v380
  %v2417 = vunpack.c.h.b16 %v380
  %v2418 = vunpack.c.l.b16 %v381
  %v2419 = vunpack.c.h.b16 %v381
  %v2420 = vunpack.c.l.b16 %v382
  %v2421 = vunpack.c.h.b16 %v382
  %v2422 = vunpack.c.l.b16 %v383
  %v2423 = vunpack.c.h.b16 %v383
  %v2424 = vunpack.c.l.b16 %v384
  %v2425 = vunpack.c.h.b16 %v384
  %v2426 = vunpack.c.l.b16 %v385
  %v2427 = vunpack.c.h.b16 %v385
  %v2428 = vunpack.c.l.b16 %v386
  %v2429 = vunpack.c.h.b16 %v386
  %v2430 = vunpack.c.l.b16 %v387
  %v2431 = vunpack.c.h.b16 %v387
  %v2432 = vunpack.c.l.b16 %v388
  %v2433 = vunpack.c.h.b16 %v388
  %v2434 = vunpack.c.l.b16 %v389
  %v2435 = vunpack.c.h.b16 %v389
  %v2436 = vunpack.c.l.b16 %v390
  %v2437 = vunpack.c.h.b16 %v390
  %v2438 = vunpack.c.l.b16 %v391
  %v2439 = vunpack.c.h.b16 %v391
  %v2440 = vunpack.c.l.b16 %v392
  %v2441 = vunpack.c.h.b16 %v392
  %v2442 = vunpack.c.l.b16 %v393
  %v2443 = vunpack.c.h.b16 %v393
  %v2444 = vunpack.c.l.b16 %v394
  %v2445 = vunpack.c.h.b16 %v394
  %v2446 = vunpack.c.l.b16 %v395
  %v2447 = vunpack.c.h.b16 %v395
  %v2448 = vunpack.c.l.b16 %v396
  %v2449 = vunpack.c.h.b16 %v396
  %v2450 = vunpack.c.l.b16 %v397
  %v2451 = vunpack.c.h.b16 %v397
  %v2452 = vunpack.c.l.b16 %v398
  %v2453 = vunpack.c.h.b16 %v398
  %v2454 = vunpack.c.l.b16 %v399
  %v2455 = vunpack.c.h.b16 %v399
  %v2456 = vunpack.c.l.b16 %v400
  %v2457 = vunpack.c.h.b16 %v400
  %v2458 = vunpack.c.l.b16 %v401
  %v2459 = vunpack.c.h.b16 %v401
  %v2460 = vunpack.c.l.b16 %v402
  %v2461 = vunpack.c.h.b16 %v402
  %v2462 = vunpack.c.l.b16 %v403
  %v2463 = vunpack.c.h.b16 %v403
  %v2464 = vunpack.c.l.b16 %v404
  %v2465 = vunpack.c.h.b16 %v404
  %v2466 = vunpack.c.l.b16 %v405
  %v2467 = vunpack.c.h.b16 %v405
  %v2468 = vunpack.c.l.b16 %v406
  %v2469 = vunpack.c.h.b16 %v406
  %v2470 = vunpack.c.l.b16 %v407
  %v2471 = vunpack.c.h.b16 %v407
  %v2472 = vunpack.c.l.b16 %v408
  %v2473 = vunpack.c.h.b16 %v408
  %v2474 = vunpack.c.l.b16 %v409
  %v2475 = vunpack.c.h.b16 %v409
  %v2476 = vunpack.c.l.b16 %v410
  %v2477 = vunpack.c.h.b16 %v410
  %v2478 = vunpack.c.l.b16 %v411
  %v2479 = vunpack.c.h.b16 %v411
  %v2480 = vunpack.c.l.b16 %v412
  %v2481 = vunpack.c.h.b16 %v412
  %v2482 = vunpack.c.l.b16 %v413
  %v2483 = vunpack.c.h.b16 %v413
  %v2484 = vunpack.c.l.b16 %v414
  %v2485 = vunpack.c.h.b16 %v414
  %v2486 = vunpack.c.l.b16 %v415
  %v2487 = vunpack.c.h.b16 %v415
  %v2488 = vunpack.c.l.b16 %v416
  %v2489 = vunpack.c.h.b16 %v416
  %v2490 = vunpack.c.l.b16 %v417
  %v2491 = vunpack.c.h.b16 %v417
  %v2492 = vunpack.c.l.b16 %v418
  %v2493 = vunpack.c.h.b16 %v418
  %v2494 = vunpack.c.l.b16 %v419
  %v2495 = vunpack.c.h.b16 %v419
  %v2496 = vunpack.c.l.b16 %v420
  %v2497 = vunpack.c.h.b16 %v420
  %v2498 = vunpack.c.l.b16 %v421
  %v2499 = vunpack.c.h.b16 %v421
  %v2500 = vunpack.c.l.b16 %v422
  %v2501 = vunpack.c.h.b16 %v422
  %v2502 = vunpack.c.l.b16 %v423
  %v2503 = vunpack.c.h.b16 %v423
  %v2504 = vunpack.c.l.b16 %v424
  %v2505 = vunpack.c.h.b16 %v424
  %v2506 = vunpack.c.l.b16 %v425
  %v2507 = vunpack.c.h.b16 %v425
  %v2508 = vunpack.c.l.b16 %v426
  %v2509 = vunpack.c.h.b16 %v426
  %v2510 = vunpack.c.l.b16 %v427
  %v2511 = vunpack.c.h.b16 %v427
  %v2512 = vunpack.c.l.b16 %v428
  %v2513 = vunpack.c.h.b16 %v428
  %v2514 = vunpack.c.l.b16 %v429
  %v2515 = vunpack.c.h.b16 %v429
  %v2516 = vunpack.c.l.b16 %v430
  %v2517 = vunpack.c.h.b16 %v430
  %v2518 = vunpack.c.l.b16 %v431
  %v2519 = vunpack.c.h.b16 %v431
  %v2520 = vunpack.c.l.b16 %v432
  %v2521 = vunpack.c.h.b16 %v432
  %v2522 = vunpack.c.l.b16 %v433
  %v2523 = vunpack.c.h.b16 %v433
  %v2524 = vunpack.c.l.b16 %v434
  %v2525 = vunpack.c.h.b16 %v434
  %v2526 = vunpack.c.l.b16 %v435
  %v2527 = vunpack.c.h.b16 %v435
  %v2528 = vunpack.c.l.b16 %v436
  %v2529 = vunpack.c.h.b16 %v436
  %v2530 = vunpack.c.l.b16 %v437
  %v2531 = vunpack.c.h.b16 %v437
  %v2532 = vunpack.c.l.b16 %v438
  %v2533 = vunpack.c.h.b16 %v438
  %v2534 = vunpack.c.l.b16 %v439
  %v2535 = vunpack.c.h.b16 %v439
  %v2536 = vunpack.c.l.b16 %v440
  %v2537 = vunpack.c.h.b16 %v440
  %v2538 = vunpack.c.l.b16 %v441
  %v2539 = vunpack.c.h.b16 %v441
  %v2540 = vunpack.c.l.b16 %v442
  %v2541 = vunpack.c.h.b16 %v442
  %v2542 = vunpack.c.l.b16 %v443
  %v2543 = vunpack.c.h.b16 %v443
  %v2544 = vunpack.c.l.b16 %v444
  %v2545 = vunpack.c.h.b16 %v444
  %v2546 = vunpack.c.l.b16 %v445
  %v2547 = vunpack.c.h.b16 %v445
  %v2548 = vunpack.c.l.b16 %v446
  %v2549 = vunpack.c.h.b16 %v446
  %v2550 = vunpack.c.l.b16 %v447
  %v2551 = vunpack.c.h.b16 %v447
  %v2552 = vunpack.c.l.b16 %v448
  %v2553 = vunpack.c.h.b16 %v448
  %v2554 = vunpack.c.l.b16 %v449
  %v2555 = vunpack.c.h.b16 %v449
  %v2556 = vunpack.c.l.b16 %v450
  %v2557 = vunpack.c.h.b16 %v450
  %v2558 = vunpack.c.l.b16 %v451
  %v2559 = vunpack.c.h.b16 %v451
  %v2560 = vunpack.c.l.b16 %v452
  %v2561 = vunpack.c.h.b16 %v452
  %v2562 = vunpack.c.l.b16 %v453
  %v2563 = vunpack.c.h.b16 %v453
  %v2564 = vunpack.c.l.b16 %v454
  %v2565 = vunpack.c.h.b16 %v454
  %v2566 = vunpack.c.l.b16 %v455
  %v2567 = vunpack.c.h.b16 %v455
  %v2568 = vunpack.c.l.b16 %v456
  %v2569 = vunpack.c.h.b16 %v456
  %v2570 = vunpack.c.l.b16 %v457
  %v2571 = vunpack.c.h.b16 %v457
  %v2572 = vunpack.c.l.b16 %v458
  %v2573 = vunpack.c.h.b16 %v458
  %v2574 = vunpack.c.l.b16 %v459
  %v2575 = vunpack.c.h.b16 %v459
  %v2576 = vunpack.c.l.b16 %v460
  %v2577 = vunpack.c.h.b16 %v460
  %v2578 = vunpack.c.l.b16 %v461
  %v2579 = vunpack.c.h.b16 %v461
  %v2580 = vunpack.c.l.b16 %v462
  %v2581 = vunpack.c.h.b16 %v462
  %v2582 = vunpack.c.l.b16 %v463
  %v2583 = vunpack.c.h.b16 %v463
  %v2584 = vunpack.c.l.b16 %v464
  %v2585 = vunpack.c.h.b16 %v464
  %v2586 = vunpack.c.l.b16 %v465
  %v2587 = vunpack.c.h.b16 %v465
  %v2588 = vunpack.c.l.b16 %v466
  %v2589 = vunpack.c.h.b16 %v466
  %v2590 = vunpack.c.l.b16 %v467
  %v2591 = vunpack.c.h.b16 %v467
  %v2592 = vunpack.c.l.b16 %v468
  %v2593 = vunpack.c.h.b16 %v468
  %v2594 = vunpack.c.l.b16 %v469
  %v2595 = vunpack.c.h.b16 %v469
  %v2596 = vunpack.c.l.b16 %v470
  %v2597 = vunpack.c.h.b16 %v470
  %v2598 = vunpack.c.l.b16 %v471
  %v2599 = vunpack.c.h.b16 %v471
  %v2600 = vunpack.c.l.b16 %v472
  %v2601 = vunpack.c.h.b16 %v472
  %v2602 = vunpack.c.l.b16 %v473
  %v2603 = vunpack.c.h.b16 %v473
  %v2604 = vunpack.c.l.b16 %v474
  %v2605 = vunpack.c.h.b16 %v474
  %v2606 = vunpack.c.l.b16 %v475
  %v2607 = vunpack.c.h.b16 %v475
  %v2608 = vunpack.c.l.b16 %v476
  %v2609 = vunpack.c.h.b16 %v476
  %v2610 = vunpack.c.l.b16 %v477
  %v2611 = vunpack.c.h.b16 %v477
  %v2612 = vunpack.c.l.b16 %v478
  %v2613 = vunpack.c.h.b16 %v478
  %v2614 = vunpack.c.l.b16 %v479
  %v2615 = vunpack.c.h.b16 %v479
  %v2616 = vunpack.c.l.b16 %v480
  %v2617 = vunpack.c.h.b16 %v480
  %v2618 = vunpack.c.l.b16 %v481
  %v2619 = vunpack.c.h.b16 %v481
  %v2620 = vunpack.c.l.b16 %v482
  %v2621 = vunpack.c.h.b16 %v482
  %v2622 = vunpack.c.l.b16 %v483
  %v2623 = vunpack.c.h.b16 %v483
  %v2624 = vunpack.c.l.b16 %v484
  %v2625 = vunpack.c.h.b16 %v484
  %v2626 = vunpack.c.l.b16 %v485
  %v2627 = vunpack.c.h.b16 %v485
  %v2628 = vunpack.c.l.b16 %v486
  %v2629 = vunpack.c.h.b16 %v486
  %v2630 = vunpack.c.l.b16 %v487
  %v2631 = vunpack.c.h.b16 %v487
  %v2632 = vunpack.c.l.b16 %v488
  %v2633 = vunpack.c.h.b16 %v488
  %v2634 = vunpack.c.l.b16 %v489
  %v2635 = vunpack.c.h.b16 %v489
  %v2636 = vunpack.c.l.b16 %v490
  %v2637 = vunpack.c.h.b16 %v490
  %v2638 = vunpack.c.l.b16 %v491
  %v2639 = vunpack.c.h.b16 %v491
  %v2640 = vunpack.c.l.b16 %v492
  %v2641 = vunpack.c.h.b16 %v492
  %v2642 = vunpack.c.l.b16 %v493
  %v2643 = vunpack.c.h.b16 %v493
  %v2644 = vunpack.c.l.b16 %v494
  %v2645 = vunpack.c.h.b16 %v494
  %v2646 = vunpack.c.l.b16 %v495
  %v2647 = vunpack.c.h.b16 %v495
  %v2648 = vunpack.c.l.b16 %v496
  %v2649 = vunpack.c.h.b16 %v496
  %v2650 = vunpack.c.l.b16 %v497
  %v2651 = vunpack.c.h.b16 %v497
  %v2652 = vunpack.c.l.b16 %v498
  %v2653 = vunpack.c.h.b16 %v498
  %v2654 = vunpack.c.l.b16 %v499
  %v2655 = vunpack.c.h.b16 %v499
  %v2656 = vunpack.c.l.b16 %v500
  %v2657 = vunpack.c.h.b16 %v500
  %v2658 = vunpack.c.l.b16 %v501
  %v2659 = vunpack.c.h.b16 %v501
  %v2660 = vunpack.c.l.b16 %v502
  %v2661 = vunpack.c.h.b16 %v502
  %v2662 = vunpack.c.l.b16 %v503
  %v2663 = vunpack.c.h.b16 %v503
  %v2664 = vunpack.c.l.b16 %v504
  %v2665 = vunpack.c.h.b16 %v504
  %v2666 = vunpack.c.l.b16 %v505
  %v2667 = vunpack.c.h.b16 %v505
  %v2668 = vunpack.c.l.b16 %v506
  %v2669 = vunpack.c.h.b16 %v506
  %v2670 = vunpack.c.l.b16 %v507
  %v2671 = vunpack.c.h.b16 %v507
  %v2672 = vunpack.c.l.b16 %v508
  %v2673 = vunpack.c.h.b16 %v508
  %v2674 = vunpack.c.l.b16 %v509
  %v2675 = vunpack.c.h.b16 %v509
  %v2676 = vunpack.c.l.b16 %v510
  %v2677 = vunpack.c.h.b16 %v510
  %v2678 = vunpack.c.l.b16 %v511
  %v2679 = vunpack.c.h.b16 %v511
  %v2680 = vunpack.c.l.b16 %v512
  %v2681 = vunpack.c.h.b16 %v512
  %v2682 = vunpack.c.l.b16 %v513
  %v2683 = vunpack.c.h.b16 %v513
  %v2684 = vunpack.c.l.b16 %v514
  %v2685 = vunpack.c.h.b16 %v514
  %v2686 = vunpack.c.l.b16 %v515
  %v2687 = vunpack.c.h.b16 %v515
  %v2688 = vunpack.c.l.b16 %v516
  %v2689 = vunpack.c.h.b16 %v516
  %v2690 = vunpack.c.l.b16 %v517
  %v2691 = vunpack.c.h.b16 %v517
  %v2692 = vunpack.c.l.b16 %v518
  %v2693 = vunpack.c.h.b16 %v518
  %v2694 = vunpack.c.l.b16 %v519
  %v2695 = vunpack.c.h.b16 %v519
  %v2696 = vunpack.c.l.b16 %v520
  %v2697 = vunpack.c.h.b16 %v520
  %v2698 = vunpack.c.l.b16 %v521
  %v2699 = vunpack.c.h.b16 %v521
  %v2700 = vunpack.c.l.b16 %v522
  %v2701 = vunpack.c.h.b16 %v522
  %v2702 = vunpack.c.l.b16 %v523
  %v2703 = vunpack.c.h.b16 %v523
  %v2704 = vunpack.c.l.b16 %v524
  %v2705 = vunpack.c.h.b16 %v524
  %v2706 = vunpack.c.l.b16 %v525
  %v2707 = vunpack.c.h.b16 %v525
  %v2708 = vunpack.c.l.b16 %v526
  %v2709 = vunpack.c.h.b16 %v526
  %v2710 = vunpack.c.l.b16 %v527
  %v2711 = vunpack.c.h.b16 %v527
  %v2712 = vunpack.c.l.b16 %v528
  %v2713 = vunpack.c.h.b16 %v528
  %v2714 = vunpack.c.l.b16 %v529
  %v2715 = vunpack.c.h.b16 %v529
  %v2716 = vunpack.c.l.b16 %v530
  %v2717 = vunpack.c.h.b16 %v530
  %v2718 = vunpack.c.l.b16 %v531
  %v2719 = vunpack.c.h.b16 %v531
  %v2720 = vunpack.c.l.b16 %v532
  %v2721 = vunpack.c.h.b16 %v532
  %v2722 = vunpack.c.l.b16 %v533
  %v2723 = vunpack.c.h.b16 %v533
  %v2724 = vunpack.c.l.b16 %v534
  %v2725 = vunpack.c.h.b16 %v534
  %v2726 = vunpack.c.l.b16 %v535
  %v2727 = vunpack.c.h.b16 %v535
  %v2728 = vunpack.c.l.b16 %v536
  %v2729 = vunpack.c.h.b16 %v536
  %v2730 = vunpack.c.l.b16 %v537
  %v2731 = vunpack.c.h.b16 %v537
  %v2732 = vunpack.c.l.b16 %v538
  %v2733 = vunpack.c.h.b16 %v538
  %v2734 = vunpack.c.l.b16 %v539
  %v2735 = vunpack.c.h.b16 %v539
  %v2736 = vunpack.c.l.b16 %v540
  %v2737 = vunpack.c.h.b16 %v540
  %v2738 = vunpack.c.l.b16 %v541
  %v2739 = vunpack.c.h.b16 %v541
  %v2740 = vunpack.c.l.b16 %v542
  %v2741 = vunpack.c.h.b16 %v542
  %v2742 = vunpack.c.l.b16 %v543
  %v2743 = vunpack.c.h.b16 %v543
  %v2744 = vunpack.c.l.b16 %v544
  %v2745 = vunpack.c.h.b16 %v544
  %v2746 = vunpack.c.l.b16 %v545
  %v2747 = vunpack.c.h.b16 %v545
  %v2748 = vunpack.c.l.b16 %v546
  %v2749 = vunpack.c.h.b16 %v546
  %v2750 = vunpack.c.l.b16 %v547
  %v2751 = vunpack.c.h.b16 %v547
  %v2752 = vunpack.c.l.b16 %v548
  %v2753 = vunpack.c.h.b16 %v548
  %v2754 = vunpack.c.l.b16 %v549
  %v2755 = vunpack.c.h.b16 %v549
  %v2756 = vunpack.c.l.b16 %v550
  %v2757 = vunpack.c.h.b16 %v550
  %v2758 = vunpack.c.l.b16 %v551
  %v2759 = vunpack.c.h.b16 %v551
  %v2760 = vunpack.c.l.b16 %v552
  %v2761 = vunpack.c.h.b16 %v552
  %v2762 = vunpack.c.l.b16 %v553
  %v2763 = vunpack.c.h.b16 %v553
  %v2764 = vunpack.c.l.b16 %v554
  %v2765 = vunpack.c.h.b16 %v554
  %v2766 = vunpack.c.l.b16 %v555
  %v2767 = vunpack.c.h.b16 %v555
  %v2768 = vunpack.c.l.b16 %v556
  %v2769 = vunpack.c.h.b16 %v556
  %v2770 = vunpack.c.l.b16 %v557
  %v2771 = vunpack.c.h.b16 %v557
  %v2772 = vunpack.c.l.b16 %v558
  %v2773 = vunpack.c.h.b16 %v558
  %v2774 = vunpack.c.l.b16 %v559
  %v2775 = vunpack.c.h.b16 %v559
  %v2776 = vunpack.c.l.b16 %v560
  %v2777 = vunpack.c.h.b16 %v560
  %v2778 = vunpack.c.l.b16 %v561
  %v2779 = vunpack.c.h.b16 %v561
  %v2780 = vunpack.c.l.b16 %v562
  %v2781 = vunpack.c.h.b16 %v562
  %v2782 = vunpack.c.l.b16 %v563
  %v2783 = vunpack.c.h.b16 %v563
  %v2784 = vunpack.c.l.b16 %v564
  %v2785 = vunpack.c.h.b16 %v564
  %v2786 = vunpack.c.l.b16 %v565
  %v2787 = vunpack.c.h.b16 %v565
  %v2788 = vunpack.c.l.b16 %v566
  %v2789 = vunpack.c.h.b16 %v566
  %v2790 = vunpack.c.l.b16 %v567
  %v2791 = vunpack.c.h.b16 %v567
  %v2792 = vunpack.c.l.b16 %v568
  %v2793 = vunpack.c.h.b16 %v568
  %v2794 = vunpack.c.l.b16 %v569
  %v2795 = vunpack.c.h.b16 %v569
  %v2796 = vunpack.c.l.b16 %v570
  %v2797 = vunpack.c.h.b16 %v570
  %v2798 = vunpack.c.l.b16 %v571
  %v2799 = vunpack.c.h.b16 %v571
  %v2800 = vunpack.c.l.b16 %v572
  %v2801 = vunpack.c.h.b16 %v572
  %v2802 = vunpack.c.l.b16 %v573
  %v2803 = vunpack.c.h.b16 %v573
  %v2804 = vunpack.c.l.b16 %v574
  %v2805 = vunpack.c.h.b16 %v574
  %v2806 = vunpack.c.l.b16 %v575
  %v2807 = vunpack.c.h.b16 %v575
  %v2808 = vunpack.c.l.b16 %v576
  %v2809 = vunpack.c.h.b16 %v576
  %v2810 = vunpack.c.l.b16 %v577
  %v2811 = vunpack.c.h.b16 %v577
  %v2812 = vunpack.c.l.b16 %v578
  %v2813 = vunpack.c.h.b16 %v578
  %v2814 = vunpack.c.l.b16 %v579
  %v2815 = vunpack.c.h.b16 %v579
  %v2816 = vunpack.c.l.b16 %v580
  %v2817 = vunpack.c.h.b16 %v580
  %v2818 = vunpack.c.l.b16 %v581
  %v2819 = vunpack.c.h.b16 %v581
  %v2820 = vunpack.c.l.b16 %v582
  %v2821 = vunpack.c.h.b16 %v582
  %v2822 = vunpack.c.l.b16 %v583
  %v2823 = vunpack.c.h.b16 %v583
  %v2824 = vunpack.c.l.b16 %v584
  %v2825 = vunpack.c.h.b16 %v584
  %v2826 = vunpack.c.l.b16 %v585
  %v2827 = vunpack.c.h.b16 %v585
  %v2828 = vunpack.c.l.b16 %v586
  %v2829 = vunpack.c.h.b16 %v586
  %v2830 = vunpack.c.l.b16 %v587
  %v2831 = vunpack.c.h.b16 %v587
  %v2832 = vunpack.c.l.b16 %v588
  %v2833 = vunpack.c.h.b16 %v588
  %v2834 = vunpack.c.l.b16 %v589
  %v2835 = vunpack.c.h.b16 %v589
  %v2836 = vunpack.c.l.b16 %v590
  %v2837 = vunpack.c.h.b16 %v590
  %v2838 = vunpack.c.l.b16 %v591
  %v2839 = vunpack.c.h.b16 %v591
  %v2840 = vunpack.c.l.b16 %v592
  %v2841 = vunpack.c.h.b16 %v592
  %v2842 = vunpack.c.l.b16 %v593
  %v2843 = vunpack.c.h.b16 %v593
  %v2844 = vunpack.c.l.b16 %v594
  %v2845 = vunpack.c.h.b16 %v594
  %v2846 = vunpack.c.l.b16 %v595
  %v2847 = vunpack.c.h.b16 %v595
  %v2848 = vunpack.c.l.b16 %v596
  %v2849 = vunpack.c.h.b16 %v596
  %v2850 = vunpack.c.l.b16 %v597
  %v2851 = vunpack.c.h.b16 %v597
  %v2852 = vunpack.c.l.b16 %v598
  %v2853 = vunpack.c.h.b16 %v598
  %v2854 = vunpack.c.l.b16 %v599
  %v2855 = vunpack.c.h.b16 %v599
  %v2856 = vunpack.c.l.b16 %v600
  %v2857 = vunpack.c.h.b16 %v600
  %v2858 = vunpack.c.l.b16 %v601
  %v2859 = vunpack.c.h.b16 %v601
  %v2860 = vunpack.c.l.b16 %v602
  %v2861 = vunpack.c.h.b16 %v602
  %v2862 = vunpack.c.l.b16 %v603
  %v2863 = vunpack.c.h.b16 %v603
  %v2864 = vunpack.c.l.b16 %v604
  %v2865 = vunpack.c.h.b16 %v604
  %v2866 = vunpack.c.l.b16 %v605
  %v2867 = vunpack.c.h.b16 %v605
  %v2868 = vunpack.c.l.b16 %v606
  %v2869 = vunpack.c.h.b16 %v606
  %v2870 = vunpack.c.l.b16 %v607
  %v2871 = vunpack.c.h.b16 %v607
  %v2872 = vunpack.c.l.b16 %v608
  %v2873 = vunpack.c.h.b16 %v608
  %v2874 = vunpack.c.l.b16 %v609
  %v2875 = vunpack.c.h.b16 %v609
  %v2876 = vunpack.c.l.b16 %v610
  %v2877 = vunpack.c.h.b16 %v610
  %v2878 = vunpack.c.l.b16 %v611
  %v2879 = vunpack.c.h.b16 %v611
  %v2880 = vunpack.c.l.b16 %v612
  %v2881 = vunpack.c.h.b16 %v612
  %v2882 = vunpack.c.l.b16 %v613
  %v2883 = vunpack.c.h.b16 %v613
  %v2884 = vunpack.c.l.b16 %v614
  %v2885 = vunpack.c.h.b16 %v614
  %v2886 = vunpack.c.l.b16 %v615
  %v2887 = vunpack.c.h.b16 %v615
  %v2888 = vunpack.c.l.b16 %v616
  %v2889 = vunpack.c.h.b16 %v616
  %v2890 = vunpack.c.l.b16 %v617
  %v2891 = vunpack.c.h.b16 %v617
  %v2892 = vunpack.c.l.b16 %v618
  %v2893 = vunpack.c.h.b16 %v618
  %v2894 = vunpack.c.l.b16 %v619
  %v2895 = vunpack.c.h.b16 %v619
  %v2896 = vunpack.c.l.b16 %v620
  %v2897 = vunpack.c.h.b16 %v620
  %v2898 = vunpack.c.l.b16 %v621
  %v2899 = vunpack.c.h.b16 %v621
  %v2900 = vunpack.c.l.b16 %v622
  %v2901 = vunpack.c.h.b16 %v622
  %v2902 = vunpack.c.l.b16 %v623
  %v2903 = vunpack.c.h.b16 %v623
  %v2904 = vunpack.c.l.b16 %v624
  %v2905 = vunpack.c.h.b16 %v624
  %v2906 = vunpack.c.l.b16 %v625
  %v2907 = vunpack.c.h.b16 %v625
  %v2908 = vunpack.c.l.b16 %v626
  %v2909 = vunpack.c.h.b16 %v626
  %v2910 = vunpack.c.l.b16 %v627
  %v2911 = vunpack.c.h.b16 %v627
  %v2912 = vunpack.c.l.b16 %v628
  %v2913 = vunpack.c.h.b16 %v628
  %v2914 = vunpack.c.l.b16 %v629
  %v2915 = vunpack.c.h.b16 %v629
  %v2916 = vunpack.c.l.b16 %v630
  %v2917 = vunpack.c.h.b16 %v630
  %v2918 = vunpack.c.l.b16 %v631
  %v2919 = vunpack.c.h.b16 %v631
  %v2920 = vunpack.c.l.b16 %v632
  %v2921 = vunpack.c.h.b16 %v632
  %v2922 = vunpack.c.l.b16 %v633
  %v2923 = vunpack.c.h.b16 %v633
  %v2924 = vunpack.c.l.b16 %v634
  %v2925 = vunpack.c.h.b16 %v634
  %v2926 = vunpack.c.l.b16 %v635
  %v2927 = vunpack.c.h.b16 %v635
  %v2928 = vunpack.c.l.b16 %v636
  %v2929 = vunpack.c.h.b16 %v636
  %v2930 = vunpack.c.l.b16 %v637
  %v2931 = vunpack.c.h.b16 %v637
  %v2932 = vunpack.c.l.b16 %v638
  %v2933 = vunpack.c.h.b16 %v638
  %v2934 = vunpack.c.l.b16 %v639
  %v2935 = vunpack.c.h.b16 %v639
  %v2936 = vunpack.c.l.b16 %v640
  %v2937 = vunpack.c.h.b16 %v640
  %v2938 = vunpack.c.l.b16 %v641
  %v2939 = vunpack.c.h.b16 %v641
  %v2940 = vunpack.c.l.b16 %v642
  %v2941 = vunpack.c.h.b16 %v642
  %v2942 = vunpack.c.l.b16 %v643
  %v2943 = vunpack.c.h.b16 %v643
  %v2944 = vunpack.c.l.b16 %v644
  %v2945 = vunpack.c.h.b16 %v644
  %v2946 = vunpack.c.l.b16 %v645
  %v2947 = vunpack.c.h.b16 %v645
  %v2948 = vunpack.c.l.b16 %v646
  %v2949 = vunpack.c.h.b16 %v646
  %v2950 = vunpack.c.l.b16 %v647
  %v2951 = vunpack.c.h.b16 %v647
  %v2952 = vunpack.c.l.b16 %v648
  %v2953 = vunpack.c.h.b16 %v648
  %v2954 = vunpack.c.l.b16 %v649
  %v2955 = vunpack.c.h.b16 %v649
  %v2956 = vunpack.c.l.b16 %v650
  %v2957 = vunpack.c.h.b16 %v650
  %v2958 = vunpack.c.l.b16 %v651
  %v2959 = vunpack.c.h.b16 %v651
  %v2960 = vunpack.c.l.b16 %v652
  %v2961 = vunpack.c.h.b16 %v652
  %v2962 = vunpack.c.l.b16 %v653
  %v2963 = vunpack.c.h.b16 %v653
  %v2964 = vunpack.c.l.b16 %v654
  %v2965 = vunpack.c.h.b16 %v654
  %v2966 = vunpack.c.l.b16 %v655
  %v2967 = vunpack.c.h.b16 %v655
  %v2968 = vunpack.c.l.b16 %v656
  %v2969 = vunpack.c.h.b16 %v656
  %v2970 = vunpack.c.l.b16 %v657
  %v2971 = vunpack.c.h.b16 %v657
  %v2972 = vunpack.c.l.b16 %v658
  %v2973 = vunpack.c.h.b16 %v658
  %v2974 = vunpack.c.l.b16 %v659
  %v2975 = vunpack.c.h.b16 %v659
  %v2976 = vunpack.c.l.b16 %v660
  %v2977 = vunpack.c.h.b16 %v660
  %v2978 = vunpack.c.l.b16 %v661
  %v2979 = vunpack.c.h.b16 %v661
  %v2980 = vunpack.c.l.b16 %v662
  %v2981 = vunpack.c.h.b16 %v662
  %v2982 = vunpack.c.l.b16 %v663
  %v2983 = vunpack.c.h.b16 %v663
  %v2984 = vunpack.c.l.b16 %v664
  %v2985 = vunpack.c.h.b16 %v664
  %v2986 = vunpack.c.l.b16 %v665
  %v2987 = vunpack.c.h.b16 %v665
  %v2988 = vunpack.c.l.b16 %v666
  %v2989 = vunpack.c.h.b16 %v666
  %v2990 = vunpack.c.l.b16 %v667
  %v2991 = vunpack.c.h.b16 %v667
  %v2992 = vunpack.c.l.b16 %v668
  %v2993 = vunpack.c.h.b16 %v668
  %v2994 = vunpack.c.l.b16 %v669
  %v2995 = vunpack.c.h.b16 %v669
  %v2996 = vunpack.c.l.b16 %v670
  %v2997 = vunpack.c.h.b16 %v670
  %v2998 = vunpack.c.l.b16 %v671
  %v2999 = vunpack.c.h.b16 %v671
  %v3000 = vunpack.c.l.b16 %v672
  %v3001 = vunpack.c.h.b16 %v672
  %v3002 = vunpack.c.l.b16 %v673
  %v3003 = vunpack.c.h.b16 %v673
  %v3004 = vunpack.c.l.b16 %v674
  %v3005 = vunpack.c.h.b16 %v674
  %v3006 = vunpack.c.l.b16 %v675
  %v3007 = vunpack.c.h.b16 %v675
  %v3008 = vunpack.c.l.b16 %v676
  %v3009 = vunpack.c.h.b16 %v676
  %v3010 = vunpack.c.l.b16 %v677
  %v3011 = vunpack.c.h.b16 %v677
  %v3012 = vunpack.c.l.b16 %v678
  %v3013 = vunpack.c.h.b16 %v678
  %v3014 = vunpack.c.l.b16 %v679
  %v3015 = vunpack.c.h.b16 %v679
  %v3016 = vunpack.c.l.b16 %v680
  %v3017 = vunpack.c.h.b16 %v680
  %v3018 = vunpack.c.l.b16 %v681
  %v3019 = vunpack.c.h.b16 %v681
  %v3020 = vunpack.c.l.b16 %v682
  %v3021 = vunpack.c.h.b16 %v682
  %v3022 = vunpack.c.l.b16 %v683
  %v3023 = vunpack.c.h.b16 %v683
  %v3024 = vunpack.c.l.b16 %v684
  %v3025 = vunpack.c.h.b16 %v684
  %v3026 = vunpack.c.l.b16 %v685
  %v3027 = vunpack.c.h.b16 %v685
  %v3028 = vunpack.c.l.b16 %v686
  %v3029 = vunpack.c.h.b16 %v686
  %v3030 = vunpack.c.l.b16 %v687
  %v3031 = vunpack.c.h.b16 %v687
  %v3032 = vunpack.c.l.b16 %v688
  %v3033 = vunpack.c.h.b16 %v688
  %v3034 = vunpack.c.l.b16 %v689
  %v3035 = vunpack.c.h.b16 %v689
  %v3036 = vunpack.c.l.b16 %v690
  %v3037 = vunpack.c.h.b16 %v690
  %v3038 = vunpack.c.l.b16 %v691
  %v3039 = vunpack.c.h.b16 %v691
  %v3040 = vunpack.c.l.b16 %v692
  %v3041 = vunpack.c.h.b16 %v692
  %v3042 = vunpack.c.l.b16 %v693
  %v3043 = vunpack.c.h.b16 %v693
  %v3044 = vunpack.c.l.b16 %v694
  %v3045 = vunpack.c.h.b16 %v694
  %v3046 = vunpack.c.l.b16 %v695
  %v3047 = vunpack.c.h.b16 %v695
  %v3048 = vunpack.c.l.b16 %v696
  %v3049 = vunpack.c.h.b16 %v696
  %v3050 = vunpack.c.l.b16 %v697
  %v3051 = vunpack.c.h.b16 %v697
  %v3052 = vunpack.c.l.b16 %v698
  %v3053 = vunpack.c.h.b16 %v698
  %v3054 = vunpack.c.l.b16 %v699
  %v3055 = vunpack.c.h.b16 %v699
  %v3056 = vunpack.c.l.b16 %v700
  %v3057 = vunpack.c.h.b16 %v700
  %v3058 = vunpack.c.l.b16 %v701
  %v3059 = vunpack.c.h.b16 %v701
  %v3060 = vunpack.c.l.b16 %v702
  %v3061 = vunpack.c.h.b16 %v702
  %v3062 = vunpack.c.l.b16 %v703
  %v3063 = vunpack.c.h.b16 %v703
  %v3064 = vunpack.c.l.b16 %v704
  %v3065 = vunpack.c.h.b16 %v704
  %v3066 = vunpack.c.l.b16 %v705
  %v3067 = vunpack.c.h.b16 %v705
  %v3068 = vunpack.c.l.b16 %v706
  %v3069 = vunpack.c.h.b16 %v706
  %v3070 = vunpack.c.l.b16 %v707
  %v3071 = vunpack.c.h.b16 %v707
  %v3072 = vunpack.c.l.b16 %v708
  %v3073 = vunpack.c.h.b16 %v708
  %v3074 = vunpack.c.l.b16 %v709
  %v3075 = vunpack.c.h.b16 %v709
  %v3076 = vunpack.c.l.b16 %v710
  %v3077 = vunpack.c.h.b16 %v710
  %v3078 = vunpack.c.l.b16 %v711
  %v3079 = vunpack.c.h.b16 %v711
  %v3080 = vunpack.c.l.b16 %v712
  %v3081 = vunpack.c.h.b16 %v712
  %v3082 = vunpack.c.l.b16 %v713
  %v3083 = vunpack.c.h.b16 %v713
  %v3084 = vunpack.c.l.b16 %v714
  %v3085 = vunpack.c.h.b16 %v714
  %v3086 = vunpack.c.l.b16 %v715
  %v3087 = vunpack.c.h.b16 %v715
  %v3088 = vunpack.c.l.b16 %v716
  %v3089 = vunpack.c.h.b16 %v716
  %v3090 = vunpack.c.l.b16 %v717
  %v3091 = vunpack.c.h.b16 %v717
  %v3092 = vunpack.c.l.b16 %v718
  %v3093 = vunpack.c.h.b16 %v718
  %v3094 = vunpack.c.l.b16 %v719
  %v3095 = vunpack.c.h.b16 %v719
  %v3096 = vunpack.c.l.b16 %v720
  %v3097 = vunpack.c.h.b16 %v720
  %v3098 = vunpack.c.l.b16 %v721
  %v3099 = vunpack.c.h.b16 %v721
  %v3100 = vunpack.c.l.b16 %v722
  %v3101 = vunpack.c.h.b16 %v722
  %v3102 = vunpack.c.l.b16 %v723
  %v3103 = vunpack.c.h.b16 %v723
  %v3104 = vunpack.c.l.b16 %v724
  %v3105 = vunpack.c.h.b16 %v724
  %v3106 = vunpack.c.l.b16 %v725
  %v3107 = vunpack.c.h.b16 %v725
  %v3108 = vunpack.c.l.b16 %v726
  %v3109 = vunpack.c.h.b16 %v726
  %v3110 = vunpack.c.l.b16 %v727
  %v3111 = vunpack.c.h.b16 %v727
  %v3112 = vunpack.c.l.b16 %v728
  %v3113 = vunpack.c.h.b16 %v728
  %v3114 = vunpack.c.l.b16 %v729
  %v3115 = vunpack.c.h.b16 %v729
  %v3116 = vunpack.c.l.b16 %v730
  %v3117 = vunpack.c.h.b16 %v730
  %v3118 = vunpack.c.l.b16 %v731
  %v3119 = vunpack.c.h.b16 %v731
  %v3120 = vunpack.c.l.b16 %v732
  %v3121 = vunpack.c.h.b16 %v732
  %v3122 = vunpack.c.l.b16 %v733
  %v3123 = vunpack.c.h.b16 %v733
  %v3124 = vunpack.c.l.b16 %v734
  %v3125 = vunpack.c.h.b16 %v734
  %v3126 = vunpack.c.l.b16 %v735
  %v3127 = vunpack.c.h.b16 %v735
  %v3128 = vunpack.c.l.b16 %v736
  %v3129 = vunpack.c.h.b16 %v736
  %v3130 = vunpack.c.l.b16 %v737
  %v3131 = vunpack.c.h.b16 %v737
  %v3132 = vunpack.c.l.b16 %v738
  %v3133 = vunpack.c.h.b16 %v738
  %v3134 = vunpack.c.l.b16 %v739
  %v3135 = vunpack.c.h.b16 %v739
  %v3136 = vunpack.c.l.b16 %v740
  %v3137 = vunpack.c.h.b16 %v740
  %v3138 = vunpack.c.l.b16 %v741
  %v3139 = vunpack.c.h.b16 %v741
  %v3140 = vunpack.c.l.b16 %v742
  %v3141 = vunpack.c.h.b16 %v742
  %v3142 = vunpack.c.l.b16 %v743
  %v3143 = vunpack.c.h.b16 %v743
  %v3144 = vunpack.c.l.b16 %v744
  %v3145 = vunpack.c.h.b16 %v744
  %v3146 = vunpack.c.l.b16 %v745
  %v3147 = vunpack.c.h.b16 %v745
  %v3148 = vunpack.c.l.b16 %v746
  %v3149 = vunpack.c.h.b16 %v746
  %v3150 = vunpack.c.l.b16 %v747
  %v3151 = vunpack.c.h.b16 %v747
  %v3152 = vunpack.c.l.b16 %v748
  %v3153 = vunpack.c.h.b16 %v748
  %v3154 = vunpack.c.l.b16 %v749
  %v3155 = vunpack.c.h.b16 %v749
  %v3156 = vunpack.c.l.b16 %v750
  %v3157 = vunpack.c.h.b16 %v750
  %v3158 = vunpack.c.l.b16 %v751
  %v3159 = vunpack.c.h.b16 %v751
  %v3160 = vunpack.c.l.b16 %v752
  %v3161 = vunpack.c.h.b16 %v752
  %v3162 = vunpack.c.l.b16 %v753
  %v3163 = vunpack.c.h.b16 %v753
  %v3164 = vunpack.c.l.b16 %v754
  %v3165 = vunpack.c.h.b16 %v754
  %v3166 = vunpack.c.l.b16 %v755
  %v3167 = vunpack.c.h.b16 %v755
  %v3168 = vunpack.c.l.b16 %v756
  %v3169 = vunpack.c.h.b16 %v756
  %v3170 = vunpack.c.l.b16 %v757
  %v3171 = vunpack.c.h.b16 %v757
  %v3172 = vunpack.c.l.b16 %v758
  %v3173 = vunpack.c.h.b16 %v758
  %v3174 = vunpack.c.l.b16 %v759
  %v3175 = vunpack.c.h.b16 %v759
  %v3176 = vunpack.c.l.b16 %v760
  %v3177 = vunpack.c.h.b16 %v760
  %v3178 = vunpack.c.l.b16 %v761
  %v3179 = vunpack.c.h.b16 %v761
  %v3180 = vunpack.c.l.b16 %v762
  %v3181 = vunpack.c.h.b16 %v762
  %v3182 = vunpack.c.l.b16 %v763
  %v3183 = vunpack.c.h.b16 %v763
  %v3184 = vunpack.c.l.b16 %v764
  %v3185 = vunpack.c.h.b16 %v764
  %v3186 = vunpack.c.l.b16 %v765
  %v3187 = vunpack.c.h.b16 %v765
  %v3188 = vunpack.c.l.b16 %v766
  %v3189 = vunpack.c.h.b16 %v766
  %v3190 = vunpack.c.l.b16 %v767
  %v3191 = vunpack.c.h.b16 %v767
  %v3192 = vunpack.c.l.b16 %v768
  %v3193 = vunpack.c.h.b16 %v768
  %v3194 = vunpack.c.l.b16 %v769
  %v3195 = vunpack.c.h.b16 %v769
  %v3196 = vunpack.c.l.b16 %v770
  %v3197 = vunpack.c.h.b16 %v770
  %v3198 = vunpack.c.l.b16 %v771
  %v3199 = vunpack.c.h.b16 %v771
  %v3200 = vunpack.c.l.b16 %v772
  %v3201 = vunpack.c.h.b16 %v772
  %v3202 = vunpack.c.l.b16 %v773
  %v3203 = vunpack.c.h.b16 %v773
  %v3204 = vunpack.c.l.b16 %v774
  %v3205 = vunpack.c.h.b16 %v774
  %v3206 = vunpack.c.l.b16 %v775
  %v3207 = vunpack.c.h.b16 %v775
  %v3208 = vunpack.c.l.b16 %v776
  %v3209 = vunpack.c.h.b16 %v776
  %v3210 = vunpack.c.l.b16 %v777
  %v3211 = vunpack.c.h.b16 %v777
  %v3212 = vunpack.c.l.b16 %v778
  %v3213 = vunpack.c.h.b16 %v778
  %v3214 = vunpack.c.l.b16 %v779
  %v3215 = vunpack.c.h.b16 %v779
  %v3216 = vunpack.c.l.b16 %v780
  %v3217 = vunpack.c.h.b16 %v780
  %v3218 = vunpack.c.l.b16 %v781
  %v3219 = vunpack.c.h.b16 %v781
  %v3220 = vunpack.c.l.b16 %v782
  %v3221 = vunpack.c.h.b16 %v782
  %v3222 = vunpack.c.l.b16 %v783
  %v3223 = vunpack.c.h.b16 %v783
  %v3224 = vunpack.c.l.b16 %v784
  %v3225 = vunpack.c.h.b16 %v784
  %v3226 = vunpack.c.l.b16 %v785
  %v3227 = vunpack.c.h.b16 %v785
  %v3228 = vunpack.c.l.b16 %v786
  %v3229 = vunpack.c.h.b16 %v786
  %v3230 = vunpack.c.l.b16 %v787
  %v3231 = vunpack.c.h.b16 %v787
  %v3232 = vunpack.c.l.b16 %v788
  %v3233 = vunpack.c.h.b16 %v788
  %v3234 = vunpack.c.l.b16 %v789
  %v3235 = vunpack.c.h.b16 %v789
  %v3236 = vunpack.c.l.b16 %v790
  %v3237 = vunpack.c.h.b16 %v790
  %v3238 = vunpack.c.l.b16 %v791
  %v3239 = vunpack.c.h.b16 %v791
  %v3240 = vunpack.c.l.b16 %v792
  %v3241 = vunpack.c.h.b16 %v792
  %v3242 = vunpack.c.l.b16 %v793
  %v3243 = vunpack.c.h.b16 %v793
  %v3244 = vunpack.c.l.b16 %v794
  %v3245 = vunpack.c.h.b16 %v794
  %v3246 = vunpack.c.l.b16 %v795
  %v3247 = vunpack.c.h.b16 %v795
  %v3248 = vunpack.c.l.b16 %v796
  %v3249 = vunpack.c.h.b16 %v796
  %v3250 = vunpack.c.l.b16 %v797
  %v3251 = vunpack.c.h.b16 %v797
  %v3252 = vunpack.c.l.b16 %v798
  %v3253 = vunpack.c.h.b16 %v798
  %v3254 = vunpack.c.l.b16 %v799
  %v3255 = vunpack.c.h.b16 %v799
  %v3256 = vunpack.c.l.b16 %v800
  %v3257 = vunpack.c.h.b16 %v800
  %v3258 = vunpack.c.l.b16 %v801
  %v3259 = vunpack.c.h.b16 %v801
  %v3260 = vunpack.c.l.b16 %v802
  %v3261 = vunpack.c.h.b16 %v802
  %v3262 = vunpack.c.l.b16 %v803
  %v3263 = vunpack.c.h.b16 %v803
  %v3264 = vunpack.c.l.b16 %v804
  %v3265 = vunpack.c.h.b16 %v804
  %v3266 = vunpack.c.l.b16 %v805
  %v3267 = vunpack.c.h.b16 %v805
  %v3268 = vunpack.c.l.b16 %v806
  %v3269 = vunpack.c.h.b16 %v806
  %v3270 = vunpack.c.l.b16 %v807
  %v3271 = vunpack.c.h.b16 %v807
  %v3272 = vunpack.c.l.b16 %v808
  %v3273 = vunpack.c.h.b16 %v808
  %v3274 = vunpack.c.l.b16 %v809
  %v3275 = vunpack.c.h.b16 %v809
  %v3276 = vunpack.c.l.b16 %v810
  %v3277 = vunpack.c.h.b16 %v810
  %v3278 = vunpack.c.l.b16 %v811
  %v3279 = vunpack.c.h.b16 %v811
  %v3280 = vunpack.c.l.b16 %v812
  %v3281 = vunpack.c.h.b16 %v812
  %v3282 = vunpack.c.l.b16 %v813
  %v3283 = vunpack.c.h.b16 %v813
  %v3284 = vunpack.c.l.b16 %v814
  %v3285 = vunpack.c.h.b16 %v814
  %v3286 = vunpack.c.l.b16 %v815
  %v3287 = vunpack.c.h.b16 %v815
  %v3288 = vunpack.c.l.b16 %v816
  %v3289 = vunpack.c.h.b16 %v816
  %v3290 = vunpack.c.l.b16 %v817
  %v3291 = vunpack.c.h.b16 %v817
  %v3292 = vunpack.c.l.b16 %v818
  %v3293 = vunpack.c.h.b16 %v818
  %v3294 = vunpack.c.l.b16 %v819
  %v3295 = vunpack.c.h.b16 %v819
  %v3296 = vunpack.c.l.b16 %v820
  %v3297 = vunpack.c.h.b16 %v820
  %v3298 = vunpack.c.l.b16 %v821
  %v3299 = vunpack.c.h.b16 %v821
  %v3300 = vunpack.c.l.b16 %v822
  %v3301 = vunpack.c.h.b16 %v822
  %v3302 = vunpack.c.l.b16 %v823
  %v3303 = vunpack.c.h.b16 %v823
  %v3304 = vunpack.c.l.b16 %v824
  %v3305 = vunpack.c.h.b16 %v824
  %v3306 = vunpack.c.l.b16 %v825
  %v3307 = vunpack.c.h.b16 %v825
  %v3308 = vunpack.c.l.b16 %v826
  %v3309 = vunpack.c.h.b16 %v826
  %v3310 = vunpack.c.l.b16 %v827
  %v3311 = vunpack.c.h.b16 %v827
  %v3312 = vunpack.c.l.b16 %v828
  %v3313 = vunpack.c.h.b16 %v828
  %v3314 = vunpack.c.l.b16 %v829
  %v3315 = vunpack.c.h.b16 %v829
  %v3316 = vunpack.c.l.b16 %v830
  %v3317 = vunpack.c.h.b16 %v830
  %v3318 = vunpack.c.l.b16 %v831
  %v3319 = vunpack.c.h.b16 %v831
  %v3320 = vunpack.c.l.b16 %v832
  %v3321 = vunpack.c.h.b16 %v832
  %v3322 = vunpack.c.l.b16 %v833
  %v3323 = vunpack.c.h.b16 %v833
  %v3324 = vunpack.c.l.b16 %v834
  %v3325 = vunpack.c.h.b16 %v834
  %v3326 = vunpack.c.l.b16 %v835
  %v3327 = vunpack.c.h.b16 %v835
  %v3328 = vunpack.c.l.b16 %v836
  %v3329 = vunpack.c.h.b16 %v836
  %v3330 = vunpack.c.l.b16 %v837
  %v3331 = vunpack.c.h.b16 %v837
  %v3332 = vunpack.c.l.b16 %v838
  %v3333 = vunpack.c.h.b16 %v838
  %v3334 = vunpack.c.l.b16 %v839
  %v3335 = vunpack.c.h.b16 %v839
  %v3336 = vunpack.c.l.b16 %v840
  %v3337 = vunpack.c.h.b16 %v840
  %v3338 = vunpack.c.l.b16 %v841
  %v3339 = vunpack.c.h.b16 %v841
  %v3340 = vunpack.c.l.b16 %v842
  %v3341 = vunpack.c.h.b16 %v842
  %v3342 = vpack.c.b16 %v1778, %v1774
  %v3343 = vpack.c.b16 %v1779, %v1775
  %v3344 = vpack.c.b16 %v1780, %v1776
  %v3345 = vpack.c.b16 %v1781, %v1777
  %v3346 = vpack.c.b16 %v1786, %v1782
  %v3347 = vpack.c.b16 %v1787, %v1783
  %v3348 = vpack.c.b16 %v1788, %v1784
  %v3349 = vpack.c.b16 %v1789, %v1785
  %v3350 = vpack.c.b16 %v1794, %v1790
  %v3351 = vpack.c.b16 %v1795, %v1791
  %v3352 = vpack.c.b16 %v1796, %v1792
  %v3353 = vpack.c.b16 %v1797, %v1793
  %v3354 = vpack.c.b16 %v1802, %v1798
  %v3355 = vpack.c.b16 %v1803, %v1799
  %v3356 = vpack.c.b16 %v1804, %v1800
  %v3357 = vpack.c.b16 %v1805, %v1801
  %v3358 = vpack.c.b16 %v1810, %v1806
  %v3359 = vpack.c.b16 %v1811, %v1807
  %v3360 = vpack.c.b16 %v1812, %v1808
  %v3361 = vpack.c.b16 %v1813, %v1809
  %v3362 = vpack.c.b16 %v1818, %v1814
  %v3363 = vpack.c.b16 %v1819, %v1815
  %v3364 = vpack.c.b16 %v1820, %v1816
  %v3365 = vpack.c.b16 %v1821, %v1817
  %v3366 = vpack.c.b16 %v1826, %v1822
  %v3367 = vpack.c.b16 %v1827, %v1823
  %v3368 = vpack.c.b16 %v1828, %v1824
  %v3369 = vpack.c.b16 %v1829, %v1825
  %v3370 = vpack.c.b16 %v1834, %v1830
  %v3371 = vpack.c.b16 %v1835, %v1831
  %v3372 = vpack.c.b16 %v1836, %v1832
  %v3373 = vpack.c.b16 %v1837, %v1833
  %v3374 = vpack.c.b16 %v1842, %v1838
  %v3375 = vpack.c.b16 %v1843, %v1839
  %v3376 = vpack.c.b16 %v1844, %v1840
  %v3377 = vpack.c.b16 %v1845, %v1841
  %v3378 = vpack.c.b16 %v1850, %v1846
  %v3379 = vpack.c.b16 %v1851, %v1847
  %v3380 = vpack.c.b16 %v1852, %v1848
  %v3381 = vpack.c.b16 %v1853, %v1849
  %v3382 = vpack.c.b16 %v1858, %v1854
  %v3383 = vpack.c.b16 %v1859, %v1855
  %v3384 = vpack.c.b16 %v1860, %v1856
  %v3385 = vpack.c.b16 %v1861, %v1857
  %v3386 = vpack.c.b16 %v1866, %v1862
  %v3387 = vpack.c.b16 %v1867, %v1863
  %v3388 = vpack.c.b16 %v1868, %v1864
  %v3389 = vpack.c.b16 %v1869, %v1865
  %v3390 = vpack.c.b16 %v1874, %v1870
  %v3391 = vpack.c.b16 %v1875, %v1871
  %v3392 = vpack.c.b16 %v1876, %v1872
  %v3393 = vpack.c.b16 %v1877, %v1873
  %v3394 = vpack.c.b16 %v1882, %v1878
  %v3395 = vpack.c.b16 %v1883, %v1879
  %v3396 = vpack.c.b16 %v1884, %v1880
  %v3397 = vpack.c.b16 %v1885, %v1881
  %v3398 = vpack.c.b16 %v1890, %v1886
  %v3399 = vpack.c.b16 %v1891, %v1887
  %v3400 = vpack.c.b16 %v1892, %v1888
  %v3401 = vpack.c.b16 %v1893, %v1889
  %v3402 = vpack.c.b16 %v1898, %v1894
  %v3403 = vpack.c.b16 %v1899, %v1895
  %v3404 = vpack.c.b16 %v1900, %v1896
  %v3405 = vpack.c.b16 %v1901, %v1897
  %v3406 = vpack.c.b16 %v1906, %v1902
  %v3407 = vpack.c.b16 %v1907, %v1903
  %v3408 = vpack.c.b16 %v1908, %v1904
  %v3409 = vpack.c.b16 %v1909, %v1905
  %v3410 = vpack.c.b16 %v1914, %v1910
  %v3411 = vpack.c.b16 %v1915, %v1911
  %v3412 = vpack.c.b16 %v1916, %v1912
  %v3413 = vpack.c.b16 %v1917, %v1913
  %v3414 = vpack.c.b16 %v1922, %v1918
  %v3415 = vpack.c.b16 %v1923, %v1919
  %v3416 = vpack.c.b16 %v1924, %v1920
  %v3417 = vpack.c.b16 %v1925, %v1921
  %v3418 = vpack.c.b16 %v1930, %v1926
  %v3419 = vpack.c.b16 %v1931, %v1927
  %v3420 = vpack.c.b16 %v1932, %v1928
  %v3421 = vpack.c.b16 %v1933, %v1929
  %v3422 = vpack.c.b16 %v1938, %v1934
  %v3423 = vpack.c.b16 %v1939, %v1935
  %v3424 = vpack.c.b16 %v1940, %v1936
  %v3425 = vpack.c.b16 %v1941, %v1937
  %v3426 = vpack.c.b16 %v1946, %v1942
  %v3427 = vpack.c.b16 %v1947, %v1943
  %v3428 = vpack.c.b16 %v1948, %v1944
  %v3429 = vpack.c.b16 %v1949, %v1945
  %v3430 = vpack.c.b16 %v1954, %v1950
  %v3431 = vpack.c.b16 %v1955, %v1951
  %v3432 = vpack.c.b16 %v1956, %v1952
  %v3433 = vpack.c.b16 %v1957, %v1953
  %v3434 = vpack.c.b16 %v1962, %v1958
  %v3435 = vpack.c.b16 %v1963, %v1959
  %v3436 = vpack.c.b16 %v1964, %v1960
  %v3437 = vpack.c.b16 %v1965, %v1961
  %v3438 = vpack.c.b16 %v1970, %v1966
  %v3439 = vpack.c.b16 %v1971, %v1967
  %v3440 = vpack.c.b16 %v1972, %v1968
  %v3441 = vpack.c.b16 %v1973, %v1969
  %v3442 = vpack.c.b16 %v1978, %v1974
  %v3443 = vpack.c.b16 %v1979, %v1975
  %v3444 = vpack.c.b16 %v1980, %v1976
  %v3445 = vpack.c.b16 %v1981, %v1977
  %v3446 = vpack.c.b16 %v1986, %v1982
  %v3447 = vpack.c.b16 %v1987, %v1983
  %v3448 = vpack.c.b16 %v1988, %v1984
  %v3449 = vpack.c.b16 %v1989, %v1985
  %v3450 = vpack.c.b16 %v1994, %v1990
  %v3451 = vpack.c.b16 %v1995, %v1991
  %v3452 = vpack.c.b16 %v1996, %v1992
  %v3453 = vpack.c.b16 %v1997, %v1993
  %v3454 = vpack.c.b16 %v2002, %v1998
  %v3455 = vpack.c.b16 %v2003, %v1999
  %v3456 = vpack.c.b16 %v2004, %v2000
  %v3457 = vpack.c.b16 %v2005, %v2001
  %v3458 = vpack.c.b16 %v2010, %v2006
  %v3459 = vpack.c.b16 %v2011, %v2007
  %v3460 = vpack.c.b16 %v2012, %v2008
  %v3461 = vpack.c.b16 %v2013, %v2009
  %v3462 = vpack.c.b16 %v2018, %v2014
  %v3463 = vpack.c.b16 %v2019, %v2015
  %v3464 = vpack.c.b16 %v2020, %v2016
  %v3465 = vpack.c.b16 %v2021, %v2017
  %v3466 = vpack.c.b16 %v2026, %v2022
  %v3467 = vpack.c.b16 %v2027, %v2023
  %v3468 = vpack.c.b16 %v2028, %v2024
  %v3469 = vpack.c.b16 %v2029, %v2025
  %v3470 = vpack.c.b16 %v2034, %v2030
  %v3471 = vpack.c.b16 %v2035, %v2031
  %v3472 = vpack.c.b16 %v2036, %v2032
  %v3473 = vpack.c.b16 %v2037, %v2033
  %v3474 = vpack.c.b16 %v2042, %v2038
  %v3475 = vpack.c.b16 %v2043, %v2039
  %v3476 = vpack.c.b16 %v2044, %v2040
  %v3477 = vpack.c.b16 %v2045, %v2041
  %v3478 = vpack.c.b16 %v2050, %v2046
  %v3479 = vpack.c.b16 %v2051, %v2047
  %v3480 = vpack.c.b16 %v2052, %v2048
  %v3481 = vpack.c.b16 %v2053, %v2049
  %v3482 = vpack.c.b16 %v2058, %v2054
  %v3483 = vpack.c.b16 %v2059, %v2055
  %v3484 = vpack.c.b16 %v2060, %v2056
  %v3485 = vpack.c.b16 %v2061, %v2057
  %v3486 = vpack.c.b16 %v2066, %v2062
  %v3487 = vpack.c.b16 %v2067, %v2063
  %v3488 = vpack.c.b16 %v2068, %v2064
  %v3489 = vpack.c.b16 %v2069, %v2065
  %v3490 = vpack.c.b16 %v2074, %v2070
  %v3491 = vpack.c.b16 %v2075, %v2071
  %v3492 = vpack.c.b16 %v2076, %v2072
  %v3493 = vpack.c.b16 %v2077, %v2073
  %v3494 = vpack.c.b16 %v2082, %v2078
  %v3495 = vpack.c.b16 %v2083, %v2079
  %v3496 = vpack.c.b16 %v2084, %v2080
  %v3497 = vpack.c.b16 %v2085, %v2081
  %v3498 = vpack.c.b16 %v2090, %v2086
  %v3499 = vpack.c.b16 %v2091, %v2087
  %v3500 = vpack.c.b16 %v2092, %v2088
  %v3501 = vpack.c.b16 %v2093, %v2089
  %v3502 = vpack.c.b16 %v2098, %v2094
  %v3503 = vpack.c.b16 %v2099, %v2095
  %v3504 = vpack.c.b16 %v2100, %v2096
  %v3505 = vpack.c.b16 %v2101, %v2097
  %v3506 = vpack.c.b16 %v2106, %v2102
  %v3507 = vpack.c.b16 %v2107, %v2103
  %v3508 = vpack.c.b16 %v2108, %v2104
  %v3509 = vpack.c.b16 %v2109, %v2105
  %v3510 = vpack.c.b16 %v2114, %v2110
  %v3511 = vpack.c.b16 %v2115, %v2111
  %v3512 = vpack.c.b16 %v2116, %v2112
  %v3513 = vpack.c.b16 %v2117, %v2113
  %v3514 = vpack.c.b16 %v2122, %v2118
  %v3515 = vpack.c.b16 %v2123, %v2119
  %v3516 = vpack.c.b16 %v2124, %v2120
  %v3517 = vpack.c.b16 %v2125, %v2121
  %v3518 = vpack.c.b16 %v2130, %v2126
  %v3519 = vpack.c.b16 %v2131, %v2127
  %v3520 = vpack.c.b16 %v2132, %v2128
  %v3521 = vpack.c.b16 %v2133, %v2129
  %v3522 = vpack.c.b16 %v2138, %v2134
  %v3523 = vpack.c.b16 %v2139, %v2135
  %v3524 = vpack.c.b16 %v2140, %v2136
  %v3525 = vpack.c.b16 %v2141, %v2137
  %v3526 = vpack.c.b16 %v2146, %v2142
  %v3527 = vpack.c.b16 %v2147, %v2143
  %v3528 = vpack.c.b16 %v2148, %v2144
  %v3529 = vpack.c.b16 %v2149, %v2145
  %v3530 = vpack.c.b16 %v2154, %v2150
  %v3531 = vpack.c.b16 %v2155, %v2151
  %v3532 = vpack.c.b16 %v2156, %v2152
  %v3533 = vpack.c.b16 %v2157, %v2153
  %v3534 = vpack.c.b16 %v2162, %v2158
  %v3535 = vpack.c.b16 %v2163, %v2159
  %v3536 = vpack.c.b16 %v2164, %v2160
  %v3537 = vpack.c.b16 %v2165, %v2161
  %v3538 = vpack.c.b16 %v2170, %v2166
  %v3539 = vpack.c.b16 %v2171, %v2167
  %v3540 = vpack.c.b16 %v2172, %v2168
  %v3541 = vpack.c.b16 %v2173, %v2169
  %v3542 = vpack.c.b16 %v2178, %v2174
  %v3543 = vpack.c.b16 %v2179, %v2175
  %v3544 = vpack.c.b16 %v2180, %v2176
  %v3545 = vpack.c.b16 %v2181, %v2177
  %v3546 = vpack.c.b16 %v2186, %v2182
  %v3547 = vpack.c.b16 %v2187, %v2183
  %v3548 = vpack.c.b16 %v2188, %v2184
  %v3549 = vpack.c.b16 %v2189, %v2185
  %v3550 = vpack.c.b16 %v2194, %v2190
  %v3551 = vpack.c.b16 %v2195, %v2191
  %v3552 = vpack.c.b16 %v2196, %v2192
  %v3553 = vpack.c.b16 %v2197, %v2193
  %v3554 = vpack.c.b16 %v2202, %v2198
  %v3555 = vpack.c.b16 %v2203, %v2199
  %v3556 = vpack.c.b16 %v2204, %v2200
  %v3557 = vpack.c.b16 %v2205, %v2201
  %v3558 = vpack.c.b16 %v2210, %v2206
  %v3559 = vpack.c.b16 %v2211, %v2207
  %v3560 = vpack.c.b16 %v2212, %v2208
  %v3561 = vpack.c.b16 %v2213, %v2209
  %v3562 = vpack.c.b16 %v2218, %v2214
  %v3563 = vpack.c.b16 %v2219, %v2215
  %v3564 = vpack.c.b16 %v2220, %v2216
  %v3565 = vpack.c.b16 %v2221, %v2217
  %v3566 = vpack.c.b16 %v2226, %v2222
  %v3567 = vpack.c.b16 %v2227, %v2223
  %v3568 = vpack.c.b16 %v2228, %v2224
  %v3569 = vpack.c.b16 %v2229, %v2225
  %v3570 = vpack.c.b16 %v2234, %v2230
  %v3571 = vpack.c.b16 %v2235, %v2231
  %v3572 = vpack.c.b16 %v2236, %v2232
  %v3573 = vpack.c.b16 %v2237, %v2233
  %v3574 = vpack.c.b16 %v2242, %v2238
  %v3575 = vpack.c.b16 %v2243, %v2239
  %v3576 = vpack.c.b16 %v2244, %v2240
  %v3577 = vpack.c.b16 %v2245, %v2241
  %v3578 = vpack.c.b16 %v2250, %v2246
  %v3579 = vpack.c.b16 %v2251, %v2247
  %v3580 = vpack.c.b16 %v2252, %v2248
  %v3581 = vpack.c.b16 %v2253, %v2249
  %v3582 = vpack.c.b16 %v2258, %v2254
  %v3583 = vpack.c.b16 %v2259, %v2255
  %v3584 = vpack.c.b16 %v2260, %v2256
  %v3585 = vpack.c.b16 %v2261, %v2257
  %v3586 = vpack.c.b16 %v2266, %v2262
  %v3587 = vpack.c.b16 %v2267, %v2263
  %v3588 = vpack.c.b16 %v2268, %v2264
  %v3589 = vpack.c.b16 %v2269, %v2265
  %v3590 = vpack.c.b16 %v2274, %v2270
  %v3591 = vpack.c.b16 %v2275, %v2271
  %v3592 = vpack.c.b16 %v2276, %v2272
  %v3593 = vpack.c.b16 %v2277, %v2273
  %v3594 = vpack.c.b16 %v2282, %v2278
  %v3595 = vpack.c.b16 %v2283, %v2279
  %v3596 = vpack.c.b16 %v2284, %v2280
  %v3597 = vpack.c.b16 %v2285, %v2281
  %v3598 = vpack.c.b16 %v2290, %v2286
  %v3599 = vpack.c.b16 %v2291, %v2287
  %v3600 = vpack.c.b16 %v2292, %v2288
  %v3601 = vpack.c.b16 %v2293, %v2289
  %v3602 = vpack.c.b16 %v2298, %v2294
  %v3603 = vpack.c.b16 %v2299, %v2295
  %v3604 = vpack.c.b16 %v2300, %v2296
  %v3605 = vpack.c.b16 %v2301, %v2297
  %v3606 = vpack.c.b16 %v2306, %v2302
  %v3607 = vpack.c.b16 %v2307, %v2303
  %v3608 = vpack.c.b16 %v2308, %v2304
  %v3609 = vpack.c.b16 %v2309, %v2305
  %v3610 = vpack.c.b16 %v2314, %v2310
  %v3611 = vpack.c.b16 %v2315, %v2311
  %v3612 = vpack.c.b16 %v2316, %v2312
  %v3613 = vpack.c.b16 %v2317, %v2313
  %v3614 = vpack.c.b16 %v2322, %v2318
  %v3615 = vpack.c.b16 %v2323, %v2319
  %v3616 = vpack.c.b16 %v2324, %v2320
  %v3617 = vpack.c.b16 %v2325, %v2321
  %v3618 = vpack.c.b16 %v2330, %v2326
  %v3619 = vpack.c.b16 %v2331, %v2327
  %v3620 = vpack.c.b16 %v2332, %v2328
  %v3621 = vpack.c.b16 %v2333, %v2329
  %v3622 = vpack.c.b16 %v2338, %v2334
  %v3623 = vpack.c.b16 %v2339, %v2335
  %v3624 = vpack.c.b16 %v2340, %v2336
  %v3625 = vpack.c.b16 %v2341, %v2337
  %v3626 = vpack.c.b16 %v2346, %v2342
  %v3627 = vpack.c.b16 %v2347, %v2343
  %v3628 = vpack.c.b16 %v2348, %v2344
  %v3629 = vpack.c.b16 %v2349, %v2345
  %v3630 = vpack.c.b16 %v2354, %v2350
  %v3631 = vpack.c.b16 %v2355, %v2351
  %v3632 = vpack.c.b16 %v2356, %v2352
  %v3633 = vpack.c.b16 %v2357, %v2353
  %v3634 = vpack.c.b16 %v2362, %v2358
  %v3635 = vpack.c.b16 %v2363, %v2359
  %v3636 = vpack.c.b16 %v2364, %v2360
  %v3637 = vpack.c.b16 %v2365, %v2361
  %v3638 = vpack.c.b16 %v2370, %v2366
  %v3639 = vpack.c.b16 %v2371, %v2367
  %v3640 = vpack.c.b16 %v2372, %v2368
  %v3641 = vpack.c.b16 %v2373, %v2369
  %v3642 = vpack.c.b16 %v2378, %v2374
  %v3643 = vpack.c.b16 %v2379, %v2375
  %v3644 = vpack.c.b16 %v2380, %v2376
  %v3645 = vpack.c.b16 %v2381, %v2377
  %v3646 = vpack.c.b16 %v2386, %v2382
  %v3647 = vpack.c.b16 %v2387, %v2383
  %v3648 = vpack.c.b16 %v2388, %v2384
  %v3649 = vpack.c.b16 %v2389, %v2385
  %v3650 = vpack.c.b16 %v2394, %v2390
  %v3651 = vpack.c.b16 %v2395, %v2391
  %v3652 = vpack.c.b16 %v2396, %v2392
  %v3653 = vpack.c.b16 %v2397, %v2393
  %v3654 = vpack.c.b16 %v2402, %v2398
  %v3655 = vpack.c.b16 %v2403, %v2399
  %v3656 = vpack.c.b16 %v2404, %v2400
  %v3657 = vpack.c.b16 %v2405, %v2401
  %v3658 = vpack.c.b16 %v2410, %v2406
  %v3659 = vpack.c.b16 %v2411, %v2407
  %v3660 = vpack.c.b16 %v2412, %v2408
  %v3661 = vpack.c.b16 %v2413, %v2409
  %v3662 = vpack.c.b16 %v2418, %v2414
  %v3663 = vpack.c.b16 %v2419, %v2415
  %v3664 = vpack.c.b16 %v2420, %v2416
  %v3665 = vpack.c.b16 %v2421, %v2417
  %v3666 = vpack.c.b16 %v2426, %v2422
  %v3667 = vpack.c.b16 %v2427, %v2423
  %v3668 = vpack.c.b16 %v2428, %v2424
  %v3669 = vpack.c.b16 %v2429, %v2425
  %v3670 = vpack.c.b16 %v2434, %v2430
  %v3671 = vpack.c.b16 %v2435, %v2431
  %v3672 = vpack.c.b16 %v2436, %v2432
  %v3673 = vpack.c.b16 %v2437, %v2433
  %v3674 = vpack.c.b16 %v2442, %v2438
  %v3675 = vpack.c.b16 %v2443, %v2439
  %v3676 = vpack.c.b16 %v2444, %v2440
  %v3677 = vpack.c.b16 %v2445, %v2441
  %v3678 = vpack.c.b16 %v2450, %v2446
  %v3679 = vpack.c.b16 %v2451, %v2447
  %v3680 = vpack.c.b16 %v2452, %v2448
  %v3681 = vpack.c.b16 %v2453, %v2449
  %v3682 = vpack.c.b16 %v2458, %v2454
  %v3683 = vpack.c.b16 %v2459, %v2455
  %v3684 = vpack.c.b16 %v2460, %v2456
  %v3685 = vpack.c.b16 %v2461, %v2457
  %v3686 = vpack.c.b16 %v2466, %v2462
  %v3687 = vpack.c.b16 %v2467, %v2463
  %v3688 = vpack.c.b16 %v2468, %v2464
  %v3689 = vpack.c.b16 %v2469, %v2465
  %v3690 = vpack.c.b16 %v2474, %v2470
  %v3691 = vpack.c.b16 %v2475, %v2471
  %v3692 = vpack.c.b16 %v2476, %v2472
  %v3693 = vpack.c.b16 %v2477, %v2473
  %v3694 = vpack.c.b16 %v2482, %v2478
  %v3695 = vpack.c.b16 %v2483, %v2479
  %v3696 = vpack.c.b16 %v2484, %v2480
  %v3697 = vpack.c.b16 %v2485, %v2481
  %v3698 = vpack.c.b16 %v2490, %v2486
  %v3699 = vpack.c.b16 %v2491, %v2487
  %v3700 = vpack.c.b16 %v2492, %v2488
  %v3701 = vpack.c.b16 %v2493, %v2489
  %v3702 = vpack.c.b16 %v2498, %v2494
  %v3703 = vpack.c.b16 %v2499, %v2495
  %v3704 = vpack.c.b16 %v2500, %v2496
  %v3705 = vpack.c.b16 %v2501, %v2497
  %v3706 = vpack.c.b16 %v2506, %v2502
  %v3707 = vpack.c.b16 %v2507, %v2503
  %v3708 = vpack.c.b16 %v2508, %v2504
  %v3709 = vpack.c.b16 %v2509, %v2505
  %v3710 = vpack.c.b16 %v2514, %v2510
  %v3711 = vpack.c.b16 %v2515, %v2511
  %v3712 = vpack.c.b16 %v2516, %v2512
  %v3713 = vpack.c.b16 %v2517, %v2513
  %v3714 = vpack.c.b16 %v2522, %v2518
  %v3715 = vpack.c.b16 %v2523, %v2519
  %v3716 = vpack.c.b16 %v2524, %v2520
  %v3717 = vpack.c.b16 %v2525, %v2521
  %v3718 = vpack.c.b16 %v2530, %v2526
  %v3719 = vpack.c.b16 %v2531, %v2527
  %v3720 = vpack.c.b16 %v2532, %v2528
  %v3721 = vpack.c.b16 %v2533, %v2529
  %v3722 = vpack.c.b16 %v2538, %v2534
  %v3723 = vpack.c.b16 %v2539, %v2535
  %v3724 = vpack.c.b16 %v2540, %v2536
  %v3725 = vpack.c.b16 %v2541, %v2537
  %v3726 = vpack.c.b16 %v2546, %v2542
  %v3727 = vpack.c.b16 %v2547, %v2543
  %v3728 = vpack.c.b16 %v2548, %v2544
  %v3729 = vpack.c.b16 %v2549, %v2545
  %v3730 = vpack.c.b16 %v2554, %v2550
  %v3731 = vpack.c.b16 %v2555, %v2551
  %v3732 = vpack.c.b16 %v2556, %v2552
  %v3733 = vpack.c.b16 %v2557, %v2553
  %v3734 = vpack.c.b16 %v2562, %v2558
  %v3735 = vpack.c.b16 %v2563, %v2559
  %v3736 = vpack.c.b16 %v2564, %v2560
  %v3737 = vpack.c.b16 %v2565, %v2561
  %v3738 = vpack.c.b16 %v2570, %v2566
  %v3739 = vpack.c.b16 %v2571, %v2567
  %v3740 = vpack.c.b16 %v2572, %v2568
  %v3741 = vpack.c.b16 %v2573, %v2569
  %v3742 = vpack.c.b16 %v2578, %v2574
  %v3743 = vpack.c.b16 %v2579, %v2575
  %v3744 = vpack.c.b16 %v2580, %v2576
  %v3745 = vpack.c.b16 %v2581, %v2577
  %v3746 = vpack.c.b16 %v2586, %v2582
  %v3747 = vpack.c.b16 %v2587, %v2583
  %v3748 = vpack.c.b16 %v2588, %v2584
  %v3749 = vpack.c.b16 %v2589, %v2585
  %v3750 = vpack.c.b16 %v2594, %v2590
  %v3751 = vpack.c.b16 %v2595, %v2591
  %v3752 = vpack.c.b16 %v2596, %v2592
  %v3753 = vpack.c.b16 %v2597, %v2593
  %v3754 = vpack.c.b16 %v2602, %v2598
  %v3755 = vpack.c.b16 %v2603, %v2599
  %v3756 = vpack.c.b16 %v2604, %v2600
  %v3757 = vpack.c.b16 %v2605, %v2601
  %v3758 = vpack.c.b16 %v2610, %v2606
  %v3759 = vpack.c.b16 %v2611, %v2607
  %v3760 = vpack.c.b16 %v2612, %v2608
  %v3761 = vpack.c.b16 %v2613, %v2609
  %v3762 = vpack.c.b16 %v2618, %v2614
  %v3763 = vpack.c.b16 %v2619, %v2615
  %v3764 = vpack.c.b16 %v2620, %v2616
  %v3765 = vpack.c.b16 %v2621, %v2617
  %v3766 = vpack.c.b16 %v2626, %v2622
  %v3767 = vpack.c.b16 %v2627, %v2623
  %v3768 = vpack.c.b16 %v2628, %v2624
  %v3769 = vpack.c.b16 %v2629, %v2625
  %v3770 = vpack.c.b16 %v2634, %v2630
  %v3771 = vpack.c.b16 %v2635, %v2631
  %v3772 = vpack.c.b16 %v2636, %v2632
  %v3773 = vpack.c.b16 %v2637, %v2633
  %v3774 = vpack.c.b16 %v2642, %v2638
  %v3775 = vpack.c.b16 %v2643, %v2639
  %v3776 = vpack.c.b16 %v2644, %v2640
  %v3777 = vpack.c.b16 %v2645, %v2641
  %v3778 = vpack.c.b16 %v2650, %v2646
  %v3779 = vpack.c.b16 %v2651, %v2647
  %v3780 = vpack.c.b16 %v2652, %v2648
  %v3781 = vpack.c.b16 %v2653, %v2649
  %v3782 = vpack.c.b16 %v2658, %v2654
  %v3783 = vpack.c.b16 %v2659, %v2655
  %v3784 = vpack.c.b16 %v2660, %v2656
  %v3785 = vpack.c.b16 %v2661, %v2657
  %v3786 = vpack.c.b16 %v2666, %v2662
  %v3787 = vpack.c.b16 %v2667, %v2663
  %v3788 = vpack.c.b16 %v2668, %v2664
  %v3789 = vpack.c.b16 %v2669, %v2665
  %v3790 = vpack.c.b16 %v2674, %v2670
  %v3791 = vpack.c.b16 %v2675, %v2671
  %v3792 = vpack.c.b16 %v2676, %v2672
  %v3793 = vpack.c.b16 %v2677, %v2673
  %v3794 = vpack.c.b16 %v2682, %v2678
  %v3795 = vpack.c.b16 %v2683, %v2679
  %v3796 = vpack.c.b16 %v2684, %v2680
  %v3797 = vpack.c.b16 %v2685, %v2681
  %v3798 = vpack.c.b16 %v2690, %v2686
  %v3799 = vpack.c.b16 %v2691, %v2687
  %v3800 = vpack.c.b16 %v2692, %v2688
  %v3801 = vpack.c.b16 %v2693, %v2689
  %v3802 = vpack.c.b16 %v2698, %v2694
  %v3803 = vpack.c.b16 %v2699, %v2695
  %v3804 = vpack.c.b16 %v2700, %v2696
  %v3805 = vpack.c.b16 %v2701, %v2697
  %v3806 = vpack.c.b16 %v2706, %v2702
  %v3807 = vpack.c.b16 %v2707, %v2703
  %v3808 = vpack.c.b16 %v2708, %v2704
  %v3809 = vpack.c.b16 %v2709, %v2705
  %v3810 = vpack.c.b16 %v2714, %v2710
  %v3811 = vpack.c.b16 %v2715, %v2711
  %v3812 = vpack.c.b16 %v2716, %v2712
  %v3813 = vpack.c.b16 %v2717, %v2713
  %v3814 = vpack.c.b16 %v2722, %v2718
  %v3815 = vpack.c.b16 %v2723, %v2719
  %v3816 = vpack.c.b16 %v2724, %v2720
  %v3817 = vpack.c.b16 %v2725, %v2721
  %v3818 = vpack.c.b16 %v2730, %v2726
  %v3819 = vpack.c.b16 %v2731, %v2727
  %v3820 = vpack.c.b16 %v2732, %v2728
  %v3821 = vpack.c.b16 %v2733, %v2729
  %v3822 = vpack.c.b16 %v2738, %v2734
  %v3823 = vpack.c.b16 %v2739, %v2735
  %v3824 = vpack.c.b16 %v2740, %v2736
  %v3825 = vpack.c.b16 %v2741, %v2737
  %v3826 = vpack.c.b16 %v2746, %v2742
  %v3827 = vpack.c.b16 %v2747, %v2743
  %v3828 = vpack.c.b16 %v2748, %v2744
  %v3829 = vpack.c.b16 %v2749, %v2745
  %v3830 = vpack.c.b16 %v2754, %v2750
  %v3831 = vpack.c.b16 %v2755, %v2751
  %v3832 = vpack.c.b16 %v2756, %v2752
  %v3833 = vpack.c.b16 %v2757, %v2753
  %v3834 = vpack.c.b16 %v2762, %v2758
  %v3835 = vpack.c.b16 %v2763, %v2759
  %v3836 = vpack.c.b16 %v2764, %v2760
  %v3837 = vpack.c.b16 %v2765, %v2761
  %v3838 = vpack.c.b16 %v2770, %v2766
  %v3839 = vpack.c.b16 %v2771, %v2767
  %v3840 = vpack.c.b16 %v2772, %v2768
  %v3841 = vpack.c.b16 %v2773, %v2769
  %v3842 = vpack.c.b16 %v2778, %v2774
  %v3843 = vpack.c.b16 %v2779, %v2775
  %v3844 = vpack.c.b16 %v2780, %v2776
  %v3845 = vpack.c.b16 %v2781, %v2777
  %v3846 = vpack.c.b16 %v2786, %v2782
  %v3847 = vpack.c.b16 %v2787, %v2783
  %v3848 = vpack.c.b16 %v2788, %v2784
  %v3849 = vpack.c.b16 %v2789, %v2785
  %v3850 = vpack.c.b16 %v2794, %v2790
  %v3851 = vpack.c.b16 %v2795, %v2791
  %v3852 = vpack.c.b16 %v2796, %v2792
  %v3853 = vpack.c.b16 %v2797, %v2793
  %v3854 = vpack.c.b16 %v2802, %v2798
  %v3855 = vpack.c.b16 %v2803, %v2799
  %v3856 = vpack.c.b16 %v2804, %v2800
  %v3857 = vpack.c.b16 %v2805, %v2801
  %v3858 = vpack.c.b16 %v2810, %v2806
  %v3859 = vpack.c.b16 %v2811, %v2807
  %v3860 = vpack.c.b16 %v2812, %v2808
  %v3861 = vpack.c.b16 %v2813, %v2809
  %v3862 = vpack.c.b16 %v2818, %v2814
  %v3863 = vpack.c.b16 %v2819, %v2815
  %v3864 = vpack.c.b16 %v2820, %v2816
  %v3865 = vpack.c.b16 %v2821, %v2817
  %v3866 = vpack.c.b16 %v2826, %v2822
  %v3867 = vpack.c.b16 %v2827, %v2823
  %v3868 = vpack.c.b16 %v2828, %v2824
  %v3869 = vpack.c.b16 %v2829, %v2825
  %v3870 = vpack.c.b16 %v2834, %v2830
  %v3871 = vpack.c.b16 %v2835, %v2831
  %v3872 = vpack.c.b16 %v2836, %v2832
  %v3873 = vpack.c.b16 %v2837, %v2833
  %v3874 = vpack.c.b16 %v2842, %v2838
  %v3875 = vpack.c.b16 %v2843, %v2839
  %v3876 = vpack.c.b16 %v2844, %v2840
  %v3877 = vpack.c.b16 %v2845, %v2841
  %v3878 = vpack.c.b16 %v2850, %v2846
  %v3879 = vpack.c.b16 %v2851, %v2847
  %v3880 = vpack.c.b16 %v2852, %v2848
  %v3881 = vpack.c.b16 %v2853, %v2849
  %v3882 = vpack.c.b16 %v2858, %v2854
  %v3883 = vpack.c.b16 %v2859, %v2855
  %v3884 = vpack.c.b16 %v2860, %v2856
  %v3885 = vpack.c.b16 %v2861, %v2857
  %v3886 = vpack.c.b16 %v2866, %v2862
  %v3887 = vpack.c.b16 %v2867, %v2863
  %v3888 = vpack.c.b16 %v2868, %v2864
  %v3889 = vpack.c.b16 %v2869, %v2865
  %v3890 = vpack.c.b16 %v2874, %v2870
  %v3891 = vpack.c.b16 %v2875, %v2871
  %v3892 = vpack.c.b16 %v2876, %v2872
  %v3893 = vpack.c.b16 %v2877, %v2873
  %v3894 = vpack.c.b16 %v2882, %v2878
  %v3895 = vpack.c.b16 %v2883, %v2879
  %v3896 = vpack.c.b16 %v2884, %v2880
  %v3897 = vpack.c.b16 %v2885, %v2881
  %v3898 = vpack.c.b16 %v2890, %v2886
  %v3899 = vpack.c.b16 %v2891, %v2887
  %v3900 = vpack.c.b16 %v2892, %v2888
  %v3901 = vpack.c.b16 %v2893, %v2889
  %v3902 = vpack.c.b16 %v2898, %v2894
  %v3903 = vpack.c.b16 %v2899, %v2895
  %v3904 = vpack.c.b16 %v2900, %v2896
  %v3905 = vpack.c.b16 %v2901, %v2897
  %v3906 = vpack.c.b16 %v2906, %v2902
  %v3907 = vpack.c.b16 %v2907, %v2903
  %v3908 = vpack.c.b16 %v2908, %v2904
  %v3909 = vpack.c.b16 %v2909, %v2905
  %v3910 = vpack.c.b16 %v2914, %v2910
  %v3911 = vpack.c.b16 %v2915, %v2911
  %v3912 = vpack.c.b16 %v2916, %v2912
  %v3913 = vpack.c.b16 %v2917, %v2913
  %v3914 = vpack.c.b16 %v2922, %v2918
  %v3915 = vpack.c.b16 %v2923, %v2919
  %v3916 = vpack.c.b16 %v2924, %v2920
  %v3917 = vpack.c.b16 %v2925, %v2921
  %v3918 = vpack.c.b16 %v2930, %v2926
  %v3919 = vpack.c.b16 %v2931, %v2927
  %v3920 = vpack.c.b16 %v2932, %v2928
  %v3921 = vpack.c.b16 %v2933, %v2929
  %v3922 = vpack.c.b16 %v2938, %v2934
  %v3923 = vpack.c.b16 %v2939, %v2935
  %v3924 = vpack.c.b16 %v2940, %v2936
  %v3925 = vpack.c.b16 %v2941, %v2937
  %v3926 = vpack.c.b16 %v2946, %v2942
  %v3927 = vpack.c.b16 %v2947, %v2943
  %v3928 = vpack.c.b16 %v2948, %v2944
  %v3929 = vpack.c.b16 %v2949, %v2945
  %v3930 = vpack.c.b16 %v2954, %v2950
  %v3931 = vpack.c.b16 %v2955, %v2951
  %v3932 = vpack.c.b16 %v2956, %v2952
  %v3933 = vpack.c.b16 %v2957, %v2953
  %v3934 = vpack.c.b16 %v2962, %v2958
  %v3935 = vpack.c.b16 %v2963, %v2959
  %v3936 = vpack.c.b16 %v2964, %v2960
  %v3937 = vpack.c.b16 %v2965, %v2961
  %v3938 = vpack.c.b16 %v2970, %v2966
  %v3939 = vpack.c.b16 %v2971, %v2967
  %v3940 = vpack.c.b16 %v2972, %v2968
  %v3941 = vpack.c.b16 %v2973, %v2969
  %v3942 = vpack.c.b16 %v2978, %v2974
  %v3943 = vpack.c.b16 %v2979, %v2975
  %v3944 = vpack.c.b16 %v2980, %v2976
  %v3945 = vpack.c.b16 %v2981, %v2977
  %v3946 = vpack.c.b16 %v2986, %v2982
  %v3947 = vpack.c.b16 %v2987, %v2983
  %v3948 = vpack.c.b16 %v2988, %v2984
  %v3949 = vpack.c.b16 %v2989, %v2985
  %v3950 = vpack.c.b16 %v2994, %v2990
  %v3951 = vpack.c.b16 %v2995, %v2991
  %v3952 = vpack.c.b16 %v2996, %v2992
  %v3953 = vpack.c.b16 %v2997, %v2993
  %v3954 = vpack.c.b16 %v3002, %v2998
  %v3955 = vpack.c.b16 %v3003, %v2999
  %v3956 = vpack.c.b16 %v3004, %v3000
  %v3957 = vpack.c.b16 %v3005, %v3001
  %v3958 = vpack.c.b16 %v3010, %v3006
  %v3959 = vpack.c.b16 %v3011, %v3007
  %v3960 = vpack.c.b16 %v3012, %v3008
  %v3961 = vpack.c.b16 %v3013, %v3009
  %v3962 = vpack.c.b16 %v3018, %v3014
  %v3963 = vpack.c.b16 %v3019, %v3015
  %v3964 = vpack.c.b16 %v3020, %v3016
  %v3965 = vpack.c.b16 %v3021, %v3017
  %v3966 = vpack.c.b16 %v3026, %v3022
  %v3967 = vpack.c.b16 %v3027, %v3023
  %v3968 = vpack.c.b16 %v3028, %v3024
  %v3969 = vpack.c.b16 %v3029, %v3025
  %v3970 = vpack.c.b16 %v3034, %v3030
  %v3971 = vpack.c.b16 %v3035, %v3031
  %v3972 = vpack.c.b16 %v3036, %v3032
  %v3973 = vpack.c.b16 %v3037, %v3033
  %v3974 = vpack.c.b16 %v3042, %v3038
  %v3975 = vpack.c.b16 %v3043, %v3039
  %v3976 = vpack.c.b16 %v3044, %v3040
  %v3977 = vpack.c.b16 %v3045, %v3041
  %v3978 = vpack.c.b16 %v3050, %v3046
  %v3979 = vpack.c.b16 %v3051, %v3047
  %v3980 = vpack.c.b16 %v3052, %v3048
  %v3981 = vpack.c.b16 %v3053, %v3049
  %v3982 = vpack.c.b16 %v3058, %v3054
  %v3983 = vpack.c.b16 %v3059, %v3055
  %v3984 = vpack.c.b16 %v3060, %v3056
  %v3985 = vpack.c.b16 %v3061, %v3057
  %v3986 = vpack.c.b16 %v3066, %v3062
  %v3987 = vpack.c.b16 %v3067, %v3063
  %v3988 = vpack.c.b16 %v3068, %v3064
  %v3989 = vpack.c.b16 %v3069, %v3065
  %v3990 = vpack.c.b16 %v3074, %v3070
  %v3991 = vpack.c.b16 %v3075, %v3071
  %v3992 = vpack.c.b16 %v3076, %v3072
  %v3993 = vpack.c.b16 %v3077, %v3073
  %v3994 = vpack.c.b16 %v3082, %v3078
  %v3995 = vpack.c.b16 %v3083, %v3079
  %v3996 = vpack.c.b16 %v3084, %v3080
  %v3997 = vpack.c.b16 %v3085, %v3081
  %v3998 = vpack.c.b16 %v3090, %v3086
  %v3999 = vpack.c.b16 %v3091, %v3087
  %v4000 = vpack.c.b16 %v3092, %v3088
  %v4001 = vpack.c.b16 %v3093, %v3089
  %v4002 = vpack.c.b16 %v3098, %v3094
  %v4003 = vpack.c.b16 %v3099, %v3095
  %v4004 = vpack.c.b16 %v3100, %v3096
  %v4005 = vpack.c.b16 %v3101, %v3097
  %v4006 = vpack.c.b16 %v3106, %v3102
  %v4007 = vpack.c.b16 %v3107, %v3103
  %v4008 = vpack.c.b16 %v3108, %v3104
  %v4009 = vpack.c.b16 %v3109, %v3105
  %v4010 = vpack.c.b16 %v3114, %v3110
  %v4011 = vpack.c.b16 %v3115, %v3111
  %v4012 = vpack.c.b16 %v3116, %v3112
  %v4013 = vpack.c.b16 %v3117, %v3113
  %v4014 = vpack.c.b16 %v3122, %v3118
  %v4015 = vpack.c.b16 %v3123, %v3119
  %v4016 = vpack.c.b16 %v3124, %v3120
  %v4017 = vpack.c.b16 %v3125, %v3121
  %v4018 = vpack.c.b16 %v3130, %v3126
  %v4019 = vpack.c.b16 %v3131, %v3127
  %v4020 = vpack.c.b16 %v3132, %v3128
  %v4021 = vpack.c.b16 %v3133, %v3129
  %v4022 = vpack.c.b16 %v3138, %v3134
  %v4023 = vpack.c.b16 %v3139, %v3135
  %v4024 = vpack.c.b16 %v3140, %v3136
  %v4025 = vpack.c.b16 %v3141, %v3137
  %v4026 = vpack.c.b16 %v3146, %v3142
  %v4027 = vpack.c.b16 %v3147, %v3143
  %v4028 = vpack.c.b16 %v3148, %v3144
  %v4029 = vpack.c.b16 %v3149, %v3145
  %v4030 = vpack.c.b16 %v3154, %v3150
  %v4031 = vpack.c.b16 %v3155, %v3151
  %v4032 = vpack.c.b16 %v3156, %v3152
  %v4033 = vpack.c.b16 %v3157, %v3153
  %v4034 = vpack.c.b16 %v3162, %v3158
  %v4035 = vpack.c.b16 %v3163, %v3159
  %v4036 = vpack.c.b16 %v3164, %v3160
  %v4037 = vpack.c.b16 %v3165, %v3161
  %v4038 = vpack.c.b16 %v3170, %v3166
  %v4039 = vpack.c.b16 %v3171, %v3167
  %v4040 = vpack.c.b16 %v3172, %v3168
  %v4041 = vpack.c.b16 %v3173, %v3169
  %v4042 = vpack.c.b16 %v3178, %v3174
  %v4043 = vpack.c.b16 %v3179, %v3175
  %v4044 = vpack.c.b16 %v3180, %v3176
  %v4045 = vpack.c.b16 %v3181, %v3177
  %v4046 = vpack.c.b16 %v3186, %v3182
  %v4047 = vpack.c.b16 %v3187, %v3183
  %v4048 = vpack.c.b16 %v3188, %v3184
  %v4049 = vpack.c.b16 %v3189, %v3185
  %v4050 = vpack.c.b16 %v3194, %v3190
  %v4051 = vpack.c.b16 %v3195, %v3191
  %v4052 = vpack.c.b16 %v3196, %v3192
  %v4053 = vpack.c.b16 %v3197, %v3193
  %v4054 = vpack.c.b16 %v3202, %v3198
  %v4055 = vpack.c.b16 %v3203, %v3199
  %v4056 = vpack.c.b16 %v3204, %v3200
  %v4057 = vpack.c.b16 %v3205, %v3201
  %v4058 = vpack.c.b16 %v3210, %v3206
  %v4059 = vpack.c.b16 %v3211, %v3207
  %v4060 = vpack.c.b16 %v3212, %v3208
  %v4061 = vpack.c.b16 %v3213, %v3209
  %v4062 = vpack.c.b16 %v3218, %v3214
  %v4063 = vpack.c.b16 %v3219, %v3215
  %v4064 = vpack.c.b16 %v3220, %v3216
  %v4065 = vpack.c.b16 %v3221, %v3217
  %v4066 = vpack.c.b16 %v3226, %v3222
  %v4067 = vpack.c.b16 %v3227, %v3223
  %v4068 = vpack.c.b16 %v3228, %v3224
  %v4069 = vpack.c.b16 %v3229, %v3225
  %v4070 = vpack.c.b16 %v3234, %v3230
  %v4071 = vpack.c.b16 %v3235, %v3231
  %v4072 = vpack.c.b16 %v3236, %v3232
  %v4073 = vpack.c.b16 %v3237, %v3233
  %v4074 = vpack.c.b16 %v3242, %v3238
  %v4075 = vpack.c.b16 %v3243, %v3239
  %v4076 = vpack.c.b16 %v3244, %v3240
  %v4077 = vpack.c.b16 %v3245, %v3241
  %v4078 = vpack.c.b16 %v3250, %v3246
  %v4079 = vpack.c.b16 %v3251, %v3247
  %v4080 = vpack.c.b16 %v3252, %v3248
  %v4081 = vpack.c.b16 %v3253, %v3249
  %v4082 = vpack.c.b16 %v3258, %v3254
  %v4083 = vpack.c.b16 %v3259, %v3255
  %v4084 = vpack.c.b16 %v3260, %v3256
  %v4085 = vpack.c.b16 %v3261, %v3257
  %v4086 = vpack.c.b16 %v3266, %v3262
  %v4087 = vpack.c.b16 %v3267, %v3263
  %v4088 = vpack.c.b16 %v3268, %v3264
  %v4089 = vpack.c.b16 %v3269, %v3265
  %v4090 = vpack.c.b16 %v3274, %v3270
  %v4091 = vpack.c.b16 %v3275, %v3271
  %v4092 = vpack.c.b16 %v3276, %v3272
  %v4093 = vpack.c.b16 %v3277, %v3273
  %v4094 = vpack.c.b16 %v3282, %v3278
  %v4095 = vpack.c.b16 %v3283, %v3279
  %v4096 = vpack.c.b16 %v3284, %v3280
  %v4097 = vpack.c.b16 %v3285, %v3281
  %v4098 = vpack.c.b16 %v3290, %v3286
  %v4099 = vpack.c.b16 %v3291, %v3287
  %v4100 = vpack.c.b16 %v3292, %v3288
  %v4101 = vpack.c.b16 %v3293, %v3289
  %v4102 = vpack.c.b16 %v3298, %v3294
  %v4103 = vpack.c.b16 %v3299, %v3295
  %v4104 = vpack.c.b16 %v3300, %v3296
  %v4105 = vpack.c.b16 %v3301, %v3297
  %v4106 = vpack.c.b16 %v3306, %v3302
  %v4107 = vpack.c.b16 %v3307, %v3303
  %v4108 = vpack.c.b16 %v3308, %v3304
  %v4109 = vpack.c.b16 %v3309, %v3305
  %v4110 = vpack.c.b16 %v3314, %v3310
  %v4111 = vpack.c.b16 %v3315, %v3311
  %v4112 = vpack.c.b16 %v3316, %v3312
  %v4113 = vpack.c.b16 %v3317, %v3313
  %v4114 = vpack.c.b16 %v3322, %v3318
  %v4115 = vpack.c.b16 %v3323, %v3319
  %v4116 = vpack.c.b16 %v3324, %v3320
  %v4117 = vpack.c.b16 %v3325, %v3321
  %v4118 = vpack.c.b16 %v3330, %v3326
  %v4119 = vpack.c.b16 %v3331, %v3327
  %v4120 = vpack.c.b16 %v3332, %v3328
  %v4121 = vpack.c.b16 %v3333, %v3329
  %v4122 = vpack.c.b16 %v3338, %v3334
  %v4123 = vpack.c.b16 %v3339, %v3335
  %v4124 = vpack.c.b16 %v3340, %v3336
  %v4125 = vpack.c.b16 %v3341, %v3337
  %vm4910 = vcmask 523264
  %v4912 = vsel %vm4910, %v965, 0
  %4914 = vmatprep.subr.bf16.mxu0 %v3371
  %4915 = vmatpush1.bf16.msra.mxu0 %v3370
  %4916 = vmatprep.subr.bf16.mxu0 %v3367
  %4917 = vmatpush1.bf16.msra.mxu0 %v3366
  %4918 = vmatprep.subr.bf16.mxu0 %v3363
  %4919 = vmatpush1.bf16.msra.mxu0 %v3362
  %4920 = vmatprep.subr.bf16.mxu0 %v3359
  %4921 = vmatpush1.bf16.msra.mxu0 %v3358
  %4922 = vmatprep.subr.bf16.mxu0 %v3355
  %4923 = vmatpush1.bf16.msra.mxu0 %v3354
  %4924 = vmatprep.subr.bf16.mxu0 %v3351
  %4925 = vmatpush1.bf16.msra.mxu0 %v3350
  %4926 = vmatprep.subr.bf16.mxu0 %v3347
  %4927 = vmatpush1.bf16.msra.mxu0 %v3346
  %4928 = vmatprep.subr.bf16.mxu0 %v3343
  %4929 = vmatpush1.bf16.msra.mxu0 %v3342
  %4930 = vmatprep.subr.bf16.mxu0 %v3403
  %4931 = vmatpush2.bf16.msra.mxu0 %v3402
  %4932 = vmatprep.subr.bf16.mxu0 %v3399
  %4933 = vmatpush2.bf16.msra.mxu0 %v3398
  %4934 = vmatprep.subr.bf16.mxu0 %v3395
  %4935 = vmatpush2.bf16.msra.mxu0 %v3394
  %4936 = vmatprep.subr.bf16.mxu0 %v3391
  %4937 = vmatpush2.bf16.msra.mxu0 %v3390
  %4938 = vmatprep.subr.bf16.mxu0 %v3387
  %4939 = vmatpush2.bf16.msra.mxu0 %v3386
  %4940 = vmatprep.subr.bf16.mxu0 %v3383
  %4941 = vmatpush2.bf16.msra.mxu0 %v3382
  %4942 = vmatprep.subr.bf16.mxu0 %v3379
  %4943 = vmatpush2.bf16.msra.mxu0 %v3378
  %4944 = vmatprep.subr.bf16.mxu0 %v3375
  %4945 = vmatpush2.bf16.msra.mxu0 %v3374
  %4946 = vmatprep.mubr.bf16.mxu0 %v942
  %4947 = vmatmul.mubr.bf16.gmra.mxu0 %v941
  %v4948 = vpop.f32.mrf.mxu0
  %v4949 = vadd.f32 %v848, %v4948
  %v4950 = vpop.f32.mrf.mxu0
  %v4951 = vadd.f32 %v852, %v4950
  %v4952 = vpop.f32.mrf.mxu0
  %v4953 = vadd.f32 %v848, %v4952
  %v4954 = vpop.f32.mrf.mxu0
  %v4955 = vadd.f32 %v852, %v4954
  %4956 = vdwg.mxu0
  %4957 = vmatprep.subr.bf16.mxu0 %v3435
  %4958 = vmatpush1.bf16.msra.mxu0 %v3434
  %4959 = vmatprep.subr.bf16.mxu0 %v3431
  %4960 = vmatpush1.bf16.msra.mxu0 %v3430
  %4961 = vmatprep.subr.bf16.mxu0 %v3427
  %4962 = vmatpush1.bf16.msra.mxu0 %v3426
  %4963 = vmatprep.subr.bf16.mxu0 %v3423
  %4964 = vmatpush1.bf16.msra.mxu0 %v3422
  %4965 = vmatprep.subr.bf16.mxu0 %v3419
  %4966 = vmatpush1.bf16.msra.mxu0 %v3418
  %4967 = vmatprep.subr.bf16.mxu0 %v3415
  %4968 = vmatpush1.bf16.msra.mxu0 %v3414
  %4969 = vmatprep.subr.bf16.mxu0 %v3411
  %4970 = vmatpush1.bf16.msra.mxu0 %v3410
  %4971 = vmatprep.subr.bf16.mxu0 %v3407
  %4972 = vmatpush1.bf16.msra.mxu0 %v3406
  %4973 = vmatprep.subr.bf16.mxu0 %v3467
  %4974 = vmatpush2.bf16.msra.mxu0 %v3466
  %4975 = vmatprep.subr.bf16.mxu0 %v3463
  %4976 = vmatpush2.bf16.msra.mxu0 %v3462
  %4977 = vmatprep.subr.bf16.mxu0 %v3459
  %4978 = vmatpush2.bf16.msra.mxu0 %v3458
  %4979 = vmatprep.subr.bf16.mxu0 %v3455
  %4980 = vmatpush2.bf16.msra.mxu0 %v3454
  %4981 = vmatprep.subr.bf16.mxu0 %v3451
  %4982 = vmatpush2.bf16.msra.mxu0 %v3450
  %4983 = vmatprep.subr.bf16.mxu0 %v3447
  %4984 = vmatpush2.bf16.msra.mxu0 %v3446
  %4985 = vmatprep.subr.bf16.mxu0 %v3443
  %4986 = vmatpush2.bf16.msra.mxu0 %v3442
  %4987 = vmatprep.subr.bf16.mxu0 %v3439
  %4988 = vmatpush2.bf16.msra.mxu0 %v3438
  %4989 = vmatprep.mubr.bf16.mxu0 %v944
  %4990 = vmatmul.mubr.bf16.gmra.mxu0 %v943
  %v4991 = vpop.f32.mrf.mxu0
  %v4992 = vadd.f32 %v4949, %v4991
  %v4993 = vpop.f32.mrf.mxu0
  %v4994 = vadd.f32 %v4951, %v4993
  %v4995 = vpop.f32.mrf.mxu0
  %v4996 = vadd.f32 %v4953, %v4995
  %v4997 = vpop.f32.mrf.mxu0
  %v4998 = vadd.f32 %v4955, %v4997
  %4999 = vdwg.mxu0
  %5000 = vmatprep.subr.bf16.mxu0 %v3499
  %5001 = vmatpush1.bf16.msra.mxu0 %v3498
  %5002 = vmatprep.subr.bf16.mxu0 %v3495
  %5003 = vmatpush1.bf16.msra.mxu0 %v3494
  %5004 = vmatprep.subr.bf16.mxu0 %v3491
  %5005 = vmatpush1.bf16.msra.mxu0 %v3490
  %5006 = vmatprep.subr.bf16.mxu0 %v3487
  %5007 = vmatpush1.bf16.msra.mxu0 %v3486
  %5008 = vmatprep.subr.bf16.mxu0 %v3483
  %5009 = vmatpush1.bf16.msra.mxu0 %v3482
  %5010 = vmatprep.subr.bf16.mxu0 %v3479
  %5011 = vmatpush1.bf16.msra.mxu0 %v3478
  %5012 = vmatprep.subr.bf16.mxu0 %v3475
  %5013 = vmatpush1.bf16.msra.mxu0 %v3474
  %5014 = vmatprep.subr.bf16.mxu0 %v3471
  %5015 = vmatpush1.bf16.msra.mxu0 %v3470
  %5016 = vmatprep.subr.bf16.mxu0 %v3531
  %5017 = vmatpush2.bf16.msra.mxu0 %v3530
  %5018 = vmatprep.subr.bf16.mxu0 %v3527
  %5019 = vmatpush2.bf16.msra.mxu0 %v3526
  %5020 = vmatprep.subr.bf16.mxu0 %v3523
  %5021 = vmatpush2.bf16.msra.mxu0 %v3522
  %5022 = vmatprep.subr.bf16.mxu0 %v3519
  %5023 = vmatpush2.bf16.msra.mxu0 %v3518
  %5024 = vmatprep.subr.bf16.mxu0 %v3515
  %5025 = vmatpush2.bf16.msra.mxu0 %v3514
  %5026 = vmatprep.subr.bf16.mxu0 %v3511
  %5027 = vmatpush2.bf16.msra.mxu0 %v3510
  %5028 = vmatprep.subr.bf16.mxu0 %v3507
  %5029 = vmatpush2.bf16.msra.mxu0 %v3506
  %5030 = vmatprep.subr.bf16.mxu0 %v3503
  %5031 = vmatpush2.bf16.msra.mxu0 %v3502
  %5032 = vmatprep.mubr.bf16.mxu0 %v946
  %5033 = vmatmul.mubr.bf16.gmra.mxu0 %v945
  %v5034 = vpop.f32.mrf.mxu0
  %v5035 = vadd.f32 %v4992, %v5034
  %v5036 = vpop.f32.mrf.mxu0
  %v5037 = vadd.f32 %v4994, %v5036
  %v5038 = vpop.f32.mrf.mxu0
  %v5039 = vadd.f32 %v4996, %v5038
  %v5040 = vpop.f32.mrf.mxu0
  %v5041 = vadd.f32 %v4998, %v5040
  %5042 = vdwg.mxu0
  %5043 = vmatprep.subr.bf16.mxu0 %v3563
  %5044 = vmatpush1.bf16.msra.mxu0 %v3562
  %5045 = vmatprep.subr.bf16.mxu0 %v3559
  %5046 = vmatpush1.bf16.msra.mxu0 %v3558
  %5047 = vmatprep.subr.bf16.mxu0 %v3555
  %5048 = vmatpush1.bf16.msra.mxu0 %v3554
  %5049 = vmatprep.subr.bf16.mxu0 %v3551
  %5050 = vmatpush1.bf16.msra.mxu0 %v3550
  %5051 = vmatprep.subr.bf16.mxu0 %v3547
  %5052 = vmatpush1.bf16.msra.mxu0 %v3546
  %5053 = vmatprep.subr.bf16.mxu0 %v3543
  %5054 = vmatpush1.bf16.msra.mxu0 %v3542
  %5055 = vmatprep.subr.bf16.mxu0 %v3539
  %5056 = vmatpush1.bf16.msra.mxu0 %v3538
  %5057 = vmatprep.subr.bf16.mxu0 %v3535
  %5058 = vmatpush1.bf16.msra.mxu0 %v3534
  %5059 = vmatprep.subr.bf16.mxu0 %v3595
  %5060 = vmatpush2.bf16.msra.mxu0 %v3594
  %5061 = vmatprep.subr.bf16.mxu0 %v3591
  %5062 = vmatpush2.bf16.msra.mxu0 %v3590
  %5063 = vmatprep.subr.bf16.mxu0 %v3587
  %5064 = vmatpush2.bf16.msra.mxu0 %v3586
  %5065 = vmatprep.subr.bf16.mxu0 %v3583
  %5066 = vmatpush2.bf16.msra.mxu0 %v3582
  %5067 = vmatprep.subr.bf16.mxu0 %v3579
  %5068 = vmatpush2.bf16.msra.mxu0 %v3578
  %5069 = vmatprep.subr.bf16.mxu0 %v3575
  %5070 = vmatpush2.bf16.msra.mxu0 %v3574
  %5071 = vmatprep.subr.bf16.mxu0 %v3571
  %5072 = vmatpush2.bf16.msra.mxu0 %v3570
  %5073 = vmatprep.subr.bf16.mxu0 %v3567
  %5074 = vmatpush2.bf16.msra.mxu0 %v3566
  %5075 = vmatprep.mubr.bf16.mxu0 %v948
  %5076 = vmatmul.mubr.bf16.gmra.mxu0 %v947
  %v5077 = vpop.f32.mrf.mxu0
  %v5078 = vadd.f32 %v5035, %v5077
  %v5079 = vpop.f32.mrf.mxu0
  %v5080 = vadd.f32 %v5037, %v5079
  %v5081 = vpop.f32.mrf.mxu0
  %v5082 = vadd.f32 %v5039, %v5081
  %v5083 = vpop.f32.mrf.mxu0
  %v5084 = vadd.f32 %v5041, %v5083
  %5085 = vdwg.mxu0
  %5086 = vmatprep.subr.bf16.mxu0 %v3627
  %5087 = vmatpush1.bf16.msra.mxu0 %v3626
  %5088 = vmatprep.subr.bf16.mxu0 %v3623
  %5089 = vmatpush1.bf16.msra.mxu0 %v3622
  %5090 = vmatprep.subr.bf16.mxu0 %v3619
  %5091 = vmatpush1.bf16.msra.mxu0 %v3618
  %5092 = vmatprep.subr.bf16.mxu0 %v3615
  %5093 = vmatpush1.bf16.msra.mxu0 %v3614
  %5094 = vmatprep.subr.bf16.mxu0 %v3611
  %5095 = vmatpush1.bf16.msra.mxu0 %v3610
  %5096 = vmatprep.subr.bf16.mxu0 %v3607
  %5097 = vmatpush1.bf16.msra.mxu0 %v3606
  %5098 = vmatprep.subr.bf16.mxu0 %v3603
  %5099 = vmatpush1.bf16.msra.mxu0 %v3602
  %5100 = vmatprep.subr.bf16.mxu0 %v3599
  %5101 = vmatpush1.bf16.msra.mxu0 %v3598
  %5102 = vmatprep.subr.bf16.mxu0 %v3659
  %5103 = vmatpush2.bf16.msra.mxu0 %v3658
  %5104 = vmatprep.subr.bf16.mxu0 %v3655
  %5105 = vmatpush2.bf16.msra.mxu0 %v3654
  %5106 = vmatprep.subr.bf16.mxu0 %v3651
  %5107 = vmatpush2.bf16.msra.mxu0 %v3650
  %5108 = vmatprep.subr.bf16.mxu0 %v3647
  %5109 = vmatpush2.bf16.msra.mxu0 %v3646
  %5110 = vmatprep.subr.bf16.mxu0 %v3643
  %5111 = vmatpush2.bf16.msra.mxu0 %v3642
  %5112 = vmatprep.subr.bf16.mxu0 %v3639
  %5113 = vmatpush2.bf16.msra.mxu0 %v3638
  %5114 = vmatprep.subr.bf16.mxu0 %v3635
  %5115 = vmatpush2.bf16.msra.mxu0 %v3634
  %5116 = vmatprep.subr.bf16.mxu0 %v3631
  %5117 = vmatpush2.bf16.msra.mxu0 %v3630
  %5118 = vmatprep.mubr.bf16.mxu0 %v950
  %5119 = vmatmul.mubr.bf16.gmra.mxu0 %v949
  %v5120 = vpop.f32.mrf.mxu0
  %v5121 = vadd.f32 %v5078, %v5120
  %v5122 = vpop.f32.mrf.mxu0
  %v5123 = vadd.f32 %v5080, %v5122
  %v5124 = vpop.f32.mrf.mxu0
  %v5125 = vadd.f32 %v5082, %v5124
  %v5126 = vpop.f32.mrf.mxu0
  %v5127 = vadd.f32 %v5084, %v5126
  %5128 = vdwg.mxu0
  %5129 = vmatprep.subr.bf16.mxu0 %v3691
  %5130 = vmatpush1.bf16.msra.mxu0 %v3690
  %5131 = vmatprep.subr.bf16.mxu0 %v3687
  %5132 = vmatpush1.bf16.msra.mxu0 %v3686
  %5133 = vmatprep.subr.bf16.mxu0 %v3683
  %5134 = vmatpush1.bf16.msra.mxu0 %v3682
  %5135 = vmatprep.subr.bf16.mxu0 %v3679
  %5136 = vmatpush1.bf16.msra.mxu0 %v3678
  %5137 = vmatprep.subr.bf16.mxu0 %v3675
  %5138 = vmatpush1.bf16.msra.mxu0 %v3674
  %5139 = vmatprep.subr.bf16.mxu0 %v3671
  %5140 = vmatpush1.bf16.msra.mxu0 %v3670
  %5141 = vmatprep.subr.bf16.mxu0 %v3667
  %5142 = vmatpush1.bf16.msra.mxu0 %v3666
  %5143 = vmatprep.subr.bf16.mxu0 %v3663
  %5144 = vmatpush1.bf16.msra.mxu0 %v3662
  %5145 = vmatprep.subr.bf16.mxu0 %v3723
  %5146 = vmatpush2.bf16.msra.mxu0 %v3722
  %5147 = vmatprep.subr.bf16.mxu0 %v3719
  %5148 = vmatpush2.bf16.msra.mxu0 %v3718
  %5149 = vmatprep.subr.bf16.mxu0 %v3715
  %5150 = vmatpush2.bf16.msra.mxu0 %v3714
  %5151 = vmatprep.subr.bf16.mxu0 %v3711
  %5152 = vmatpush2.bf16.msra.mxu0 %v3710
  %5153 = vmatprep.subr.bf16.mxu0 %v3707
  %5154 = vmatpush2.bf16.msra.mxu0 %v3706
  %5155 = vmatprep.subr.bf16.mxu0 %v3703
  %5156 = vmatpush2.bf16.msra.mxu0 %v3702
  %5157 = vmatprep.subr.bf16.mxu0 %v3699
  %5158 = vmatpush2.bf16.msra.mxu0 %v3698
  %5159 = vmatprep.subr.bf16.mxu0 %v3695
  %5160 = vmatpush2.bf16.msra.mxu0 %v3694
  %5161 = vmatprep.mubr.bf16.mxu0 %v952
  %5162 = vmatmul.mubr.bf16.gmra.mxu0 %v951
  %v5163 = vpop.f32.mrf.mxu0
  %v5164 = vadd.f32 %v5121, %v5163
  %v5165 = vpop.f32.mrf.mxu0
  %v5166 = vadd.f32 %v5123, %v5165
  %v5167 = vpop.f32.mrf.mxu0
  %v5168 = vadd.f32 %v5125, %v5167
  %v5169 = vpop.f32.mrf.mxu0
  %v5170 = vadd.f32 %v5127, %v5169
  %5171 = vdwg.mxu0
  %5172 = vmatprep.subr.bf16.mxu0 %v3755
  %5173 = vmatpush1.bf16.msra.mxu0 %v3754
  %5174 = vmatprep.subr.bf16.mxu0 %v3751
  %5175 = vmatpush1.bf16.msra.mxu0 %v3750
  %5176 = vmatprep.subr.bf16.mxu0 %v3747
  %5177 = vmatpush1.bf16.msra.mxu0 %v3746
  %5178 = vmatprep.subr.bf16.mxu0 %v3743
  %5179 = vmatpush1.bf16.msra.mxu0 %v3742
  %5180 = vmatprep.subr.bf16.mxu0 %v3739
  %5181 = vmatpush1.bf16.msra.mxu0 %v3738
  %5182 = vmatprep.subr.bf16.mxu0 %v3735
  %5183 = vmatpush1.bf16.msra.mxu0 %v3734
  %5184 = vmatprep.subr.bf16.mxu0 %v3731
  %5185 = vmatpush1.bf16.msra.mxu0 %v3730
  %5186 = vmatprep.subr.bf16.mxu0 %v3727
  %5187 = vmatpush1.bf16.msra.mxu0 %v3726
  %5188 = vmatprep.subr.bf16.mxu0 %v3787
  %5189 = vmatpush2.bf16.msra.mxu0 %v3786
  %5190 = vmatprep.subr.bf16.mxu0 %v3783
  %5191 = vmatpush2.bf16.msra.mxu0 %v3782
  %5192 = vmatprep.subr.bf16.mxu0 %v3779
  %5193 = vmatpush2.bf16.msra.mxu0 %v3778
  %5194 = vmatprep.subr.bf16.mxu0 %v3775
  %5195 = vmatpush2.bf16.msra.mxu0 %v3774
  %5196 = vmatprep.subr.bf16.mxu0 %v3771
  %5197 = vmatpush2.bf16.msra.mxu0 %v3770
  %5198 = vmatprep.subr.bf16.mxu0 %v3767
  %5199 = vmatpush2.bf16.msra.mxu0 %v3766
  %5200 = vmatprep.subr.bf16.mxu0 %v3763
  %5201 = vmatpush2.bf16.msra.mxu0 %v3762
  %5202 = vmatprep.subr.bf16.mxu0 %v3759
  %5203 = vmatpush2.bf16.msra.mxu0 %v3758
  %5204 = vmatprep.mubr.bf16.mxu0 %v954
  %5205 = vmatmul.mubr.bf16.gmra.mxu0 %v953
  %v5206 = vpop.f32.mrf.mxu0
  %v5207 = vadd.f32 %v5164, %v5206
  %v5208 = vpop.f32.mrf.mxu0
  %v5209 = vadd.f32 %v5166, %v5208
  %v5210 = vpop.f32.mrf.mxu0
  %v5211 = vadd.f32 %v5168, %v5210
  %v5212 = vpop.f32.mrf.mxu0
  %v5213 = vadd.f32 %v5170, %v5212
  %5214 = vdwg.mxu0
  %5215 = vmatprep.subr.bf16.mxu0 %v3819
  %5216 = vmatpush1.bf16.msra.mxu0 %v3818
  %5217 = vmatprep.subr.bf16.mxu0 %v3815
  %5218 = vmatpush1.bf16.msra.mxu0 %v3814
  %5219 = vmatprep.subr.bf16.mxu0 %v3811
  %5220 = vmatpush1.bf16.msra.mxu0 %v3810
  %5221 = vmatprep.subr.bf16.mxu0 %v3807
  %5222 = vmatpush1.bf16.msra.mxu0 %v3806
  %5223 = vmatprep.subr.bf16.mxu0 %v3803
  %5224 = vmatpush1.bf16.msra.mxu0 %v3802
  %5225 = vmatprep.subr.bf16.mxu0 %v3799
  %5226 = vmatpush1.bf16.msra.mxu0 %v3798
  %5227 = vmatprep.subr.bf16.mxu0 %v3795
  %5228 = vmatpush1.bf16.msra.mxu0 %v3794
  %5229 = vmatprep.subr.bf16.mxu0 %v3791
  %5230 = vmatpush1.bf16.msra.mxu0 %v3790
  %5231 = vmatprep.subr.bf16.mxu0 %v3851
  %5232 = vmatpush2.bf16.msra.mxu0 %v3850
  %5233 = vmatprep.subr.bf16.mxu0 %v3847
  %5234 = vmatpush2.bf16.msra.mxu0 %v3846
  %5235 = vmatprep.subr.bf16.mxu0 %v3843
  %5236 = vmatpush2.bf16.msra.mxu0 %v3842
  %5237 = vmatprep.subr.bf16.mxu0 %v3839
  %5238 = vmatpush2.bf16.msra.mxu0 %v3838
  %5239 = vmatprep.subr.bf16.mxu0 %v3835
  %5240 = vmatpush2.bf16.msra.mxu0 %v3834
  %5241 = vmatprep.subr.bf16.mxu0 %v3831
  %5242 = vmatpush2.bf16.msra.mxu0 %v3830
  %5243 = vmatprep.subr.bf16.mxu0 %v3827
  %5244 = vmatpush2.bf16.msra.mxu0 %v3826
  %5245 = vmatprep.subr.bf16.mxu0 %v3823
  %5246 = vmatpush2.bf16.msra.mxu0 %v3822
  %5247 = vmatprep.mubr.bf16.mxu0 %v956
  %5248 = vmatmul.mubr.bf16.gmra.mxu0 %v955
  %v5249 = vpop.f32.mrf.mxu0
  %v5250 = vadd.f32 %v5207, %v5249
  %v5251 = vpop.f32.mrf.mxu0
  %v5252 = vadd.f32 %v5209, %v5251
  %v5253 = vpop.f32.mrf.mxu0
  %v5254 = vadd.f32 %v5211, %v5253
  %v5255 = vpop.f32.mrf.mxu0
  %v5256 = vadd.f32 %v5213, %v5255
  %5257 = vdwg.mxu0
  %5258 = vmatprep.subr.bf16.mxu0 %v3883
  %5259 = vmatpush1.bf16.msra.mxu0 %v3882
  %5260 = vmatprep.subr.bf16.mxu0 %v3879
  %5261 = vmatpush1.bf16.msra.mxu0 %v3878
  %5262 = vmatprep.subr.bf16.mxu0 %v3875
  %5263 = vmatpush1.bf16.msra.mxu0 %v3874
  %5264 = vmatprep.subr.bf16.mxu0 %v3871
  %5265 = vmatpush1.bf16.msra.mxu0 %v3870
  %5266 = vmatprep.subr.bf16.mxu0 %v3867
  %5267 = vmatpush1.bf16.msra.mxu0 %v3866
  %5268 = vmatprep.subr.bf16.mxu0 %v3863
  %5269 = vmatpush1.bf16.msra.mxu0 %v3862
  %5270 = vmatprep.subr.bf16.mxu0 %v3859
  %5271 = vmatpush1.bf16.msra.mxu0 %v3858
  %5272 = vmatprep.subr.bf16.mxu0 %v3855
  %5273 = vmatpush1.bf16.msra.mxu0 %v3854
  %5274 = vmatprep.subr.bf16.mxu0 %v3915
  %5275 = vmatpush2.bf16.msra.mxu0 %v3914
  %5276 = vmatprep.subr.bf16.mxu0 %v3911
  %5277 = vmatpush2.bf16.msra.mxu0 %v3910
  %5278 = vmatprep.subr.bf16.mxu0 %v3907
  %5279 = vmatpush2.bf16.msra.mxu0 %v3906
  %5280 = vmatprep.subr.bf16.mxu0 %v3903
  %5281 = vmatpush2.bf16.msra.mxu0 %v3902
  %5282 = vmatprep.subr.bf16.mxu0 %v3899
  %5283 = vmatpush2.bf16.msra.mxu0 %v3898
  %5284 = vmatprep.subr.bf16.mxu0 %v3895
  %5285 = vmatpush2.bf16.msra.mxu0 %v3894
  %5286 = vmatprep.subr.bf16.mxu0 %v3891
  %5287 = vmatpush2.bf16.msra.mxu0 %v3890
  %5288 = vmatprep.subr.bf16.mxu0 %v3887
  %5289 = vmatpush2.bf16.msra.mxu0 %v3886
  %5290 = vmatprep.mubr.bf16.mxu0 %v958
  %5291 = vmatmul.mubr.bf16.gmra.mxu0 %v957
  %v5292 = vpop.f32.mrf.mxu0
  %v5293 = vadd.f32 %v5250, %v5292
  %v5294 = vpop.f32.mrf.mxu0
  %v5295 = vadd.f32 %v5252, %v5294
  %v5296 = vpop.f32.mrf.mxu0
  %v5297 = vadd.f32 %v5254, %v5296
  %v5298 = vpop.f32.mrf.mxu0
  %v5299 = vadd.f32 %v5256, %v5298
  %5300 = vdwg.mxu0
  %5301 = vmatprep.subr.bf16.mxu0 %v3947
  %5302 = vmatpush1.bf16.msra.mxu0 %v3946
  %5303 = vmatprep.subr.bf16.mxu0 %v3943
  %5304 = vmatpush1.bf16.msra.mxu0 %v3942
  %5305 = vmatprep.subr.bf16.mxu0 %v3939
  %5306 = vmatpush1.bf16.msra.mxu0 %v3938
  %5307 = vmatprep.subr.bf16.mxu0 %v3935
  %5308 = vmatpush1.bf16.msra.mxu0 %v3934
  %5309 = vmatprep.subr.bf16.mxu0 %v3931
  %5310 = vmatpush1.bf16.msra.mxu0 %v3930
  %5311 = vmatprep.subr.bf16.mxu0 %v3927
  %5312 = vmatpush1.bf16.msra.mxu0 %v3926
  %5313 = vmatprep.subr.bf16.mxu0 %v3923
  %5314 = vmatpush1.bf16.msra.mxu0 %v3922
  %5315 = vmatprep.subr.bf16.mxu0 %v3919
  %5316 = vmatpush1.bf16.msra.mxu0 %v3918
  %5317 = vmatprep.subr.bf16.mxu0 %v3979
  %5318 = vmatpush2.bf16.msra.mxu0 %v3978
  %5319 = vmatprep.subr.bf16.mxu0 %v3975
  %5320 = vmatpush2.bf16.msra.mxu0 %v3974
  %5321 = vmatprep.subr.bf16.mxu0 %v3971
  %5322 = vmatpush2.bf16.msra.mxu0 %v3970
  %5323 = vmatprep.subr.bf16.mxu0 %v3967
  %5324 = vmatpush2.bf16.msra.mxu0 %v3966
  %5325 = vmatprep.subr.bf16.mxu0 %v3963
  %5326 = vmatpush2.bf16.msra.mxu0 %v3962
  %5327 = vmatprep.subr.bf16.mxu0 %v3959
  %5328 = vmatpush2.bf16.msra.mxu0 %v3958
  %5329 = vmatprep.subr.bf16.mxu0 %v3955
  %5330 = vmatpush2.bf16.msra.mxu0 %v3954
  %5331 = vmatprep.subr.bf16.mxu0 %v3951
  %5332 = vmatpush2.bf16.msra.mxu0 %v3950
  %5333 = vmatprep.mubr.bf16.mxu0 %v960
  %5334 = vmatmul.mubr.bf16.gmra.mxu0 %v959
  %v5335 = vpop.f32.mrf.mxu0
  %v5336 = vadd.f32 %v5293, %v5335
  %v5337 = vpop.f32.mrf.mxu0
  %v5338 = vadd.f32 %v5295, %v5337
  %v5339 = vpop.f32.mrf.mxu0
  %v5340 = vadd.f32 %v5297, %v5339
  %v5341 = vpop.f32.mrf.mxu0
  %v5342 = vadd.f32 %v5299, %v5341
  %5343 = vdwg.mxu0
  %5344 = vmatprep.subr.bf16.mxu0 %v4011
  %5345 = vmatpush1.bf16.msra.mxu0 %v4010
  %5346 = vmatprep.subr.bf16.mxu0 %v4007
  %5347 = vmatpush1.bf16.msra.mxu0 %v4006
  %5348 = vmatprep.subr.bf16.mxu0 %v4003
  %5349 = vmatpush1.bf16.msra.mxu0 %v4002
  %5350 = vmatprep.subr.bf16.mxu0 %v3999
  %5351 = vmatpush1.bf16.msra.mxu0 %v3998
  %5352 = vmatprep.subr.bf16.mxu0 %v3995
  %5353 = vmatpush1.bf16.msra.mxu0 %v3994
  %5354 = vmatprep.subr.bf16.mxu0 %v3991
  %5355 = vmatpush1.bf16.msra.mxu0 %v3990
  %5356 = vmatprep.subr.bf16.mxu0 %v3987
  %5357 = vmatpush1.bf16.msra.mxu0 %v3986
  %5358 = vmatprep.subr.bf16.mxu0 %v3983
  %5359 = vmatpush1.bf16.msra.mxu0 %v3982
  %5360 = vmatprep.subr.bf16.mxu0 %v4043
  %5361 = vmatpush2.bf16.msra.mxu0 %v4042
  %5362 = vmatprep.subr.bf16.mxu0 %v4039
  %5363 = vmatpush2.bf16.msra.mxu0 %v4038
  %5364 = vmatprep.subr.bf16.mxu0 %v4035
  %5365 = vmatpush2.bf16.msra.mxu0 %v4034
  %5366 = vmatprep.subr.bf16.mxu0 %v4031
  %5367 = vmatpush2.bf16.msra.mxu0 %v4030
  %5368 = vmatprep.subr.bf16.mxu0 %v4027
  %5369 = vmatpush2.bf16.msra.mxu0 %v4026
  %5370 = vmatprep.subr.bf16.mxu0 %v4023
  %5371 = vmatpush2.bf16.msra.mxu0 %v4022
  %5372 = vmatprep.subr.bf16.mxu0 %v4019
  %5373 = vmatpush2.bf16.msra.mxu0 %v4018
  %5374 = vmatprep.subr.bf16.mxu0 %v4015
  %5375 = vmatpush2.bf16.msra.mxu0 %v4014
  %5376 = vmatprep.mubr.bf16.mxu0 %v962
  %5377 = vmatmul.mubr.bf16.gmra.mxu0 %v961
  %v5378 = vpop.f32.mrf.mxu0
  %v5379 = vadd.f32 %v5336, %v5378
  %v5380 = vpop.f32.mrf.mxu0
  %v5381 = vadd.f32 %v5338, %v5380
  %v5382 = vpop.f32.mrf.mxu0
  %v5383 = vadd.f32 %v5340, %v5382
  %v5384 = vpop.f32.mrf.mxu0
  %v5385 = vadd.f32 %v5342, %v5384
  %5386 = vdwg.mxu0
  %5387 = vmatprep.subr.bf16.mxu0 %v4075
  %5388 = vmatpush1.bf16.msra.mxu0 %v4074
  %5389 = vmatprep.subr.bf16.mxu0 %v4071
  %5390 = vmatpush1.bf16.msra.mxu0 %v4070
  %5391 = vmatprep.subr.bf16.mxu0 %v4067
  %5392 = vmatpush1.bf16.msra.mxu0 %v4066
  %5393 = vmatprep.subr.bf16.mxu0 %v4063
  %5394 = vmatpush1.bf16.msra.mxu0 %v4062
  %5395 = vmatprep.subr.bf16.mxu0 %v4059
  %5396 = vmatpush1.bf16.msra.mxu0 %v4058
  %5397 = vmatprep.subr.bf16.mxu0 %v4055
  %5398 = vmatpush1.bf16.msra.mxu0 %v4054
  %5399 = vmatprep.subr.bf16.mxu0 %v4051
  %5400 = vmatpush1.bf16.msra.mxu0 %v4050
  %5401 = vmatprep.subr.bf16.mxu0 %v4047
  %5402 = vmatpush1.bf16.msra.mxu0 %v4046
  %5403 = vmatprep.subr.bf16.mxu0 %v4107
  %5404 = vmatpush2.bf16.msra.mxu0 %v4106
  %5405 = vmatprep.subr.bf16.mxu0 %v4103
  %5406 = vmatpush2.bf16.msra.mxu0 %v4102
  %5407 = vmatprep.subr.bf16.mxu0 %v4099
  %5408 = vmatpush2.bf16.msra.mxu0 %v4098
  %5409 = vmatprep.subr.bf16.mxu0 %v4095
  %5410 = vmatpush2.bf16.msra.mxu0 %v4094
  %5411 = vmatprep.subr.bf16.mxu0 %v4091
  %5412 = vmatpush2.bf16.msra.mxu0 %v4090
  %5413 = vmatprep.subr.bf16.mxu0 %v4087
  %5414 = vmatpush2.bf16.msra.mxu0 %v4086
  %5415 = vmatprep.subr.bf16.mxu0 %v4083
  %5416 = vmatpush2.bf16.msra.mxu0 %v4082
  %5417 = vmatprep.subr.bf16.mxu0 %v4079
  %5418 = vmatpush2.bf16.msra.mxu0 %v4078
  %5419 = vmatprep.mubr.bf16.mxu0 %v964
  %5420 = vmatmul.mubr.bf16.gmra.mxu0 %v963
  %v5421 = vpop.f32.mrf.mxu0
  %v5422 = vadd.f32 %v5379, %v5421
  %v5423 = vpop.f32.mrf.mxu0
  %v5424 = vadd.f32 %v5381, %v5423
  %v5425 = vpop.f32.mrf.mxu0
  %v5426 = vadd.f32 %v5383, %v5425
  %v5427 = vpop.f32.mrf.mxu0
  %v5428 = vadd.f32 %v5385, %v5427
  %5429 = vdwg.mxu0
  %5430 = vmatprep.subr.bf16.mxu0 0
  %5431 = vmatpush1.bf16.msra.mxu0 0
  %5432 = vmatprep.subr.bf16.mxu0 0
  %5433 = vmatpush1.bf16.msra.mxu0 0
  %5434 = vmatprep.subr.bf16.mxu0 0
  %5435 = vmatpush1.bf16.msra.mxu0 0
  %5436 = vmatprep.subr.bf16.mxu0 0
  %5437 = vmatpush1.bf16.msra.mxu0 0
  %5438 = vmatprep.subr.bf16.mxu0 %v4123
  %5439 = vmatpush1.bf16.msra.mxu0 %v4122
  %5440 = vmatprep.subr.bf16.mxu0 %v4119
  %5441 = vmatpush1.bf16.msra.mxu0 %v4118
  %5442 = vmatprep.subr.bf16.mxu0 %v4115
  %5443 = vmatpush1.bf16.msra.mxu0 %v4114
  %5444 = vmatprep.subr.bf16.mxu0 %v4111
  %5445 = vmatpush1.bf16.msra.mxu0 %v4110
  %5446 = vmatprep.subr.bf16.mxu0 0
  %5447 = vmatpush2.bf16.msra.mxu0 0
  %5448 = vmatprep.subr.bf16.mxu0 0
  %5449 = vmatpush2.bf16.msra.mxu0 0
  %5450 = vmatprep.subr.bf16.mxu0 0
  %5451 = vmatpush2.bf16.msra.mxu0 0
  %5452 = vmatprep.subr.bf16.mxu0 0
  %5453 = vmatpush2.bf16.msra.mxu0 0
  %5454 = vmatprep.subr.bf16.mxu0 0
  %5455 = vmatpush2.bf16.msra.mxu0 0
  %5456 = vmatprep.subr.bf16.mxu0 0
  %5457 = vmatpush2.bf16.msra.mxu0 0
  %5458 = vmatprep.subr.bf16.mxu0 0
  %5459 = vmatpush2.bf16.msra.mxu0 0
  %5460 = vmatprep.subr.bf16.mxu0 0
  %5461 = vmatpush2.bf16.msra.mxu0 0
  %5462 = vmatprep.mubr.bf16.mxu0 0
  %5463 = vmatmul.mubr.bf16.gmra.mxu0 %v4912
  %v5464 = vpop.f32.mrf.mxu0
  %v5465 = vadd.f32 %v5422, %v5464
  %v5466 = vpop.f32.mrf.mxu0
  %v5467 = vadd.f32 %v5424, %v5466
  %v5468 = vpop.f32.mrf.mxu0
  %v5469 = vadd.f32 %v5426, %v5468
  %v5470 = vpop.f32.mrf.mxu0
  %v5471 = vadd.f32 %v5428, %v5470
  %5472 = vdwg.mxu0
  %5473 = vmatprep.subr.bf16.mxu0 %v3373
  %5474 = vmatpush1.bf16.msra.mxu0 %v3372
  %5475 = vmatprep.subr.bf16.mxu0 %v3369
  %5476 = vmatpush1.bf16.msra.mxu0 %v3368
  %5477 = vmatprep.subr.bf16.mxu0 %v3365
  %5478 = vmatpush1.bf16.msra.mxu0 %v3364
  %5479 = vmatprep.subr.bf16.mxu0 %v3361
  %5480 = vmatpush1.bf16.msra.mxu0 %v3360
  %5481 = vmatprep.subr.bf16.mxu0 %v3357
  %5482 = vmatpush1.bf16.msra.mxu0 %v3356
  %5483 = vmatprep.subr.bf16.mxu0 %v3353
  %5484 = vmatpush1.bf16.msra.mxu0 %v3352
  %5485 = vmatprep.subr.bf16.mxu0 %v3349
  %5486 = vmatpush1.bf16.msra.mxu0 %v3348
  %5487 = vmatprep.subr.bf16.mxu0 %v3345
  %5488 = vmatpush1.bf16.msra.mxu0 %v3344
  %5489 = vmatprep.subr.bf16.mxu0 %v3405
  %5490 = vmatpush2.bf16.msra.mxu0 %v3404
  %5491 = vmatprep.subr.bf16.mxu0 %v3401
  %5492 = vmatpush2.bf16.msra.mxu0 %v3400
  %5493 = vmatprep.subr.bf16.mxu0 %v3397
  %5494 = vmatpush2.bf16.msra.mxu0 %v3396
  %5495 = vmatprep.subr.bf16.mxu0 %v3393
  %5496 = vmatpush2.bf16.msra.mxu0 %v3392
  %5497 = vmatprep.subr.bf16.mxu0 %v3389
  %5498 = vmatpush2.bf16.msra.mxu0 %v3388
  %5499 = vmatprep.subr.bf16.mxu0 %v3385
  %5500 = vmatpush2.bf16.msra.mxu0 %v3384
  %5501 = vmatprep.subr.bf16.mxu0 %v3381
  %5502 = vmatpush2.bf16.msra.mxu0 %v3380
  %5503 = vmatprep.subr.bf16.mxu0 %v3377
  %5504 = vmatpush2.bf16.msra.mxu0 %v3376
  %5505 = vmatprep.mubr.bf16.mxu0 %v942
  %5506 = vmatmul.mubr.bf16.gmra.mxu0 %v941
  %v5507 = vpop.f32.mrf.mxu0
  %v5508 = vadd.f32 %v856, %v5507
  %v5509 = vpop.f32.mrf.mxu0
  %v5510 = vadd.f32 %v860, %v5509
  %v5511 = vpop.f32.mrf.mxu0
  %v5512 = vadd.f32 %v856, %v5511
  %v5513 = vpop.f32.mrf.mxu0
  %v5514 = vadd.f32 %v860, %v5513
  %5515 = vdwg.mxu0
  %5516 = vmatprep.subr.bf16.mxu0 %v3437
  %5517 = vmatpush1.bf16.msra.mxu0 %v3436
  %5518 = vmatprep.subr.bf16.mxu0 %v3433
  %5519 = vmatpush1.bf16.msra.mxu0 %v3432
  %5520 = vmatprep.subr.bf16.mxu0 %v3429
  %5521 = vmatpush1.bf16.msra.mxu0 %v3428
  %5522 = vmatprep.subr.bf16.mxu0 %v3425
  %5523 = vmatpush1.bf16.msra.mxu0 %v3424
  %5524 = vmatprep.subr.bf16.mxu0 %v3421
  %5525 = vmatpush1.bf16.msra.mxu0 %v3420
  %5526 = vmatprep.subr.bf16.mxu0 %v3417
  %5527 = vmatpush1.bf16.msra.mxu0 %v3416
  %5528 = vmatprep.subr.bf16.mxu0 %v3413
  %5529 = vmatpush1.bf16.msra.mxu0 %v3412
  %5530 = vmatprep.subr.bf16.mxu0 %v3409
  %5531 = vmatpush1.bf16.msra.mxu0 %v3408
  %5532 = vmatprep.subr.bf16.mxu0 %v3469
  %5533 = vmatpush2.bf16.msra.mxu0 %v3468
  %5534 = vmatprep.subr.bf16.mxu0 %v3465
  %5535 = vmatpush2.bf16.msra.mxu0 %v3464
  %5536 = vmatprep.subr.bf16.mxu0 %v3461
  %5537 = vmatpush2.bf16.msra.mxu0 %v3460
  %5538 = vmatprep.subr.bf16.mxu0 %v3457
  %5539 = vmatpush2.bf16.msra.mxu0 %v3456
  %5540 = vmatprep.subr.bf16.mxu0 %v3453
  %5541 = vmatpush2.bf16.msra.mxu0 %v3452
  %5542 = vmatprep.subr.bf16.mxu0 %v3449
  %5543 = vmatpush2.bf16.msra.mxu0 %v3448
  %5544 = vmatprep.subr.bf16.mxu0 %v3445
  %5545 = vmatpush2.bf16.msra.mxu0 %v3444
  %5546 = vmatprep.subr.bf16.mxu0 %v3441
  %5547 = vmatpush2.bf16.msra.mxu0 %v3440
  %5548 = vmatprep.mubr.bf16.mxu0 %v944
  %5549 = vmatmul.mubr.bf16.gmra.mxu0 %v943
  %v5550 = vpop.f32.mrf.mxu0
  %v5551 = vadd.f32 %v5508, %v5550
  %v5552 = vpop.f32.mrf.mxu0
  %v5553 = vadd.f32 %v5510, %v5552
  %v5554 = vpop.f32.mrf.mxu0
  %v5555 = vadd.f32 %v5512, %v5554
  %v5556 = vpop.f32.mrf.mxu0
  %v5557 = vadd.f32 %v5514, %v5556
  %5558 = vdwg.mxu0
  %5559 = vmatprep.subr.bf16.mxu0 %v3501
  %5560 = vmatpush1.bf16.msra.mxu0 %v3500
  %5561 = vmatprep.subr.bf16.mxu0 %v3497
  %5562 = vmatpush1.bf16.msra.mxu0 %v3496
  %5563 = vmatprep.subr.bf16.mxu0 %v3493
  %5564 = vmatpush1.bf16.msra.mxu0 %v3492
  %5565 = vmatprep.subr.bf16.mxu0 %v3489
  %5566 = vmatpush1.bf16.msra.mxu0 %v3488
  %5567 = vmatprep.subr.bf16.mxu0 %v3485
  %5568 = vmatpush1.bf16.msra.mxu0 %v3484
  %5569 = vmatprep.subr.bf16.mxu0 %v3481
  %5570 = vmatpush1.bf16.msra.mxu0 %v3480
  %5571 = vmatprep.subr.bf16.mxu0 %v3477
  %5572 = vmatpush1.bf16.msra.mxu0 %v3476
  %5573 = vmatprep.subr.bf16.mxu0 %v3473
  %5574 = vmatpush1.bf16.msra.mxu0 %v3472
  %5575 = vmatprep.subr.bf16.mxu0 %v3533
  %5576 = vmatpush2.bf16.msra.mxu0 %v3532
  %5577 = vmatprep.subr.bf16.mxu0 %v3529
  %5578 = vmatpush2.bf16.msra.mxu0 %v3528
  %5579 = vmatprep.subr.bf16.mxu0 %v3525
  %5580 = vmatpush2.bf16.msra.mxu0 %v3524
  %5581 = vmatprep.subr.bf16.mxu0 %v3521
  %5582 = vmatpush2.bf16.msra.mxu0 %v3520
  %5583 = vmatprep.subr.bf16.mxu0 %v3517
  %5584 = vmatpush2.bf16.msra.mxu0 %v3516
  %5585 = vmatprep.subr.bf16.mxu0 %v3513
  %5586 = vmatpush2.bf16.msra.mxu0 %v3512
  %5587 = vmatprep.subr.bf16.mxu0 %v3509
  %5588 = vmatpush2.bf16.msra.mxu0 %v3508
  %5589 = vmatprep.subr.bf16.mxu0 %v3505
  %5590 = vmatpush2.bf16.msra.mxu0 %v3504
  %5591 = vmatprep.mubr.bf16.mxu0 %v946
  %5592 = vmatmul.mubr.bf16.gmra.mxu0 %v945
  %v5593 = vpop.f32.mrf.mxu0
  %v5594 = vadd.f32 %v5551, %v5593
  %v5595 = vpop.f32.mrf.mxu0
  %v5596 = vadd.f32 %v5553, %v5595
  %v5597 = vpop.f32.mrf.mxu0
  %v5598 = vadd.f32 %v5555, %v5597
  %v5599 = vpop.f32.mrf.mxu0
  %v5600 = vadd.f32 %v5557, %v5599
  %5601 = vdwg.mxu0
  %5602 = vmatprep.subr.bf16.mxu0 %v3565
  %5603 = vmatpush1.bf16.msra.mxu0 %v3564
  %5604 = vmatprep.subr.bf16.mxu0 %v3561
  %5605 = vmatpush1.bf16.msra.mxu0 %v3560
  %5606 = vmatprep.subr.bf16.mxu0 %v3557
  %5607 = vmatpush1.bf16.msra.mxu0 %v3556
  %5608 = vmatprep.subr.bf16.mxu0 %v3553
  %5609 = vmatpush1.bf16.msra.mxu0 %v3552
  %5610 = vmatprep.subr.bf16.mxu0 %v3549
  %5611 = vmatpush1.bf16.msra.mxu0 %v3548
  %5612 = vmatprep.subr.bf16.mxu0 %v3545
  %5613 = vmatpush1.bf16.msra.mxu0 %v3544
  %5614 = vmatprep.subr.bf16.mxu0 %v3541
  %5615 = vmatpush1.bf16.msra.mxu0 %v3540
  %5616 = vmatprep.subr.bf16.mxu0 %v3537
  %5617 = vmatpush1.bf16.msra.mxu0 %v3536
  %5618 = vmatprep.subr.bf16.mxu0 %v3597
  %5619 = vmatpush2.bf16.msra.mxu0 %v3596
  %5620 = vmatprep.subr.bf16.mxu0 %v3593
  %5621 = vmatpush2.bf16.msra.mxu0 %v3592
  %5622 = vmatprep.subr.bf16.mxu0 %v3589
  %5623 = vmatpush2.bf16.msra.mxu0 %v3588
  %5624 = vmatprep.subr.bf16.mxu0 %v3585
  %5625 = vmatpush2.bf16.msra.mxu0 %v3584
  %5626 = vmatprep.subr.bf16.mxu0 %v3581
  %5627 = vmatpush2.bf16.msra.mxu0 %v3580
  %5628 = vmatprep.subr.bf16.mxu0 %v3577
  %5629 = vmatpush2.bf16.msra.mxu0 %v3576
  %5630 = vmatprep.subr.bf16.mxu0 %v3573
  %5631 = vmatpush2.bf16.msra.mxu0 %v3572
  %5632 = vmatprep.subr.bf16.mxu0 %v3569
  %5633 = vmatpush2.bf16.msra.mxu0 %v3568
  %5634 = vmatprep.mubr.bf16.mxu0 %v948
  %5635 = vmatmul.mubr.bf16.gmra.mxu0 %v947
  %v5636 = vpop.f32.mrf.mxu0
  %v5637 = vadd.f32 %v5594, %v5636
  %v5638 = vpop.f32.mrf.mxu0
  %v5639 = vadd.f32 %v5596, %v5638
  %v5640 = vpop.f32.mrf.mxu0
  %v5641 = vadd.f32 %v5598, %v5640
  %v5642 = vpop.f32.mrf.mxu0
  %v5643 = vadd.f32 %v5600, %v5642
  %5644 = vdwg.mxu0
  %5645 = vmatprep.subr.bf16.mxu0 %v3629
  %5646 = vmatpush1.bf16.msra.mxu0 %v3628
  %5647 = vmatprep.subr.bf16.mxu0 %v3625
  %5648 = vmatpush1.bf16.msra.mxu0 %v3624
  %5649 = vmatprep.subr.bf16.mxu0 %v3621
  %5650 = vmatpush1.bf16.msra.mxu0 %v3620
  %5651 = vmatprep.subr.bf16.mxu0 %v3617
  %5652 = vmatpush1.bf16.msra.mxu0 %v3616
  %5653 = vmatprep.subr.bf16.mxu0 %v3613
  %5654 = vmatpush1.bf16.msra.mxu0 %v3612
  %5655 = vmatprep.subr.bf16.mxu0 %v3609
  %5656 = vmatpush1.bf16.msra.mxu0 %v3608
  %5657 = vmatprep.subr.bf16.mxu0 %v3605
  %5658 = vmatpush1.bf16.msra.mxu0 %v3604
  %5659 = vmatprep.subr.bf16.mxu0 %v3601
  %5660 = vmatpush1.bf16.msra.mxu0 %v3600
  %5661 = vmatprep.subr.bf16.mxu0 %v3661
  %5662 = vmatpush2.bf16.msra.mxu0 %v3660
  %5663 = vmatprep.subr.bf16.mxu0 %v3657
  %5664 = vmatpush2.bf16.msra.mxu0 %v3656
  %5665 = vmatprep.subr.bf16.mxu0 %v3653
  %5666 = vmatpush2.bf16.msra.mxu0 %v3652
  %5667 = vmatprep.subr.bf16.mxu0 %v3649
  %5668 = vmatpush2.bf16.msra.mxu0 %v3648
  %5669 = vmatprep.subr.bf16.mxu0 %v3645
  %5670 = vmatpush2.bf16.msra.mxu0 %v3644
  %5671 = vmatprep.subr.bf16.mxu0 %v3641
  %5672 = vmatpush2.bf16.msra.mxu0 %v3640
  %5673 = vmatprep.subr.bf16.mxu0 %v3637
  %5674 = vmatpush2.bf16.msra.mxu0 %v3636
  %5675 = vmatprep.subr.bf16.mxu0 %v3633
  %5676 = vmatpush2.bf16.msra.mxu0 %v3632
  %5677 = vmatprep.mubr.bf16.mxu0 %v950
  %5678 = vmatmul.mubr.bf16.gmra.mxu0 %v949
  %v5679 = vpop.f32.mrf.mxu0
  %v5680 = vadd.f32 %v5637, %v5679
  %v5681 = vpop.f32.mrf.mxu0
  %v5682 = vadd.f32 %v5639, %v5681
  %v5683 = vpop.f32.mrf.mxu0
  %v5684 = vadd.f32 %v5641, %v5683
  %v5685 = vpop.f32.mrf.mxu0
  %v5686 = vadd.f32 %v5643, %v5685
  %5687 = vdwg.mxu0
  %5688 = vmatprep.subr.bf16.mxu0 %v3693
  %5689 = vmatpush1.bf16.msra.mxu0 %v3692
  %5690 = vmatprep.subr.bf16.mxu0 %v3689
  %5691 = vmatpush1.bf16.msra.mxu0 %v3688
  %5692 = vmatprep.subr.bf16.mxu0 %v3685
  %5693 = vmatpush1.bf16.msra.mxu0 %v3684
  %5694 = vmatprep.subr.bf16.mxu0 %v3681
  %5695 = vmatpush1.bf16.msra.mxu0 %v3680
  %5696 = vmatprep.subr.bf16.mxu0 %v3677
  %5697 = vmatpush1.bf16.msra.mxu0 %v3676
  %5698 = vmatprep.subr.bf16.mxu0 %v3673
  %5699 = vmatpush1.bf16.msra.mxu0 %v3672
  %5700 = vmatprep.subr.bf16.mxu0 %v3669
  %5701 = vmatpush1.bf16.msra.mxu0 %v3668
  %5702 = vmatprep.subr.bf16.mxu0 %v3665
  %5703 = vmatpush1.bf16.msra.mxu0 %v3664
  %5704 = vmatprep.subr.bf16.mxu0 %v3725
  %5705 = vmatpush2.bf16.msra.mxu0 %v3724
  %5706 = vmatprep.subr.bf16.mxu0 %v3721
  %5707 = vmatpush2.bf16.msra.mxu0 %v3720
  %5708 = vmatprep.subr.bf16.mxu0 %v3717
  %5709 = vmatpush2.bf16.msra.mxu0 %v3716
  %5710 = vmatprep.subr.bf16.mxu0 %v3713
  %5711 = vmatpush2.bf16.msra.mxu0 %v3712
  %5712 = vmatprep.subr.bf16.mxu0 %v3709
  %5713 = vmatpush2.bf16.msra.mxu0 %v3708
  %5714 = vmatprep.subr.bf16.mxu0 %v3705
  %5715 = vmatpush2.bf16.msra.mxu0 %v3704
  %5716 = vmatprep.subr.bf16.mxu0 %v3701
  %5717 = vmatpush2.bf16.msra.mxu0 %v3700
  %5718 = vmatprep.subr.bf16.mxu0 %v3697
  %5719 = vmatpush2.bf16.msra.mxu0 %v3696
  %5720 = vmatprep.mubr.bf16.mxu0 %v952
  %5721 = vmatmul.mubr.bf16.gmra.mxu0 %v951
  %v5722 = vpop.f32.mrf.mxu0
  %v5723 = vadd.f32 %v5680, %v5722
  %v5724 = vpop.f32.mrf.mxu0
  %v5725 = vadd.f32 %v5682, %v5724
  %v5726 = vpop.f32.mrf.mxu0
  %v5727 = vadd.f32 %v5684, %v5726
  %v5728 = vpop.f32.mrf.mxu0
  %v5729 = vadd.f32 %v5686, %v5728
  %5730 = vdwg.mxu0
  %5731 = vmatprep.subr.bf16.mxu0 %v3757
  %5732 = vmatpush1.bf16.msra.mxu0 %v3756
  %5733 = vmatprep.subr.bf16.mxu0 %v3753
  %5734 = vmatpush1.bf16.msra.mxu0 %v3752
  %5735 = vmatprep.subr.bf16.mxu0 %v3749
  %5736 = vmatpush1.bf16.msra.mxu0 %v3748
  %5737 = vmatprep.subr.bf16.mxu0 %v3745
  %5738 = vmatpush1.bf16.msra.mxu0 %v3744
  %5739 = vmatprep.subr.bf16.mxu0 %v3741
  %5740 = vmatpush1.bf16.msra.mxu0 %v3740
  %5741 = vmatprep.subr.bf16.mxu0 %v3737
  %5742 = vmatpush1.bf16.msra.mxu0 %v3736
  %5743 = vmatprep.subr.bf16.mxu0 %v3733
  %5744 = vmatpush1.bf16.msra.mxu0 %v3732
  %5745 = vmatprep.subr.bf16.mxu0 %v3729
  %5746 = vmatpush1.bf16.msra.mxu0 %v3728
  %5747 = vmatprep.subr.bf16.mxu0 %v3789
  %5748 = vmatpush2.bf16.msra.mxu0 %v3788
  %5749 = vmatprep.subr.bf16.mxu0 %v3785
  %5750 = vmatpush2.bf16.msra.mxu0 %v3784
  %5751 = vmatprep.subr.bf16.mxu0 %v3781
  %5752 = vmatpush2.bf16.msra.mxu0 %v3780
  %5753 = vmatprep.subr.bf16.mxu0 %v3777
  %5754 = vmatpush2.bf16.msra.mxu0 %v3776
  %5755 = vmatprep.subr.bf16.mxu0 %v3773
  %5756 = vmatpush2.bf16.msra.mxu0 %v3772
  %5757 = vmatprep.subr.bf16.mxu0 %v3769
  %5758 = vmatpush2.bf16.msra.mxu0 %v3768
  %5759 = vmatprep.subr.bf16.mxu0 %v3765
  %5760 = vmatpush2.bf16.msra.mxu0 %v3764
  %5761 = vmatprep.subr.bf16.mxu0 %v3761
  %5762 = vmatpush2.bf16.msra.mxu0 %v3760
  %5763 = vmatprep.mubr.bf16.mxu0 %v954
  %5764 = vmatmul.mubr.bf16.gmra.mxu0 %v953
  %v5765 = vpop.f32.mrf.mxu0
  %v5766 = vadd.f32 %v5723, %v5765
  %v5767 = vpop.f32.mrf.mxu0
  %v5768 = vadd.f32 %v5725, %v5767
  %v5769 = vpop.f32.mrf.mxu0
  %v5770 = vadd.f32 %v5727, %v5769
  %v5771 = vpop.f32.mrf.mxu0
  %v5772 = vadd.f32 %v5729, %v5771
  %5773 = vdwg.mxu0
  %5774 = vmatprep.subr.bf16.mxu0 %v3821
  %5775 = vmatpush1.bf16.msra.mxu0 %v3820
  %5776 = vmatprep.subr.bf16.mxu0 %v3817
  %5777 = vmatpush1.bf16.msra.mxu0 %v3816
  %5778 = vmatprep.subr.bf16.mxu0 %v3813
  %5779 = vmatpush1.bf16.msra.mxu0 %v3812
  %5780 = vmatprep.subr.bf16.mxu0 %v3809
  %5781 = vmatpush1.bf16.msra.mxu0 %v3808
  %5782 = vmatprep.subr.bf16.mxu0 %v3805
  %5783 = vmatpush1.bf16.msra.mxu0 %v3804
  %5784 = vmatprep.subr.bf16.mxu0 %v3801
  %5785 = vmatpush1.bf16.msra.mxu0 %v3800
  %5786 = vmatprep.subr.bf16.mxu0 %v3797
  %5787 = vmatpush1.bf16.msra.mxu0 %v3796
  %5788 = vmatprep.subr.bf16.mxu0 %v3793
  %5789 = vmatpush1.bf16.msra.mxu0 %v3792
  %5790 = vmatprep.subr.bf16.mxu0 %v3853
  %5791 = vmatpush2.bf16.msra.mxu0 %v3852
  %5792 = vmatprep.subr.bf16.mxu0 %v3849
  %5793 = vmatpush2.bf16.msra.mxu0 %v3848
  %5794 = vmatprep.subr.bf16.mxu0 %v3845
  %5795 = vmatpush2.bf16.msra.mxu0 %v3844
  %5796 = vmatprep.subr.bf16.mxu0 %v3841
  %5797 = vmatpush2.bf16.msra.mxu0 %v3840
  %5798 = vmatprep.subr.bf16.mxu0 %v3837
  %5799 = vmatpush2.bf16.msra.mxu0 %v3836
  %5800 = vmatprep.subr.bf16.mxu0 %v3833
  %5801 = vmatpush2.bf16.msra.mxu0 %v3832
  %5802 = vmatprep.subr.bf16.mxu0 %v3829
  %5803 = vmatpush2.bf16.msra.mxu0 %v3828
  %5804 = vmatprep.subr.bf16.mxu0 %v3825
  %5805 = vmatpush2.bf16.msra.mxu0 %v3824
  %5806 = vmatprep.mubr.bf16.mxu0 %v956
  %5807 = vmatmul.mubr.bf16.gmra.mxu0 %v955
  %v5808 = vpop.f32.mrf.mxu0
  %v5809 = vadd.f32 %v5766, %v5808
  %v5810 = vpop.f32.mrf.mxu0
  %v5811 = vadd.f32 %v5768, %v5810
  %v5812 = vpop.f32.mrf.mxu0
  %v5813 = vadd.f32 %v5770, %v5812
  %v5814 = vpop.f32.mrf.mxu0
  %v5815 = vadd.f32 %v5772, %v5814
  %5816 = vdwg.mxu0
  %5817 = vmatprep.subr.bf16.mxu0 %v3885
  %5818 = vmatpush1.bf16.msra.mxu0 %v3884
  %5819 = vmatprep.subr.bf16.mxu0 %v3881
  %5820 = vmatpush1.bf16.msra.mxu0 %v3880
  %5821 = vmatprep.subr.bf16.mxu0 %v3877
  %5822 = vmatpush1.bf16.msra.mxu0 %v3876
  %5823 = vmatprep.subr.bf16.mxu0 %v3873
  %5824 = vmatpush1.bf16.msra.mxu0 %v3872
  %5825 = vmatprep.subr.bf16.mxu0 %v3869
  %5826 = vmatpush1.bf16.msra.mxu0 %v3868
  %5827 = vmatprep.subr.bf16.mxu0 %v3865
  %5828 = vmatpush1.bf16.msra.mxu0 %v3864
  %5829 = vmatprep.subr.bf16.mxu0 %v3861
  %5830 = vmatpush1.bf16.msra.mxu0 %v3860
  %5831 = vmatprep.subr.bf16.mxu0 %v3857
  %5832 = vmatpush1.bf16.msra.mxu0 %v3856
  %5833 = vmatprep.subr.bf16.mxu0 %v3917
  %5834 = vmatpush2.bf16.msra.mxu0 %v3916
  %5835 = vmatprep.subr.bf16.mxu0 %v3913
  %5836 = vmatpush2.bf16.msra.mxu0 %v3912
  %5837 = vmatprep.subr.bf16.mxu0 %v3909
  %5838 = vmatpush2.bf16.msra.mxu0 %v3908
  %5839 = vmatprep.subr.bf16.mxu0 %v3905
  %5840 = vmatpush2.bf16.msra.mxu0 %v3904
  %5841 = vmatprep.subr.bf16.mxu0 %v3901
  %5842 = vmatpush2.bf16.msra.mxu0 %v3900
  %5843 = vmatprep.subr.bf16.mxu0 %v3897
  %5844 = vmatpush2.bf16.msra.mxu0 %v3896
  %5845 = vmatprep.subr.bf16.mxu0 %v3893
  %5846 = vmatpush2.bf16.msra.mxu0 %v3892
  %5847 = vmatprep.subr.bf16.mxu0 %v3889
  %5848 = vmatpush2.bf16.msra.mxu0 %v3888
  %5849 = vmatprep.mubr.bf16.mxu0 %v958
  %5850 = vmatmul.mubr.bf16.gmra.mxu0 %v957
  %v5851 = vpop.f32.mrf.mxu0
  %v5852 = vadd.f32 %v5809, %v5851
  %v5853 = vpop.f32.mrf.mxu0
  %v5854 = vadd.f32 %v5811, %v5853
  %v5855 = vpop.f32.mrf.mxu0
  %v5856 = vadd.f32 %v5813, %v5855
  %v5857 = vpop.f32.mrf.mxu0
  %v5858 = vadd.f32 %v5815, %v5857
  %5859 = vdwg.mxu0
  %5860 = vmatprep.subr.bf16.mxu0 %v3949
  %5861 = vmatpush1.bf16.msra.mxu0 %v3948
  %5862 = vmatprep.subr.bf16.mxu0 %v3945
  %5863 = vmatpush1.bf16.msra.mxu0 %v3944
  %5864 = vmatprep.subr.bf16.mxu0 %v3941
  %5865 = vmatpush1.bf16.msra.mxu0 %v3940
  %5866 = vmatprep.subr.bf16.mxu0 %v3937
  %5867 = vmatpush1.bf16.msra.mxu0 %v3936
  %5868 = vmatprep.subr.bf16.mxu0 %v3933
  %5869 = vmatpush1.bf16.msra.mxu0 %v3932
  %5870 = vmatprep.subr.bf16.mxu0 %v3929
  %5871 = vmatpush1.bf16.msra.mxu0 %v3928
  %5872 = vmatprep.subr.bf16.mxu0 %v3925
  %5873 = vmatpush1.bf16.msra.mxu0 %v3924
  %5874 = vmatprep.subr.bf16.mxu0 %v3921
  %5875 = vmatpush1.bf16.msra.mxu0 %v3920
  %5876 = vmatprep.subr.bf16.mxu0 %v3981
  %5877 = vmatpush2.bf16.msra.mxu0 %v3980
  %5878 = vmatprep.subr.bf16.mxu0 %v3977
  %5879 = vmatpush2.bf16.msra.mxu0 %v3976
  %5880 = vmatprep.subr.bf16.mxu0 %v3973
  %5881 = vmatpush2.bf16.msra.mxu0 %v3972
  %5882 = vmatprep.subr.bf16.mxu0 %v3969
  %5883 = vmatpush2.bf16.msra.mxu0 %v3968
  %5884 = vmatprep.subr.bf16.mxu0 %v3965
  %5885 = vmatpush2.bf16.msra.mxu0 %v3964
  %5886 = vmatprep.subr.bf16.mxu0 %v3961
  %5887 = vmatpush2.bf16.msra.mxu0 %v3960
  %5888 = vmatprep.subr.bf16.mxu0 %v3957
  %5889 = vmatpush2.bf16.msra.mxu0 %v3956
  %5890 = vmatprep.subr.bf16.mxu0 %v3953
  %5891 = vmatpush2.bf16.msra.mxu0 %v3952
  %5892 = vmatprep.mubr.bf16.mxu0 %v960
  %5893 = vmatmul.mubr.bf16.gmra.mxu0 %v959
  %v5894 = vpop.f32.mrf.mxu0
  %v5895 = vadd.f32 %v5852, %v5894
  %v5896 = vpop.f32.mrf.mxu0
  %v5897 = vadd.f32 %v5854, %v5896
  %v5898 = vpop.f32.mrf.mxu0
  %v5899 = vadd.f32 %v5856, %v5898
  %v5900 = vpop.f32.mrf.mxu0
  %v5901 = vadd.f32 %v5858, %v5900
  %5902 = vdwg.mxu0
  %5903 = vmatprep.subr.bf16.mxu0 %v4013
  %5904 = vmatpush1.bf16.msra.mxu0 %v4012
  %5905 = vmatprep.subr.bf16.mxu0 %v4009
  %5906 = vmatpush1.bf16.msra.mxu0 %v4008
  %5907 = vmatprep.subr.bf16.mxu0 %v4005
  %5908 = vmatpush1.bf16.msra.mxu0 %v4004
  %5909 = vmatprep.subr.bf16.mxu0 %v4001
  %5910 = vmatpush1.bf16.msra.mxu0 %v4000
  %5911 = vmatprep.subr.bf16.mxu0 %v3997
  %5912 = vmatpush1.bf16.msra.mxu0 %v3996
  %5913 = vmatprep.subr.bf16.mxu0 %v3993
  %5914 = vmatpush1.bf16.msra.mxu0 %v3992
  %5915 = vmatprep.subr.bf16.mxu0 %v3989
  %5916 = vmatpush1.bf16.msra.mxu0 %v3988
  %5917 = vmatprep.subr.bf16.mxu0 %v3985
  %5918 = vmatpush1.bf16.msra.mxu0 %v3984
  %5919 = vmatprep.subr.bf16.mxu0 %v4045
  %5920 = vmatpush2.bf16.msra.mxu0 %v4044
  %5921 = vmatprep.subr.bf16.mxu0 %v4041
  %5922 = vmatpush2.bf16.msra.mxu0 %v4040
  %5923 = vmatprep.subr.bf16.mxu0 %v4037
  %5924 = vmatpush2.bf16.msra.mxu0 %v4036
  %5925 = vmatprep.subr.bf16.mxu0 %v4033
  %5926 = vmatpush2.bf16.msra.mxu0 %v4032
  %5927 = vmatprep.subr.bf16.mxu0 %v4029
  %5928 = vmatpush2.bf16.msra.mxu0 %v4028
  %5929 = vmatprep.subr.bf16.mxu0 %v4025
  %5930 = vmatpush2.bf16.msra.mxu0 %v4024
  %5931 = vmatprep.subr.bf16.mxu0 %v4021
  %5932 = vmatpush2.bf16.msra.mxu0 %v4020
  %5933 = vmatprep.subr.bf16.mxu0 %v4017
  %5934 = vmatpush2.bf16.msra.mxu0 %v4016
  %5935 = vmatprep.mubr.bf16.mxu0 %v962
  %5936 = vmatmul.mubr.bf16.gmra.mxu0 %v961
  %v5937 = vpop.f32.mrf.mxu0
  %v5938 = vadd.f32 %v5895, %v5937
  %v5939 = vpop.f32.mrf.mxu0
  %v5940 = vadd.f32 %v5897, %v5939
  %v5941 = vpop.f32.mrf.mxu0
  %v5942 = vadd.f32 %v5899, %v5941
  %v5943 = vpop.f32.mrf.mxu0
  %v5944 = vadd.f32 %v5901, %v5943
  %5945 = vdwg.mxu0
  %5946 = vmatprep.subr.bf16.mxu0 %v4077
  %5947 = vmatpush1.bf16.msra.mxu0 %v4076
  %5948 = vmatprep.subr.bf16.mxu0 %v4073
  %5949 = vmatpush1.bf16.msra.mxu0 %v4072
  %5950 = vmatprep.subr.bf16.mxu0 %v4069
  %5951 = vmatpush1.bf16.msra.mxu0 %v4068
  %5952 = vmatprep.subr.bf16.mxu0 %v4065
  %5953 = vmatpush1.bf16.msra.mxu0 %v4064
  %5954 = vmatprep.subr.bf16.mxu0 %v4061
  %5955 = vmatpush1.bf16.msra.mxu0 %v4060
  %5956 = vmatprep.subr.bf16.mxu0 %v4057
  %5957 = vmatpush1.bf16.msra.mxu0 %v4056
  %5958 = vmatprep.subr.bf16.mxu0 %v4053
  %5959 = vmatpush1.bf16.msra.mxu0 %v4052
  %5960 = vmatprep.subr.bf16.mxu0 %v4049
  %5961 = vmatpush1.bf16.msra.mxu0 %v4048
  %5962 = vmatprep.subr.bf16.mxu0 %v4109
  %5963 = vmatpush2.bf16.msra.mxu0 %v4108
  %5964 = vmatprep.subr.bf16.mxu0 %v4105
  %5965 = vmatpush2.bf16.msra.mxu0 %v4104
  %5966 = vmatprep.subr.bf16.mxu0 %v4101
  %5967 = vmatpush2.bf16.msra.mxu0 %v4100
  %5968 = vmatprep.subr.bf16.mxu0 %v4097
  %5969 = vmatpush2.bf16.msra.mxu0 %v4096
  %5970 = vmatprep.subr.bf16.mxu0 %v4093
  %5971 = vmatpush2.bf16.msra.mxu0 %v4092
  %5972 = vmatprep.subr.bf16.mxu0 %v4089
  %5973 = vmatpush2.bf16.msra.mxu0 %v4088
  %5974 = vmatprep.subr.bf16.mxu0 %v4085
  %5975 = vmatpush2.bf16.msra.mxu0 %v4084
  %5976 = vmatprep.subr.bf16.mxu0 %v4081
  %5977 = vmatpush2.bf16.msra.mxu0 %v4080
  %5978 = vmatprep.mubr.bf16.mxu0 %v964
  %5979 = vmatmul.mubr.bf16.gmra.mxu0 %v963
  %v5980 = vpop.f32.mrf.mxu0
  %v5981 = vadd.f32 %v5938, %v5980
  %v5982 = vpop.f32.mrf.mxu0
  %v5983 = vadd.f32 %v5940, %v5982
  %v5984 = vpop.f32.mrf.mxu0
  %v5985 = vadd.f32 %v5942, %v5984
  %v5986 = vpop.f32.mrf.mxu0
  %v5987 = vadd.f32 %v5944, %v5986
  %5988 = vdwg.mxu0
  %5989 = vmatprep.subr.bf16.mxu0 0
  %5990 = vmatpush1.bf16.msra.mxu0 0
  %5991 = vmatprep.subr.bf16.mxu0 0
  %5992 = vmatpush1.bf16.msra.mxu0 0
  %5993 = vmatprep.subr.bf16.mxu0 0
  %5994 = vmatpush1.bf16.msra.mxu0 0
  %5995 = vmatprep.subr.bf16.mxu0 0
  %5996 = vmatpush1.bf16.msra.mxu0 0
  %5997 = vmatprep.subr.bf16.mxu0 %v4125
  %5998 = vmatpush1.bf16.msra.mxu0 %v4124
  %5999 = vmatprep.subr.bf16.mxu0 %v4121
  %6000 = vmatpush1.bf16.msra.mxu0 %v4120
  %6001 = vmatprep.subr.bf16.mxu0 %v4117
  %6002 = vmatpush1.bf16.msra.mxu0 %v4116
  %6003 = vmatprep.subr.bf16.mxu0 %v4113
  %6004 = vmatpush1.bf16.msra.mxu0 %v4112
  %6005 = vmatprep.subr.bf16.mxu0 0
  %6006 = vmatpush2.bf16.msra.mxu0 0
  %6007 = vmatprep.subr.bf16.mxu0 0
  %6008 = vmatpush2.bf16.msra.mxu0 0
  %6009 = vmatprep.subr.bf16.mxu0 0
  %6010 = vmatpush2.bf16.msra.mxu0 0
  %6011 = vmatprep.subr.bf16.mxu0 0
  %6012 = vmatpush2.bf16.msra.mxu0 0
  %6013 = vmatprep.subr.bf16.mxu0 0
  %6014 = vmatpush2.bf16.msra.mxu0 0
  %6015 = vmatprep.subr.bf16.mxu0 0
  %6016 = vmatpush2.bf16.msra.mxu0 0
  %6017 = vmatprep.subr.bf16.mxu0 0
  %6018 = vmatpush2.bf16.msra.mxu0 0
  %6019 = vmatprep.subr.bf16.mxu0 0
  %6020 = vmatpush2.bf16.msra.mxu0 0
  %6021 = vmatprep.mubr.bf16.mxu0 0
  %6022 = vmatmul.mubr.bf16.gmra.mxu0 %v4912
  %v6023 = vpop.f32.mrf.mxu0
  %v6024 = vadd.f32 %v5981, %v6023
  %v6025 = vpop.f32.mrf.mxu0
  %v6026 = vadd.f32 %v5983, %v6025
  %v6027 = vpop.f32.mrf.mxu0
  %v6028 = vadd.f32 %v5985, %v6027
  %v6029 = vpop.f32.mrf.mxu0
  %v6030 = vadd.f32 %v5987, %v6029
  %6031 = vdwg.mxu0
  %v6032 = vmax.f32 %v5465, 0.0
  %v6033 = vmax.f32 %v5467, 0.0
  %v6034 = vmax.f32 %v6024, 0.0
  %v6035 = vmax.f32 %v6026, 0.0
  %v6036 = vmax.f32 %v5469, 0.0
  %v6037 = vmax.f32 %v5471, 0.0
  %v6038 = vmax.f32 %v6028, 0.0
  %v6039 = vmax.f32 %v6030, 0.0
  %v6040 = vpack.c.bf16 %v6036, %v6032
  %v6041 = vpack.c.bf16 %v6037, %v6033
  %v6042 = vpack.c.bf16 %v6038, %v6034
  %v6043 = vpack.c.bf16 %v6039, %v6035
  %v6044 = vld [vmem:[%s4] sm:$0xff]
  %v6045 = vld [vmem:[%s4 + $0x8] sm:$0xff]
  %v6046 = vld [vmem:[%s4 + $0x10] sm:$0xff]
  %v6047 = vld [vmem:[%s4 + $0x18] sm:$0xff]
  %v6048 = vld [vmem:[%s4 + $0x20] sm:$0xff]
  %v6049 = vld [vmem:[%s4 + $0x28] sm:$0xff]
  %v6050 = vld [vmem:[%s4 + $0x30] sm:$0xff]
  %v6051 = vld [vmem:[%s4 + $0x38] sm:$0xff]
  %v6052 = vld [vmem:[%s4 + $0x40] sm:$0xff]
  %v6053 = vld [vmem:[%s4 + $0x48] sm:$0xff]
  %v6054 = vld [vmem:[%s4 + $0x50] sm:$0xff]
  %v6055 = vld [vmem:[%s4 + $0x58] sm:$0xff]
  %v6056 = vld [vmem:[%s4 + $0x60] sm:$0xff]
  %v6057 = vld [vmem:[%s4 + $0x68] sm:$0xff]
  %v6058 = vld [vmem:[%s4 + $0x70] sm:$0xff]
  %v6059 = vld [vmem:[%s4 + $0x78] sm:$0xff]
  %v6060 = vld [vmem:[%s4 + $0x80] sm:$0xff]
  %v6061 = vld [vmem:[%s4 + $0x88] sm:$0xff]
  %v6062 = vld [vmem:[%s4 + $0x90] sm:$0xff]
  %v6063 = vld [vmem:[%s4 + $0x98] sm:$0xff]
  %v6064 = vld [vmem:[%s4 + $0xa0] sm:$0xff]
  %v6065 = vld [vmem:[%s4 + $0xa8] sm:$0xff]
  %v6066 = vld [vmem:[%s4 + $0xb0] sm:$0xff]
  %v6067 = vld [vmem:[%s4 + $0xb8] sm:$0xff]
  %v6068 = vld [vmem:[%s4 + $0xc0] sm:$0xff]
  %v6069 = vld [vmem:[%s4 + $0xc8] sm:$0xff]
  %v6070 = vld [vmem:[%s4 + $0xd0] sm:$0xff]
  %v6071 = vld [vmem:[%s4 + $0xd8] sm:$0xff]
  %v6072 = vld [vmem:[%s4 + $0xe0] sm:$0xff]
  %v6073 = vld [vmem:[%s4 + $0xe8] sm:$0xff]
  %v6074 = vld [vmem:[%s4 + $0xf0] sm:$0xff]
  %v6075 = vld [vmem:[%s4 + $0xf8] sm:$0xff]
  %v6076 = vld [vmem:[%s4 + $0x100] sm:$0xff]
  %v6077 = vld [vmem:[%s4 + $0x108] sm:$0xff]
  %v6078 = vld [vmem:[%s4 + $0x110] sm:$0xff]
  %v6079 = vld [vmem:[%s4 + $0x118] sm:$0xff]
  %v6080 = vld [vmem:[%s4 + $0x120] sm:$0xff]
  %v6081 = vld [vmem:[%s4 + $0x128] sm:$0xff]
  %v6082 = vld [vmem:[%s4 + $0x130] sm:$0xff]
  %v6083 = vld [vmem:[%s4 + $0x138] sm:$0xff]
  %v6084 = vld [vmem:[%s4 + $0x140] sm:$0xff]
  %v6085 = vld [vmem:[%s4 + $0x148] sm:$0xff]
  %v6086 = vld [vmem:[%s4 + $0x150] sm:$0xff]
  %v6087 = vld [vmem:[%s4 + $0x158] sm:$0xff]
  %v6088 = vld [vmem:[%s4 + $0x160] sm:$0xff]
  %v6089 = vld [vmem:[%s4 + $0x168] sm:$0xff]
  %v6090 = vld [vmem:[%s4 + $0x170] sm:$0xff]
  %v6091 = vld [vmem:[%s4 + $0x178] sm:$0xff]
  %v6092 = vld [vmem:[%s4 + $0x180] sm:$0xff]
  %v6093 = vld [vmem:[%s4 + $0x188] sm:$0xff]
  %v6094 = vld [vmem:[%s4 + $0x190] sm:$0xff]
  %v6095 = vld [vmem:[%s4 + $0x198] sm:$0xff]
  %v6096 = vld [vmem:[%s4 + $0x1a0] sm:$0xff]
  %v6097 = vld [vmem:[%s4 + $0x1a8] sm:$0xff]
  %v6098 = vld [vmem:[%s4 + $0x1b0] sm:$0xff]
  %v6099 = vld [vmem:[%s4 + $0x1b8] sm:$0xff]
  %v6100 = vld [vmem:[%s4 + $0x1c0] sm:$0xff]
  %v6101 = vld [vmem:[%s4 + $0x1c8] sm:$0xff]
  %v6102 = vld [vmem:[%s4 + $0x1d0] sm:$0xff]
  %v6103 = vld [vmem:[%s4 + $0x1d8] sm:$0xff]
  %v6104 = vld [vmem:[%s4 + $0x1e0] sm:$0xff]
  %v6105 = vld [vmem:[%s4 + $0x1e8] sm:$0xff]
  %v6106 = vld [vmem:[%s4 + $0x1f0] sm:$0xff]
  %v6107 = vld [vmem:[%s4 + $0x1f8] sm:$0xff]
  %v6108 = vld [vmem:[%s4 + $0x200] sm:$0xff]
  %v6109 = vld [vmem:[%s4 + $0x208] sm:$0xff]
  %v6110 = vld [vmem:[%s4 + $0x210] sm:$0xff]
  %v6111 = vld [vmem:[%s4 + $0x218] sm:$0xff]
  %v6112 = vld [vmem:[%s4 + $0x220] sm:$0xff]
  %v6113 = vld [vmem:[%s4 + $0x228] sm:$0xff]
  %v6114 = vld [vmem:[%s4 + $0x230] sm:$0xff]
  %v6115 = vld [vmem:[%s4 + $0x238] sm:$0xff]
  %v6116 = vld [vmem:[%s4 + $0x240] sm:$0xff]
  %v6117 = vld [vmem:[%s4 + $0x248] sm:$0xff]
  %v6118 = vld [vmem:[%s4 + $0x250] sm:$0xff]
  %v6119 = vld [vmem:[%s4 + $0x258] sm:$0xff]
  %v6120 = vld [vmem:[%s4 + $0x260] sm:$0xff]
  %v6121 = vld [vmem:[%s4 + $0x268] sm:$0xff]
  %v6122 = vld [vmem:[%s4 + $0x270] sm:$0xff]
  %v6123 = vld [vmem:[%s4 + $0x278] sm:$0xff]
  %v6124 = vld [vmem:[%s4 + $0x280] sm:$0xff]
  %v6125 = vld [vmem:[%s4 + $0x288] sm:$0xff]
  %v6126 = vld [vmem:[%s4 + $0x290] sm:$0xff]
  %v6127 = vld [vmem:[%s4 + $0x298] sm:$0xff]
  %v6128 = vld [vmem:[%s4 + $0x2a0] sm:$0xff]
  %v6129 = vld [vmem:[%s4 + $0x2a8] sm:$0xff]
  %v6130 = vld [vmem:[%s4 + $0x2b0] sm:$0xff]
  %v6131 = vld [vmem:[%s4 + $0x2b8] sm:$0xff]
  %v6132 = vld [vmem:[%s4 + $0x2c0] sm:$0xff]
  %v6133 = vld [vmem:[%s4 + $0x2c8] sm:$0xff]
  %v6134 = vld [vmem:[%s4 + $0x2d0] sm:$0xff]
  %v6135 = vld [vmem:[%s4 + $0x2d8] sm:$0xff]
  %v6136 = vld [vmem:[%s4 + $0x2e0] sm:$0xff]
  %v6137 = vld [vmem:[%s4 + $0x2e8] sm:$0xff]
  %v6138 = vld [vmem:[%s4 + $0x2f0] sm:$0xff]
  %v6139 = vld [vmem:[%s4 + $0x2f8] sm:$0xff]
  %v6140 = vld [vmem:[%s4 + $0x300] sm:$0xff]
  %v6141 = vld [vmem:[%s4 + $0x308] sm:$0xff]
  %v6142 = vld [vmem:[%s4 + $0x310] sm:$0xff]
  %v6143 = vld [vmem:[%s4 + $0x318] sm:$0xff]
  %v6144 = vld [vmem:[%s4 + $0x320] sm:$0xff]
  %v6145 = vld [vmem:[%s4 + $0x328] sm:$0xff]
  %v6146 = vld [vmem:[%s4 + $0x330] sm:$0xff]
  %v6147 = vld [vmem:[%s4 + $0x338] sm:$0xff]
  %v6148 = vld [vmem:[%s4 + $0x340] sm:$0xff]
  %v6149 = vld [vmem:[%s4 + $0x348] sm:$0xff]
  %v6150 = vld [vmem:[%s4 + $0x350] sm:$0xff]
  %v6151 = vld [vmem:[%s4 + $0x358] sm:$0xff]
  %v6152 = vld [vmem:[%s4 + $0x360] sm:$0xff]
  %v6153 = vld [vmem:[%s4 + $0x368] sm:$0xff]
  %v6154 = vld [vmem:[%s4 + $0x370] sm:$0xff]
  %v6155 = vld [vmem:[%s4 + $0x378] sm:$0xff]
  %v6156 = vld [vmem:[%s4 + $0x380] sm:$0xff]
  %v6157 = vld [vmem:[%s4 + $0x388] sm:$0xff]
  %v6158 = vld [vmem:[%s4 + $0x390] sm:$0xff]
  %v6159 = vld [vmem:[%s4 + $0x398] sm:$0xff]
  %v6160 = vld [vmem:[%s4 + $0x3a0] sm:$0xff]
  %v6161 = vld [vmem:[%s4 + $0x3a8] sm:$0xff]
  %v6162 = vld [vmem:[%s4 + $0x3b0] sm:$0xff]
  %v6163 = vld [vmem:[%s4 + $0x3b8] sm:$0xff]
  %v6164 = vld [vmem:[%s4 + $0x3c0] sm:$0xff]
  %v6165 = vld [vmem:[%s4 + $0x3c8] sm:$0xff]
  %v6166 = vld [vmem:[%s4 + $0x3d0] sm:$0xff]
  %v6167 = vld [vmem:[%s4 + $0x3d8] sm:$0xff]
  %v6168 = vld [vmem:[%s4 + $0x3e0] sm:$0xff]
  %v6169 = vld [vmem:[%s4 + $0x3e8] sm:$0xff]
  %v6170 = vld [vmem:[%s4 + $0x3f0] sm:$0xff]
  %v6171 = vld [vmem:[%s4 + $0x3f8] sm:$0xff]
  %v6172 = vld [vmem:[%s1] sm:$0xf]
  %v6173 = vld [vmem:[%s1 + $0x4] sm:$0xf]
  %v6174 = vld [vmem:[%s5] sm:$0xff]
  %v6177 = vunpack.c.l.b16 %v6172
  %v6178 = vunpack.c.l.b16 %v6173
  %v6179 = vpack.c.b16 %v6178, %v6177
  %v6181 = vcombine.high %v6174, %v6174
  %v6183 = vunpack.c.l.s4 1983009808
  %v6184 = vunpack.c.0.s8 %v6183
  %v6185 = vlaneseq
  %v6186 = vshrl.u32 %v6185, 7
  %v6187 = vsub.s32 %v6184, %v6186
  %v6188 = vrot.slane %v6174, %v6187
  %v6190 = vunpack.c.l.s4 1983009808
  %v6191 = vunpack.c.0.s8 %v6190
  %v6192 = vlaneseq
  %v6193 = vshrl.u32 %v6192, 7
  %v6194 = vsub.s32 %v6191, %v6193
  %v6195 = vrot.slane %v6181, %v6194
  %v6196 = vcombine.high %v6188, %v6188
  %v6197 = vcombine.high %v6195, %v6195
  %vm6198 = vcmask 31744
  %v6200 = vsel %vm6198, %v6179, 0
  %vm6202 = vcmask 1041408
  %v6204 = vsel %vm6202, %v6188, 0
  %v6207 = vsel %vm6202, %v6196, 0
  %v6210 = vsel %vm6202, %v6195, 0
  %v6213 = vsel %vm6202, %v6197, 0
  %6215 = vmatprep.subr.bf16.mxu0 0
  %6216 = vmatpush1.bf16.msra.mxu0 0
  %6217 = vmatprep.subr.bf16.mxu0 0
  %6218 = vmatpush1.bf16.msra.mxu0 0
  %6219 = vmatprep.subr.bf16.mxu0 0
  %6220 = vmatpush1.bf16.msra.mxu0 0
  %6221 = vmatprep.subr.bf16.mxu0 0
  %6222 = vmatpush1.bf16.msra.mxu0 0
  %6223 = vmatprep.subr.bf16.mxu0 0
  %6224 = vmatpush1.bf16.msra.mxu0 0
  %6225 = vmatprep.subr.bf16.mxu0 0
  %6226 = vmatpush1.bf16.msra.mxu0 0
  %6227 = vmatprep.subr.bf16.mxu0 0
  %6228 = vmatpush1.bf16.msra.mxu0 0
  %6229 = vmatprep.subr.bf16.mxu0 %v6207
  %6230 = vmatpush1.bf16.msra.mxu0 %v6204
  %6231 = vmatprep.subr.bf16.mxu0 0
  %6232 = vmatpush2.bf16.msra.mxu0 0
  %6233 = vmatprep.subr.bf16.mxu0 0
  %6234 = vmatpush2.bf16.msra.mxu0 0
  %6235 = vmatprep.subr.bf16.mxu0 0
  %6236 = vmatpush2.bf16.msra.mxu0 0
  %6237 = vmatprep.subr.bf16.mxu0 0
  %6238 = vmatpush2.bf16.msra.mxu0 0
  %6239 = vmatprep.subr.bf16.mxu0 0
  %6240 = vmatpush2.bf16.msra.mxu0 0
  %6241 = vmatprep.subr.bf16.mxu0 0
  %6242 = vmatpush2.bf16.msra.mxu0 0
  %6243 = vmatprep.subr.bf16.mxu0 0
  %6244 = vmatpush2.bf16.msra.mxu0 0
  %6245 = vmatprep.subr.bf16.mxu0 0
  %6246 = vmatpush2.bf16.msra.mxu0 0
  %6247 = vmatprep.mubr.bf16.mxu0 0
  %6248 = vmatmul.mubr.bf16.gmra.mxu0 %v6200
  %v6249 = vpop.f32.mrf.mxu0
  %v6250 = vadd.f32 0.0, %v6249
  %v6251 = vpop.f32.mrf.mxu0
  %v6252 = vadd.f32 0.0, %v6251
  %v6253 = vpop.f32.mrf.mxu0
  %v6254 = vadd.f32 0.0, %v6253
  %v6255 = vpop.f32.mrf.mxu0
  %v6256 = vadd.f32 0.0, %v6255
  %6257 = vdwg.mxu0
  %6258 = vmatprep.subr.bf16.mxu0 0
  %6259 = vmatpush1.bf16.msra.mxu0 0
  %6260 = vmatprep.subr.bf16.mxu0 0
  %6261 = vmatpush1.bf16.msra.mxu0 0
  %6262 = vmatprep.subr.bf16.mxu0 0
  %6263 = vmatpush1.bf16.msra.mxu0 0
  %6264 = vmatprep.subr.bf16.mxu0 0
  %6265 = vmatpush1.bf16.msra.mxu0 0
  %6266 = vmatprep.subr.bf16.mxu0 0
  %6267 = vmatpush1.bf16.msra.mxu0 0
  %6268 = vmatprep.subr.bf16.mxu0 0
  %6269 = vmatpush1.bf16.msra.mxu0 0
  %6270 = vmatprep.subr.bf16.mxu0 0
  %6271 = vmatpush1.bf16.msra.mxu0 0
  %6272 = vmatprep.subr.bf16.mxu0 %v6213
  %6273 = vmatpush1.bf16.msra.mxu0 %v6210
  %6274 = vmatprep.subr.bf16.mxu0 0
  %6275 = vmatpush2.bf16.msra.mxu0 0
  %6276 = vmatprep.subr.bf16.mxu0 0
  %6277 = vmatpush2.bf16.msra.mxu0 0
  %6278 = vmatprep.subr.bf16.mxu0 0
  %6279 = vmatpush2.bf16.msra.mxu0 0
  %6280 = vmatprep.subr.bf16.mxu0 0
  %6281 = vmatpush2.bf16.msra.mxu0 0
  %6282 = vmatprep.subr.bf16.mxu0 0
  %6283 = vmatpush2.bf16.msra.mxu0 0
  %6284 = vmatprep.subr.bf16.mxu0 0
  %6285 = vmatpush2.bf16.msra.mxu0 0
  %6286 = vmatprep.subr.bf16.mxu0 0
  %6287 = vmatpush2.bf16.msra.mxu0 0
  %6288 = vmatprep.subr.bf16.mxu0 0
  %6289 = vmatpush2.bf16.msra.mxu0 0
  %6290 = vmatprep.mubr.bf16.mxu0 0
  %6291 = vmatmul.mubr.bf16.gmra.mxu0 %v6200
  %v6292 = vpop.f32.mrf.mxu0
  %v6293 = vadd.f32 0.0, %v6292
  %v6294 = vpop.f32.mrf.mxu0
  %v6295 = vadd.f32 0.0, %v6294
  %v6296 = vpop.f32.mrf.mxu0
  %v6297 = vadd.f32 0.0, %v6296
  %v6298 = vpop.f32.mrf.mxu0
  %v6299 = vadd.f32 0.0, %v6298
  %6300 = vdwg.mxu0
  %v6429 = vunpack.c.l.b16 %v6044
  %v6430 = vunpack.c.h.b16 %v6044
  %v6431 = vunpack.c.l.b16 %v6045
  %v6432 = vunpack.c.h.b16 %v6045
  %v6433 = vunpack.c.l.b16 %v6046
  %v6434 = vunpack.c.h.b16 %v6046
  %v6435 = vunpack.c.l.b16 %v6047
  %v6436 = vunpack.c.h.b16 %v6047
  %v6437 = vunpack.c.l.b16 %v6048
  %v6438 = vunpack.c.h.b16 %v6048
  %v6439 = vunpack.c.l.b16 %v6049
  %v6440 = vunpack.c.h.b16 %v6049
  %v6441 = vunpack.c.l.b16 %v6050
  %v6442 = vunpack.c.h.b16 %v6050
  %v6443 = vunpack.c.l.b16 %v6051
  %v6444 = vunpack.c.h.b16 %v6051
  %v6445 = vunpack.c.l.b16 %v6052
  %v6446 = vunpack.c.h.b16 %v6052
  %v6447 = vunpack.c.l.b16 %v6053
  %v6448 = vunpack.c.h.b16 %v6053
  %v6449 = vunpack.c.l.b16 %v6054
  %v6450 = vunpack.c.h.b16 %v6054
  %v6451 = vunpack.c.l.b16 %v6055
  %v6452 = vunpack.c.h.b16 %v6055
  %v6453 = vunpack.c.l.b16 %v6056
  %v6454 = vunpack.c.h.b16 %v6056
  %v6455 = vunpack.c.l.b16 %v6057
  %v6456 = vunpack.c.h.b16 %v6057
  %v6457 = vunpack.c.l.b16 %v6058
  %v6458 = vunpack.c.h.b16 %v6058
  %v6459 = vunpack.c.l.b16 %v6059
  %v6460 = vunpack.c.h.b16 %v6059
  %v6461 = vunpack.c.l.b16 %v6060
  %v6462 = vunpack.c.h.b16 %v6060
  %v6463 = vunpack.c.l.b16 %v6061
  %v6464 = vunpack.c.h.b16 %v6061
  %v6465 = vunpack.c.l.b16 %v6062
  %v6466 = vunpack.c.h.b16 %v6062
  %v6467 = vunpack.c.l.b16 %v6063
  %v6468 = vunpack.c.h.b16 %v6063
  %v6469 = vunpack.c.l.b16 %v6064
  %v6470 = vunpack.c.h.b16 %v6064
  %v6471 = vunpack.c.l.b16 %v6065
  %v6472 = vunpack.c.h.b16 %v6065
  %v6473 = vunpack.c.l.b16 %v6066
  %v6474 = vunpack.c.h.b16 %v6066
  %v6475 = vunpack.c.l.b16 %v6067
  %v6476 = vunpack.c.h.b16 %v6067
  %v6477 = vunpack.c.l.b16 %v6068
  %v6478 = vunpack.c.h.b16 %v6068
  %v6479 = vunpack.c.l.b16 %v6069
  %v6480 = vunpack.c.h.b16 %v6069
  %v6481 = vunpack.c.l.b16 %v6070
  %v6482 = vunpack.c.h.b16 %v6070
  %v6483 = vunpack.c.l.b16 %v6071
  %v6484 = vunpack.c.h.b16 %v6071
  %v6485 = vunpack.c.l.b16 %v6072
  %v6486 = vunpack.c.h.b16 %v6072
  %v6487 = vunpack.c.l.b16 %v6073
  %v6488 = vunpack.c.h.b16 %v6073
  %v6489 = vunpack.c.l.b16 %v6074
  %v6490 = vunpack.c.h.b16 %v6074
  %v6491 = vunpack.c.l.b16 %v6075
  %v6492 = vunpack.c.h.b16 %v6075
  %v6493 = vunpack.c.l.b16 %v6076
  %v6494 = vunpack.c.h.b16 %v6076
  %v6495 = vunpack.c.l.b16 %v6077
  %v6496 = vunpack.c.h.b16 %v6077
  %v6497 = vunpack.c.l.b16 %v6078
  %v6498 = vunpack.c.h.b16 %v6078
  %v6499 = vunpack.c.l.b16 %v6079
  %v6500 = vunpack.c.h.b16 %v6079
  %v6501 = vunpack.c.l.b16 %v6080
  %v6502 = vunpack.c.h.b16 %v6080
  %v6503 = vunpack.c.l.b16 %v6081
  %v6504 = vunpack.c.h.b16 %v6081
  %v6505 = vunpack.c.l.b16 %v6082
  %v6506 = vunpack.c.h.b16 %v6082
  %v6507 = vunpack.c.l.b16 %v6083
  %v6508 = vunpack.c.h.b16 %v6083
  %v6509 = vunpack.c.l.b16 %v6084
  %v6510 = vunpack.c.h.b16 %v6084
  %v6511 = vunpack.c.l.b16 %v6085
  %v6512 = vunpack.c.h.b16 %v6085
  %v6513 = vunpack.c.l.b16 %v6086
  %v6514 = vunpack.c.h.b16 %v6086
  %v6515 = vunpack.c.l.b16 %v6087
  %v6516 = vunpack.c.h.b16 %v6087
  %v6517 = vunpack.c.l.b16 %v6088
  %v6518 = vunpack.c.h.b16 %v6088
  %v6519 = vunpack.c.l.b16 %v6089
  %v6520 = vunpack.c.h.b16 %v6089
  %v6521 = vunpack.c.l.b16 %v6090
  %v6522 = vunpack.c.h.b16 %v6090
  %v6523 = vunpack.c.l.b16 %v6091
  %v6524 = vunpack.c.h.b16 %v6091
  %v6525 = vunpack.c.l.b16 %v6092
  %v6526 = vunpack.c.h.b16 %v6092
  %v6527 = vunpack.c.l.b16 %v6093
  %v6528 = vunpack.c.h.b16 %v6093
  %v6529 = vunpack.c.l.b16 %v6094
  %v6530 = vunpack.c.h.b16 %v6094
  %v6531 = vunpack.c.l.b16 %v6095
  %v6532 = vunpack.c.h.b16 %v6095
  %v6533 = vunpack.c.l.b16 %v6096
  %v6534 = vunpack.c.h.b16 %v6096
  %v6535 = vunpack.c.l.b16 %v6097
  %v6536 = vunpack.c.h.b16 %v6097
  %v6537 = vunpack.c.l.b16 %v6098
  %v6538 = vunpack.c.h.b16 %v6098
  %v6539 = vunpack.c.l.b16 %v6099
  %v6540 = vunpack.c.h.b16 %v6099
  %v6541 = vunpack.c.l.b16 %v6100
  %v6542 = vunpack.c.h.b16 %v6100
  %v6543 = vunpack.c.l.b16 %v6101
  %v6544 = vunpack.c.h.b16 %v6101
  %v6545 = vunpack.c.l.b16 %v6102
  %v6546 = vunpack.c.h.b16 %v6102
  %v6547 = vunpack.c.l.b16 %v6103
  %v6548 = vunpack.c.h.b16 %v6103
  %v6549 = vunpack.c.l.b16 %v6104
  %v6550 = vunpack.c.h.b16 %v6104
  %v6551 = vunpack.c.l.b16 %v6105
  %v6552 = vunpack.c.h.b16 %v6105
  %v6553 = vunpack.c.l.b16 %v6106
  %v6554 = vunpack.c.h.b16 %v6106
  %v6555 = vunpack.c.l.b16 %v6107
  %v6556 = vunpack.c.h.b16 %v6107
  %v6557 = vunpack.c.l.b16 %v6108
  %v6558 = vunpack.c.h.b16 %v6108
  %v6559 = vunpack.c.l.b16 %v6109
  %v6560 = vunpack.c.h.b16 %v6109
  %v6561 = vunpack.c.l.b16 %v6110
  %v6562 = vunpack.c.h.b16 %v6110
  %v6563 = vunpack.c.l.b16 %v6111
  %v6564 = vunpack.c.h.b16 %v6111
  %v6565 = vunpack.c.l.b16 %v6112
  %v6566 = vunpack.c.h.b16 %v6112
  %v6567 = vunpack.c.l.b16 %v6113
  %v6568 = vunpack.c.h.b16 %v6113
  %v6569 = vunpack.c.l.b16 %v6114
  %v6570 = vunpack.c.h.b16 %v6114
  %v6571 = vunpack.c.l.b16 %v6115
  %v6572 = vunpack.c.h.b16 %v6115
  %v6573 = vunpack.c.l.b16 %v6116
  %v6574 = vunpack.c.h.b16 %v6116
  %v6575 = vunpack.c.l.b16 %v6117
  %v6576 = vunpack.c.h.b16 %v6117
  %v6577 = vunpack.c.l.b16 %v6118
  %v6578 = vunpack.c.h.b16 %v6118
  %v6579 = vunpack.c.l.b16 %v6119
  %v6580 = vunpack.c.h.b16 %v6119
  %v6581 = vunpack.c.l.b16 %v6120
  %v6582 = vunpack.c.h.b16 %v6120
  %v6583 = vunpack.c.l.b16 %v6121
  %v6584 = vunpack.c.h.b16 %v6121
  %v6585 = vunpack.c.l.b16 %v6122
  %v6586 = vunpack.c.h.b16 %v6122
  %v6587 = vunpack.c.l.b16 %v6123
  %v6588 = vunpack.c.h.b16 %v6123
  %v6589 = vunpack.c.l.b16 %v6124
  %v6590 = vunpack.c.h.b16 %v6124
  %v6591 = vunpack.c.l.b16 %v6125
  %v6592 = vunpack.c.h.b16 %v6125
  %v6593 = vunpack.c.l.b16 %v6126
  %v6594 = vunpack.c.h.b16 %v6126
  %v6595 = vunpack.c.l.b16 %v6127
  %v6596 = vunpack.c.h.b16 %v6127
  %v6597 = vunpack.c.l.b16 %v6128
  %v6598 = vunpack.c.h.b16 %v6128
  %v6599 = vunpack.c.l.b16 %v6129
  %v6600 = vunpack.c.h.b16 %v6129
  %v6601 = vunpack.c.l.b16 %v6130
  %v6602 = vunpack.c.h.b16 %v6130
  %v6603 = vunpack.c.l.b16 %v6131
  %v6604 = vunpack.c.h.b16 %v6131
  %v6605 = vunpack.c.l.b16 %v6132
  %v6606 = vunpack.c.h.b16 %v6132
  %v6607 = vunpack.c.l.b16 %v6133
  %v6608 = vunpack.c.h.b16 %v6133
  %v6609 = vunpack.c.l.b16 %v6134
  %v6610 = vunpack.c.h.b16 %v6134
  %v6611 = vunpack.c.l.b16 %v6135
  %v6612 = vunpack.c.h.b16 %v6135
  %v6613 = vunpack.c.l.b16 %v6136
  %v6614 = vunpack.c.h.b16 %v6136
  %v6615 = vunpack.c.l.b16 %v6137
  %v6616 = vunpack.c.h.b16 %v6137
  %v6617 = vunpack.c.l.b16 %v6138
  %v6618 = vunpack.c.h.b16 %v6138
  %v6619 = vunpack.c.l.b16 %v6139
  %v6620 = vunpack.c.h.b16 %v6139
  %v6621 = vunpack.c.l.b16 %v6140
  %v6622 = vunpack.c.h.b16 %v6140
  %v6623 = vunpack.c.l.b16 %v6141
  %v6624 = vunpack.c.h.b16 %v6141
  %v6625 = vunpack.c.l.b16 %v6142
  %v6626 = vunpack.c.h.b16 %v6142
  %v6627 = vunpack.c.l.b16 %v6143
  %v6628 = vunpack.c.h.b16 %v6143
  %v6629 = vunpack.c.l.b16 %v6144
  %v6630 = vunpack.c.h.b16 %v6144
  %v6631 = vunpack.c.l.b16 %v6145
  %v6632 = vunpack.c.h.b16 %v6145
  %v6633 = vunpack.c.l.b16 %v6146
  %v6634 = vunpack.c.h.b16 %v6146
  %v6635 = vunpack.c.l.b16 %v6147
  %v6636 = vunpack.c.h.b16 %v6147
  %v6637 = vunpack.c.l.b16 %v6148
  %v6638 = vunpack.c.h.b16 %v6148
  %v6639 = vunpack.c.l.b16 %v6149
  %v6640 = vunpack.c.h.b16 %v6149
  %v6641 = vunpack.c.l.b16 %v6150
  %v6642 = vunpack.c.h.b16 %v6150
  %v6643 = vunpack.c.l.b16 %v6151
  %v6644 = vunpack.c.h.b16 %v6151
  %v6645 = vunpack.c.l.b16 %v6152
  %v6646 = vunpack.c.h.b16 %v6152
  %v6647 = vunpack.c.l.b16 %v6153
  %v6648 = vunpack.c.h.b16 %v6153
  %v6649 = vunpack.c.l.b16 %v6154
  %v6650 = vunpack.c.h.b16 %v6154
  %v6651 = vunpack.c.l.b16 %v6155
  %v6652 = vunpack.c.h.b16 %v6155
  %v6653 = vunpack.c.l.b16 %v6156
  %v6654 = vunpack.c.h.b16 %v6156
  %v6655 = vunpack.c.l.b16 %v6157
  %v6656 = vunpack.c.h.b16 %v6157
  %v6657 = vunpack.c.l.b16 %v6158
  %v6658 = vunpack.c.h.b16 %v6158
  %v6659 = vunpack.c.l.b16 %v6159
  %v6660 = vunpack.c.h.b16 %v6159
  %v6661 = vunpack.c.l.b16 %v6160
  %v6662 = vunpack.c.h.b16 %v6160
  %v6663 = vunpack.c.l.b16 %v6161
  %v6664 = vunpack.c.h.b16 %v6161
  %v6665 = vunpack.c.l.b16 %v6162
  %v6666 = vunpack.c.h.b16 %v6162
  %v6667 = vunpack.c.l.b16 %v6163
  %v6668 = vunpack.c.h.b16 %v6163
  %v6669 = vunpack.c.l.b16 %v6164
  %v6670 = vunpack.c.h.b16 %v6164
  %v6671 = vunpack.c.l.b16 %v6165
  %v6672 = vunpack.c.h.b16 %v6165
  %v6673 = vunpack.c.l.b16 %v6166
  %v6674 = vunpack.c.h.b16 %v6166
  %v6675 = vunpack.c.l.b16 %v6167
  %v6676 = vunpack.c.h.b16 %v6167
  %v6677 = vunpack.c.l.b16 %v6168
  %v6678 = vunpack.c.h.b16 %v6168
  %v6679 = vunpack.c.l.b16 %v6169
  %v6680 = vunpack.c.h.b16 %v6169
  %v6681 = vunpack.c.l.b16 %v6170
  %v6682 = vunpack.c.h.b16 %v6170
  %v6683 = vunpack.c.l.b16 %v6171
  %v6684 = vunpack.c.h.b16 %v6171
  %v6685 = vpack.c.b16 %v6433, %v6429
  %v6686 = vpack.c.b16 %v6434, %v6430
  %v6687 = vpack.c.b16 %v6435, %v6431
  %v6688 = vpack.c.b16 %v6436, %v6432
  %v6689 = vpack.c.b16 %v6441, %v6437
  %v6690 = vpack.c.b16 %v6442, %v6438
  %v6691 = vpack.c.b16 %v6443, %v6439
  %v6692 = vpack.c.b16 %v6444, %v6440
  %v6693 = vpack.c.b16 %v6449, %v6445
  %v6694 = vpack.c.b16 %v6450, %v6446
  %v6695 = vpack.c.b16 %v6451, %v6447
  %v6696 = vpack.c.b16 %v6452, %v6448
  %v6697 = vpack.c.b16 %v6457, %v6453
  %v6698 = vpack.c.b16 %v6458, %v6454
  %v6699 = vpack.c.b16 %v6459, %v6455
  %v6700 = vpack.c.b16 %v6460, %v6456
  %v6701 = vpack.c.b16 %v6465, %v6461
  %v6702 = vpack.c.b16 %v6466, %v6462
  %v6703 = vpack.c.b16 %v6467, %v6463
  %v6704 = vpack.c.b16 %v6468, %v6464
  %v6705 = vpack.c.b16 %v6473, %v6469
  %v6706 = vpack.c.b16 %v6474, %v6470
  %v6707 = vpack.c.b16 %v6475, %v6471
  %v6708 = vpack.c.b16 %v6476, %v6472
  %v6709 = vpack.c.b16 %v6481, %v6477
  %v6710 = vpack.c.b16 %v6482, %v6478
  %v6711 = vpack.c.b16 %v6483, %v6479
  %v6712 = vpack.c.b16 %v6484, %v6480
  %v6713 = vpack.c.b16 %v6489, %v6485
  %v6714 = vpack.c.b16 %v6490, %v6486
  %v6715 = vpack.c.b16 %v6491, %v6487
  %v6716 = vpack.c.b16 %v6492, %v6488
  %v6717 = vpack.c.b16 %v6497, %v6493
  %v6718 = vpack.c.b16 %v6498, %v6494
  %v6719 = vpack.c.b16 %v6499, %v6495
  %v6720 = vpack.c.b16 %v6500, %v6496
  %v6721 = vpack.c.b16 %v6505, %v6501
  %v6722 = vpack.c.b16 %v6506, %v6502
  %v6723 = vpack.c.b16 %v6507, %v6503
  %v6724 = vpack.c.b16 %v6508, %v6504
  %v6725 = vpack.c.b16 %v6513, %v6509
  %v6726 = vpack.c.b16 %v6514, %v6510
  %v6727 = vpack.c.b16 %v6515, %v6511
  %v6728 = vpack.c.b16 %v6516, %v6512
  %v6729 = vpack.c.b16 %v6521, %v6517
  %v6730 = vpack.c.b16 %v6522, %v6518
  %v6731 = vpack.c.b16 %v6523, %v6519
  %v6732 = vpack.c.b16 %v6524, %v6520
  %v6733 = vpack.c.b16 %v6529, %v6525
  %v6734 = vpack.c.b16 %v6530, %v6526
  %v6735 = vpack.c.b16 %v6531, %v6527
  %v6736 = vpack.c.b16 %v6532, %v6528
  %v6737 = vpack.c.b16 %v6537, %v6533
  %v6738 = vpack.c.b16 %v6538, %v6534
  %v6739 = vpack.c.b16 %v6539, %v6535
  %v6740 = vpack.c.b16 %v6540, %v6536
  %v6741 = vpack.c.b16 %v6545, %v6541
  %v6742 = vpack.c.b16 %v6546, %v6542
  %v6743 = vpack.c.b16 %v6547, %v6543
  %v6744 = vpack.c.b16 %v6548, %v6544
  %v6745 = vpack.c.b16 %v6553, %v6549
  %v6746 = vpack.c.b16 %v6554, %v6550
  %v6747 = vpack.c.b16 %v6555, %v6551
  %v6748 = vpack.c.b16 %v6556, %v6552
  %v6749 = vpack.c.b16 %v6561, %v6557
  %v6750 = vpack.c.b16 %v6562, %v6558
  %v6751 = vpack.c.b16 %v6563, %v6559
  %v6752 = vpack.c.b16 %v6564, %v6560
  %v6753 = vpack.c.b16 %v6569, %v6565
  %v6754 = vpack.c.b16 %v6570, %v6566
  %v6755 = vpack.c.b16 %v6571, %v6567
  %v6756 = vpack.c.b16 %v6572, %v6568
  %v6757 = vpack.c.b16 %v6577, %v6573
  %v6758 = vpack.c.b16 %v6578, %v6574
  %v6759 = vpack.c.b16 %v6579, %v6575
  %v6760 = vpack.c.b16 %v6580, %v6576
  %v6761 = vpack.c.b16 %v6585, %v6581
  %v6762 = vpack.c.b16 %v6586, %v6582
  %v6763 = vpack.c.b16 %v6587, %v6583
  %v6764 = vpack.c.b16 %v6588, %v6584
  %v6765 = vpack.c.b16 %v6593, %v6589
  %v6766 = vpack.c.b16 %v6594, %v6590
  %v6767 = vpack.c.b16 %v6595, %v6591
  %v6768 = vpack.c.b16 %v6596, %v6592
  %v6769 = vpack.c.b16 %v6601, %v6597
  %v6770 = vpack.c.b16 %v6602, %v6598
  %v6771 = vpack.c.b16 %v6603, %v6599
  %v6772 = vpack.c.b16 %v6604, %v6600
  %v6773 = vpack.c.b16 %v6609, %v6605
  %v6774 = vpack.c.b16 %v6610, %v6606
  %v6775 = vpack.c.b16 %v6611, %v6607
  %v6776 = vpack.c.b16 %v6612, %v6608
  %v6777 = vpack.c.b16 %v6617, %v6613
  %v6778 = vpack.c.b16 %v6618, %v6614
  %v6779 = vpack.c.b16 %v6619, %v6615
  %v6780 = vpack.c.b16 %v6620, %v6616
  %v6781 = vpack.c.b16 %v6625, %v6621
  %v6782 = vpack.c.b16 %v6626, %v6622
  %v6783 = vpack.c.b16 %v6627, %v6623
  %v6784 = vpack.c.b16 %v6628, %v6624
  %v6785 = vpack.c.b16 %v6633, %v6629
  %v6786 = vpack.c.b16 %v6634, %v6630
  %v6787 = vpack.c.b16 %v6635, %v6631
  %v6788 = vpack.c.b16 %v6636, %v6632
  %v6789 = vpack.c.b16 %v6641, %v6637
  %v6790 = vpack.c.b16 %v6642, %v6638
  %v6791 = vpack.c.b16 %v6643, %v6639
  %v6792 = vpack.c.b16 %v6644, %v6640
  %v6793 = vpack.c.b16 %v6649, %v6645
  %v6794 = vpack.c.b16 %v6650, %v6646
  %v6795 = vpack.c.b16 %v6651, %v6647
  %v6796 = vpack.c.b16 %v6652, %v6648
  %v6797 = vpack.c.b16 %v6657, %v6653
  %v6798 = vpack.c.b16 %v6658, %v6654
  %v6799 = vpack.c.b16 %v6659, %v6655
  %v6800 = vpack.c.b16 %v6660, %v6656
  %v6801 = vpack.c.b16 %v6665, %v6661
  %v6802 = vpack.c.b16 %v6666, %v6662
  %v6803 = vpack.c.b16 %v6667, %v6663
  %v6804 = vpack.c.b16 %v6668, %v6664
  %v6805 = vpack.c.b16 %v6673, %v6669
  %v6806 = vpack.c.b16 %v6674, %v6670
  %v6807 = vpack.c.b16 %v6675, %v6671
  %v6808 = vpack.c.b16 %v6676, %v6672
  %v6809 = vpack.c.b16 %v6681, %v6677
  %v6810 = vpack.c.b16 %v6682, %v6678
  %v6811 = vpack.c.b16 %v6683, %v6679
  %v6812 = vpack.c.b16 %v6684, %v6680
  %6941 = vmatprep.subr.bf16.mxu0 %v6714
  %6942 = vmatpush1.bf16.msra.mxu0 %v6713
  %6943 = vmatprep.subr.bf16.mxu0 %v6710
  %6944 = vmatpush1.bf16.msra.mxu0 %v6709
  %6945 = vmatprep.subr.bf16.mxu0 %v6706
  %6946 = vmatpush1.bf16.msra.mxu0 %v6705
  %6947 = vmatprep.subr.bf16.mxu0 %v6702
  %6948 = vmatpush1.bf16.msra.mxu0 %v6701
  %6949 = vmatprep.subr.bf16.mxu0 %v6698
  %6950 = vmatpush1.bf16.msra.mxu0 %v6697
  %6951 = vmatprep.subr.bf16.mxu0 %v6694
  %6952 = vmatpush1.bf16.msra.mxu0 %v6693
  %6953 = vmatprep.subr.bf16.mxu0 %v6690
  %6954 = vmatpush1.bf16.msra.mxu0 %v6689
  %6955 = vmatprep.subr.bf16.mxu0 %v6686
  %6956 = vmatpush1.bf16.msra.mxu0 %v6685
  %6957 = vmatprep.subr.bf16.mxu0 %v6746
  %6958 = vmatpush2.bf16.msra.mxu0 %v6745
  %6959 = vmatprep.subr.bf16.mxu0 %v6742
  %6960 = vmatpush2.bf16.msra.mxu0 %v6741
  %6961 = vmatprep.subr.bf16.mxu0 %v6738
  %6962 = vmatpush2.bf16.msra.mxu0 %v6737
  %6963 = vmatprep.subr.bf16.mxu0 %v6734
  %6964 = vmatpush2.bf16.msra.mxu0 %v6733
  %6965 = vmatprep.subr.bf16.mxu0 %v6730
  %6966 = vmatpush2.bf16.msra.mxu0 %v6729
  %6967 = vmatprep.subr.bf16.mxu0 %v6726
  %6968 = vmatpush2.bf16.msra.mxu0 %v6725
  %6969 = vmatprep.subr.bf16.mxu0 %v6722
  %6970 = vmatpush2.bf16.msra.mxu0 %v6721
  %6971 = vmatprep.subr.bf16.mxu0 %v6718
  %6972 = vmatpush2.bf16.msra.mxu0 %v6717
  %6973 = vmatprep.mubr.bf16.mxu0 %v6041
  %6974 = vmatmul.mubr.bf16.gmra.mxu0 %v6040
  %v6975 = vpop.f32.mrf.mxu0
  %v6976 = vadd.f32 %v6250, %v6975
  %v6977 = vpop.f32.mrf.mxu0
  %v6978 = vadd.f32 %v6252, %v6977
  %v6979 = vpop.f32.mrf.mxu0
  %v6980 = vadd.f32 %v6254, %v6979
  %v6981 = vpop.f32.mrf.mxu0
  %v6982 = vadd.f32 %v6256, %v6981
  %6983 = vdwg.mxu0
  %6984 = vmatprep.subr.bf16.mxu0 %v6778
  %6985 = vmatpush1.bf16.msra.mxu0 %v6777
  %6986 = vmatprep.subr.bf16.mxu0 %v6774
  %6987 = vmatpush1.bf16.msra.mxu0 %v6773
  %6988 = vmatprep.subr.bf16.mxu0 %v6770
  %6989 = vmatpush1.bf16.msra.mxu0 %v6769
  %6990 = vmatprep.subr.bf16.mxu0 %v6766
  %6991 = vmatpush1.bf16.msra.mxu0 %v6765
  %6992 = vmatprep.subr.bf16.mxu0 %v6762
  %6993 = vmatpush1.bf16.msra.mxu0 %v6761
  %6994 = vmatprep.subr.bf16.mxu0 %v6758
  %6995 = vmatpush1.bf16.msra.mxu0 %v6757
  %6996 = vmatprep.subr.bf16.mxu0 %v6754
  %6997 = vmatpush1.bf16.msra.mxu0 %v6753
  %6998 = vmatprep.subr.bf16.mxu0 %v6750
  %6999 = vmatpush1.bf16.msra.mxu0 %v6749
  %7000 = vmatprep.subr.bf16.mxu0 %v6810
  %7001 = vmatpush2.bf16.msra.mxu0 %v6809
  %7002 = vmatprep.subr.bf16.mxu0 %v6806
  %7003 = vmatpush2.bf16.msra.mxu0 %v6805
  %7004 = vmatprep.subr.bf16.mxu0 %v6802
  %7005 = vmatpush2.bf16.msra.mxu0 %v6801
  %7006 = vmatprep.subr.bf16.mxu0 %v6798
  %7007 = vmatpush2.bf16.msra.mxu0 %v6797
  %7008 = vmatprep.subr.bf16.mxu0 %v6794
  %7009 = vmatpush2.bf16.msra.mxu0 %v6793
  %7010 = vmatprep.subr.bf16.mxu0 %v6790
  %7011 = vmatpush2.bf16.msra.mxu0 %v6789
  %7012 = vmatprep.subr.bf16.mxu0 %v6786
  %7013 = vmatpush2.bf16.msra.mxu0 %v6785
  %7014 = vmatprep.subr.bf16.mxu0 %v6782
  %7015 = vmatpush2.bf16.msra.mxu0 %v6781
  %7016 = vmatprep.mubr.bf16.mxu0 %v6043
  %7017 = vmatmul.mubr.bf16.gmra.mxu0 %v6042
  %v7018 = vpop.f32.mrf.mxu0
  %v7019 = vadd.f32 %v6976, %v7018
  %v7020 = vpop.f32.mrf.mxu0
  %v7021 = vadd.f32 %v6978, %v7020
  %v7022 = vpop.f32.mrf.mxu0
  %v7023 = vadd.f32 %v6980, %v7022
  %v7024 = vpop.f32.mrf.mxu0
  %v7025 = vadd.f32 %v6982, %v7024
  %7026 = vdwg.mxu0
  %7027 = vmatprep.subr.bf16.mxu0 %v6716
  %7028 = vmatpush1.bf16.msra.mxu0 %v6715
  %7029 = vmatprep.subr.bf16.mxu0 %v6712
  %7030 = vmatpush1.bf16.msra.mxu0 %v6711
  %7031 = vmatprep.subr.bf16.mxu0 %v6708
  %7032 = vmatpush1.bf16.msra.mxu0 %v6707
  %7033 = vmatprep.subr.bf16.mxu0 %v6704
  %7034 = vmatpush1.bf16.msra.mxu0 %v6703
  %7035 = vmatprep.subr.bf16.mxu0 %v6700
  %7036 = vmatpush1.bf16.msra.mxu0 %v6699
  %7037 = vmatprep.subr.bf16.mxu0 %v6696
  %7038 = vmatpush1.bf16.msra.mxu0 %v6695
  %7039 = vmatprep.subr.bf16.mxu0 %v6692
  %7040 = vmatpush1.bf16.msra.mxu0 %v6691
  %7041 = vmatprep.subr.bf16.mxu0 %v6688
  %7042 = vmatpush1.bf16.msra.mxu0 %v6687
  %7043 = vmatprep.subr.bf16.mxu0 %v6748
  %7044 = vmatpush2.bf16.msra.mxu0 %v6747
  %7045 = vmatprep.subr.bf16.mxu0 %v6744
  %7046 = vmatpush2.bf16.msra.mxu0 %v6743
  %7047 = vmatprep.subr.bf16.mxu0 %v6740
  %7048 = vmatpush2.bf16.msra.mxu0 %v6739
  %7049 = vmatprep.subr.bf16.mxu0 %v6736
  %7050 = vmatpush2.bf16.msra.mxu0 %v6735
  %7051 = vmatprep.subr.bf16.mxu0 %v6732
  %7052 = vmatpush2.bf16.msra.mxu0 %v6731
  %7053 = vmatprep.subr.bf16.mxu0 %v6728
  %7054 = vmatpush2.bf16.msra.mxu0 %v6727
  %7055 = vmatprep.subr.bf16.mxu0 %v6724
  %7056 = vmatpush2.bf16.msra.mxu0 %v6723
  %7057 = vmatprep.subr.bf16.mxu0 %v6720
  %7058 = vmatpush2.bf16.msra.mxu0 %v6719
  %7059 = vmatprep.mubr.bf16.mxu0 %v6041
  %7060 = vmatmul.mubr.bf16.gmra.mxu0 %v6040
  %v7061 = vpop.f32.mrf.mxu0
  %v7062 = vadd.f32 %v6293, %v7061
  %v7063 = vpop.f32.mrf.mxu0
  %v7064 = vadd.f32 %v6295, %v7063
  %v7065 = vpop.f32.mrf.mxu0
  %v7066 = vadd.f32 %v6297, %v7065
  %v7067 = vpop.f32.mrf.mxu0
  %v7068 = vadd.f32 %v6299, %v7067
  %7069 = vdwg.mxu0
  %7070 = vmatprep.subr.bf16.mxu0 %v6780
  %7071 = vmatpush1.bf16.msra.mxu0 %v6779
  %7072 = vmatprep.subr.bf16.mxu0 %v6776
  %7073 = vmatpush1.bf16.msra.mxu0 %v6775
  %7074 = vmatprep.subr.bf16.mxu0 %v6772
  %7075 = vmatpush1.bf16.msra.mxu0 %v6771
  %7076 = vmatprep.subr.bf16.mxu0 %v6768
  %7077 = vmatpush1.bf16.msra.mxu0 %v6767
  %7078 = vmatprep.subr.bf16.mxu0 %v6764
  %7079 = vmatpush1.bf16.msra.mxu0 %v6763
  %7080 = vmatprep.subr.bf16.mxu0 %v6760
  %7081 = vmatpush1.bf16.msra.mxu0 %v6759
  %7082 = vmatprep.subr.bf16.mxu0 %v6756
  %7083 = vmatpush1.bf16.msra.mxu0 %v6755
  %7084 = vmatprep.subr.bf16.mxu0 %v6752
  %7085 = vmatpush1.bf16.msra.mxu0 %v6751
  %7086 = vmatprep.subr.bf16.mxu0 %v6812
  %7087 = vmatpush2.bf16.msra.mxu0 %v6811
  %7088 = vmatprep.subr.bf16.mxu0 %v6808
  %7089 = vmatpush2.bf16.msra.mxu0 %v6807
  %7090 = vmatprep.subr.bf16.mxu0 %v6804
  %7091 = vmatpush2.bf16.msra.mxu0 %v6803
  %7092 = vmatprep.subr.bf16.mxu0 %v6800
  %7093 = vmatpush2.bf16.msra.mxu0 %v6799
  %7094 = vmatprep.subr.bf16.mxu0 %v6796
  %7095 = vmatpush2.bf16.msra.mxu0 %v6795
  %7096 = vmatprep.subr.bf16.mxu0 %v6792
  %7097 = vmatpush2.bf16.msra.mxu0 %v6791
  %7098 = vmatprep.subr.bf16.mxu0 %v6788
  %7099 = vmatpush2.bf16.msra.mxu0 %v6787
  %7100 = vmatprep.subr.bf16.mxu0 %v6784
  %7101 = vmatpush2.bf16.msra.mxu0 %v6783
  %7102 = vmatprep.mubr.bf16.mxu0 %v6043
  %7103 = vmatmul.mubr.bf16.gmra.mxu0 %v6042
  %v7104 = vpop.f32.mrf.mxu0
  %v7105 = vadd.f32 %v7062, %v7104
  %v7106 = vpop.f32.mrf.mxu0
  %v7107 = vadd.f32 %v7064, %v7106
  %v7108 = vpop.f32.mrf.mxu0
  %v7109 = vadd.f32 %v7066, %v7108
  %v7110 = vpop.f32.mrf.mxu0
  %v7111 = vadd.f32 %v7068, %v7110
  %7112 = vdwg.mxu0
  %v7113 = vld [vmem:[%s6] sm:$0xf]
  %v7115 = vlaneseq
  %v7116 = vshrl.u32 %v7115, 7
  %v7117 = vsub.s32 0, %v7116
  %v7118 = vrot.slane %v7113, %v7117
  %v7119 = vlaneseq
  %v7120 = vshrl.u32 %v7119, 7
  %v7121 = vsub.s32 1, %v7120
  %v7122 = vrot.slane %v7113, %v7121
  %v7123 = vlaneseq
  %v7124 = vshrl.u32 %v7123, 7
  %v7125 = vsub.s32 2, %v7124
  %v7126 = vrot.slane %v7113, %v7125
  %v7127 = vlaneseq
  %v7128 = vshrl.u32 %v7127, 7
  %v7129 = vsub.s32 3, %v7128
  %v7130 = vrot.slane %v7113, %v7129
  %v7135 = vadd.f32 %v7019, %v7118
  %v7136 = vadd.f32 %v7021, %v7122
  %v7137 = vadd.f32 %v7105, %v7126
  %v7138 = vadd.f32 %v7107, %v7130
  %v7139 = vadd.f32 %v7023, %v7118
  %v7140 = vadd.f32 %v7025, %v7122
  %v7141 = vadd.f32 %v7109, %v7126
  %v7142 = vadd.f32 %v7111, %v7130
  %v7143 = vmax.f32 %v7135, 0.0
  %v7144 = vmax.f32 %v7136, 0.0
  %v7145 = vmax.f32 %v7137, 0.0
  %v7146 = vmax.f32 %v7138, 0.0
  %v7147 = vmax.f32 %v7139, 0.0
  %v7148 = vmax.f32 %v7140, 0.0
  %v7149 = vmax.f32 %v7141, 0.0
  %v7150 = vmax.f32 %v7142, 0.0
  %v7151 = vpack.c.bf16 %v7147, %v7143
  %v7152 = vpack.c.bf16 %v7148, %v7144
  %v7153 = vpack.c.bf16 %v7149, %v7145
  %v7154 = vpack.c.bf16 %v7150, %v7146
  %v7155 = vld [vmem:[%s7] sm:$0xf]
  %v7156 = vld [vmem:[%s7 + $0x4] sm:$0xf]
  %v7157 = vld [vmem:[%s7 + $0x8] sm:$0xf]
  %v7158 = vld [vmem:[%s7 + $0xc] sm:$0xf]
  %v7159 = vld [vmem:[%s7 + $0x10] sm:$0xf]
  %v7160 = vld [vmem:[%s7 + $0x14] sm:$0xf]
  %v7161 = vld [vmem:[%s7 + $0x18] sm:$0xf]
  %v7162 = vld [vmem:[%s7 + $0x1c] sm:$0xf]
  %v7163 = vld [vmem:[%s7 + $0x20] sm:$0xf]
  %v7164 = vld [vmem:[%s7 + $0x24] sm:$0xf]
  %v7165 = vld [vmem:[%s7 + $0x28] sm:$0xf]
  %v7166 = vld [vmem:[%s7 + $0x2c] sm:$0xf]
  %v7167 = vld [vmem:[%s7 + $0x30] sm:$0xf]
  %v7168 = vld [vmem:[%s7 + $0x34] sm:$0xf]
  %v7169 = vld [vmem:[%s7 + $0x38] sm:$0xf]
  %v7170 = vld [vmem:[%s7 + $0x3c] sm:$0xf]
  %v7171 = vld [vmem:[%s7 + $0x40] sm:$0xf]
  %v7172 = vld [vmem:[%s7 + $0x44] sm:$0xf]
  %v7173 = vld [vmem:[%s7 + $0x48] sm:$0xf]
  %v7174 = vld [vmem:[%s7 + $0x4c] sm:$0xf]
  %v7175 = vld [vmem:[%s7 + $0x50] sm:$0xf]
  %v7176 = vld [vmem:[%s7 + $0x54] sm:$0xf]
  %v7177 = vld [vmem:[%s7 + $0x58] sm:$0xf]
  %v7178 = vld [vmem:[%s7 + $0x5c] sm:$0xf]
  %v7179 = vld [vmem:[%s7 + $0x60] sm:$0xf]
  %v7180 = vld [vmem:[%s7 + $0x64] sm:$0xf]
  %v7181 = vld [vmem:[%s7 + $0x68] sm:$0xf]
  %v7182 = vld [vmem:[%s7 + $0x6c] sm:$0xf]
  %v7183 = vld [vmem:[%s7 + $0x70] sm:$0xf]
  %v7184 = vld [vmem:[%s7 + $0x74] sm:$0xf]
  %v7185 = vld [vmem:[%s7 + $0x78] sm:$0xf]
  %v7186 = vld [vmem:[%s7 + $0x7c] sm:$0xf]
  %v7187 = vld [vmem:[%s7 + $0x80] sm:$0xf]
  %v7188 = vld [vmem:[%s7 + $0x84] sm:$0xf]
  %v7189 = vld [vmem:[%s7 + $0x88] sm:$0xf]
  %v7190 = vld [vmem:[%s7 + $0x8c] sm:$0xf]
  %v7191 = vld [vmem:[%s7 + $0x90] sm:$0xf]
  %v7192 = vld [vmem:[%s7 + $0x94] sm:$0xf]
  %v7193 = vld [vmem:[%s7 + $0x98] sm:$0xf]
  %v7194 = vld [vmem:[%s7 + $0x9c] sm:$0xf]
  %v7195 = vld [vmem:[%s7 + $0xa0] sm:$0xf]
  %v7196 = vld [vmem:[%s7 + $0xa4] sm:$0xf]
  %v7197 = vld [vmem:[%s7 + $0xa8] sm:$0xf]
  %v7198 = vld [vmem:[%s7 + $0xac] sm:$0xf]
  %v7199 = vld [vmem:[%s7 + $0xb0] sm:$0xf]
  %v7200 = vld [vmem:[%s7 + $0xb4] sm:$0xf]
  %v7201 = vld [vmem:[%s7 + $0xb8] sm:$0xf]
  %v7202 = vld [vmem:[%s7 + $0xbc] sm:$0xf]
  %v7203 = vld [vmem:[%s7 + $0xc0] sm:$0xf]
  %v7204 = vld [vmem:[%s7 + $0xc4] sm:$0xf]
  %v7205 = vld [vmem:[%s7 + $0xc8] sm:$0xf]
  %v7206 = vld [vmem:[%s7 + $0xcc] sm:$0xf]
  %v7207 = vld [vmem:[%s7 + $0xd0] sm:$0xf]
  %v7208 = vld [vmem:[%s7 + $0xd4] sm:$0xf]
  %v7209 = vld [vmem:[%s7 + $0xd8] sm:$0xf]
  %v7210 = vld [vmem:[%s7 + $0xdc] sm:$0xf]
  %v7211 = vld [vmem:[%s7 + $0xe0] sm:$0xf]
  %v7212 = vld [vmem:[%s7 + $0xe4] sm:$0xf]
  %v7213 = vld [vmem:[%s7 + $0xe8] sm:$0xf]
  %v7214 = vld [vmem:[%s7 + $0xec] sm:$0xf]
  %v7215 = vld [vmem:[%s7 + $0xf0] sm:$0xf]
  %v7216 = vld [vmem:[%s7 + $0xf4] sm:$0xf]
  %v7217 = vld [vmem:[%s7 + $0xf8] sm:$0xf]
  %v7218 = vld [vmem:[%s7 + $0xfc] sm:$0xf]
  %v7219 = vld [vmem:[%s8] sm:$0x1]
  %v7221 = vlaneseq
  %v7222 = vshrl.u32 %v7221, 7
  %v7223 = vsub.s32 0, %v7222
  %v7224 = vrot.slane %v7219, %v7223
  %v7290 = vunpack.c.l.b16 %v7155
  %v7291 = vunpack.c.l.b16 %v7156
  %v7292 = vunpack.c.l.b16 %v7157
  %v7293 = vunpack.c.l.b16 %v7158
  %v7294 = vunpack.c.l.b16 %v7159
  %v7295 = vunpack.c.l.b16 %v7160
  %v7296 = vunpack.c.l.b16 %v7161
  %v7297 = vunpack.c.l.b16 %v7162
  %v7298 = vunpack.c.l.b16 %v7163
  %v7299 = vunpack.c.l.b16 %v7164
  %v7300 = vunpack.c.l.b16 %v7165
  %v7301 = vunpack.c.l.b16 %v7166
  %v7302 = vunpack.c.l.b16 %v7167
  %v7303 = vunpack.c.l.b16 %v7168
  %v7304 = vunpack.c.l.b16 %v7169
  %v7305 = vunpack.c.l.b16 %v7170
  %v7306 = vunpack.c.l.b16 %v7171
  %v7307 = vunpack.c.l.b16 %v7172
  %v7308 = vunpack.c.l.b16 %v7173
  %v7309 = vunpack.c.l.b16 %v7174
  %v7310 = vunpack.c.l.b16 %v7175
  %v7311 = vunpack.c.l.b16 %v7176
  %v7312 = vunpack.c.l.b16 %v7177
  %v7313 = vunpack.c.l.b16 %v7178
  %v7314 = vunpack.c.l.b16 %v7179
  %v7315 = vunpack.c.l.b16 %v7180
  %v7316 = vunpack.c.l.b16 %v7181
  %v7317 = vunpack.c.l.b16 %v7182
  %v7318 = vunpack.c.l.b16 %v7183
  %v7319 = vunpack.c.l.b16 %v7184
  %v7320 = vunpack.c.l.b16 %v7185
  %v7321 = vunpack.c.l.b16 %v7186
  %v7322 = vunpack.c.l.b16 %v7187
  %v7323 = vunpack.c.l.b16 %v7188
  %v7324 = vunpack.c.l.b16 %v7189
  %v7325 = vunpack.c.l.b16 %v7190
  %v7326 = vunpack.c.l.b16 %v7191
  %v7327 = vunpack.c.l.b16 %v7192
  %v7328 = vunpack.c.l.b16 %v7193
  %v7329 = vunpack.c.l.b16 %v7194
  %v7330 = vunpack.c.l.b16 %v7195
  %v7331 = vunpack.c.l.b16 %v7196
  %v7332 = vunpack.c.l.b16 %v7197
  %v7333 = vunpack.c.l.b16 %v7198
  %v7334 = vunpack.c.l.b16 %v7199
  %v7335 = vunpack.c.l.b16 %v7200
  %v7336 = vunpack.c.l.b16 %v7201
  %v7337 = vunpack.c.l.b16 %v7202
  %v7338 = vunpack.c.l.b16 %v7203
  %v7339 = vunpack.c.l.b16 %v7204
  %v7340 = vunpack.c.l.b16 %v7205
  %v7341 = vunpack.c.l.b16 %v7206
  %v7342 = vunpack.c.l.b16 %v7207
  %v7343 = vunpack.c.l.b16 %v7208
  %v7344 = vunpack.c.l.b16 %v7209
  %v7345 = vunpack.c.l.b16 %v7210
  %v7346 = vunpack.c.l.b16 %v7211
  %v7347 = vunpack.c.l.b16 %v7212
  %v7348 = vunpack.c.l.b16 %v7213
  %v7349 = vunpack.c.l.b16 %v7214
  %v7350 = vunpack.c.l.b16 %v7215
  %v7351 = vunpack.c.l.b16 %v7216
  %v7352 = vunpack.c.l.b16 %v7217
  %v7353 = vunpack.c.l.b16 %v7218
  %v7354 = vpack.c.b16 %v7291, %v7290
  %v7355 = vpack.c.b16 %v7293, %v7292
  %v7356 = vpack.c.b16 %v7295, %v7294
  %v7357 = vpack.c.b16 %v7297, %v7296
  %v7358 = vpack.c.b16 %v7299, %v7298
  %v7359 = vpack.c.b16 %v7301, %v7300
  %v7360 = vpack.c.b16 %v7303, %v7302
  %v7361 = vpack.c.b16 %v7305, %v7304
  %v7362 = vpack.c.b16 %v7307, %v7306
  %v7363 = vpack.c.b16 %v7309, %v7308
  %v7364 = vpack.c.b16 %v7311, %v7310
  %v7365 = vpack.c.b16 %v7313, %v7312
  %v7366 = vpack.c.b16 %v7315, %v7314
  %v7367 = vpack.c.b16 %v7317, %v7316
  %v7368 = vpack.c.b16 %v7319, %v7318
  %v7369 = vpack.c.b16 %v7321, %v7320
  %v7370 = vpack.c.b16 %v7323, %v7322
  %v7371 = vpack.c.b16 %v7325, %v7324
  %v7372 = vpack.c.b16 %v7327, %v7326
  %v7373 = vpack.c.b16 %v7329, %v7328
  %v7374 = vpack.c.b16 %v7331, %v7330
  %v7375 = vpack.c.b16 %v7333, %v7332
  %v7376 = vpack.c.b16 %v7335, %v7334
  %v7377 = vpack.c.b16 %v7337, %v7336
  %v7378 = vpack.c.b16 %v7339, %v7338
  %v7379 = vpack.c.b16 %v7341, %v7340
  %v7380 = vpack.c.b16 %v7343, %v7342
  %v7381 = vpack.c.b16 %v7345, %v7344
  %v7382 = vpack.c.b16 %v7347, %v7346
  %v7383 = vpack.c.b16 %v7349, %v7348
  %v7384 = vpack.c.b16 %v7351, %v7350
  %v7385 = vpack.c.b16 %v7353, %v7352
  %7418 = vmatprep.subr.bf16.mxu0 0
  %7419 = vmatpush1.bf16.msra.mxu0 %v7361
  %7420 = vmatprep.subr.bf16.mxu0 0
  %7421 = vmatpush1.bf16.msra.mxu0 %v7360
  %7422 = vmatprep.subr.bf16.mxu0 0
  %7423 = vmatpush1.bf16.msra.mxu0 %v7359
  %7424 = vmatprep.subr.bf16.mxu0 0
  %7425 = vmatpush1.bf16.msra.mxu0 %v7358
  %7426 = vmatprep.subr.bf16.mxu0 0
  %7427 = vmatpush1.bf16.msra.mxu0 %v7357
  %7428 = vmatprep.subr.bf16.mxu0 0
  %7429 = vmatpush1.bf16.msra.mxu0 %v7356
  %7430 = vmatprep.subr.bf16.mxu0 0
  %7431 = vmatpush1.bf16.msra.mxu0 %v7355
  %7432 = vmatprep.subr.bf16.mxu0 0
  %7433 = vmatpush1.bf16.msra.mxu0 %v7354
  %7434 = vmatprep.subr.bf16.mxu0 0
  %7435 = vmatpush2.bf16.msra.mxu0 %v7369
  %7436 = vmatprep.subr.bf16.mxu0 0
  %7437 = vmatpush2.bf16.msra.mxu0 %v7368
  %7438 = vmatprep.subr.bf16.mxu0 0
  %7439 = vmatpush2.bf16.msra.mxu0 %v7367
  %7440 = vmatprep.subr.bf16.mxu0 0
  %7441 = vmatpush2.bf16.msra.mxu0 %v7366
  %7442 = vmatprep.subr.bf16.mxu0 0
  %7443 = vmatpush2.bf16.msra.mxu0 %v7365
  %7444 = vmatprep.subr.bf16.mxu0 0
  %7445 = vmatpush2.bf16.msra.mxu0 %v7364
  %7446 = vmatprep.subr.bf16.mxu0 0
  %7447 = vmatpush2.bf16.msra.mxu0 %v7363
  %7448 = vmatprep.subr.bf16.mxu0 0
  %7449 = vmatpush2.bf16.msra.mxu0 %v7362
  %7450 = vmatprep.mubr.bf16.mxu0 %v7152
  %7451 = vmatmul.mubr.bf16.gmra.mxu0 %v7151
  %v7452 = vpop.f32.mrf.mxu0
  %v7453 = vadd.f32 %v7224, %v7452
  %v7454 = vpop.f32.mrf.mxu0
  %v7455 = vpop.f32.mrf.mxu0
  %v7456 = vadd.f32 %v7224, %v7455
  %v7457 = vpop.f32.mrf.mxu0
  %7458 = vdwg.mxu0
  %7459 = vmatprep.subr.bf16.mxu0 0
  %7460 = vmatpush1.bf16.msra.mxu0 %v7377
  %7461 = vmatprep.subr.bf16.mxu0 0
  %7462 = vmatpush1.bf16.msra.mxu0 %v7376
  %7463 = vmatprep.subr.bf16.mxu0 0
  %7464 = vmatpush1.bf16.msra.mxu0 %v7375
  %7465 = vmatprep.subr.bf16.mxu0 0
  %7466 = vmatpush1.bf16.msra.mxu0 %v7374
  %7467 = vmatprep.subr.bf16.mxu0 0
  %7468 = vmatpush1.bf16.msra.mxu0 %v7373
  %7469 = vmatprep.subr.bf16.mxu0 0
  %7470 = vmatpush1.bf16.msra.mxu0 %v7372
  %7471 = vmatprep.subr.bf16.mxu0 0
  %7472 = vmatpush1.bf16.msra.mxu0 %v7371
  %7473 = vmatprep.subr.bf16.mxu0 0
  %7474 = vmatpush1.bf16.msra.mxu0 %v7370
  %7475 = vmatprep.subr.bf16.mxu0 0
  %7476 = vmatpush2.bf16.msra.mxu0 %v7385
  %7477 = vmatprep.subr.bf16.mxu0 0
  %7478 = vmatpush2.bf16.msra.mxu0 %v7384
  %7479 = vmatprep.subr.bf16.mxu0 0
  %7480 = vmatpush2.bf16.msra.mxu0 %v7383
  %7481 = vmatprep.subr.bf16.mxu0 0
  %7482 = vmatpush2.bf16.msra.mxu0 %v7382
  %7483 = vmatprep.subr.bf16.mxu0 0
  %7484 = vmatpush2.bf16.msra.mxu0 %v7381
  %7485 = vmatprep.subr.bf16.mxu0 0
  %7486 = vmatpush2.bf16.msra.mxu0 %v7380
  %7487 = vmatprep.subr.bf16.mxu0 0
  %7488 = vmatpush2.bf16.msra.mxu0 %v7379
  %7489 = vmatprep.subr.bf16.mxu0 0
  %7490 = vmatpush2.bf16.msra.mxu0 %v7378
  %7491 = vmatprep.mubr.bf16.mxu0 %v7154
  %7492 = vmatmul.mubr.bf16.gmra.mxu0 %v7153
  %v7493 = vpop.f32.mrf.mxu0
  %v7494 = vadd.f32 %v7453, %v7493
  %v7495 = vpop.f32.mrf.mxu0
  %v7496 = vpop.f32.mrf.mxu0
  %v7497 = vadd.f32 %v7456, %v7496
  %v7498 = vpop.f32.mrf.mxu0
  %7499 = vdwg.mxu0
  %7500 = vst [vmem:[%s9] sm:$0xff] %v7494
  %7501 = vst [vmem:[%s9 + $0x8] sm:$0xff] %v7497
  // Predicated region
  $region38: #{cnn_reward_forward.7} parent=0 // pred_check
    _
  $region39: #{cnn_reward_forward.7} parent=0 // pred_check_branch
    %7503 = sbr.rel (0) target = $region41
  $region40: #{cnn_reward_forward.7} parent=0 // pred_region
    _
  $region41: #{cnn_reward_forward.7} parent=0 // pred_fallthru
    _
  // Predicated region
  $region42: #{cnn_reward_forward.7} parent=0 // pred_check
    _
  $region43: #{cnn_reward_forward.7} parent=0 // pred_check_branch
    %7505 = sbr.rel (0) target = $region45
  $region44: #{cnn_reward_forward.7} parent=0 // pred_region
    _
  $region45: #{cnn_reward_forward.7} parent=0 // pred_fallthru
    _

</llo_original>
